<compile_context>
chip_gen: v7x
topology: tpu7x:2x2x1
jax: 0.10.0
libtpu: 0.0.40
codegen_flags: <defaults>
</compile_context>

<pallas_src>
import functools

import jax
import jax.numpy as jnp
from jax.experimental import pallas as pl
from jax.experimental.pallas import tpu as pltpu

EPS = 1e-5


# ---------------------------------------------------------------------------
# Kernel helpers
# ---------------------------------------------------------------------------
def _conv3x3_flat(src_ref, w_ref, *, H, W, C, d):
    """3x3 (dilated) conv as 9 flat MXU GEMMs, f32 accumulation.

    src_ref: (Hp, Wp, C) reflection-padded activation (Hp = H + 2d, Wp = W + 2d)
    w_ref:   (9, C, C)   tap-major (3*ky + kx) weights, laid out (C_in, C_out)
    returns: (H*W, C) float32
    """
    acc = None
    for kx in range(3):
        # One column-shifted, width-W flat canvas per kx.  This is the only
        # sublane-unaligned access (start = kx*d); every per-tap ky shift
        # below is a row offset of ky*d*W (sublane-aligned when W % 8 == 0),
        # so each tap is a single (H*W, C) @ (C, C) GEMM.
        canvas = src_ref[:, kx * d:kx * d + W, :].reshape(-1, C)    # (Hp*W, C)
        for ky in range(3):
            start = ky * d * W
            term = jnp.dot(canvas[start:start + H * W, :],
                           w_ref[3 * ky + kx],
                           preferred_element_type=jnp.float32)
            acc = term if acc is None else acc + term
    return acc                                                      # f32


def _instance_norm_flat(y, inv_n):
    """Per-channel (lane dim) InstanceNorm over the flat spatial axis, f32."""
    s = jnp.sum(y, axis=0, keepdims=True)
    ss = jnp.sum(y * y, axis=0, keepdims=True)
    mean = s * inv_n
    var = jnp.maximum(ss * inv_n - mean * mean, 0.0)
    return (y - mean) * jax.lax.rsqrt(var + EPS)


# ---------------------------------------------------------------------------
# Fused kernel: conv3x3(dil) -> IN -> ReLU -> reflpad -> conv3x3 -> IN -> +x
# ---------------------------------------------------------------------------
def _resnet_block_kernel(xp_ref, xres_ref, w1_ref, w2_ref, out_ref, hpad_ref,
                         *, H, W, C, d):
    # xp_ref:   (H+2d, W+2d, C) reflection-padded input (compute dtype)
    # xres_ref: (H*W, C)        flat residual input (original dtype, f32)
    # w*_ref:   (9, C, C)       tap-major conv weights (compute dtype)
    # out_ref:  (H*W, C)
    # hpad_ref: (H+2, W+2, C)   VMEM canvas for the stage-2 reflection pad
    inv_n = 1.0 / float(H * W)

    # ---- stage 1: Conv(dil=d) -> InstanceNorm -> ReLU ----------------------
    y1 = _conv3x3_flat(xp_ref, w1_ref, H=H, W=W, C=C, d=d)
    h = jnp.maximum(_instance_norm_flat(y1, inv_n), 0.0)

    # ---- in-VMEM ReflectionPad2d(1) of the hidden activation ---------------
    h3 = h.reshape(H, W, C).astype(hpad_ref.dtype)
    hpad_ref[1:H + 1, 1:W + 1, :] = h3
    hpad_ref[1:H + 1, 0:1, :] = h3[:, 1:2, :]
    hpad_ref[1:H + 1, W + 1:W + 2, :] = h3[:, W - 2:W - 1, :]
    hpad_ref[0:1, :, :] = hpad_ref[2:3, :, :]
    hpad_ref[H + 1:H + 2, :, :] = hpad_ref[H - 1:H, :, :]

    # ---- stage 2: Conv(dil=1) -> InstanceNorm -> residual add --------------
    y2 = _instance_norm_flat(
        _conv3x3_flat(hpad_ref, w2_ref, H=H, W=W, C=C, d=1), inv_n)
    out_ref[...] = (xres_ref[...].astype(jnp.float32) + y2).astype(out_ref.dtype)


# ---------------------------------------------------------------------------
# Wrapper
# ---------------------------------------------------------------------------
def _vmem_bytes_estimate(H, W, C, d, csize):
    f32 = 4
    Hp, Wp = H + 2 * d, W + 2 * d
    xp_blk = Hp * Wp * C * csize
    res_blk = H * W * C * f32
    out_blk = H * W * C * f32
    w_blk = 9 * C * C * csize
    hpad = (H + 2) * (W + 2) * C * csize
    pipeline = 2 * (xp_blk + res_blk + out_blk) + 2 * 2 * w_blk   # double-buffered
    temps = Hp * W * C * csize + 3 * H * W * C * f32              # canvas + f32 slabs
    return pipeline + hpad + temps


def resnet_block_pallas(x, w1, b1, w2, b2, dilation=1,
                        compute_dtype=jnp.bfloat16):
    """out = x + conv_block(x), matching the PyTorch ResnetBlock forward.

    x: (B, C, H, W).  b1/b2 are accepted for parity with the PyTorch module
    but unused: each conv feeds InstanceNorm2d(affine=False), which is exactly
    invariant to a per-channel constant shift, so the bias cancels.

    compute_dtype affects only the conv/matmul operands (accumulation and all
    InstanceNorm math are f32).  bf16 (default) is MXU-native on v5e/v6e/v7x
    and halves activation/weight DMA + VMEM; pass jnp.float32 for strict
    parity with an f32 reference.
    """
    del b1, b2
    B, C, H, W = x.shape
    d = int(dilation)
    Hp, Wp = H + 2 * d, W + 2 * d
    cdt = jnp.dtype(x.dtype if compute_dtype is None else compute_dtype)

    # Host-side glue is layout only (no im2col): NCHW -> NHWC, reflection pad
    # of the input, flat residual copy, tap-major weights.
    x_nhwc = jnp.transpose(x, (0, 2, 3, 1))                        # (B, H, W, C)
    xp = jnp.pad(x_nhwc, ((0, 0), (d, d), (d, d), (0, 0)),
                 mode="reflect").astype(cdt)                       # (B, Hp, Wp, C)
    xres = x_nhwc.reshape(B, H * W, C)                             # residual, x.dtype
    w1f = jnp.transpose(w1, (2, 3, 1, 0)).reshape(9, C, C).astype(cdt)
    w2f = jnp.transpose(w2, (2, 3, 1, 0)).reshape(9, C, C).astype(cdt)

    est = _vmem_bytes_estimate(H, W, C, d, cdt.itemsize)
    vmem_limit = int(min(max(int(1.5 * est), 32 * 1024 * 1024),
                         64 * 1024 * 1024))

    kernel = functools.partial(_resnet_block_kernel, H=H, W=W, C=C, d=d)
    out = pl.pallas_call(
        kernel,
        out_shape=jax.ShapeDtypeStruct((B, H * W, C), x.dtype),
        grid_spec=pltpu.PrefetchScalarGridSpec(
            num_scalar_prefetch=0,
            grid=(B,),
            in_specs=[
                pl.BlockSpec((None, Hp, Wp, C), lambda b: (b, 0, 0, 0)),
                pl.BlockSpec((None, H * W, C), lambda b: (b, 0, 0)),
                # Constant block index -> the pipeline DMAs the weights once.
                # TODO(synk): single-buffer them (pl.Buffered(1) / manual DMA)
                # to drop the redundant second weight buffer at large C.
                pl.BlockSpec((9, C, C), lambda b: (0, 0, 0)),
                pl.BlockSpec((9, C, C), lambda b: (0, 0, 0)),
            ],
            out_specs=pl.BlockSpec((None, H * W, C), lambda b: (b, 0, 0)),
            scratch_shapes=[pltpu.VMEM((H + 2, W + 2, C), cdt)],
        ),
        compiler_params=pltpu.CompilerParams(
            dimension_semantics=("parallel",),
            vmem_limit_bytes=vmem_limit),
    )(xp, xres, w1f, w2f)

    return jnp.transpose(out.reshape(B, H, W, C), (0, 3, 1, 2))    # back to NCHW


# ---------------------------------------------------------------------------
# Pure-JAX reference (faithful to the PyTorch module, incl. bias)
# ---------------------------------------------------------------------------
def resnet_block_ref(x, w1, b1, w2, b2, dilation=1):
    def conv(z, w, b, d):
        zp = jnp.pad(z, ((0, 0), (0, 0), (d, d), (d, d)), mode="reflect")
        y = jax.lax.conv_general_dilated(
            zp, w, window_strides=(1, 1), padding="VALID",
            rhs_dilation=(d, d),
            dimension_numbers=("NCHW", "OIHW", "NCHW"))
        return y + b[None, :, None, None]

    def inorm(y):
        m = jnp.mean(y, axis=(2, 3), keepdims=True)
        v = jnp.mean((y - m) ** 2, axis=(2, 3), keepdims=True)
        return (y - m) * jax.lax.rsqrt(v + EPS)

    h = jax.nn.relu(inorm(conv(x, w1, b1, dilation)))
    return x + inorm(conv(h, w2, b2, 1))


# ---------------------------------------------------------------------------
if __name__ == "__main__":
    B, C, H, W = 2, 4, 16, 16

    key = jax.random.PRNGKey(0)
    k_x, k_w1, k_b1, k_w2, k_b2 = jax.random.split(key, 5)

    x = jax.random.normal(k_x, (B, C, H, W), dtype=jnp.float32)
    w1 = 0.1 * jax.random.normal(k_w1, (C, C, 3, 3), dtype=jnp.float32)
    b1 = 0.1 * jax.random.normal(k_b1, (C,), dtype=jnp.float32)
    w2 = 0.1 * jax.random.normal(k_w2, (C, C, 3, 3), dtype=jnp.float32)
    b2 = 0.1 * jax.random.normal(k_b2, (C,), dtype=jnp.float32)

    run = jax.jit(resnet_block_pallas,
                  static_argnames=("dilation", "compute_dtype"))

    for dil in (1, 2):
        ref = resnet_block_ref(x, w1, b1, w2, b2, dilation=dil)

        # Strict check with f32 matmul operands.
        out_f32 = jax.block_until_ready(
            run(x, w1, b1, w2, b2, dilation=dil, compute_dtype=jnp.float32))
        assert out_f32.shape == (B, C, H, W)
        err32 = float(jnp.max(jnp.abs(out_f32 - ref)))
        assert jnp.allclose(out_f32, ref, atol=1e-4, rtol=1e-4), (dil, err32)

        # Default mixed precision (bf16 operands, f32 accumulate / IN math).
        out_bf = jax.block_until_ready(run(x, w1, b1, w2, b2, dilation=dil))
        assert out_bf.shape == (B, C, H, W)
        errbf = float(jnp.max(jnp.abs(out_bf - ref)))
        assert errbf < 0.3, (dil, errbf)

    print("KERNEL_OK")
</pallas_src>

<mosaic_0001>
module attributes {stable_mosaic.version = 11 : i64} {
  func.func @_resnet_block_kernel(%arg0: i32, %arg1: memref<1x18x18x4xf32, #tpu.memory_space<vmem>>, %arg2: memref<1x256x4xf32, #tpu.memory_space<vmem>>, %arg3: memref<9x4x4xf32, #tpu.memory_space<vmem>>, %arg4: memref<9x4x4xf32, #tpu.memory_space<vmem>>, %arg5: memref<1x256x4xf32, #tpu.memory_space<vmem>>, %arg6: memref<18x18x4xf32, #tpu.memory_space<vmem>>) attributes {dimension_semantics = [#tpu.dimension_semantics<parallel>], iteration_bounds = array<i64: 2>, scalar_prefetch = 0 : i64, scratch_operands = 1 : i64, tpu.core_type = #tpu.core_type<tc>, window_params = [{transform_indices = @transform_0, window_bounds = array<i64: 1, 18, 18, 4>}, {transform_indices = @transform_1, window_bounds = array<i64: 1, 256, 4>}, {pipeline_mode = #tpu.pipeline_mode<synchronous>, transform_indices = @transform_2, window_bounds = array<i64: 9, 4, 4>}, {pipeline_mode = #tpu.pipeline_mode<synchronous>, transform_indices = @transform_3, window_bounds = array<i64: 9, 4, 4>}, {transform_indices = @transform_4, window_bounds = array<i64: 1, 256, 4>}]} {
    %c0 = arith.constant 0 : index
    %c0_0 = arith.constant 0 : index
    %c0_1 = arith.constant 0 : index
    %c0_2 = arith.constant 0 : index
    %0 = vector.load %arg1[%c0, %c0_0, %c0_1, %c0_2] : memref<1x18x18x4xf32, #tpu.memory_space<vmem>>, vector<1x18x16x4xf32>
    %1 = vector.shape_cast %0 : vector<1x18x16x4xf32> to vector<18x16x4xf32>
    %2 = vector.shape_cast %1 : vector<18x16x4xf32> to vector<288x4xf32>
    %3 = vector.extract_strided_slice %2 {offsets = [0, 0], sizes = [256, 4], strides = [1, 1]} : vector<288x4xf32> to vector<256x4xf32>
    %c0_3 = arith.constant 0 : index
    %c0_4 = arith.constant 0 : index
    %c0_5 = arith.constant 0 : index
    %4 = vector.load %arg3[%c0_3, %c0_4, %c0_5] : memref<9x4x4xf32, #tpu.memory_space<vmem>>, vector<1x4x4xf32>
    %5 = vector.shape_cast %4 : vector<1x4x4xf32> to vector<4x4xf32>
    %cst = arith.constant dense<0.000000e+00> : vector<256x4xf32>
    %6 = tpu.matmul %3, %5, %cst {dimension_numbers = #tpu.dot_dimension_numbers<[1], [0], [0], [1], [0, 0, 1, 1], [], []>} : vector<256x4xf32>, vector<4x4xf32>, vector<256x4xf32> -> vector<256x4xf32>
    %7 = vector.extract_strided_slice %2 {offsets = [16, 0], sizes = [256, 4], strides = [1, 1]} : vector<288x4xf32> to vector<256x4xf32>
    %c3 = arith.constant 3 : index
    %c0_6 = arith.constant 0 : index
    %c0_7 = arith.constant 0 : index
    %8 = vector.load %arg3[%c3, %c0_6, %c0_7] : memref<9x4x4xf32, #tpu.memory_space<vmem>>, vector<1x4x4xf32>
    %9 = vector.shape_cast %8 : vector<1x4x4xf32> to vector<4x4xf32>
    %cst_8 = arith.constant dense<0.000000e+00> : vector<256x4xf32>
    %10 = tpu.matmul %7, %9, %cst_8 {dimension_numbers = #tpu.dot_dimension_numbers<[1], [0], [0], [1], [0, 0, 1, 1], [], []>} : vector<256x4xf32>, vector<4x4xf32>, vector<256x4xf32> -> vector<256x4xf32>
    %11 = arith.addf %6, %10 : vector<256x4xf32>
    %12 = vector.extract_strided_slice %2 {offsets = [32, 0], sizes = [256, 4], strides = [1, 1]} : vector<288x4xf32> to vector<256x4xf32>
    %c6 = arith.constant 6 : index
    %c0_9 = arith.constant 0 : index
    %c0_10 = arith.constant 0 : index
    %13 = vector.load %arg3[%c6, %c0_9, %c0_10] : memref<9x4x4xf32, #tpu.memory_space<vmem>>, vector<1x4x4xf32>
    %14 = vector.shape_cast %13 : vector<1x4x4xf32> to vector<4x4xf32>
    %cst_11 = arith.constant dense<0.000000e+00> : vector<256x4xf32>
    %15 = tpu.matmul %12, %14, %cst_11 {dimension_numbers = #tpu.dot_dimension_numbers<[1], [0], [0], [1], [0, 0, 1, 1], [], []>} : vector<256x4xf32>, vector<4x4xf32>, vector<256x4xf32> -> vector<256x4xf32>
    %16 = arith.addf %11, %15 : vector<256x4xf32>
    %c0_12 = arith.constant 0 : index
    %c0_13 = arith.constant 0 : index
    %c1 = arith.constant 1 : index
    %c0_14 = arith.constant 0 : index
    %17 = vector.load %arg1[%c0_12, %c0_13, %c1, %c0_14] : memref<1x18x18x4xf32, #tpu.memory_space<vmem>>, vector<1x18x16x4xf32>
    %18 = vector.shape_cast %17 : vector<1x18x16x4xf32> to vector<18x16x4xf32>
    %19 = vector.shape_cast %18 : vector<18x16x4xf32> to vector<288x4xf32>
    %20 = vector.extract_strided_slice %19 {offsets = [0, 0], sizes = [256, 4], strides = [1, 1]} : vector<288x4xf32> to vector<256x4xf32>
    %c1_15 = arith.constant 1 : index
    %c0_16 = arith.constant 0 : index
    %c0_17 = arith.constant 0 : index
    %21 = vector.load %arg3[%c1_15, %c0_16, %c0_17] : memref<9x4x4xf32, #tpu.memory_space<vmem>>, vector<1x4x4xf32>
    %22 = vector.shape_cast %21 : vector<1x4x4xf32> to vector<4x4xf32>
    %cst_18 = arith.constant dense<0.000000e+00> : vector<256x4xf32>
    %23 = tpu.matmul %20, %22, %cst_18 {dimension_numbers = #tpu.dot_dimension_numbers<[1], [0], [0], [1], [0, 0, 1, 1], [], []>} : vector<256x4xf32>, vector<4x4xf32>, vector<256x4xf32> -> vector<256x4xf32>
    %24 = arith.addf %16, %23 : vector<256x4xf32>
    %25 = vector.extract_strided_slice %19 {offsets = [16, 0], sizes = [256, 4], strides = [1, 1]} : vector<288x4xf32> to vector<256x4xf32>
    %c4 = arith.constant 4 : index
    %c0_19 = arith.constant 0 : index
    %c0_20 = arith.constant 0 : index
    %26 = vector.load %arg3[%c4, %c0_19, %c0_20] : memref<9x4x4xf32, #tpu.memory_space<vmem>>, vector<1x4x4xf32>
    %27 = vector.shape_cast %26 : vector<1x4x4xf32> to vector<4x4xf32>
    %cst_21 = arith.constant dense<0.000000e+00> : vector<256x4xf32>
    %28 = tpu.matmul %25, %27, %cst_21 {dimension_numbers = #tpu.dot_dimension_numbers<[1], [0], [0], [1], [0, 0, 1, 1], [], []>} : vector<256x4xf32>, vector<4x4xf32>, vector<256x4xf32> -> vector<256x4xf32>
    %29 = arith.addf %24, %28 : vector<256x4xf32>
    %30 = vector.extract_strided_slice %19 {offsets = [32, 0], sizes = [256, 4], strides = [1, 1]} : vector<288x4xf32> to vector<256x4xf32>
    %c7 = arith.constant 7 : index
    %c0_22 = arith.constant 0 : index
    %c0_23 = arith.constant 0 : index
    %31 = vector.load %arg3[%c7, %c0_22, %c0_23] : memref<9x4x4xf32, #tpu.memory_space<vmem>>, vector<1x4x4xf32>
    %32 = vector.shape_cast %31 : vector<1x4x4xf32> to vector<4x4xf32>
    %cst_24 = arith.constant dense<0.000000e+00> : vector<256x4xf32>
    %33 = tpu.matmul %30, %32, %cst_24 {dimension_numbers = #tpu.dot_dimension_numbers<[1], [0], [0], [1], [0, 0, 1, 1], [], []>} : vector<256x4xf32>, vector<4x4xf32>, vector<256x4xf32> -> vector<256x4xf32>
    %34 = arith.addf %29, %33 : vector<256x4xf32>
    %c0_25 = arith.constant 0 : index
    %c0_26 = arith.constant 0 : index
    %c2 = arith.constant 2 : index
    %c0_27 = arith.constant 0 : index
    %35 = vector.load %arg1[%c0_25, %c0_26, %c2, %c0_27] : memref<1x18x18x4xf32, #tpu.memory_space<vmem>>, vector<1x18x16x4xf32>
    %36 = vector.shape_cast %35 : vector<1x18x16x4xf32> to vector<18x16x4xf32>
    %37 = vector.shape_cast %36 : vector<18x16x4xf32> to vector<288x4xf32>
    %38 = vector.extract_strided_slice %37 {offsets = [0, 0], sizes = [256, 4], strides = [1, 1]} : vector<288x4xf32> to vector<256x4xf32>
    %c2_28 = arith.constant 2 : index
    %c0_29 = arith.constant 0 : index
    %c0_30 = arith.constant 0 : index
    %39 = vector.load %arg3[%c2_28, %c0_29, %c0_30] : memref<9x4x4xf32, #tpu.memory_space<vmem>>, vector<1x4x4xf32>
    %40 = vector.shape_cast %39 : vector<1x4x4xf32> to vector<4x4xf32>
    %cst_31 = arith.constant dense<0.000000e+00> : vector<256x4xf32>
    %41 = tpu.matmul %38, %40, %cst_31 {dimension_numbers = #tpu.dot_dimension_numbers<[1], [0], [0], [1], [0, 0, 1, 1], [], []>} : vector<256x4xf32>, vector<4x4xf32>, vector<256x4xf32> -> vector<256x4xf32>
    %42 = arith.addf %34, %41 : vector<256x4xf32>
    %43 = vector.extract_strided_slice %37 {offsets = [16, 0], sizes = [256, 4], strides = [1, 1]} : vector<288x4xf32> to vector<256x4xf32>
    %c5 = arith.constant 5 : index
    %c0_32 = arith.constant 0 : index
    %c0_33 = arith.constant 0 : index
    %44 = vector.load %arg3[%c5, %c0_32, %c0_33] : memref<9x4x4xf32, #tpu.memory_space<vmem>>, vector<1x4x4xf32>
    %45 = vector.shape_cast %44 : vector<1x4x4xf32> to vector<4x4xf32>
    %cst_34 = arith.constant dense<0.000000e+00> : vector<256x4xf32>
    %46 = tpu.matmul %43, %45, %cst_34 {dimension_numbers = #tpu.dot_dimension_numbers<[1], [0], [0], [1], [0, 0, 1, 1], [], []>} : vector<256x4xf32>, vector<4x4xf32>, vector<256x4xf32> -> vector<256x4xf32>
    %47 = arith.addf %42, %46 : vector<256x4xf32>
    %48 = vector.extract_strided_slice %37 {offsets = [32, 0], sizes = [256, 4], strides = [1, 1]} : vector<288x4xf32> to vector<256x4xf32>
    %c8 = arith.constant 8 : index
    %c0_35 = arith.constant 0 : index
    %c0_36 = arith.constant 0 : index
    %49 = vector.load %arg3[%c8, %c0_35, %c0_36] : memref<9x4x4xf32, #tpu.memory_space<vmem>>, vector<1x4x4xf32>
    %50 = vector.shape_cast %49 : vector<1x4x4xf32> to vector<4x4xf32>
    %cst_37 = arith.constant dense<0.000000e+00> : vector<256x4xf32>
    %51 = tpu.matmul %48, %50, %cst_37 {dimension_numbers = #tpu.dot_dimension_numbers<[1], [0], [0], [1], [0, 0, 1, 1], [], []>} : vector<256x4xf32>, vector<4x4xf32>, vector<256x4xf32> -> vector<256x4xf32>
    %52 = arith.addf %47, %51 : vector<256x4xf32>
    %cst_38 = arith.constant dense<0.000000e+00> : vector<4xf32>
    %53 = vector.multi_reduction <add>, %52, %cst_38 [0] : vector<256x4xf32> to vector<4xf32>
    %54 = vector.shape_cast %53 : vector<4xf32> to vector<1x4xf32>
    %55 = arith.mulf %52, %52 : vector<256x4xf32>
    %cst_39 = arith.constant dense<0.000000e+00> : vector<4xf32>
    %56 = vector.multi_reduction <add>, %55, %cst_39 [0] : vector<256x4xf32> to vector<4xf32>
    %57 = vector.shape_cast %56 : vector<4xf32> to vector<1x4xf32>
    %cst_40 = arith.constant 3.906250e-03 : f32
    %58 = vector.broadcast %cst_40 : f32 to vector<1x4xf32>
    %59 = arith.mulf %54, %58 : vector<1x4xf32>
    %cst_41 = arith.constant 3.906250e-03 : f32
    %60 = vector.broadcast %cst_41 : f32 to vector<1x4xf32>
    %61 = arith.mulf %57, %60 : vector<1x4xf32>
    %62 = arith.mulf %59, %59 : vector<1x4xf32>
    %63 = arith.subf %61, %62 : vector<1x4xf32>
    %cst_42 = arith.constant 0.000000e+00 : f32
    %64 = vector.broadcast %cst_42 : f32 to vector<1x4xf32>
    %65 = arith.maximumf %63, %64 : vector<1x4xf32>
    %66 = vector.broadcast %59 : vector<1x4xf32> to vector<256x4xf32>
    %67 = arith.subf %52, %66 : vector<256x4xf32>
    %cst_43 = arith.constant 9.99999974E-6 : f32
    %68 = vector.broadcast %cst_43 : f32 to vector<1x4xf32>
    %69 = arith.addf %65, %68 : vector<1x4xf32>
    %70 = math.rsqrt %69 : vector<1x4xf32>
    %71 = vector.broadcast %70 : vector<1x4xf32> to vector<256x4xf32>
    %72 = arith.mulf %67, %71 : vector<256x4xf32>
    %cst_44 = arith.constant 0.000000e+00 : f32
    %73 = vector.broadcast %cst_44 : f32 to vector<256x4xf32>
    %74 = arith.maximumf %72, %73 : vector<256x4xf32>
    %75 = vector.shape_cast %74 : vector<256x4xf32> to vector<16x16x4xf32>
    %c1_45 = arith.constant 1 : index
    %c1_46 = arith.constant 1 : index
    %c0_47 = arith.constant 0 : index
    %76 = vector.load %arg6[%c1_45, %c1_46, %c0_47] : memref<18x18x4xf32, #tpu.memory_space<vmem>>, vector<16x16x4xf32>
    tpu.vector_store %arg6[%c1_45, %c1_46, %c0_47], %75 {strides = array<i32>} : memref<18x18x4xf32, #tpu.memory_space<vmem>>, vector<16x16x4xf32>,
    %77 = vector.extract_strided_slice %75 {offsets = [0, 1, 0], sizes = [16, 1, 4], strides = [1, 1, 1]} : vector<16x16x4xf32> to vector<16x1x4xf32>
    %c1_48 = arith.constant 1 : index
    %c0_49 = arith.constant 0 : index
    %c0_50 = arith.constant 0 : index
    %78 = vector.load %arg6[%c1_48, %c0_49, %c0_50] : memref<18x18x4xf32, #tpu.memory_space<vmem>>, vector<16x1x4xf32>
    tpu.vector_store %arg6[%c1_48, %c0_49, %c0_50], %77 {strides = array<i32>} : memref<18x18x4xf32, #tpu.memory_space<vmem>>, vector<16x1x4xf32>,
    %79 = vector.extract_strided_slice %75 {offsets = [0, 14, 0], sizes = [16, 1, 4], strides = [1, 1, 1]} : vector<16x16x4xf32> to vector<16x1x4xf32>
    %c1_51 = arith.constant 1 : index
    %c17 = arith.constant 17 : index
    %c0_52 = arith.constant 0 : index
    %80 = vector.load %arg6[%c1_51, %c17, %c0_52] : memref<18x18x4xf32, #tpu.memory_space<vmem>>, vector<16x1x4xf32>
    tpu.vector_store %arg6[%c1_51, %c17, %c0_52], %79 {strides = array<i32>} : memref<18x18x4xf32, #tpu.memory_space<vmem>>, vector<16x1x4xf32>,
    %c2_53 = arith.constant 2 : index
    %c0_54 = arith.constant 0 : index
    %c0_55 = arith.constant 0 : index
    %81 = vector.load %arg6[%c2_53, %c0_54, %c0_55] : memref<18x18x4xf32, #tpu.memory_space<vmem>>, vector<1x18x4xf32>
    %c0_56 = arith.constant 0 : index
    %c0_57 = arith.constant 0 : index
    %c0_58 = arith.constant 0 : index
    %82 = vector.load %arg6[%c0_56, %c0_57, %c0_58] : memref<18x18x4xf32, #tpu.memory_space<vmem>>, vector<1x18x4xf32>
    tpu.vector_store %arg6[%c0_56, %c0_57, %c0_58], %81 {strides = array<i32>} : memref<18x18x4xf32, #tpu.memory_space<vmem>>, vector<1x18x4xf32>,
    %c15 = arith.constant 15 : index
    %c0_59 = arith.constant 0 : index
    %c0_60 = arith.constant 0 : index
    %83 = vector.load %arg6[%c15, %c0_59, %c0_60] : memref<18x18x4xf32, #tpu.memory_space<vmem>>, vector<1x18x4xf32>
    %c17_61 = arith.constant 17 : index
    %c0_62 = arith.constant 0 : index
    %c0_63 = arith.constant 0 : index
    %84 = vector.load %arg6[%c17_61, %c0_62, %c0_63] : memref<18x18x4xf32, #tpu.memory_space<vmem>>, vector<1x18x4xf32>
    tpu.vector_store %arg6[%c17_61, %c0_62, %c0_63], %83 {strides = array<i32>} : memref<18x18x4xf32, #tpu.memory_space<vmem>>, vector<1x18x4xf32>,
    %c0_64 = arith.constant 0 : index
    %c0_65 = arith.constant 0 : index
    %c0_66 = arith.constant 0 : index
    %85 = vector.load %arg6[%c0_64, %c0_65, %c0_66] : memref<18x18x4xf32, #tpu.memory_space<vmem>>, vector<18x16x4xf32>
    %86 = vector.shape_cast %85 : vector<18x16x4xf32> to vector<288x4xf32>
    %87 = vector.extract_strided_slice %86 {offsets = [0, 0], sizes = [256, 4], strides = [1, 1]} : vector<288x4xf32> to vector<256x4xf32>
    %c0_67 = arith.constant 0 : index
    %c0_68 = arith.constant 0 : index
    %c0_69 = arith.constant 0 : index
    %88 = vector.load %arg4[%c0_67, %c0_68, %c0_69] : memref<9x4x4xf32, #tpu.memory_space<vmem>>, vector<1x4x4xf32>
    %89 = vector.shape_cast %88 : vector<1x4x4xf32> to vector<4x4xf32>
    %cst_70 = arith.constant dense<0.000000e+00> : vector<256x4xf32>
    %90 = tpu.matmul %87, %89, %cst_70 {dimension_numbers = #tpu.dot_dimension_numbers<[1], [0], [0], [1], [0, 0, 1, 1], [], []>} : vector<256x4xf32>, vector<4x4xf32>, vector<256x4xf32> -> vector<256x4xf32>
    %91 = vector.extract_strided_slice %86 {offsets = [16, 0], sizes = [256, 4], strides = [1, 1]} : vector<288x4xf32> to vector<256x4xf32>
    %c3_71 = arith.constant 3 : index
    %c0_72 = arith.constant 0 : index
    %c0_73 = arith.constant 0 : index
    %92 = vector.load %arg4[%c3_71, %c0_72, %c0_73] : memref<9x4x4xf32, #tpu.memory_space<vmem>>, vector<1x4x4xf32>
    %93 = vector.shape_cast %92 : vector<1x4x4xf32> to vector<4x4xf32>
    %cst_74 = arith.constant dense<0.000000e+00> : vector<256x4xf32>
    %94 = tpu.matmul %91, %93, %cst_74 {dimension_numbers = #tpu.dot_dimension_numbers<[1], [0], [0], [1], [0, 0, 1, 1], [], []>} : vector<256x4xf32>, vector<4x4xf32>, vector<256x4xf32> -> vector<256x4xf32>
    %95 = arith.addf %90, %94 : vector<256x4xf32>
    %96 = vector.extract_strided_slice %86 {offsets = [32, 0], sizes = [256, 4], strides = [1, 1]} : vector<288x4xf32> to vector<256x4xf32>
    %c6_75 = arith.constant 6 : index
    %c0_76 = arith.constant 0 : index
    %c0_77 = arith.constant 0 : index
    %97 = vector.load %arg4[%c6_75, %c0_76, %c0_77] : memref<9x4x4xf32, #tpu.memory_space<vmem>>, vector<1x4x4xf32>
    %98 = vector.shape_cast %97 : vector<1x4x4xf32> to vector<4x4xf32>
    %cst_78 = arith.constant dense<0.000000e+00> : vector<256x4xf32>
    %99 = tpu.matmul %96, %98, %cst_78 {dimension_numbers = #tpu.dot_dimension_numbers<[1], [0], [0], [1], [0, 0, 1, 1], [], []>} : vector<256x4xf32>, vector<4x4xf32>, vector<256x4xf32> -> vector<256x4xf32>
    %100 = arith.addf %95, %99 : vector<256x4xf32>
    %c0_79 = arith.constant 0 : index
    %c1_80 = arith.constant 1 : index
    %c0_81 = arith.constant 0 : index
    %101 = vector.load %arg6[%c0_79, %c1_80, %c0_81] : memref<18x18x4xf32, #tpu.memory_space<vmem>>, vector<18x16x4xf32>
    %102 = vector.shape_cast %101 : vector<18x16x4xf32> to vector<288x4xf32>
    %103 = vector.extract_strided_slice %102 {offsets = [0, 0], sizes = [256, 4], strides = [1, 1]} : vector<288x4xf32> to vector<256x4xf32>
    %c1_82 = arith.constant 1 : index
    %c0_83 = arith.constant 0 : index
    %c0_84 = arith.constant 0 : index
    %104 = vector.load %arg4[%c1_82, %c0_83, %c0_84] : memref<9x4x4xf32, #tpu.memory_space<vmem>>, vector<1x4x4xf32>
    %105 = vector.shape_cast %104 : vector<1x4x4xf32> to vector<4x4xf32>
    %cst_85 = arith.constant dense<0.000000e+00> : vector<256x4xf32>
    %106 = tpu.matmul %103, %105, %cst_85 {dimension_numbers = #tpu.dot_dimension_numbers<[1], [0], [0], [1], [0, 0, 1, 1], [], []>} : vector<256x4xf32>, vector<4x4xf32>, vector<256x4xf32> -> vector<256x4xf32>
    %107 = arith.addf %100, %106 : vector<256x4xf32>
    %108 = vector.extract_strided_slice %102 {offsets = [16, 0], sizes = [256, 4], strides = [1, 1]} : vector<288x4xf32> to vector<256x4xf32>
    %c4_86 = arith.constant 4 : index
    %c0_87 = arith.constant 0 : index
    %c0_88 = arith.constant 0 : index
    %109 = vector.load %arg4[%c4_86, %c0_87, %c0_88] : memref<9x4x4xf32, #tpu.memory_space<vmem>>, vector<1x4x4xf32>
    %110 = vector.shape_cast %109 : vector<1x4x4xf32> to vector<4x4xf32>
    %cst_89 = arith.constant dense<0.000000e+00> : vector<256x4xf32>
    %111 = tpu.matmul %108, %110, %cst_89 {dimension_numbers = #tpu.dot_dimension_numbers<[1], [0], [0], [1], [0, 0, 1, 1], [], []>} : vector<256x4xf32>, vector<4x4xf32>, vector<256x4xf32> -> vector<256x4xf32>
    %112 = arith.addf %107, %111 : vector<256x4xf32>
    %113 = vector.extract_strided_slice %102 {offsets = [32, 0], sizes = [256, 4], strides = [1, 1]} : vector<288x4xf32> to vector<256x4xf32>
    %c7_90 = arith.constant 7 : index
    %c0_91 = arith.constant 0 : index
    %c0_92 = arith.constant 0 : index
    %114 = vector.load %arg4[%c7_90, %c0_91, %c0_92] : memref<9x4x4xf32, #tpu.memory_space<vmem>>, vector<1x4x4xf32>
    %115 = vector.shape_cast %114 : vector<1x4x4xf32> to vector<4x4xf32>
    %cst_93 = arith.constant dense<0.000000e+00> : vector<256x4xf32>
    %116 = tpu.matmul %113, %115, %cst_93 {dimension_numbers = #tpu.dot_dimension_numbers<[1], [0], [0], [1], [0, 0, 1, 1], [], []>} : vector<256x4xf32>, vector<4x4xf32>, vector<256x4xf32> -> vector<256x4xf32>
    %117 = arith.addf %112, %116 : vector<256x4xf32>
    %c0_94 = arith.constant 0 : index
    %c2_95 = arith.constant 2 : index
    %c0_96 = arith.constant 0 : index
    %118 = vector.load %arg6[%c0_94, %c2_95, %c0_96] : memref<18x18x4xf32, #tpu.memory_space<vmem>>, vector<18x16x4xf32>
    %119 = vector.shape_cast %118 : vector<18x16x4xf32> to vector<288x4xf32>
    %120 = vector.extract_strided_slice %119 {offsets = [0, 0], sizes = [256, 4], strides = [1, 1]} : vector<288x4xf32> to vector<256x4xf32>
    %c2_97 = arith.constant 2 : index
    %c0_98 = arith.constant 0 : index
    %c0_99 = arith.constant 0 : index
    %121 = vector.load %arg4[%c2_97, %c0_98, %c0_99] : memref<9x4x4xf32, #tpu.memory_space<vmem>>, vector<1x4x4xf32>
    %122 = vector.shape_cast %121 : vector<1x4x4xf32> to vector<4x4xf32>
    %cst_100 = arith.constant dense<0.000000e+00> : vector<256x4xf32>
    %123 = tpu.matmul %120, %122, %cst_100 {dimension_numbers = #tpu.dot_dimension_numbers<[1], [0], [0], [1], [0, 0, 1, 1], [], []>} : vector<256x4xf32>, vector<4x4xf32>, vector<256x4xf32> -> vector<256x4xf32>
    %124 = arith.addf %117, %123 : vector<256x4xf32>
    %125 = vector.extract_strided_slice %119 {offsets = [16, 0], sizes = [256, 4], strides = [1, 1]} : vector<288x4xf32> to vector<256x4xf32>
    %c5_101 = arith.constant 5 : index
    %c0_102 = arith.constant 0 : index
    %c0_103 = arith.constant 0 : index
    %126 = vector.load %arg4[%c5_101, %c0_102, %c0_103] : memref<9x4x4xf32, #tpu.memory_space<vmem>>, vector<1x4x4xf32>
    %127 = vector.shape_cast %126 : vector<1x4x4xf32> to vector<4x4xf32>
    %cst_104 = arith.constant dense<0.000000e+00> : vector<256x4xf32>
    %128 = tpu.matmul %125, %127, %cst_104 {dimension_numbers = #tpu.dot_dimension_numbers<[1], [0], [0], [1], [0, 0, 1, 1], [], []>} : vector<256x4xf32>, vector<4x4xf32>, vector<256x4xf32> -> vector<256x4xf32>
    %129 = arith.addf %124, %128 : vector<256x4xf32>
    %130 = vector.extract_strided_slice %119 {offsets = [32, 0], sizes = [256, 4], strides = [1, 1]} : vector<288x4xf32> to vector<256x4xf32>
    %c8_105 = arith.constant 8 : index
    %c0_106 = arith.constant 0 : index
    %c0_107 = arith.constant 0 : index
    %131 = vector.load %arg4[%c8_105, %c0_106, %c0_107] : memref<9x4x4xf32, #tpu.memory_space<vmem>>, vector<1x4x4xf32>
    %132 = vector.shape_cast %131 : vector<1x4x4xf32> to vector<4x4xf32>
    %cst_108 = arith.constant dense<0.000000e+00> : vector<256x4xf32>
    %133 = tpu.matmul %130, %132, %cst_108 {dimension_numbers = #tpu.dot_dimension_numbers<[1], [0], [0], [1], [0, 0, 1, 1], [], []>} : vector<256x4xf32>, vector<4x4xf32>, vector<256x4xf32> -> vector<256x4xf32>
    %134 = arith.addf %129, %133 : vector<256x4xf32>
    %cst_109 = arith.constant dense<0.000000e+00> : vector<4xf32>
    %135 = vector.multi_reduction <add>, %134, %cst_109 [0] : vector<256x4xf32> to vector<4xf32>
    %136 = vector.shape_cast %135 : vector<4xf32> to vector<1x4xf32>
    %137 = arith.mulf %134, %134 : vector<256x4xf32>
    %cst_110 = arith.constant dense<0.000000e+00> : vector<4xf32>
    %138 = vector.multi_reduction <add>, %137, %cst_110 [0] : vector<256x4xf32> to vector<4xf32>
    %139 = vector.shape_cast %138 : vector<4xf32> to vector<1x4xf32>
    %cst_111 = arith.constant 3.906250e-03 : f32
    %140 = vector.broadcast %cst_111 : f32 to vector<1x4xf32>
    %141 = arith.mulf %136, %140 : vector<1x4xf32>
    %cst_112 = arith.constant 3.906250e-03 : f32
    %142 = vector.broadcast %cst_112 : f32 to vector<1x4xf32>
    %143 = arith.mulf %139, %142 : vector<1x4xf32>
    %144 = arith.mulf %141, %141 : vector<1x4xf32>
    %145 = arith.subf %143, %144 : vector<1x4xf32>
    %cst_113 = arith.constant 0.000000e+00 : f32
    %146 = vector.broadcast %cst_113 : f32 to vector<1x4xf32>
    %147 = arith.maximumf %145, %146 : vector<1x4xf32>
    %148 = vector.broadcast %141 : vector<1x4xf32> to vector<256x4xf32>
    %149 = arith.subf %134, %148 : vector<256x4xf32>
    %cst_114 = arith.constant 9.99999974E-6 : f32
    %150 = vector.broadcast %cst_114 : f32 to vector<1x4xf32>
    %151 = arith.addf %147, %150 : vector<1x4xf32>
    %152 = math.rsqrt %151 : vector<1x4xf32>
    %153 = vector.broadcast %152 : vector<1x4xf32> to vector<256x4xf32>
    %154 = arith.mulf %149, %153 : vector<256x4xf32>
    %c0_115 = arith.constant 0 : index
    %c0_116 = arith.constant 0 : index
    %c0_117 = arith.constant 0 : index
    %155 = vector.load %arg2[%c0_115, %c0_116, %c0_117] : memref<1x256x4xf32, #tpu.memory_space<vmem>>, vector<1x256x4xf32>
    %156 = vector.shape_cast %155 : vector<1x256x4xf32> to vector<256x4xf32>
    %157 = arith.addf %156, %154 : vector<256x4xf32>
    %c0_118 = arith.constant 0 : index
    %c0_119 = arith.constant 0 : index
    %c0_120 = arith.constant 0 : index
    %158 = vector.load %arg5[%c0_118, %c0_119, %c0_120] : memref<1x256x4xf32, #tpu.memory_space<vmem>>, vector<1x256x4xf32>
    %159 = vector.shape_cast %158 : vector<1x256x4xf32> to vector<256x4xf32>
    %160 = vector.shape_cast %157 : vector<256x4xf32> to vector<1x256x4xf32>
    tpu.vector_store %arg5[%c0_118, %c0_119, %c0_120], %160 {strides = array<i32>} : memref<1x256x4xf32, #tpu.memory_space<vmem>>, vector<1x256x4xf32>,
    return
  }
  func.func @transform_0(%arg0: i32) -> (i32, i32, i32, i32) {
    %c0_i32 = arith.constant 0 : i32
    %c0_i32_0 = arith.constant 0 : i32
    %c0_i32_1 = arith.constant 0 : i32
    %c0_i32_2 = arith.constant 0 : i32
    return %arg0, %c0_i32, %c0_i32_0, %c0_i32_1 : i32, i32, i32, i32
  }
  func.func @transform_1(%arg0: i32) -> (i32, i32, i32) {
    %c0_i32 = arith.constant 0 : i32
    %c0_i32_0 = arith.constant 0 : i32
    %c0_i32_1 = arith.constant 0 : i32
    return %arg0, %c0_i32, %c0_i32_0 : i32, i32, i32
  }
  func.func @transform_2(%arg0: i32) -> (i32, i32, i32) {
    %c0_i32 = arith.constant 0 : i32
    %c0_i32_0 = arith.constant 0 : i32
    %c0_i32_1 = arith.constant 0 : i32
    %c0_i32_2 = arith.constant 0 : i32
    return %c0_i32, %c0_i32_0, %c0_i32_1 : i32, i32, i32
  }
  func.func @transform_3(%arg0: i32) -> (i32, i32, i32) {
    %c0_i32 = arith.constant 0 : i32
    %c0_i32_0 = arith.constant 0 : i32
    %c0_i32_1 = arith.constant 0 : i32
    %c0_i32_2 = arith.constant 0 : i32
    return %c0_i32, %c0_i32_0, %c0_i32_1 : i32, i32, i32
  }
  func.func @transform_4(%arg0: i32) -> (i32, i32, i32) {
    %c0_i32 = arith.constant 0 : i32
    %c0_i32_0 = arith.constant 0 : i32
    %c0_i32_1 = arith.constant 0 : i32
    return %arg0, %c0_i32, %c0_i32_0 : i32, i32, i32
  }
}

</mosaic_0001>

<llo_original>
// kernel: resnet_block_pallas.1
$region0: #{resnet_block_pallas.1}
  #allocation0 [shape = 'u32[]', space=smem, size = 0x4, offset = 0x4, fixed_abs, tag = 'smem constant byte address 0x4 - core index']
  #allocation1 [shape = 'u32[144,128]{1,0:T(1,128)}', space=vmem, size = 0x12000, scoped, tag = 'internal scratch']
  #allocation2 [shape = 'f32[18,18,4]{2,1,0:T(8,128)}', space=vmem, size = 0x36000, scoped, tag = 'scratch operand']
  %s0 = inlined_call_operand.vmem [shape: f32[2,18,18,4], index: 0, kind: input, shape index: {}]
  %s1 = inlined_call_operand.vmem [shape: f32[2,256,4], index: 1, kind: input, shape index: {}]
  %s2 = inlined_call_operand.vmem [shape: f32[9,4,4], index: 2, kind: input, shape index: {}]
  %s3 = inlined_call_operand.vmem [shape: f32[9,4,4], index: 3, kind: input, shape index: {}]
  %s4 = inlined_call_operand.vmem [shape: f32[2,256,4], index: 4, kind: output, shape index: {}]
  %s5 = sld [smem:[#allocation0]]
  $region49: #{resnet_block_pallas.1} parent=0
    _
  %s7 = ssub.s32 1, %s5
  %s8 = scalar_select 0, %s7, %s5
  loop: start=0, step=1, limit=4
  $region2: #{resnet_block_pallas.1} parent=0 // loop_pre_header
    _
  $region3: #{resnet_block_pallas.1} parent=0 // loop_header
    %s10 = sphi 0, %s14
    %p11 = scmp.ge.s32.totalorder %s10, 4
    %s20 = sphi 0, %s22
    %s23 = sphi 0, %s20
    %s24 = sphi 0, %s23
    %s40 = sphi 0, %s24
    %s46 = sphi 0, %s48
    %s49 = sphi 0, %s46
    %s50 = sphi 0, %s49
    %s66 = sphi 0, %s50
    %s70 = sphi 0, %s70
    %s72 = sphi 0, %s70
    %s73 = sphi 0, %s72
    %s87 = sphi 0, %s73
    %s91 = sphi 0, %s91
    %s93 = sphi 0, %s91
    %s94 = sphi 0, %s93
    %s108 = sphi 0, %s94
    %s114 = sphi 0, %s116
    %s117 = sphi 0, %s114
    %s118 = sphi 0, %s117
    %s134 = sphi 0, %s118
  $region4: #{resnet_block_pallas.1} parent=0 // loop_header_branch
    %13 = sbr.rel (%p11) target = $region8
  $region5: #{resnet_block_pallas.1} parent=0 // loop_body
    %s15 = ssub.s32 %s10, 1
    %s16 = ssub.s32 %s10, 2
    %s17 = sadd.s32 %s10, 1
    %s18 = ssub.s32 %s10, %s17
    %p19 = scmp.eq.s32.totalorder %s18, 0
    %s21 = sadd.s32 %s20, 1
    %s22 = scalar_select %p19, %s20, %s21
    %p25 = pneg %p19
    %p26 = scmp.eq.s32.totalorder %s10, 1
    %p27 = por %p25, %p26
    %p28 = scmp.ne.s32.totalorder %s20, %s23
    %p29 = scmp.eq.s32.totalorder %s10, 0
    %p30 = por %p28, %p29
    %p31 = scmp.ne.s32.totalorder %s20, %s23
    %p32 = scmp.eq.s32.totalorder %s15, 1
    %p33 = por %p31, %p32
    %p34 = scmp.ne.s32.totalorder %s23, %s24
    %p35 = scmp.eq.s32.totalorder %s15, 0
    %p36 = por %p34, %p35
    %p37 = scmp.ne.s32.totalorder %s23, %s24
    %p38 = scmp.eq.s32.totalorder %s16, 1
    %p39 = por %p37, %p38
    %p41 = scmp.ne.s32.totalorder %s24, %s40
    %p42 = scmp.eq.s32.totalorder %s16, 0
    %p43 = por %p41, %p42
    %s44 = ssub.s32 %s10, %s17
    %p45 = scmp.eq.s32.totalorder %s44, 0
    %s47 = sadd.s32 %s46, 1
    %s48 = scalar_select %p45, %s46, %s47
    %p51 = pneg %p45
    %p52 = scmp.eq.s32.totalorder %s10, 1
    %p53 = por %p51, %p52
    %p54 = scmp.ne.s32.totalorder %s46, %s49
    %p55 = scmp.eq.s32.totalorder %s10, 0
    %p56 = por %p54, %p55
    %p57 = scmp.ne.s32.totalorder %s46, %s49
    %p58 = scmp.eq.s32.totalorder %s15, 1
    %p59 = por %p57, %p58
    %p60 = scmp.ne.s32.totalorder %s49, %s50
    %p61 = scmp.eq.s32.totalorder %s15, 0
    %p62 = por %p60, %p61
    %p63 = scmp.ne.s32.totalorder %s49, %s50
    %p64 = scmp.eq.s32.totalorder %s16, 1
    %p65 = por %p63, %p64
    %p67 = scmp.ne.s32.totalorder %s50, %s66
    %p68 = scmp.eq.s32.totalorder %s16, 0
    %p69 = por %p67, %p68
    %s71 = sadd.s32 %s70, 1
    %p74 = scmp.eq.s32.totalorder %s10, 1
    %p75 = scmp.ne.s32.totalorder %s70, %s72
    %p76 = scmp.eq.s32.totalorder %s10, 0
    %p77 = por %p75, %p76
    %p78 = scmp.ne.s32.totalorder %s70, %s72
    %p79 = scmp.eq.s32.totalorder %s15, 1
    %p80 = por %p78, %p79
    %p81 = scmp.ne.s32.totalorder %s72, %s73
    %p82 = scmp.eq.s32.totalorder %s15, 0
    %p83 = por %p81, %p82
    %p84 = scmp.ne.s32.totalorder %s72, %s73
    %p85 = scmp.eq.s32.totalorder %s16, 1
    %p86 = por %p84, %p85
    %p88 = scmp.ne.s32.totalorder %s73, %s87
    %p89 = scmp.eq.s32.totalorder %s16, 0
    %p90 = por %p88, %p89
    %s92 = sadd.s32 %s91, 1
    %p95 = scmp.eq.s32.totalorder %s10, 1
    %p96 = scmp.ne.s32.totalorder %s91, %s93
    %p97 = scmp.eq.s32.totalorder %s10, 0
    %p98 = por %p96, %p97
    %p99 = scmp.ne.s32.totalorder %s91, %s93
    %p100 = scmp.eq.s32.totalorder %s15, 1
    %p101 = por %p99, %p100
    %p102 = scmp.ne.s32.totalorder %s93, %s94
    %p103 = scmp.eq.s32.totalorder %s15, 0
    %p104 = por %p102, %p103
    %p105 = scmp.ne.s32.totalorder %s93, %s94
    %p106 = scmp.eq.s32.totalorder %s16, 1
    %p107 = por %p105, %p106
    %p109 = scmp.ne.s32.totalorder %s94, %s108
    %p110 = scmp.eq.s32.totalorder %s16, 0
    %p111 = por %p109, %p110
    %s112 = ssub.s32 %s10, %s17
    %p113 = scmp.eq.s32.totalorder %s112, 0
    %s115 = sadd.s32 %s114, 1
    %s116 = scalar_select %p113, %s114, %s115
    %p119 = pneg %p113
    %p120 = scmp.eq.s32.totalorder %s10, 1
    %p121 = por %p119, %p120
    %p122 = scmp.ne.s32.totalorder %s114, %s117
    %p123 = scmp.eq.s32.totalorder %s10, 0
    %p124 = por %p122, %p123
    %p125 = scmp.ne.s32.totalorder %s114, %s117
    %p126 = scmp.eq.s32.totalorder %s15, 1
    %p127 = por %p125, %p126
    %p128 = scmp.ne.s32.totalorder %s117, %s118
    %p129 = scmp.eq.s32.totalorder %s15, 0
    %p130 = por %p128, %p129
    %p131 = scmp.ne.s32.totalorder %s117, %s118
    %p132 = scmp.eq.s32.totalorder %s16, 1
    %p133 = por %p131, %p132
    %p135 = scmp.ne.s32.totalorder %s118, %s134
    %p136 = scmp.eq.s32.totalorder %s16, 0
    %p137 = por %p135, %p136
    %p138 = scmp.le.s32.totalorder 1, %s10
    %p139 = scmp.lt.s32.totalorder %s10, 3
    %p140 = pnand %p138, %p139
    %p141 = pneg %p140
    // Predicated region
    $region9: #{resnet_block_pallas.1} parent=5 // pred_check
      _
    $region10: #{resnet_block_pallas.1} parent=5 // pred_check_branch
      %143 = sbr.rel (%p140) target = $region12
    $region11: #{resnet_block_pallas.1} parent=5 // pred_region
      %s144 = ssub.s32 %s10, 1
      // Predicated region
      $region13: #{resnet_block_pallas.1} parent=11 // pred_check
        %p145 = pneg %p83
      $region14: #{resnet_block_pallas.1} parent=11 // pred_check_branch
        %147 = sbr.rel (%p145) target = $region16
      $region15: #{resnet_block_pallas.1} parent=11 // pred_region
        _
      $region16: #{resnet_block_pallas.1} parent=11 // pred_fallthru
        _
      // Predicated region
      $region17: #{resnet_block_pallas.1} parent=11 // pred_check
        %p148 = pneg %p104
      $region18: #{resnet_block_pallas.1} parent=11 // pred_check_branch
        %150 = sbr.rel (%p148) target = $region20
      $region19: #{resnet_block_pallas.1} parent=11 // pred_region
        _
      $region20: #{resnet_block_pallas.1} parent=11 // pred_fallthru
        _
    $region12: #{resnet_block_pallas.1} parent=5 // pred_fallthru
      _
    %p151 = scmp.lt.s32.totalorder %s10, 2
    // Predicated region
    $region21: #{resnet_block_pallas.1} parent=5 // pred_check
      %p152 = pneg %p151
    $region22: #{resnet_block_pallas.1} parent=5 // pred_check_branch
      %154 = sbr.rel (%p152) target = $region24
    $region23: #{resnet_block_pallas.1} parent=5 // pred_region
      // Predicated region
      $region25: #{resnet_block_pallas.1} parent=23 // pred_check
        %p155 = pneg %p30
      $region26: #{resnet_block_pallas.1} parent=23 // pred_check_branch
        %157 = sbr.rel (%p155) target = $region28
      $region27: #{resnet_block_pallas.1} parent=23 // pred_region
        %p158 = scmp.lt.s32.totalorder %s10, 1
        %s159 = scalar_select %p158, %s10, 1
        %s160 = smul.addr %s159, 54
        %s161 = smul.addr %s160, 8
        %s162 = scalar_lea.vmem %s0, %s161
      $region28: #{resnet_block_pallas.1} parent=23 // pred_fallthru
        _
      // Predicated region
      $region29: #{resnet_block_pallas.1} parent=23 // pred_check
        %p163 = pneg %p56
      $region30: #{resnet_block_pallas.1} parent=23 // pred_check_branch
        %165 = sbr.rel (%p163) target = $region32
      $region31: #{resnet_block_pallas.1} parent=23 // pred_region
        %p166 = scmp.lt.s32.totalorder %s10, 1
        %s167 = scalar_select %p166, %s10, 1
        %s168 = smul.addr %s167, 32
        %s169 = smul.addr %s168, 8
        %s170 = scalar_lea.vmem %s1, %s169
      $region32: #{resnet_block_pallas.1} parent=23 // pred_fallthru
        _
    $region24: #{resnet_block_pallas.1} parent=5 // pred_fallthru
      _
    %p171 = scmp.le.s32.totalorder 1, %s10
    %p172 = scmp.lt.s32.totalorder %s10, 3
    %p173 = pnand %p171, %p172
    %p174 = pneg %p173
    // Predicated region
    $region33: #{resnet_block_pallas.1} parent=5 // pred_check
      _
    $region34: #{resnet_block_pallas.1} parent=5 // pred_check_branch
      %176 = sbr.rel (%p173) target = $region36
    $region35: #{resnet_block_pallas.1} parent=5 // pred_region
      %s177 = ssub.s32 %s10, 1
      %p178 = scmp.lt.s32.totalorder %s15, 1
      %s179 = scalar_select %p178, %s15, 1
      %s180 = smul.addr %s179, 54
      %s181 = smul.addr %s180, 8
      %s182 = scalar_lea.vmem %s0, %s181
      %p183 = pneg %p36
      %p184 = pneg %p33
      %p185 = scmp.lt.s32.totalorder %s15, 1
      %s186 = scalar_select %p185, %s15, 1
      %s187 = smul.addr %s186, 32
      %s188 = smul.addr %s187, 8
      %s189 = scalar_lea.vmem %s1, %s188
      %p190 = pneg %p62
      %p191 = pneg %p59
      %p192 = pneg %p83
      %p193 = pneg %p80
      %p194 = pneg %p104
      %p195 = pneg %p101
      %p196 = pneg %p130
      %p197 = pneg %p127
      %p198 = scmp.lt.s32.totalorder %s15, 1
      %s199 = scalar_select %p198, %s15, 1
      %s200 = smul.addr %s199, 32
      %s201 = smul.addr %s200, 8
      %s202 = scalar_lea.vmem %s4, %s201
      %p203 = scmp.lt.s32.totalorder %s15, 1
      %s204 = scalar_select %p203, %s15, 1
      %s205 = smul.addr %s204, 54
      %s206 = smul.addr %s205, 8
      %s207 = scalar_lea.vmem %s0, %s206
      %p208 = scmp.lt.s32.totalorder %s15, 1
      %s209 = scalar_select %p208, %s15, 1
      %s210 = smul.addr %s209, 32
      %s211 = smul.addr %s210, 8
      %s212 = scalar_lea.vmem %s1, %s211
      %p213 = scmp.lt.s32.totalorder %s15, 1
      %s214 = scalar_select %p213, %s15, 1
      %s215 = smul.addr %s214, 32
      %s216 = smul.addr %s215, 8
      %s217 = scalar_lea.vmem %s4, %s216
      %v218 = vld [vmem:[%s207] sm:$0xff]
      %v219 = vld [vmem:[%s207 + $0x8] sm:$0xff]
      %v220 = vld [vmem:[%s207 + $0x18] sm:$0xff]
      %v221 = vld [vmem:[%s207 + $0x20] sm:$0xff]
      %v222 = vld [vmem:[%s207 + $0x30] sm:$0xff]
      %v223 = vld [vmem:[%s207 + $0x38] sm:$0xff]
      %v224 = vld [vmem:[%s207 + $0x48] sm:$0xff]
      %v225 = vld [vmem:[%s207 + $0x50] sm:$0xff]
      %v226 = vld [vmem:[%s207 + $0x60] sm:$0xff]
      %v227 = vld [vmem:[%s207 + $0x68] sm:$0xff]
      %v228 = vld [vmem:[%s207 + $0x78] sm:$0xff]
      %v229 = vld [vmem:[%s207 + $0x80] sm:$0xff]
      %v230 = vld [vmem:[%s207 + $0x90] sm:$0xff]
      %v231 = vld [vmem:[%s207 + $0x98] sm:$0xff]
      %v232 = vld [vmem:[%s207 + $0xa8] sm:$0xff]
      %v233 = vld [vmem:[%s207 + $0xb0] sm:$0xff]
      %v234 = vld [vmem:[%s207 + $0xc0] sm:$0xff]
      %v235 = vld [vmem:[%s207 + $0xc8] sm:$0xff]
      %v236 = vld [vmem:[%s207 + $0xd8] sm:$0xff]
      %v237 = vld [vmem:[%s207 + $0xe0] sm:$0xff]
      %v238 = vld [vmem:[%s207 + $0xf0] sm:$0xff]
      %v239 = vld [vmem:[%s207 + $0xf8] sm:$0xff]
      %v240 = vld [vmem:[%s207 + $0x108] sm:$0xff]
      %v241 = vld [vmem:[%s207 + $0x110] sm:$0xff]
      %v242 = vld [vmem:[%s207 + $0x120] sm:$0xff]
      %v243 = vld [vmem:[%s207 + $0x128] sm:$0xff]
      %v244 = vld [vmem:[%s207 + $0x138] sm:$0xff]
      %v245 = vld [vmem:[%s207 + $0x140] sm:$0xff]
      %v246 = vld [vmem:[%s207 + $0x150] sm:$0xff]
      %v247 = vld [vmem:[%s207 + $0x158] sm:$0xff]
      %v248 = vld [vmem:[%s207 + $0x168] sm:$0xff]
      %v249 = vld [vmem:[%s207 + $0x170] sm:$0xff]
      %v250 = vld [vmem:[%s207 + $0x180] sm:$0xff]
      %v251 = vld [vmem:[%s207 + $0x188] sm:$0xff]
      %v252 = vld [vmem:[%s207 + $0x198] sm:$0xff]
      %v253 = vld [vmem:[%s207 + $0x1a0] sm:$0xff]
      %v254 = vld [vmem:[%s2] sm:$0xf]
      %s255 = scalar_lea.vmem %s2, 12
      %v256 = vld [vmem:[%s255] sm:$0xf]
      %vm257 = vcmask 31744
      %v259 = vsel %vm257, %v220, 0
      %v262 = vsel %vm257, %v221, 0
      %v265 = vsel %vm257, %v222, 0
      %v268 = vsel %vm257, %v223, 0
      %v271 = vsel %vm257, %v224, 0
      %v274 = vsel %vm257, %v225, 0
      %v277 = vsel %vm257, %v226, 0
      %v280 = vsel %vm257, %v227, 0
      %v283 = vsel %vm257, %v228, 0
      %v286 = vsel %vm257, %v229, 0
      %v289 = vsel %vm257, %v230, 0
      %v292 = vsel %vm257, %v231, 0
      %v295 = vsel %vm257, %v232, 0
      %v298 = vsel %vm257, %v233, 0
      %v301 = vsel %vm257, %v234, 0
      %v304 = vsel %vm257, %v235, 0
      %v307 = vsel %vm257, %v236, 0
      %v310 = vsel %vm257, %v237, 0
      %v313 = vsel %vm257, %v238, 0
      %v316 = vsel %vm257, %v239, 0
      %v319 = vsel %vm257, %v240, 0
      %v322 = vsel %vm257, %v241, 0
      %v325 = vsel %vm257, %v242, 0
      %v328 = vsel %vm257, %v243, 0
      %v331 = vsel %vm257, %v244, 0
      %v334 = vsel %vm257, %v245, 0
      %v337 = vsel %vm257, %v246, 0
      %v340 = vsel %vm257, %v247, 0
      %v343 = vsel %vm257, %v248, 0
      %v346 = vsel %vm257, %v249, 0
      %v349 = vsel %vm257, %v250, 0
      %v352 = vsel %vm257, %v251, 0
      %vm354 = vcmask 1043456
      %v356 = vsel %vm354, %v256, 0
      %358 = vmatprep.subr.mxu0 0.0
      %359 = vmatpush1.msra.mxu0 %v356
      %360 = vmatprep.subr.mxu0 0.0
      %361 = vmatpush1.msra.mxu0 0.0
      %362 = vmatprep.subr.mxu0 0.0
      %363 = vmatpush1.msra.mxu0 0.0
      %364 = vmatprep.subr.mxu0 0.0
      %365 = vmatpush1.msra.mxu0 0.0
      %366 = vmatprep.subr.mxu0 0.0
      %367 = vmatpush1.msra.mxu0 0.0
      %368 = vmatprep.subr.mxu0 0.0
      %369 = vmatpush1.msra.mxu0 0.0
      %370 = vmatprep.subr.mxu0 0.0
      %371 = vmatpush1.msra.mxu0 0.0
      %372 = vmatprep.subr.mxu0 0.0
      %373 = vmatpush1.msra.mxu0 0.0
      %374 = vmatprep.subr.mxu0 0.0
      %375 = vmatpush1.msra.mxu0 0.0
      %376 = vmatprep.subr.mxu0 0.0
      %377 = vmatpush1.msra.mxu0 0.0
      %378 = vmatprep.subr.mxu0 0.0
      %379 = vmatpush1.msra.mxu0 0.0
      %380 = vmatprep.subr.mxu0 0.0
      %381 = vmatpush1.msra.mxu0 0.0
      %382 = vmatprep.subr.mxu0 0.0
      %383 = vmatpush1.msra.mxu0 0.0
      %384 = vmatprep.subr.mxu0 0.0
      %385 = vmatpush1.msra.mxu0 0.0
      %386 = vmatprep.subr.mxu0 0.0
      %387 = vmatpush1.msra.mxu0 0.0
      %388 = vmatprep.subr.mxu0 0.0
      %389 = vmatpush1.msra.mxu0 0.0
      %390 = vmatprep.subr.mxu0 0.0
      %391 = vmatpush1.msra.mxu0 0.0
      %392 = vmatprep.subr.mxu0 0.0
      %393 = vmatpush1.msra.mxu0 0.0
      %394 = vmatprep.subr.mxu0 0.0
      %395 = vmatpush1.msra.mxu0 0.0
      %396 = vmatprep.subr.mxu0 0.0
      %397 = vmatpush1.msra.mxu0 0.0
      %398 = vmatprep.subr.mxu0 0.0
      %399 = vmatpush1.msra.mxu0 0.0
      %400 = vmatprep.subr.mxu0 0.0
      %401 = vmatpush1.msra.mxu0 0.0
      %402 = vmatprep.subr.mxu0 0.0
      %403 = vmatpush1.msra.mxu0 0.0
      %404 = vmatprep.subr.mxu0 0.0
      %405 = vmatpush1.msra.mxu0 0.0
      %406 = vmatprep.subr.mxu0 0.0
      %407 = vmatpush1.msra.mxu0 0.0
      %408 = vmatprep.subr.mxu0 0.0
      %409 = vmatpush1.msra.mxu0 0.0
      %410 = vmatprep.subr.mxu0 0.0
      %411 = vmatpush1.msra.mxu0 0.0
      %412 = vmatprep.subr.mxu0 0.0
      %413 = vmatpush1.msra.mxu0 0.0
      %414 = vmatprep.subr.mxu0 0.0
      %415 = vmatpush1.msra.mxu0 0.0
      %416 = vmatprep.subr.mxu0 0.0
      %417 = vmatpush1.msra.mxu0 0.0
      %418 = vmatprep.subr.mxu0 0.0
      %419 = vmatpush1.msra.mxu0 0.0
      %420 = vmatprep.subr.mxu0 0.0
      %421 = vmatpush1.msra.mxu0 0.0
      %422 = vmatprep.mubr.f32.mxu0 0.0
      %423 = vmatmul.mubr.f32.gmra.mrb[0].mxu0 %v259
      %v424 = vpop.f32.mrb[0].mxu0
      %v425 = vadd.f32 0.0, %v424
      %v426 = vpop.f32.mrb[0].mxu0
      %427 = vmatprep.mubr.f32.mxu0 0.0
      %428 = vmatmul.mubr.f32.gmra.mrb[0].mxu0 %v262
      %v429 = vpop.f32.mrb[0].mxu0
      %v430 = vadd.f32 0.0, %v429
      %v431 = vpop.f32.mrb[0].mxu0
      %432 = vmatprep.mubr.f32.mxu0 0.0
      %433 = vmatmul.mubr.f32.gmra.mrb[0].mxu0 %v265
      %v434 = vpop.f32.mrb[0].mxu0
      %v435 = vadd.f32 0.0, %v434
      %v436 = vpop.f32.mrb[0].mxu0
      %437 = vmatprep.mubr.f32.mxu0 0.0
      %438 = vmatmul.mubr.f32.gmra.mrb[0].mxu0 %v268
      %v439 = vpop.f32.mrb[0].mxu0
      %v440 = vadd.f32 0.0, %v439
      %v441 = vpop.f32.mrb[0].mxu0
      %442 = vmatprep.mubr.f32.mxu0 0.0
      %443 = vmatmul.mubr.f32.gmra.mrb[0].mxu0 %v271
      %v444 = vpop.f32.mrb[0].mxu0
      %v445 = vadd.f32 0.0, %v444
      %v446 = vpop.f32.mrb[0].mxu0
      %447 = vmatprep.mubr.f32.mxu0 0.0
      %448 = vmatmul.mubr.f32.gmra.mrb[0].mxu0 %v274
      %v449 = vpop.f32.mrb[0].mxu0
      %v450 = vadd.f32 0.0, %v449
      %v451 = vpop.f32.mrb[0].mxu0
      %452 = vmatprep.mubr.f32.mxu0 0.0
      %453 = vmatmul.mubr.f32.gmra.mrb[0].mxu0 %v277
      %v454 = vpop.f32.mrb[0].mxu0
      %v455 = vadd.f32 0.0, %v454
      %v456 = vpop.f32.mrb[0].mxu0
      %457 = vmatprep.mubr.f32.mxu0 0.0
      %458 = vmatmul.mubr.f32.gmra.mrb[0].mxu0 %v280
      %v459 = vpop.f32.mrb[0].mxu0
      %v460 = vadd.f32 0.0, %v459
      %v461 = vpop.f32.mrb[0].mxu0
      %462 = vmatprep.mubr.f32.mxu0 0.0
      %463 = vmatmul.mubr.f32.gmra.mrb[0].mxu0 %v283
      %v464 = vpop.f32.mrb[0].mxu0
      %v465 = vadd.f32 0.0, %v464
      %v466 = vpop.f32.mrb[0].mxu0
      %467 = vmatprep.mubr.f32.mxu0 0.0
      %468 = vmatmul.mubr.f32.gmra.mrb[0].mxu0 %v286
      %v469 = vpop.f32.mrb[0].mxu0
      %v470 = vadd.f32 0.0, %v469
      %v471 = vpop.f32.mrb[0].mxu0
      %472 = vmatprep.mubr.f32.mxu0 0.0
      %473 = vmatmul.mubr.f32.gmra.mrb[0].mxu0 %v289
      %v474 = vpop.f32.mrb[0].mxu0
      %v475 = vadd.f32 0.0, %v474
      %v476 = vpop.f32.mrb[0].mxu0
      %477 = vmatprep.mubr.f32.mxu0 0.0
      %478 = vmatmul.mubr.f32.gmra.mrb[0].mxu0 %v292
      %v479 = vpop.f32.mrb[0].mxu0
      %v480 = vadd.f32 0.0, %v479
      %v481 = vpop.f32.mrb[0].mxu0
      %482 = vmatprep.mubr.f32.mxu0 0.0
      %483 = vmatmul.mubr.f32.gmra.mrb[0].mxu0 %v295
      %v484 = vpop.f32.mrb[0].mxu0
      %v485 = vadd.f32 0.0, %v484
      %v486 = vpop.f32.mrb[0].mxu0
      %487 = vmatprep.mubr.f32.mxu0 0.0
      %488 = vmatmul.mubr.f32.gmra.mrb[0].mxu0 %v298
      %v489 = vpop.f32.mrb[0].mxu0
      %v490 = vadd.f32 0.0, %v489
      %v491 = vpop.f32.mrb[0].mxu0
      %492 = vmatprep.mubr.f32.mxu0 0.0
      %493 = vmatmul.mubr.f32.gmra.mrb[0].mxu0 %v301
      %v494 = vpop.f32.mrb[0].mxu0
      %v495 = vadd.f32 0.0, %v494
      %v496 = vpop.f32.mrb[0].mxu0
      %497 = vmatprep.mubr.f32.mxu0 0.0
      %498 = vmatmul.mubr.f32.gmra.mrb[0].mxu0 %v304
      %v499 = vpop.f32.mrb[0].mxu0
      %v500 = vadd.f32 0.0, %v499
      %v501 = vpop.f32.mrb[0].mxu0
      %502 = vmatprep.mubr.f32.mxu0 0.0
      %503 = vmatmul.mubr.f32.gmra.mrb[0].mxu0 %v307
      %v504 = vpop.f32.mrb[0].mxu0
      %v505 = vadd.f32 0.0, %v504
      %v506 = vpop.f32.mrb[0].mxu0
      %507 = vmatprep.mubr.f32.mxu0 0.0
      %508 = vmatmul.mubr.f32.gmra.mrb[0].mxu0 %v310
      %v509 = vpop.f32.mrb[0].mxu0
      %v510 = vadd.f32 0.0, %v509
      %v511 = vpop.f32.mrb[0].mxu0
      %512 = vmatprep.mubr.f32.mxu0 0.0
      %513 = vmatmul.mubr.f32.gmra.mrb[0].mxu0 %v313
      %v514 = vpop.f32.mrb[0].mxu0
      %v515 = vadd.f32 0.0, %v514
      %v516 = vpop.f32.mrb[0].mxu0
      %517 = vmatprep.mubr.f32.mxu0 0.0
      %518 = vmatmul.mubr.f32.gmra.mrb[0].mxu0 %v316
      %v519 = vpop.f32.mrb[0].mxu0
      %v520 = vadd.f32 0.0, %v519
      %v521 = vpop.f32.mrb[0].mxu0
      %522 = vmatprep.mubr.f32.mxu0 0.0
      %523 = vmatmul.mubr.f32.gmra.mrb[0].mxu0 %v319
      %v524 = vpop.f32.mrb[0].mxu0
      %v525 = vadd.f32 0.0, %v524
      %v526 = vpop.f32.mrb[0].mxu0
      %527 = vmatprep.mubr.f32.mxu0 0.0
      %528 = vmatmul.mubr.f32.gmra.mrb[0].mxu0 %v322
      %v529 = vpop.f32.mrb[0].mxu0
      %v530 = vadd.f32 0.0, %v529
      %v531 = vpop.f32.mrb[0].mxu0
      %532 = vmatprep.mubr.f32.mxu0 0.0
      %533 = vmatmul.mubr.f32.gmra.mrb[0].mxu0 %v325
      %v534 = vpop.f32.mrb[0].mxu0
      %v535 = vadd.f32 0.0, %v534
      %v536 = vpop.f32.mrb[0].mxu0
      %537 = vmatprep.mubr.f32.mxu0 0.0
      %538 = vmatmul.mubr.f32.gmra.mrb[0].mxu0 %v328
      %v539 = vpop.f32.mrb[0].mxu0
      %v540 = vadd.f32 0.0, %v539
      %v541 = vpop.f32.mrb[0].mxu0
      %542 = vmatprep.mubr.f32.mxu0 0.0
      %543 = vmatmul.mubr.f32.gmra.mrb[0].mxu0 %v331
      %v544 = vpop.f32.mrb[0].mxu0
      %v545 = vadd.f32 0.0, %v544
      %v546 = vpop.f32.mrb[0].mxu0
      %547 = vmatprep.mubr.f32.mxu0 0.0
      %548 = vmatmul.mubr.f32.gmra.mrb[0].mxu0 %v334
      %v549 = vpop.f32.mrb[0].mxu0
      %v550 = vadd.f32 0.0, %v549
      %v551 = vpop.f32.mrb[0].mxu0
      %552 = vmatprep.mubr.f32.mxu0 0.0
      %553 = vmatmul.mubr.f32.gmra.mrb[0].mxu0 %v337
      %v554 = vpop.f32.mrb[0].mxu0
      %v555 = vadd.f32 0.0, %v554
      %v556 = vpop.f32.mrb[0].mxu0
      %557 = vmatprep.mubr.f32.mxu0 0.0
      %558 = vmatmul.mubr.f32.gmra.mrb[0].mxu0 %v340
      %v559 = vpop.f32.mrb[0].mxu0
      %v560 = vadd.f32 0.0, %v559
      %v561 = vpop.f32.mrb[0].mxu0
      %562 = vmatprep.mubr.f32.mxu0 0.0
      %563 = vmatmul.mubr.f32.gmra.mrb[0].mxu0 %v343
      %v564 = vpop.f32.mrb[0].mxu0
      %v565 = vadd.f32 0.0, %v564
      %v566 = vpop.f32.mrb[0].mxu0
      %567 = vmatprep.mubr.f32.mxu0 0.0
      %568 = vmatmul.mubr.f32.gmra.mrb[0].mxu0 %v346
      %v569 = vpop.f32.mrb[0].mxu0
      %v570 = vadd.f32 0.0, %v569
      %v571 = vpop.f32.mrb[0].mxu0
      %572 = vmatprep.mubr.f32.mxu0 0.0
      %573 = vmatmul.mubr.f32.gmra.mrb[0].mxu0 %v349
      %v574 = vpop.f32.mrb[0].mxu0
      %v575 = vadd.f32 0.0, %v574
      %v576 = vpop.f32.mrb[0].mxu0
      %577 = vmatprep.mubr.f32.mxu0 0.0
      %578 = vmatmul.mubr.f32.gmra.mrb[0].mxu0 %v352
      %v579 = vpop.f32.mrb[0].mxu0
      %v580 = vadd.f32 0.0, %v579
      %v581 = vpop.f32.mrb[0].mxu0
      %582 = vdwg.mxu0
      %v584 = vsel %vm257, %v218, 0
      %v587 = vsel %vm257, %v219, 0
      %v590 = vsel %vm354, %v254, 0
      %592 = vmatprep.subr.mxu0 0.0
      %593 = vmatpush1.msra.mxu0 %v590
      %594 = vmatprep.subr.mxu0 0.0
      %595 = vmatpush1.msra.mxu0 0.0
      %596 = vmatprep.subr.mxu0 0.0
      %597 = vmatpush1.msra.mxu0 0.0
      %598 = vmatprep.subr.mxu0 0.0
      %599 = vmatpush1.msra.mxu0 0.0
      %600 = vmatprep.subr.mxu0 0.0
      %601 = vmatpush1.msra.mxu0 0.0
      %602 = vmatprep.subr.mxu0 0.0
      %603 = vmatpush1.msra.mxu0 0.0
      %604 = vmatprep.subr.mxu0 0.0
      %605 = vmatpush1.msra.mxu0 0.0
      %606 = vmatprep.subr.mxu0 0.0
      %607 = vmatpush1.msra.mxu0 0.0
      %608 = vmatprep.subr.mxu0 0.0
      %609 = vmatpush1.msra.mxu0 0.0
      %610 = vmatprep.subr.mxu0 0.0
      %611 = vmatpush1.msra.mxu0 0.0
      %612 = vmatprep.subr.mxu0 0.0
      %613 = vmatpush1.msra.mxu0 0.0
      %614 = vmatprep.subr.mxu0 0.0
      %615 = vmatpush1.msra.mxu0 0.0
      %616 = vmatprep.subr.mxu0 0.0
      %617 = vmatpush1.msra.mxu0 0.0
      %618 = vmatprep.subr.mxu0 0.0
      %619 = vmatpush1.msra.mxu0 0.0
      %620 = vmatprep.subr.mxu0 0.0
      %621 = vmatpush1.msra.mxu0 0.0
      %622 = vmatprep.subr.mxu0 0.0
      %623 = vmatpush1.msra.mxu0 0.0
      %624 = vmatprep.subr.mxu0 0.0
      %625 = vmatpush1.msra.mxu0 0.0
      %626 = vmatprep.subr.mxu0 0.0
      %627 = vmatpush1.msra.mxu0 0.0
      %628 = vmatprep.subr.mxu0 0.0
      %629 = vmatpush1.msra.mxu0 0.0
      %630 = vmatprep.subr.mxu0 0.0
      %631 = vmatpush1.msra.mxu0 0.0
      %632 = vmatprep.subr.mxu0 0.0
      %633 = vmatpush1.msra.mxu0 0.0
      %634 = vmatprep.subr.mxu0 0.0
      %635 = vmatpush1.msra.mxu0 0.0
      %636 = vmatprep.subr.mxu0 0.0
      %637 = vmatpush1.msra.mxu0 0.0
      %638 = vmatprep.subr.mxu0 0.0
      %639 = vmatpush1.msra.mxu0 0.0
      %640 = vmatprep.subr.mxu0 0.0
      %641 = vmatpush1.msra.mxu0 0.0
      %642 = vmatprep.subr.mxu0 0.0
      %643 = vmatpush1.msra.mxu0 0.0
      %644 = vmatprep.subr.mxu0 0.0
      %645 = vmatpush1.msra.mxu0 0.0
      %646 = vmatprep.subr.mxu0 0.0
      %647 = vmatpush1.msra.mxu0 0.0
      %648 = vmatprep.subr.mxu0 0.0
      %649 = vmatpush1.msra.mxu0 0.0
      %650 = vmatprep.subr.mxu0 0.0
      %651 = vmatpush1.msra.mxu0 0.0
      %652 = vmatprep.subr.mxu0 0.0
      %653 = vmatpush1.msra.mxu0 0.0
      %654 = vmatprep.subr.mxu0 0.0
      %655 = vmatpush1.msra.mxu0 0.0
      %656 = vmatprep.mubr.f32.mxu0 0.0
      %657 = vmatmul.mubr.f32.gmra.mrb[0].mxu0 %v584
      %v658 = vpop.f32.mrb[0].mxu0
      %v659 = vadd.f32 %v425, %v658
      %v660 = vpop.f32.mrb[0].mxu0
      %661 = vmatprep.mubr.f32.mxu0 0.0
      %662 = vmatmul.mubr.f32.gmra.mrb[0].mxu0 %v587
      %v663 = vpop.f32.mrb[0].mxu0
      %v664 = vadd.f32 %v430, %v663
      %v665 = vpop.f32.mrb[0].mxu0
      %666 = vmatprep.mubr.f32.mxu0 0.0
      %667 = vmatmul.mubr.f32.gmra.mrb[0].mxu0 %v259
      %v668 = vpop.f32.mrb[0].mxu0
      %v669 = vadd.f32 %v435, %v668
      %v670 = vpop.f32.mrb[0].mxu0
      %671 = vmatprep.mubr.f32.mxu0 0.0
      %672 = vmatmul.mubr.f32.gmra.mrb[0].mxu0 %v262
      %v673 = vpop.f32.mrb[0].mxu0
      %v674 = vadd.f32 %v440, %v673
      %v675 = vpop.f32.mrb[0].mxu0
      %676 = vmatprep.mubr.f32.mxu0 0.0
      %677 = vmatmul.mubr.f32.gmra.mrb[0].mxu0 %v265
      %v678 = vpop.f32.mrb[0].mxu0
      %v679 = vadd.f32 %v445, %v678
      %v680 = vpop.f32.mrb[0].mxu0
      %681 = vmatprep.mubr.f32.mxu0 0.0
      %682 = vmatmul.mubr.f32.gmra.mrb[0].mxu0 %v268
      %v683 = vpop.f32.mrb[0].mxu0
      %v684 = vadd.f32 %v450, %v683
      %v685 = vpop.f32.mrb[0].mxu0
      %686 = vmatprep.mubr.f32.mxu0 0.0
      %687 = vmatmul.mubr.f32.gmra.mrb[0].mxu0 %v271
      %v688 = vpop.f32.mrb[0].mxu0
      %v689 = vadd.f32 %v455, %v688
      %v690 = vpop.f32.mrb[0].mxu0
      %691 = vmatprep.mubr.f32.mxu0 0.0
      %692 = vmatmul.mubr.f32.gmra.mrb[0].mxu0 %v274
      %v693 = vpop.f32.mrb[0].mxu0
      %v694 = vadd.f32 %v460, %v693
      %v695 = vpop.f32.mrb[0].mxu0
      %696 = vmatprep.mubr.f32.mxu0 0.0
      %697 = vmatmul.mubr.f32.gmra.mrb[0].mxu0 %v277
      %v698 = vpop.f32.mrb[0].mxu0
      %v699 = vadd.f32 %v465, %v698
      %v700 = vpop.f32.mrb[0].mxu0
      %701 = vmatprep.mubr.f32.mxu0 0.0
      %702 = vmatmul.mubr.f32.gmra.mrb[0].mxu0 %v280
      %v703 = vpop.f32.mrb[0].mxu0
      %v704 = vadd.f32 %v470, %v703
      %v705 = vpop.f32.mrb[0].mxu0
      %706 = vmatprep.mubr.f32.mxu0 0.0
      %707 = vmatmul.mubr.f32.gmra.mrb[0].mxu0 %v283
      %v708 = vpop.f32.mrb[0].mxu0
      %v709 = vadd.f32 %v475, %v708
      %v710 = vpop.f32.mrb[0].mxu0
      %711 = vmatprep.mubr.f32.mxu0 0.0
      %712 = vmatmul.mubr.f32.gmra.mrb[0].mxu0 %v286
      %v713 = vpop.f32.mrb[0].mxu0
      %v714 = vadd.f32 %v480, %v713
      %v715 = vpop.f32.mrb[0].mxu0
      %716 = vmatprep.mubr.f32.mxu0 0.0
      %717 = vmatmul.mubr.f32.gmra.mrb[0].mxu0 %v289
      %v718 = vpop.f32.mrb[0].mxu0
      %v719 = vadd.f32 %v485, %v718
      %v720 = vpop.f32.mrb[0].mxu0
      %721 = vmatprep.mubr.f32.mxu0 0.0
      %722 = vmatmul.mubr.f32.gmra.mrb[0].mxu0 %v292
      %v723 = vpop.f32.mrb[0].mxu0
      %v724 = vadd.f32 %v490, %v723
      %v725 = vpop.f32.mrb[0].mxu0
      %726 = vmatprep.mubr.f32.mxu0 0.0
      %727 = vmatmul.mubr.f32.gmra.mrb[0].mxu0 %v295
      %v728 = vpop.f32.mrb[0].mxu0
      %v729 = vadd.f32 %v495, %v728
      %v730 = vpop.f32.mrb[0].mxu0
      %731 = vmatprep.mubr.f32.mxu0 0.0
      %732 = vmatmul.mubr.f32.gmra.mrb[0].mxu0 %v298
      %v733 = vpop.f32.mrb[0].mxu0
      %v734 = vadd.f32 %v500, %v733
      %v735 = vpop.f32.mrb[0].mxu0
      %736 = vmatprep.mubr.f32.mxu0 0.0
      %737 = vmatmul.mubr.f32.gmra.mrb[0].mxu0 %v301
      %v738 = vpop.f32.mrb[0].mxu0
      %v739 = vadd.f32 %v505, %v738
      %v740 = vpop.f32.mrb[0].mxu0
      %741 = vmatprep.mubr.f32.mxu0 0.0
      %742 = vmatmul.mubr.f32.gmra.mrb[0].mxu0 %v304
      %v743 = vpop.f32.mrb[0].mxu0
      %v744 = vadd.f32 %v510, %v743
      %v745 = vpop.f32.mrb[0].mxu0
      %746 = vmatprep.mubr.f32.mxu0 0.0
      %747 = vmatmul.mubr.f32.gmra.mrb[0].mxu0 %v307
      %v748 = vpop.f32.mrb[0].mxu0
      %v749 = vadd.f32 %v515, %v748
      %v750 = vpop.f32.mrb[0].mxu0
      %751 = vmatprep.mubr.f32.mxu0 0.0
      %752 = vmatmul.mubr.f32.gmra.mrb[0].mxu0 %v310
      %v753 = vpop.f32.mrb[0].mxu0
      %v754 = vadd.f32 %v520, %v753
      %v755 = vpop.f32.mrb[0].mxu0
      %756 = vmatprep.mubr.f32.mxu0 0.0
      %757 = vmatmul.mubr.f32.gmra.mrb[0].mxu0 %v313
      %v758 = vpop.f32.mrb[0].mxu0
      %v759 = vadd.f32 %v525, %v758
      %v760 = vpop.f32.mrb[0].mxu0
      %761 = vmatprep.mubr.f32.mxu0 0.0
      %762 = vmatmul.mubr.f32.gmra.mrb[0].mxu0 %v316
      %v763 = vpop.f32.mrb[0].mxu0
      %v764 = vadd.f32 %v530, %v763
      %v765 = vpop.f32.mrb[0].mxu0
      %766 = vmatprep.mubr.f32.mxu0 0.0
      %767 = vmatmul.mubr.f32.gmra.mrb[0].mxu0 %v319
      %v768 = vpop.f32.mrb[0].mxu0
      %v769 = vadd.f32 %v535, %v768
      %v770 = vpop.f32.mrb[0].mxu0
      %771 = vmatprep.mubr.f32.mxu0 0.0
      %772 = vmatmul.mubr.f32.gmra.mrb[0].mxu0 %v322
      %v773 = vpop.f32.mrb[0].mxu0
      %v774 = vadd.f32 %v540, %v773
      %v775 = vpop.f32.mrb[0].mxu0
      %776 = vmatprep.mubr.f32.mxu0 0.0
      %777 = vmatmul.mubr.f32.gmra.mrb[0].mxu0 %v325
      %v778 = vpop.f32.mrb[0].mxu0
      %v779 = vadd.f32 %v545, %v778
      %v780 = vpop.f32.mrb[0].mxu0
      %781 = vmatprep.mubr.f32.mxu0 0.0
      %782 = vmatmul.mubr.f32.gmra.mrb[0].mxu0 %v328
      %v783 = vpop.f32.mrb[0].mxu0
      %v784 = vadd.f32 %v550, %v783
      %v785 = vpop.f32.mrb[0].mxu0
      %786 = vmatprep.mubr.f32.mxu0 0.0
      %787 = vmatmul.mubr.f32.gmra.mrb[0].mxu0 %v331
      %v788 = vpop.f32.mrb[0].mxu0
      %v789 = vadd.f32 %v555, %v788
      %v790 = vpop.f32.mrb[0].mxu0
      %791 = vmatprep.mubr.f32.mxu0 0.0
      %792 = vmatmul.mubr.f32.gmra.mrb[0].mxu0 %v334
      %v793 = vpop.f32.mrb[0].mxu0
      %v794 = vadd.f32 %v560, %v793
      %v795 = vpop.f32.mrb[0].mxu0
      %796 = vmatprep.mubr.f32.mxu0 0.0
      %797 = vmatmul.mubr.f32.gmra.mrb[0].mxu0 %v337
      %v798 = vpop.f32.mrb[0].mxu0
      %v799 = vadd.f32 %v565, %v798
      %v800 = vpop.f32.mrb[0].mxu0
      %801 = vmatprep.mubr.f32.mxu0 0.0
      %802 = vmatmul.mubr.f32.gmra.mrb[0].mxu0 %v340
      %v803 = vpop.f32.mrb[0].mxu0
      %v804 = vadd.f32 %v570, %v803
      %v805 = vpop.f32.mrb[0].mxu0
      %806 = vmatprep.mubr.f32.mxu0 0.0
      %807 = vmatmul.mubr.f32.gmra.mrb[0].mxu0 %v343
      %v808 = vpop.f32.mrb[0].mxu0
      %v809 = vadd.f32 %v575, %v808
      %v810 = vpop.f32.mrb[0].mxu0
      %811 = vmatprep.mubr.f32.mxu0 0.0
      %812 = vmatmul.mubr.f32.gmra.mrb[0].mxu0 %v346
      %v813 = vpop.f32.mrb[0].mxu0
      %v814 = vadd.f32 %v580, %v813
      %v815 = vpop.f32.mrb[0].mxu0
      %816 = vdwg.mxu0
      %s817 = scalar_lea.vmem %s2, 24
      %v818 = vld [vmem:[%s817] sm:$0xf]
      %v820 = vsel %vm257, %v252, 0
      %v823 = vsel %vm257, %v253, 0
      %v826 = vsel %vm354, %v818, 0
      %828 = vmatprep.subr.mxu0 0.0
      %829 = vmatpush1.msra.mxu0 %v826
      %830 = vmatprep.subr.mxu0 0.0
      %831 = vmatpush1.msra.mxu0 0.0
      %832 = vmatprep.subr.mxu0 0.0
      %833 = vmatpush1.msra.mxu0 0.0
      %834 = vmatprep.subr.mxu0 0.0
      %835 = vmatpush1.msra.mxu0 0.0
      %836 = vmatprep.subr.mxu0 0.0
      %837 = vmatpush1.msra.mxu0 0.0
      %838 = vmatprep.subr.mxu0 0.0
      %839 = vmatpush1.msra.mxu0 0.0
      %840 = vmatprep.subr.mxu0 0.0
      %841 = vmatpush1.msra.mxu0 0.0
      %842 = vmatprep.subr.mxu0 0.0
      %843 = vmatpush1.msra.mxu0 0.0
      %844 = vmatprep.subr.mxu0 0.0
      %845 = vmatpush1.msra.mxu0 0.0
      %846 = vmatprep.subr.mxu0 0.0
      %847 = vmatpush1.msra.mxu0 0.0
      %848 = vmatprep.subr.mxu0 0.0
      %849 = vmatpush1.msra.mxu0 0.0
      %850 = vmatprep.subr.mxu0 0.0
      %851 = vmatpush1.msra.mxu0 0.0
      %852 = vmatprep.subr.mxu0 0.0
      %853 = vmatpush1.msra.mxu0 0.0
      %854 = vmatprep.subr.mxu0 0.0
      %855 = vmatpush1.msra.mxu0 0.0
      %856 = vmatprep.subr.mxu0 0.0
      %857 = vmatpush1.msra.mxu0 0.0
      %858 = vmatprep.subr.mxu0 0.0
      %859 = vmatpush1.msra.mxu0 0.0
      %860 = vmatprep.subr.mxu0 0.0
      %861 = vmatpush1.msra.mxu0 0.0
      %862 = vmatprep.subr.mxu0 0.0
      %863 = vmatpush1.msra.mxu0 0.0
      %864 = vmatprep.subr.mxu0 0.0
      %865 = vmatpush1.msra.mxu0 0.0
      %866 = vmatprep.subr.mxu0 0.0
      %867 = vmatpush1.msra.mxu0 0.0
      %868 = vmatprep.subr.mxu0 0.0
      %869 = vmatpush1.msra.mxu0 0.0
      %870 = vmatprep.subr.mxu0 0.0
      %871 = vmatpush1.msra.mxu0 0.0
      %872 = vmatprep.subr.mxu0 0.0
      %873 = vmatpush1.msra.mxu0 0.0
      %874 = vmatprep.subr.mxu0 0.0
      %875 = vmatpush1.msra.mxu0 0.0
      %876 = vmatprep.subr.mxu0 0.0
      %877 = vmatpush1.msra.mxu0 0.0
      %878 = vmatprep.subr.mxu0 0.0
      %879 = vmatpush1.msra.mxu0 0.0
      %880 = vmatprep.subr.mxu0 0.0
      %881 = vmatpush1.msra.mxu0 0.0
      %882 = vmatprep.subr.mxu0 0.0
      %883 = vmatpush1.msra.mxu0 0.0
      %884 = vmatprep.subr.mxu0 0.0
      %885 = vmatpush1.msra.mxu0 0.0
      %886 = vmatprep.subr.mxu0 0.0
      %887 = vmatpush1.msra.mxu0 0.0
      %888 = vmatprep.subr.mxu0 0.0
      %889 = vmatpush1.msra.mxu0 0.0
      %890 = vmatprep.subr.mxu0 0.0
      %891 = vmatpush1.msra.mxu0 0.0
      %892 = vmatprep.mubr.f32.mxu0 0.0
      %893 = vmatmul.mubr.f32.gmra.mrb[0].mxu0 %v265
      %v894 = vpop.f32.mrb[0].mxu0
      %v895 = vadd.f32 0.0, %v894
      %v896 = vpop.f32.mrb[0].mxu0
      %897 = vmatprep.mubr.f32.mxu0 0.0
      %898 = vmatmul.mubr.f32.gmra.mrb[0].mxu0 %v268
      %v899 = vpop.f32.mrb[0].mxu0
      %v900 = vadd.f32 0.0, %v899
      %v901 = vpop.f32.mrb[0].mxu0
      %902 = vmatprep.mubr.f32.mxu0 0.0
      %903 = vmatmul.mubr.f32.gmra.mrb[0].mxu0 %v271
      %v904 = vpop.f32.mrb[0].mxu0
      %v905 = vadd.f32 0.0, %v904
      %v906 = vpop.f32.mrb[0].mxu0
      %907 = vmatprep.mubr.f32.mxu0 0.0
      %908 = vmatmul.mubr.f32.gmra.mrb[0].mxu0 %v274
      %v909 = vpop.f32.mrb[0].mxu0
      %v910 = vadd.f32 0.0, %v909
      %v911 = vpop.f32.mrb[0].mxu0
      %912 = vmatprep.mubr.f32.mxu0 0.0
      %913 = vmatmul.mubr.f32.gmra.mrb[0].mxu0 %v277
      %v914 = vpop.f32.mrb[0].mxu0
      %v915 = vadd.f32 0.0, %v914
      %v916 = vpop.f32.mrb[0].mxu0
      %917 = vmatprep.mubr.f32.mxu0 0.0
      %918 = vmatmul.mubr.f32.gmra.mrb[0].mxu0 %v280
      %v919 = vpop.f32.mrb[0].mxu0
      %v920 = vadd.f32 0.0, %v919
      %v921 = vpop.f32.mrb[0].mxu0
      %922 = vmatprep.mubr.f32.mxu0 0.0
      %923 = vmatmul.mubr.f32.gmra.mrb[0].mxu0 %v283
      %v924 = vpop.f32.mrb[0].mxu0
      %v925 = vadd.f32 0.0, %v924
      %v926 = vpop.f32.mrb[0].mxu0
      %927 = vmatprep.mubr.f32.mxu0 0.0
      %928 = vmatmul.mubr.f32.gmra.mrb[0].mxu0 %v286
      %v929 = vpop.f32.mrb[0].mxu0
      %v930 = vadd.f32 0.0, %v929
      %v931 = vpop.f32.mrb[0].mxu0
      %932 = vmatprep.mubr.f32.mxu0 0.0
      %933 = vmatmul.mubr.f32.gmra.mrb[0].mxu0 %v289
      %v934 = vpop.f32.mrb[0].mxu0
      %v935 = vadd.f32 0.0, %v934
      %v936 = vpop.f32.mrb[0].mxu0
      %937 = vmatprep.mubr.f32.mxu0 0.0
      %938 = vmatmul.mubr.f32.gmra.mrb[0].mxu0 %v292
      %v939 = vpop.f32.mrb[0].mxu0
      %v940 = vadd.f32 0.0, %v939
      %v941 = vpop.f32.mrb[0].mxu0
      %942 = vmatprep.mubr.f32.mxu0 0.0
      %943 = vmatmul.mubr.f32.gmra.mrb[0].mxu0 %v295
      %v944 = vpop.f32.mrb[0].mxu0
      %v945 = vadd.f32 0.0, %v944
      %v946 = vpop.f32.mrb[0].mxu0
      %947 = vmatprep.mubr.f32.mxu0 0.0
      %948 = vmatmul.mubr.f32.gmra.mrb[0].mxu0 %v298
      %v949 = vpop.f32.mrb[0].mxu0
      %v950 = vadd.f32 0.0, %v949
      %v951 = vpop.f32.mrb[0].mxu0
      %952 = vmatprep.mubr.f32.mxu0 0.0
      %953 = vmatmul.mubr.f32.gmra.mrb[0].mxu0 %v301
      %v954 = vpop.f32.mrb[0].mxu0
      %v955 = vadd.f32 0.0, %v954
      %v956 = vpop.f32.mrb[0].mxu0
      %957 = vmatprep.mubr.f32.mxu0 0.0
      %958 = vmatmul.mubr.f32.gmra.mrb[0].mxu0 %v304
      %v959 = vpop.f32.mrb[0].mxu0
      %v960 = vadd.f32 0.0, %v959
      %v961 = vpop.f32.mrb[0].mxu0
      %962 = vmatprep.mubr.f32.mxu0 0.0
      %963 = vmatmul.mubr.f32.gmra.mrb[0].mxu0 %v307
      %v964 = vpop.f32.mrb[0].mxu0
      %v965 = vadd.f32 0.0, %v964
      %v966 = vpop.f32.mrb[0].mxu0
      %967 = vmatprep.mubr.f32.mxu0 0.0
      %968 = vmatmul.mubr.f32.gmra.mrb[0].mxu0 %v310
      %v969 = vpop.f32.mrb[0].mxu0
      %v970 = vadd.f32 0.0, %v969
      %v971 = vpop.f32.mrb[0].mxu0
      %972 = vmatprep.mubr.f32.mxu0 0.0
      %973 = vmatmul.mubr.f32.gmra.mrb[0].mxu0 %v313
      %v974 = vpop.f32.mrb[0].mxu0
      %v975 = vadd.f32 0.0, %v974
      %v976 = vpop.f32.mrb[0].mxu0
      %977 = vmatprep.mubr.f32.mxu0 0.0
      %978 = vmatmul.mubr.f32.gmra.mrb[0].mxu0 %v316
      %v979 = vpop.f32.mrb[0].mxu0
      %v980 = vadd.f32 0.0, %v979
      %v981 = vpop.f32.mrb[0].mxu0
      %982 = vmatprep.mubr.f32.mxu0 0.0
      %983 = vmatmul.mubr.f32.gmra.mrb[0].mxu0 %v319
      %v984 = vpop.f32.mrb[0].mxu0
      %v985 = vadd.f32 0.0, %v984
      %v986 = vpop.f32.mrb[0].mxu0
      %987 = vmatprep.mubr.f32.mxu0 0.0
      %988 = vmatmul.mubr.f32.gmra.mrb[0].mxu0 %v322
      %v989 = vpop.f32.mrb[0].mxu0
      %v990 = vadd.f32 0.0, %v989
      %v991 = vpop.f32.mrb[0].mxu0
      %992 = vmatprep.mubr.f32.mxu0 0.0
      %993 = vmatmul.mubr.f32.gmra.mrb[0].mxu0 %v325
      %v994 = vpop.f32.mrb[0].mxu0
      %v995 = vadd.f32 0.0, %v994
      %v996 = vpop.f32.mrb[0].mxu0
      %997 = vmatprep.mubr.f32.mxu0 0.0
      %998 = vmatmul.mubr.f32.gmra.mrb[0].mxu0 %v328
      %v999 = vpop.f32.mrb[0].mxu0
      %v1000 = vadd.f32 0.0, %v999
      %v1001 = vpop.f32.mrb[0].mxu0
      %1002 = vmatprep.mubr.f32.mxu0 0.0
      %1003 = vmatmul.mubr.f32.gmra.mrb[0].mxu0 %v331
      %v1004 = vpop.f32.mrb[0].mxu0
      %v1005 = vadd.f32 0.0, %v1004
      %v1006 = vpop.f32.mrb[0].mxu0
      %1007 = vmatprep.mubr.f32.mxu0 0.0
      %1008 = vmatmul.mubr.f32.gmra.mrb[0].mxu0 %v334
      %v1009 = vpop.f32.mrb[0].mxu0
      %v1010 = vadd.f32 0.0, %v1009
      %v1011 = vpop.f32.mrb[0].mxu0
      %1012 = vmatprep.mubr.f32.mxu0 0.0
      %1013 = vmatmul.mubr.f32.gmra.mrb[0].mxu0 %v337
      %v1014 = vpop.f32.mrb[0].mxu0
      %v1015 = vadd.f32 0.0, %v1014
      %v1016 = vpop.f32.mrb[0].mxu0
      %1017 = vmatprep.mubr.f32.mxu0 0.0
      %1018 = vmatmul.mubr.f32.gmra.mrb[0].mxu0 %v340
      %v1019 = vpop.f32.mrb[0].mxu0
      %v1020 = vadd.f32 0.0, %v1019
      %v1021 = vpop.f32.mrb[0].mxu0
      %1022 = vmatprep.mubr.f32.mxu0 0.0
      %1023 = vmatmul.mubr.f32.gmra.mrb[0].mxu0 %v343
      %v1024 = vpop.f32.mrb[0].mxu0
      %v1025 = vadd.f32 0.0, %v1024
      %v1026 = vpop.f32.mrb[0].mxu0
      %1027 = vmatprep.mubr.f32.mxu0 0.0
      %1028 = vmatmul.mubr.f32.gmra.mrb[0].mxu0 %v346
      %v1029 = vpop.f32.mrb[0].mxu0
      %v1030 = vadd.f32 0.0, %v1029
      %v1031 = vpop.f32.mrb[0].mxu0
      %1032 = vmatprep.mubr.f32.mxu0 0.0
      %1033 = vmatmul.mubr.f32.gmra.mrb[0].mxu0 %v349
      %v1034 = vpop.f32.mrb[0].mxu0
      %v1035 = vadd.f32 0.0, %v1034
      %v1036 = vpop.f32.mrb[0].mxu0
      %1037 = vmatprep.mubr.f32.mxu0 0.0
      %1038 = vmatmul.mubr.f32.gmra.mrb[0].mxu0 %v352
      %v1039 = vpop.f32.mrb[0].mxu0
      %v1040 = vadd.f32 0.0, %v1039
      %v1041 = vpop.f32.mrb[0].mxu0
      %1042 = vmatprep.mubr.f32.mxu0 0.0
      %1043 = vmatmul.mubr.f32.gmra.mrb[0].mxu0 %v820
      %v1044 = vpop.f32.mrb[0].mxu0
      %v1045 = vadd.f32 0.0, %v1044
      %v1046 = vpop.f32.mrb[0].mxu0
      %1047 = vmatprep.mubr.f32.mxu0 0.0
      %1048 = vmatmul.mubr.f32.gmra.mrb[0].mxu0 %v823
      %v1049 = vpop.f32.mrb[0].mxu0
      %v1050 = vadd.f32 0.0, %v1049
      %v1051 = vpop.f32.mrb[0].mxu0
      %1052 = vdwg.mxu0
      %v1053 = vadd.f32 %v659, %v895
      %v1054 = vadd.f32 %v664, %v900
      %v1055 = vadd.f32 %v669, %v905
      %v1056 = vadd.f32 %v674, %v910
      %v1057 = vadd.f32 %v679, %v915
      %v1058 = vadd.f32 %v684, %v920
      %v1059 = vadd.f32 %v689, %v925
      %v1060 = vadd.f32 %v694, %v930
      %v1061 = vadd.f32 %v699, %v935
      %v1062 = vadd.f32 %v704, %v940
      %v1063 = vadd.f32 %v709, %v945
      %v1064 = vadd.f32 %v714, %v950
      %v1065 = vadd.f32 %v719, %v955
      %v1066 = vadd.f32 %v724, %v960
      %v1067 = vadd.f32 %v729, %v965
      %v1068 = vadd.f32 %v734, %v970
      %v1069 = vadd.f32 %v739, %v975
      %v1070 = vadd.f32 %v744, %v980
      %v1071 = vadd.f32 %v749, %v985
      %v1072 = vadd.f32 %v754, %v990
      %v1073 = vadd.f32 %v759, %v995
      %v1074 = vadd.f32 %v764, %v1000
      %v1075 = vadd.f32 %v769, %v1005
      %v1076 = vadd.f32 %v774, %v1010
      %v1077 = vadd.f32 %v779, %v1015
      %v1078 = vadd.f32 %v784, %v1020
      %v1079 = vadd.f32 %v789, %v1025
      %v1080 = vadd.f32 %v794, %v1030
      %v1081 = vadd.f32 %v799, %v1035
      %v1082 = vadd.f32 %v804, %v1040
      %v1083 = vadd.f32 %v809, %v1045
      %v1084 = vadd.f32 %v814, %v1050
      %v1085 = vld [vmem:[%s207 + $0x1] sm:$0xff]
      %v1086 = vld [vmem:[%s207 + $0x9] sm:$0xff]
      %v1087 = vld [vmem:[%s207 + $0x19] sm:$0xff]
      %v1088 = vld [vmem:[%s207 + $0x21] sm:$0xff]
      %v1089 = vld [vmem:[%s207 + $0x31] sm:$0xff]
      %v1090 = vld [vmem:[%s207 + $0x39] sm:$0xff]
      %v1091 = vld [vmem:[%s207 + $0x49] sm:$0xff]
      %v1092 = vld [vmem:[%s207 + $0x51] sm:$0xff]
      %v1093 = vld [vmem:[%s207 + $0x61] sm:$0xff]
      %v1094 = vld [vmem:[%s207 + $0x69] sm:$0xff]
      %v1095 = vld [vmem:[%s207 + $0x79] sm:$0xff]
      %v1096 = vld [vmem:[%s207 + $0x81] sm:$0xff]
      %v1097 = vld [vmem:[%s207 + $0x91] sm:$0xff]
      %v1098 = vld [vmem:[%s207 + $0x99] sm:$0xff]
      %v1099 = vld [vmem:[%s207 + $0xa9] sm:$0xff]
      %v1100 = vld [vmem:[%s207 + $0xb1] sm:$0xff]
      %v1101 = vld [vmem:[%s207 + $0xc1] sm:$0xff]
      %v1102 = vld [vmem:[%s207 + $0xc9] sm:$0xff]
      %v1103 = vld [vmem:[%s207 + $0xd9] sm:$0xff]
      %v1104 = vld [vmem:[%s207 + $0xe1] sm:$0xff]
      %v1105 = vld [vmem:[%s207 + $0xf1] sm:$0xff]
      %v1106 = vld [vmem:[%s207 + $0xf9] sm:$0xff]
      %v1107 = vld [vmem:[%s207 + $0x109] sm:$0xff]
      %v1108 = vld [vmem:[%s207 + $0x111] sm:$0xff]
      %v1109 = vld [vmem:[%s207 + $0x121] sm:$0xff]
      %v1110 = vld [vmem:[%s207 + $0x129] sm:$0xff]
      %v1111 = vld [vmem:[%s207 + $0x139] sm:$0xff]
      %v1112 = vld [vmem:[%s207 + $0x141] sm:$0xff]
      %v1113 = vld [vmem:[%s207 + $0x151] sm:$0xff]
      %v1114 = vld [vmem:[%s207 + $0x159] sm:$0xff]
      %v1115 = vld [vmem:[%s207 + $0x169] sm:$0xff]
      %v1116 = vld [vmem:[%s207 + $0x171] sm:$0xff]
      %v1117 = vld [vmem:[%s207 + $0x181] sm:$0xff]
      %v1118 = vld [vmem:[%s207 + $0x189] sm:$0xff]
      %v1119 = vld [vmem:[%s207 + $0x199] sm:$0xff]
      %v1120 = vld [vmem:[%s207 + $0x1a1] sm:$0xff]
      %s1121 = scalar_lea.vmem %s2, 4
      %v1122 = vld [vmem:[%s1121] sm:$0xf]
      %v1124 = vsel %vm257, %v1085, 0
      %v1127 = vsel %vm257, %v1086, 0
      %v1130 = vsel %vm257, %v1087, 0
      %v1133 = vsel %vm257, %v1088, 0
      %v1136 = vsel %vm257, %v1089, 0
      %v1139 = vsel %vm257, %v1090, 0
      %v1142 = vsel %vm257, %v1091, 0
      %v1145 = vsel %vm257, %v1092, 0
      %v1148 = vsel %vm257, %v1093, 0
      %v1151 = vsel %vm257, %v1094, 0
      %v1154 = vsel %vm257, %v1095, 0
      %v1157 = vsel %vm257, %v1096, 0
      %v1160 = vsel %vm257, %v1097, 0
      %v1163 = vsel %vm257, %v1098, 0
      %v1166 = vsel %vm257, %v1099, 0
      %v1169 = vsel %vm257, %v1100, 0
      %v1172 = vsel %vm257, %v1101, 0
      %v1175 = vsel %vm257, %v1102, 0
      %v1178 = vsel %vm257, %v1103, 0
      %v1181 = vsel %vm257, %v1104, 0
      %v1184 = vsel %vm257, %v1105, 0
      %v1187 = vsel %vm257, %v1106, 0
      %v1190 = vsel %vm257, %v1107, 0
      %v1193 = vsel %vm257, %v1108, 0
      %v1196 = vsel %vm257, %v1109, 0
      %v1199 = vsel %vm257, %v1110, 0
      %v1202 = vsel %vm257, %v1111, 0
      %v1205 = vsel %vm257, %v1112, 0
      %v1208 = vsel %vm257, %v1113, 0
      %v1211 = vsel %vm257, %v1114, 0
      %v1214 = vsel %vm257, %v1115, 0
      %v1217 = vsel %vm257, %v1116, 0
      %v1220 = vsel %vm354, %v1122, 0
      %1222 = vmatprep.subr.mxu0 0.0
      %1223 = vmatpush1.msra.mxu0 %v1220
      %1224 = vmatprep.subr.mxu0 0.0
      %1225 = vmatpush1.msra.mxu0 0.0
      %1226 = vmatprep.subr.mxu0 0.0
      %1227 = vmatpush1.msra.mxu0 0.0
      %1228 = vmatprep.subr.mxu0 0.0
      %1229 = vmatpush1.msra.mxu0 0.0
      %1230 = vmatprep.subr.mxu0 0.0
      %1231 = vmatpush1.msra.mxu0 0.0
      %1232 = vmatprep.subr.mxu0 0.0
      %1233 = vmatpush1.msra.mxu0 0.0
      %1234 = vmatprep.subr.mxu0 0.0
      %1235 = vmatpush1.msra.mxu0 0.0
      %1236 = vmatprep.subr.mxu0 0.0
      %1237 = vmatpush1.msra.mxu0 0.0
      %1238 = vmatprep.subr.mxu0 0.0
      %1239 = vmatpush1.msra.mxu0 0.0
      %1240 = vmatprep.subr.mxu0 0.0
      %1241 = vmatpush1.msra.mxu0 0.0
      %1242 = vmatprep.subr.mxu0 0.0
      %1243 = vmatpush1.msra.mxu0 0.0
      %1244 = vmatprep.subr.mxu0 0.0
      %1245 = vmatpush1.msra.mxu0 0.0
      %1246 = vmatprep.subr.mxu0 0.0
      %1247 = vmatpush1.msra.mxu0 0.0
      %1248 = vmatprep.subr.mxu0 0.0
      %1249 = vmatpush1.msra.mxu0 0.0
      %1250 = vmatprep.subr.mxu0 0.0
      %1251 = vmatpush1.msra.mxu0 0.0
      %1252 = vmatprep.subr.mxu0 0.0
      %1253 = vmatpush1.msra.mxu0 0.0
      %1254 = vmatprep.subr.mxu0 0.0
      %1255 = vmatpush1.msra.mxu0 0.0
      %1256 = vmatprep.subr.mxu0 0.0
      %1257 = vmatpush1.msra.mxu0 0.0
      %1258 = vmatprep.subr.mxu0 0.0
      %1259 = vmatpush1.msra.mxu0 0.0
      %1260 = vmatprep.subr.mxu0 0.0
      %1261 = vmatpush1.msra.mxu0 0.0
      %1262 = vmatprep.subr.mxu0 0.0
      %1263 = vmatpush1.msra.mxu0 0.0
      %1264 = vmatprep.subr.mxu0 0.0
      %1265 = vmatpush1.msra.mxu0 0.0
      %1266 = vmatprep.subr.mxu0 0.0
      %1267 = vmatpush1.msra.mxu0 0.0
      %1268 = vmatprep.subr.mxu0 0.0
      %1269 = vmatpush1.msra.mxu0 0.0
      %1270 = vmatprep.subr.mxu0 0.0
      %1271 = vmatpush1.msra.mxu0 0.0
      %1272 = vmatprep.subr.mxu0 0.0
      %1273 = vmatpush1.msra.mxu0 0.0
      %1274 = vmatprep.subr.mxu0 0.0
      %1275 = vmatpush1.msra.mxu0 0.0
      %1276 = vmatprep.subr.mxu0 0.0
      %1277 = vmatpush1.msra.mxu0 0.0
      %1278 = vmatprep.subr.mxu0 0.0
      %1279 = vmatpush1.msra.mxu0 0.0
      %1280 = vmatprep.subr.mxu0 0.0
      %1281 = vmatpush1.msra.mxu0 0.0
      %1282 = vmatprep.subr.mxu0 0.0
      %1283 = vmatpush1.msra.mxu0 0.0
      %1284 = vmatprep.subr.mxu0 0.0
      %1285 = vmatpush1.msra.mxu0 0.0
      %1286 = vmatprep.mubr.f32.mxu0 0.0
      %1287 = vmatmul.mubr.f32.gmra.mrb[0].mxu0 %v1124
      %v1288 = vpop.f32.mrb[0].mxu0
      %v1289 = vadd.f32 0.0, %v1288
      %v1290 = vpop.f32.mrb[0].mxu0
      %1291 = vmatprep.mubr.f32.mxu0 0.0
      %1292 = vmatmul.mubr.f32.gmra.mrb[0].mxu0 %v1127
      %v1293 = vpop.f32.mrb[0].mxu0
      %v1294 = vadd.f32 0.0, %v1293
      %v1295 = vpop.f32.mrb[0].mxu0
      %1296 = vmatprep.mubr.f32.mxu0 0.0
      %1297 = vmatmul.mubr.f32.gmra.mrb[0].mxu0 %v1130
      %v1298 = vpop.f32.mrb[0].mxu0
      %v1299 = vadd.f32 0.0, %v1298
      %v1300 = vpop.f32.mrb[0].mxu0
      %1301 = vmatprep.mubr.f32.mxu0 0.0
      %1302 = vmatmul.mubr.f32.gmra.mrb[0].mxu0 %v1133
      %v1303 = vpop.f32.mrb[0].mxu0
      %v1304 = vadd.f32 0.0, %v1303
      %v1305 = vpop.f32.mrb[0].mxu0
      %1306 = vmatprep.mubr.f32.mxu0 0.0
      %1307 = vmatmul.mubr.f32.gmra.mrb[0].mxu0 %v1136
      %v1308 = vpop.f32.mrb[0].mxu0
      %v1309 = vadd.f32 0.0, %v1308
      %v1310 = vpop.f32.mrb[0].mxu0
      %1311 = vmatprep.mubr.f32.mxu0 0.0
      %1312 = vmatmul.mubr.f32.gmra.mrb[0].mxu0 %v1139
      %v1313 = vpop.f32.mrb[0].mxu0
      %v1314 = vadd.f32 0.0, %v1313
      %v1315 = vpop.f32.mrb[0].mxu0
      %1316 = vmatprep.mubr.f32.mxu0 0.0
      %1317 = vmatmul.mubr.f32.gmra.mrb[0].mxu0 %v1142
      %v1318 = vpop.f32.mrb[0].mxu0
      %v1319 = vadd.f32 0.0, %v1318
      %v1320 = vpop.f32.mrb[0].mxu0
      %1321 = vmatprep.mubr.f32.mxu0 0.0
      %1322 = vmatmul.mubr.f32.gmra.mrb[0].mxu0 %v1145
      %v1323 = vpop.f32.mrb[0].mxu0
      %v1324 = vadd.f32 0.0, %v1323
      %v1325 = vpop.f32.mrb[0].mxu0
      %1326 = vmatprep.mubr.f32.mxu0 0.0
      %1327 = vmatmul.mubr.f32.gmra.mrb[0].mxu0 %v1148
      %v1328 = vpop.f32.mrb[0].mxu0
      %v1329 = vadd.f32 0.0, %v1328
      %v1330 = vpop.f32.mrb[0].mxu0
      %1331 = vmatprep.mubr.f32.mxu0 0.0
      %1332 = vmatmul.mubr.f32.gmra.mrb[0].mxu0 %v1151
      %v1333 = vpop.f32.mrb[0].mxu0
      %v1334 = vadd.f32 0.0, %v1333
      %v1335 = vpop.f32.mrb[0].mxu0
      %1336 = vmatprep.mubr.f32.mxu0 0.0
      %1337 = vmatmul.mubr.f32.gmra.mrb[0].mxu0 %v1154
      %v1338 = vpop.f32.mrb[0].mxu0
      %v1339 = vadd.f32 0.0, %v1338
      %v1340 = vpop.f32.mrb[0].mxu0
      %1341 = vmatprep.mubr.f32.mxu0 0.0
      %1342 = vmatmul.mubr.f32.gmra.mrb[0].mxu0 %v1157
      %v1343 = vpop.f32.mrb[0].mxu0
      %v1344 = vadd.f32 0.0, %v1343
      %v1345 = vpop.f32.mrb[0].mxu0
      %1346 = vmatprep.mubr.f32.mxu0 0.0
      %1347 = vmatmul.mubr.f32.gmra.mrb[0].mxu0 %v1160
      %v1348 = vpop.f32.mrb[0].mxu0
      %v1349 = vadd.f32 0.0, %v1348
      %v1350 = vpop.f32.mrb[0].mxu0
      %1351 = vmatprep.mubr.f32.mxu0 0.0
      %1352 = vmatmul.mubr.f32.gmra.mrb[0].mxu0 %v1163
      %v1353 = vpop.f32.mrb[0].mxu0
      %v1354 = vadd.f32 0.0, %v1353
      %v1355 = vpop.f32.mrb[0].mxu0
      %1356 = vmatprep.mubr.f32.mxu0 0.0
      %1357 = vmatmul.mubr.f32.gmra.mrb[0].mxu0 %v1166
      %v1358 = vpop.f32.mrb[0].mxu0
      %v1359 = vadd.f32 0.0, %v1358
      %v1360 = vpop.f32.mrb[0].mxu0
      %1361 = vmatprep.mubr.f32.mxu0 0.0
      %1362 = vmatmul.mubr.f32.gmra.mrb[0].mxu0 %v1169
      %v1363 = vpop.f32.mrb[0].mxu0
      %v1364 = vadd.f32 0.0, %v1363
      %v1365 = vpop.f32.mrb[0].mxu0
      %1366 = vmatprep.mubr.f32.mxu0 0.0
      %1367 = vmatmul.mubr.f32.gmra.mrb[0].mxu0 %v1172
      %v1368 = vpop.f32.mrb[0].mxu0
      %v1369 = vadd.f32 0.0, %v1368
      %v1370 = vpop.f32.mrb[0].mxu0
      %1371 = vmatprep.mubr.f32.mxu0 0.0
      %1372 = vmatmul.mubr.f32.gmra.mrb[0].mxu0 %v1175
      %v1373 = vpop.f32.mrb[0].mxu0
      %v1374 = vadd.f32 0.0, %v1373
      %v1375 = vpop.f32.mrb[0].mxu0
      %1376 = vmatprep.mubr.f32.mxu0 0.0
      %1377 = vmatmul.mubr.f32.gmra.mrb[0].mxu0 %v1178
      %v1378 = vpop.f32.mrb[0].mxu0
      %v1379 = vadd.f32 0.0, %v1378
      %v1380 = vpop.f32.mrb[0].mxu0
      %1381 = vmatprep.mubr.f32.mxu0 0.0
      %1382 = vmatmul.mubr.f32.gmra.mrb[0].mxu0 %v1181
      %v1383 = vpop.f32.mrb[0].mxu0
      %v1384 = vadd.f32 0.0, %v1383
      %v1385 = vpop.f32.mrb[0].mxu0
      %1386 = vmatprep.mubr.f32.mxu0 0.0
      %1387 = vmatmul.mubr.f32.gmra.mrb[0].mxu0 %v1184
      %v1388 = vpop.f32.mrb[0].mxu0
      %v1389 = vadd.f32 0.0, %v1388
      %v1390 = vpop.f32.mrb[0].mxu0
      %1391 = vmatprep.mubr.f32.mxu0 0.0
      %1392 = vmatmul.mubr.f32.gmra.mrb[0].mxu0 %v1187
      %v1393 = vpop.f32.mrb[0].mxu0
      %v1394 = vadd.f32 0.0, %v1393
      %v1395 = vpop.f32.mrb[0].mxu0
      %1396 = vmatprep.mubr.f32.mxu0 0.0
      %1397 = vmatmul.mubr.f32.gmra.mrb[0].mxu0 %v1190
      %v1398 = vpop.f32.mrb[0].mxu0
      %v1399 = vadd.f32 0.0, %v1398
      %v1400 = vpop.f32.mrb[0].mxu0
      %1401 = vmatprep.mubr.f32.mxu0 0.0
      %1402 = vmatmul.mubr.f32.gmra.mrb[0].mxu0 %v1193
      %v1403 = vpop.f32.mrb[0].mxu0
      %v1404 = vadd.f32 0.0, %v1403
      %v1405 = vpop.f32.mrb[0].mxu0
      %1406 = vmatprep.mubr.f32.mxu0 0.0
      %1407 = vmatmul.mubr.f32.gmra.mrb[0].mxu0 %v1196
      %v1408 = vpop.f32.mrb[0].mxu0
      %v1409 = vadd.f32 0.0, %v1408
      %v1410 = vpop.f32.mrb[0].mxu0
      %1411 = vmatprep.mubr.f32.mxu0 0.0
      %1412 = vmatmul.mubr.f32.gmra.mrb[0].mxu0 %v1199
      %v1413 = vpop.f32.mrb[0].mxu0
      %v1414 = vadd.f32 0.0, %v1413
      %v1415 = vpop.f32.mrb[0].mxu0
      %1416 = vmatprep.mubr.f32.mxu0 0.0
      %1417 = vmatmul.mubr.f32.gmra.mrb[0].mxu0 %v1202
      %v1418 = vpop.f32.mrb[0].mxu0
      %v1419 = vadd.f32 0.0, %v1418
      %v1420 = vpop.f32.mrb[0].mxu0
      %1421 = vmatprep.mubr.f32.mxu0 0.0
      %1422 = vmatmul.mubr.f32.gmra.mrb[0].mxu0 %v1205
      %v1423 = vpop.f32.mrb[0].mxu0
      %v1424 = vadd.f32 0.0, %v1423
      %v1425 = vpop.f32.mrb[0].mxu0
      %1426 = vmatprep.mubr.f32.mxu0 0.0
      %1427 = vmatmul.mubr.f32.gmra.mrb[0].mxu0 %v1208
      %v1428 = vpop.f32.mrb[0].mxu0
      %v1429 = vadd.f32 0.0, %v1428
      %v1430 = vpop.f32.mrb[0].mxu0
      %1431 = vmatprep.mubr.f32.mxu0 0.0
      %1432 = vmatmul.mubr.f32.gmra.mrb[0].mxu0 %v1211
      %v1433 = vpop.f32.mrb[0].mxu0
      %v1434 = vadd.f32 0.0, %v1433
      %v1435 = vpop.f32.mrb[0].mxu0
      %1436 = vmatprep.mubr.f32.mxu0 0.0
      %1437 = vmatmul.mubr.f32.gmra.mrb[0].mxu0 %v1214
      %v1438 = vpop.f32.mrb[0].mxu0
      %v1439 = vadd.f32 0.0, %v1438
      %v1440 = vpop.f32.mrb[0].mxu0
      %1441 = vmatprep.mubr.f32.mxu0 0.0
      %1442 = vmatmul.mubr.f32.gmra.mrb[0].mxu0 %v1217
      %v1443 = vpop.f32.mrb[0].mxu0
      %v1444 = vadd.f32 0.0, %v1443
      %v1445 = vpop.f32.mrb[0].mxu0
      %1446 = vdwg.mxu0
      %v1447 = vadd.f32 %v1053, %v1289
      %v1448 = vadd.f32 %v1054, %v1294
      %v1449 = vadd.f32 %v1055, %v1299
      %v1450 = vadd.f32 %v1056, %v1304
      %v1451 = vadd.f32 %v1057, %v1309
      %v1452 = vadd.f32 %v1058, %v1314
      %v1453 = vadd.f32 %v1059, %v1319
      %v1454 = vadd.f32 %v1060, %v1324
      %v1455 = vadd.f32 %v1061, %v1329
      %v1456 = vadd.f32 %v1062, %v1334
      %v1457 = vadd.f32 %v1063, %v1339
      %v1458 = vadd.f32 %v1064, %v1344
      %v1459 = vadd.f32 %v1065, %v1349
      %v1460 = vadd.f32 %v1066, %v1354
      %v1461 = vadd.f32 %v1067, %v1359
      %v1462 = vadd.f32 %v1068, %v1364
      %v1463 = vadd.f32 %v1069, %v1369
      %v1464 = vadd.f32 %v1070, %v1374
      %v1465 = vadd.f32 %v1071, %v1379
      %v1466 = vadd.f32 %v1072, %v1384
      %v1467 = vadd.f32 %v1073, %v1389
      %v1468 = vadd.f32 %v1074, %v1394
      %v1469 = vadd.f32 %v1075, %v1399
      %v1470 = vadd.f32 %v1076, %v1404
      %v1471 = vadd.f32 %v1077, %v1409
      %v1472 = vadd.f32 %v1078, %v1414
      %v1473 = vadd.f32 %v1079, %v1419
      %v1474 = vadd.f32 %v1080, %v1424
      %v1475 = vadd.f32 %v1081, %v1429
      %v1476 = vadd.f32 %v1082, %v1434
      %v1477 = vadd.f32 %v1083, %v1439
      %v1478 = vadd.f32 %v1084, %v1444
      %s1479 = scalar_lea.vmem %s2, 16
      %v1480 = vld [vmem:[%s1479] sm:$0xf]
      %v1482 = vsel %vm257, %v1117, 0
      %v1485 = vsel %vm257, %v1118, 0
      %v1488 = vsel %vm354, %v1480, 0
      %1490 = vmatprep.subr.mxu0 0.0
      %1491 = vmatpush1.msra.mxu0 %v1488
      %1492 = vmatprep.subr.mxu0 0.0
      %1493 = vmatpush1.msra.mxu0 0.0
      %1494 = vmatprep.subr.mxu0 0.0
      %1495 = vmatpush1.msra.mxu0 0.0
      %1496 = vmatprep.subr.mxu0 0.0
      %1497 = vmatpush1.msra.mxu0 0.0
      %1498 = vmatprep.subr.mxu0 0.0
      %1499 = vmatpush1.msra.mxu0 0.0
      %1500 = vmatprep.subr.mxu0 0.0
      %1501 = vmatpush1.msra.mxu0 0.0
      %1502 = vmatprep.subr.mxu0 0.0
      %1503 = vmatpush1.msra.mxu0 0.0
      %1504 = vmatprep.subr.mxu0 0.0
      %1505 = vmatpush1.msra.mxu0 0.0
      %1506 = vmatprep.subr.mxu0 0.0
      %1507 = vmatpush1.msra.mxu0 0.0
      %1508 = vmatprep.subr.mxu0 0.0
      %1509 = vmatpush1.msra.mxu0 0.0
      %1510 = vmatprep.subr.mxu0 0.0
      %1511 = vmatpush1.msra.mxu0 0.0
      %1512 = vmatprep.subr.mxu0 0.0
      %1513 = vmatpush1.msra.mxu0 0.0
      %1514 = vmatprep.subr.mxu0 0.0
      %1515 = vmatpush1.msra.mxu0 0.0
      %1516 = vmatprep.subr.mxu0 0.0
      %1517 = vmatpush1.msra.mxu0 0.0
      %1518 = vmatprep.subr.mxu0 0.0
      %1519 = vmatpush1.msra.mxu0 0.0
      %1520 = vmatprep.subr.mxu0 0.0
      %1521 = vmatpush1.msra.mxu0 0.0
      %1522 = vmatprep.subr.mxu0 0.0
      %1523 = vmatpush1.msra.mxu0 0.0
      %1524 = vmatprep.subr.mxu0 0.0
      %1525 = vmatpush1.msra.mxu0 0.0
      %1526 = vmatprep.subr.mxu0 0.0
      %1527 = vmatpush1.msra.mxu0 0.0
      %1528 = vmatprep.subr.mxu0 0.0
      %1529 = vmatpush1.msra.mxu0 0.0
      %1530 = vmatprep.subr.mxu0 0.0
      %1531 = vmatpush1.msra.mxu0 0.0
      %1532 = vmatprep.subr.mxu0 0.0
      %1533 = vmatpush1.msra.mxu0 0.0
      %1534 = vmatprep.subr.mxu0 0.0
      %1535 = vmatpush1.msra.mxu0 0.0
      %1536 = vmatprep.subr.mxu0 0.0
      %1537 = vmatpush1.msra.mxu0 0.0
      %1538 = vmatprep.subr.mxu0 0.0
      %1539 = vmatpush1.msra.mxu0 0.0
      %1540 = vmatprep.subr.mxu0 0.0
      %1541 = vmatpush1.msra.mxu0 0.0
      %1542 = vmatprep.subr.mxu0 0.0
      %1543 = vmatpush1.msra.mxu0 0.0
      %1544 = vmatprep.subr.mxu0 0.0
      %1545 = vmatpush1.msra.mxu0 0.0
      %1546 = vmatprep.subr.mxu0 0.0
      %1547 = vmatpush1.msra.mxu0 0.0
      %1548 = vmatprep.subr.mxu0 0.0
      %1549 = vmatpush1.msra.mxu0 0.0
      %1550 = vmatprep.subr.mxu0 0.0
      %1551 = vmatpush1.msra.mxu0 0.0
      %1552 = vmatprep.subr.mxu0 0.0
      %1553 = vmatpush1.msra.mxu0 0.0
      %1554 = vmatprep.mubr.f32.mxu0 0.0
      %1555 = vmatmul.mubr.f32.gmra.mrb[0].mxu0 %v1130
      %v1556 = vpop.f32.mrb[0].mxu0
      %v1557 = vadd.f32 0.0, %v1556
      %v1558 = vpop.f32.mrb[0].mxu0
      %1559 = vmatprep.mubr.f32.mxu0 0.0
      %1560 = vmatmul.mubr.f32.gmra.mrb[0].mxu0 %v1133
      %v1561 = vpop.f32.mrb[0].mxu0
      %v1562 = vadd.f32 0.0, %v1561
      %v1563 = vpop.f32.mrb[0].mxu0
      %1564 = vmatprep.mubr.f32.mxu0 0.0
      %1565 = vmatmul.mubr.f32.gmra.mrb[0].mxu0 %v1136
      %v1566 = vpop.f32.mrb[0].mxu0
      %v1567 = vadd.f32 0.0, %v1566
      %v1568 = vpop.f32.mrb[0].mxu0
      %1569 = vmatprep.mubr.f32.mxu0 0.0
      %1570 = vmatmul.mubr.f32.gmra.mrb[0].mxu0 %v1139
      %v1571 = vpop.f32.mrb[0].mxu0
      %v1572 = vadd.f32 0.0, %v1571
      %v1573 = vpop.f32.mrb[0].mxu0
      %1574 = vmatprep.mubr.f32.mxu0 0.0
      %1575 = vmatmul.mubr.f32.gmra.mrb[0].mxu0 %v1142
      %v1576 = vpop.f32.mrb[0].mxu0
      %v1577 = vadd.f32 0.0, %v1576
      %v1578 = vpop.f32.mrb[0].mxu0
      %1579 = vmatprep.mubr.f32.mxu0 0.0
      %1580 = vmatmul.mubr.f32.gmra.mrb[0].mxu0 %v1145
      %v1581 = vpop.f32.mrb[0].mxu0
      %v1582 = vadd.f32 0.0, %v1581
      %v1583 = vpop.f32.mrb[0].mxu0
      %1584 = vmatprep.mubr.f32.mxu0 0.0
      %1585 = vmatmul.mubr.f32.gmra.mrb[0].mxu0 %v1148
      %v1586 = vpop.f32.mrb[0].mxu0
      %v1587 = vadd.f32 0.0, %v1586
      %v1588 = vpop.f32.mrb[0].mxu0
      %1589 = vmatprep.mubr.f32.mxu0 0.0
      %1590 = vmatmul.mubr.f32.gmra.mrb[0].mxu0 %v1151
      %v1591 = vpop.f32.mrb[0].mxu0
      %v1592 = vadd.f32 0.0, %v1591
      %v1593 = vpop.f32.mrb[0].mxu0
      %1594 = vmatprep.mubr.f32.mxu0 0.0
      %1595 = vmatmul.mubr.f32.gmra.mrb[0].mxu0 %v1154
      %v1596 = vpop.f32.mrb[0].mxu0
      %v1597 = vadd.f32 0.0, %v1596
      %v1598 = vpop.f32.mrb[0].mxu0
      %1599 = vmatprep.mubr.f32.mxu0 0.0
      %1600 = vmatmul.mubr.f32.gmra.mrb[0].mxu0 %v1157
      %v1601 = vpop.f32.mrb[0].mxu0
      %v1602 = vadd.f32 0.0, %v1601
      %v1603 = vpop.f32.mrb[0].mxu0
      %1604 = vmatprep.mubr.f32.mxu0 0.0
      %1605 = vmatmul.mubr.f32.gmra.mrb[0].mxu0 %v1160
      %v1606 = vpop.f32.mrb[0].mxu0
      %v1607 = vadd.f32 0.0, %v1606
      %v1608 = vpop.f32.mrb[0].mxu0
      %1609 = vmatprep.mubr.f32.mxu0 0.0
      %1610 = vmatmul.mubr.f32.gmra.mrb[0].mxu0 %v1163
      %v1611 = vpop.f32.mrb[0].mxu0
      %v1612 = vadd.f32 0.0, %v1611
      %v1613 = vpop.f32.mrb[0].mxu0
      %1614 = vmatprep.mubr.f32.mxu0 0.0
      %1615 = vmatmul.mubr.f32.gmra.mrb[0].mxu0 %v1166
      %v1616 = vpop.f32.mrb[0].mxu0
      %v1617 = vadd.f32 0.0, %v1616
      %v1618 = vpop.f32.mrb[0].mxu0
      %1619 = vmatprep.mubr.f32.mxu0 0.0
      %1620 = vmatmul.mubr.f32.gmra.mrb[0].mxu0 %v1169
      %v1621 = vpop.f32.mrb[0].mxu0
      %v1622 = vadd.f32 0.0, %v1621
      %v1623 = vpop.f32.mrb[0].mxu0
      %1624 = vmatprep.mubr.f32.mxu0 0.0
      %1625 = vmatmul.mubr.f32.gmra.mrb[0].mxu0 %v1172
      %v1626 = vpop.f32.mrb[0].mxu0
      %v1627 = vadd.f32 0.0, %v1626
      %v1628 = vpop.f32.mrb[0].mxu0
      %1629 = vmatprep.mubr.f32.mxu0 0.0
      %1630 = vmatmul.mubr.f32.gmra.mrb[0].mxu0 %v1175
      %v1631 = vpop.f32.mrb[0].mxu0
      %v1632 = vadd.f32 0.0, %v1631
      %v1633 = vpop.f32.mrb[0].mxu0
      %1634 = vmatprep.mubr.f32.mxu0 0.0
      %1635 = vmatmul.mubr.f32.gmra.mrb[0].mxu0 %v1178
      %v1636 = vpop.f32.mrb[0].mxu0
      %v1637 = vadd.f32 0.0, %v1636
      %v1638 = vpop.f32.mrb[0].mxu0
      %1639 = vmatprep.mubr.f32.mxu0 0.0
      %1640 = vmatmul.mubr.f32.gmra.mrb[0].mxu0 %v1181
      %v1641 = vpop.f32.mrb[0].mxu0
      %v1642 = vadd.f32 0.0, %v1641
      %v1643 = vpop.f32.mrb[0].mxu0
      %1644 = vmatprep.mubr.f32.mxu0 0.0
      %1645 = vmatmul.mubr.f32.gmra.mrb[0].mxu0 %v1184
      %v1646 = vpop.f32.mrb[0].mxu0
      %v1647 = vadd.f32 0.0, %v1646
      %v1648 = vpop.f32.mrb[0].mxu0
      %1649 = vmatprep.mubr.f32.mxu0 0.0
      %1650 = vmatmul.mubr.f32.gmra.mrb[0].mxu0 %v1187
      %v1651 = vpop.f32.mrb[0].mxu0
      %v1652 = vadd.f32 0.0, %v1651
      %v1653 = vpop.f32.mrb[0].mxu0
      %1654 = vmatprep.mubr.f32.mxu0 0.0
      %1655 = vmatmul.mubr.f32.gmra.mrb[0].mxu0 %v1190
      %v1656 = vpop.f32.mrb[0].mxu0
      %v1657 = vadd.f32 0.0, %v1656
      %v1658 = vpop.f32.mrb[0].mxu0
      %1659 = vmatprep.mubr.f32.mxu0 0.0
      %1660 = vmatmul.mubr.f32.gmra.mrb[0].mxu0 %v1193
      %v1661 = vpop.f32.mrb[0].mxu0
      %v1662 = vadd.f32 0.0, %v1661
      %v1663 = vpop.f32.mrb[0].mxu0
      %1664 = vmatprep.mubr.f32.mxu0 0.0
      %1665 = vmatmul.mubr.f32.gmra.mrb[0].mxu0 %v1196
      %v1666 = vpop.f32.mrb[0].mxu0
      %v1667 = vadd.f32 0.0, %v1666
      %v1668 = vpop.f32.mrb[0].mxu0
      %1669 = vmatprep.mubr.f32.mxu0 0.0
      %1670 = vmatmul.mubr.f32.gmra.mrb[0].mxu0 %v1199
      %v1671 = vpop.f32.mrb[0].mxu0
      %v1672 = vadd.f32 0.0, %v1671
      %v1673 = vpop.f32.mrb[0].mxu0
      %1674 = vmatprep.mubr.f32.mxu0 0.0
      %1675 = vmatmul.mubr.f32.gmra.mrb[0].mxu0 %v1202
      %v1676 = vpop.f32.mrb[0].mxu0
      %v1677 = vadd.f32 0.0, %v1676
      %v1678 = vpop.f32.mrb[0].mxu0
      %1679 = vmatprep.mubr.f32.mxu0 0.0
      %1680 = vmatmul.mubr.f32.gmra.mrb[0].mxu0 %v1205
      %v1681 = vpop.f32.mrb[0].mxu0
      %v1682 = vadd.f32 0.0, %v1681
      %v1683 = vpop.f32.mrb[0].mxu0
      %1684 = vmatprep.mubr.f32.mxu0 0.0
      %1685 = vmatmul.mubr.f32.gmra.mrb[0].mxu0 %v1208
      %v1686 = vpop.f32.mrb[0].mxu0
      %v1687 = vadd.f32 0.0, %v1686
      %v1688 = vpop.f32.mrb[0].mxu0
      %1689 = vmatprep.mubr.f32.mxu0 0.0
      %1690 = vmatmul.mubr.f32.gmra.mrb[0].mxu0 %v1211
      %v1691 = vpop.f32.mrb[0].mxu0
      %v1692 = vadd.f32 0.0, %v1691
      %v1693 = vpop.f32.mrb[0].mxu0
      %1694 = vmatprep.mubr.f32.mxu0 0.0
      %1695 = vmatmul.mubr.f32.gmra.mrb[0].mxu0 %v1214
      %v1696 = vpop.f32.mrb[0].mxu0
      %v1697 = vadd.f32 0.0, %v1696
      %v1698 = vpop.f32.mrb[0].mxu0
      %1699 = vmatprep.mubr.f32.mxu0 0.0
      %1700 = vmatmul.mubr.f32.gmra.mrb[0].mxu0 %v1217
      %v1701 = vpop.f32.mrb[0].mxu0
      %v1702 = vadd.f32 0.0, %v1701
      %v1703 = vpop.f32.mrb[0].mxu0
      %1704 = vmatprep.mubr.f32.mxu0 0.0
      %1705 = vmatmul.mubr.f32.gmra.mrb[0].mxu0 %v1482
      %v1706 = vpop.f32.mrb[0].mxu0
      %v1707 = vadd.f32 0.0, %v1706
      %v1708 = vpop.f32.mrb[0].mxu0
      %1709 = vmatprep.mubr.f32.mxu0 0.0
      %1710 = vmatmul.mubr.f32.gmra.mrb[0].mxu0 %v1485
      %v1711 = vpop.f32.mrb[0].mxu0
      %v1712 = vadd.f32 0.0, %v1711
      %v1713 = vpop.f32.mrb[0].mxu0
      %1714 = vdwg.mxu0
      %v1715 = vadd.f32 %v1447, %v1557
      %v1716 = vadd.f32 %v1448, %v1562
      %v1717 = vadd.f32 %v1449, %v1567
      %v1718 = vadd.f32 %v1450, %v1572
      %v1719 = vadd.f32 %v1451, %v1577
      %v1720 = vadd.f32 %v1452, %v1582
      %v1721 = vadd.f32 %v1453, %v1587
      %v1722 = vadd.f32 %v1454, %v1592
      %v1723 = vadd.f32 %v1455, %v1597
      %v1724 = vadd.f32 %v1456, %v1602
      %v1725 = vadd.f32 %v1457, %v1607
      %v1726 = vadd.f32 %v1458, %v1612
      %v1727 = vadd.f32 %v1459, %v1617
      %v1728 = vadd.f32 %v1460, %v1622
      %v1729 = vadd.f32 %v1461, %v1627
      %v1730 = vadd.f32 %v1462, %v1632
      %v1731 = vadd.f32 %v1463, %v1637
      %v1732 = vadd.f32 %v1464, %v1642
      %v1733 = vadd.f32 %v1465, %v1647
      %v1734 = vadd.f32 %v1466, %v1652
      %v1735 = vadd.f32 %v1467, %v1657
      %v1736 = vadd.f32 %v1468, %v1662
      %v1737 = vadd.f32 %v1469, %v1667
      %v1738 = vadd.f32 %v1470, %v1672
      %v1739 = vadd.f32 %v1471, %v1677
      %v1740 = vadd.f32 %v1472, %v1682
      %v1741 = vadd.f32 %v1473, %v1687
      %v1742 = vadd.f32 %v1474, %v1692
      %v1743 = vadd.f32 %v1475, %v1697
      %v1744 = vadd.f32 %v1476, %v1702
      %v1745 = vadd.f32 %v1477, %v1707
      %v1746 = vadd.f32 %v1478, %v1712
      %s1747 = scalar_lea.vmem %s2, 28
      %v1748 = vld [vmem:[%s1747] sm:$0xf]
      %v1750 = vsel %vm257, %v1119, 0
      %v1753 = vsel %vm257, %v1120, 0
      %v1756 = vsel %vm354, %v1748, 0
      %1758 = vmatprep.subr.mxu0 0.0
      %1759 = vmatpush1.msra.mxu0 %v1756
      %1760 = vmatprep.subr.mxu0 0.0
      %1761 = vmatpush1.msra.mxu0 0.0
      %1762 = vmatprep.subr.mxu0 0.0
      %1763 = vmatpush1.msra.mxu0 0.0
      %1764 = vmatprep.subr.mxu0 0.0
      %1765 = vmatpush1.msra.mxu0 0.0
      %1766 = vmatprep.subr.mxu0 0.0
      %1767 = vmatpush1.msra.mxu0 0.0
      %1768 = vmatprep.subr.mxu0 0.0
      %1769 = vmatpush1.msra.mxu0 0.0
      %1770 = vmatprep.subr.mxu0 0.0
      %1771 = vmatpush1.msra.mxu0 0.0
      %1772 = vmatprep.subr.mxu0 0.0
      %1773 = vmatpush1.msra.mxu0 0.0
      %1774 = vmatprep.subr.mxu0 0.0
      %1775 = vmatpush1.msra.mxu0 0.0
      %1776 = vmatprep.subr.mxu0 0.0
      %1777 = vmatpush1.msra.mxu0 0.0
      %1778 = vmatprep.subr.mxu0 0.0
      %1779 = vmatpush1.msra.mxu0 0.0
      %1780 = vmatprep.subr.mxu0 0.0
      %1781 = vmatpush1.msra.mxu0 0.0
      %1782 = vmatprep.subr.mxu0 0.0
      %1783 = vmatpush1.msra.mxu0 0.0
      %1784 = vmatprep.subr.mxu0 0.0
      %1785 = vmatpush1.msra.mxu0 0.0
      %1786 = vmatprep.subr.mxu0 0.0
      %1787 = vmatpush1.msra.mxu0 0.0
      %1788 = vmatprep.subr.mxu0 0.0
      %1789 = vmatpush1.msra.mxu0 0.0
      %1790 = vmatprep.subr.mxu0 0.0
      %1791 = vmatpush1.msra.mxu0 0.0
      %1792 = vmatprep.subr.mxu0 0.0
      %1793 = vmatpush1.msra.mxu0 0.0
      %1794 = vmatprep.subr.mxu0 0.0
      %1795 = vmatpush1.msra.mxu0 0.0
      %1796 = vmatprep.subr.mxu0 0.0
      %1797 = vmatpush1.msra.mxu0 0.0
      %1798 = vmatprep.subr.mxu0 0.0
      %1799 = vmatpush1.msra.mxu0 0.0
      %1800 = vmatprep.subr.mxu0 0.0
      %1801 = vmatpush1.msra.mxu0 0.0
      %1802 = vmatprep.subr.mxu0 0.0
      %1803 = vmatpush1.msra.mxu0 0.0
      %1804 = vmatprep.subr.mxu0 0.0
      %1805 = vmatpush1.msra.mxu0 0.0
      %1806 = vmatprep.subr.mxu0 0.0
      %1807 = vmatpush1.msra.mxu0 0.0
      %1808 = vmatprep.subr.mxu0 0.0
      %1809 = vmatpush1.msra.mxu0 0.0
      %1810 = vmatprep.subr.mxu0 0.0
      %1811 = vmatpush1.msra.mxu0 0.0
      %1812 = vmatprep.subr.mxu0 0.0
      %1813 = vmatpush1.msra.mxu0 0.0
      %1814 = vmatprep.subr.mxu0 0.0
      %1815 = vmatpush1.msra.mxu0 0.0
      %1816 = vmatprep.subr.mxu0 0.0
      %1817 = vmatpush1.msra.mxu0 0.0
      %1818 = vmatprep.subr.mxu0 0.0
      %1819 = vmatpush1.msra.mxu0 0.0
      %1820 = vmatprep.subr.mxu0 0.0
      %1821 = vmatpush1.msra.mxu0 0.0
      %1822 = vmatprep.mubr.f32.mxu0 0.0
      %1823 = vmatmul.mubr.f32.gmra.mrb[0].mxu0 %v1136
      %v1824 = vpop.f32.mrb[0].mxu0
      %v1825 = vadd.f32 0.0, %v1824
      %v1826 = vpop.f32.mrb[0].mxu0
      %1827 = vmatprep.mubr.f32.mxu0 0.0
      %1828 = vmatmul.mubr.f32.gmra.mrb[0].mxu0 %v1139
      %v1829 = vpop.f32.mrb[0].mxu0
      %v1830 = vadd.f32 0.0, %v1829
      %v1831 = vpop.f32.mrb[0].mxu0
      %1832 = vmatprep.mubr.f32.mxu0 0.0
      %1833 = vmatmul.mubr.f32.gmra.mrb[0].mxu0 %v1142
      %v1834 = vpop.f32.mrb[0].mxu0
      %v1835 = vadd.f32 0.0, %v1834
      %v1836 = vpop.f32.mrb[0].mxu0
      %1837 = vmatprep.mubr.f32.mxu0 0.0
      %1838 = vmatmul.mubr.f32.gmra.mrb[0].mxu0 %v1145
      %v1839 = vpop.f32.mrb[0].mxu0
      %v1840 = vadd.f32 0.0, %v1839
      %v1841 = vpop.f32.mrb[0].mxu0
      %1842 = vmatprep.mubr.f32.mxu0 0.0
      %1843 = vmatmul.mubr.f32.gmra.mrb[0].mxu0 %v1148
      %v1844 = vpop.f32.mrb[0].mxu0
      %v1845 = vadd.f32 0.0, %v1844
      %v1846 = vpop.f32.mrb[0].mxu0
      %1847 = vmatprep.mubr.f32.mxu0 0.0
      %1848 = vmatmul.mubr.f32.gmra.mrb[0].mxu0 %v1151
      %v1849 = vpop.f32.mrb[0].mxu0
      %v1850 = vadd.f32 0.0, %v1849
      %v1851 = vpop.f32.mrb[0].mxu0
      %1852 = vmatprep.mubr.f32.mxu0 0.0
      %1853 = vmatmul.mubr.f32.gmra.mrb[0].mxu0 %v1154
      %v1854 = vpop.f32.mrb[0].mxu0
      %v1855 = vadd.f32 0.0, %v1854
      %v1856 = vpop.f32.mrb[0].mxu0
      %1857 = vmatprep.mubr.f32.mxu0 0.0
      %1858 = vmatmul.mubr.f32.gmra.mrb[0].mxu0 %v1157
      %v1859 = vpop.f32.mrb[0].mxu0
      %v1860 = vadd.f32 0.0, %v1859
      %v1861 = vpop.f32.mrb[0].mxu0
      %1862 = vmatprep.mubr.f32.mxu0 0.0
      %1863 = vmatmul.mubr.f32.gmra.mrb[0].mxu0 %v1160
      %v1864 = vpop.f32.mrb[0].mxu0
      %v1865 = vadd.f32 0.0, %v1864
      %v1866 = vpop.f32.mrb[0].mxu0
      %1867 = vmatprep.mubr.f32.mxu0 0.0
      %1868 = vmatmul.mubr.f32.gmra.mrb[0].mxu0 %v1163
      %v1869 = vpop.f32.mrb[0].mxu0
      %v1870 = vadd.f32 0.0, %v1869
      %v1871 = vpop.f32.mrb[0].mxu0
      %1872 = vmatprep.mubr.f32.mxu0 0.0
      %1873 = vmatmul.mubr.f32.gmra.mrb[0].mxu0 %v1166
      %v1874 = vpop.f32.mrb[0].mxu0
      %v1875 = vadd.f32 0.0, %v1874
      %v1876 = vpop.f32.mrb[0].mxu0
      %1877 = vmatprep.mubr.f32.mxu0 0.0
      %1878 = vmatmul.mubr.f32.gmra.mrb[0].mxu0 %v1169
      %v1879 = vpop.f32.mrb[0].mxu0
      %v1880 = vadd.f32 0.0, %v1879
      %v1881 = vpop.f32.mrb[0].mxu0
      %1882 = vmatprep.mubr.f32.mxu0 0.0
      %1883 = vmatmul.mubr.f32.gmra.mrb[0].mxu0 %v1172
      %v1884 = vpop.f32.mrb[0].mxu0
      %v1885 = vadd.f32 0.0, %v1884
      %v1886 = vpop.f32.mrb[0].mxu0
      %1887 = vmatprep.mubr.f32.mxu0 0.0
      %1888 = vmatmul.mubr.f32.gmra.mrb[0].mxu0 %v1175
      %v1889 = vpop.f32.mrb[0].mxu0
      %v1890 = vadd.f32 0.0, %v1889
      %v1891 = vpop.f32.mrb[0].mxu0
      %1892 = vmatprep.mubr.f32.mxu0 0.0
      %1893 = vmatmul.mubr.f32.gmra.mrb[0].mxu0 %v1178
      %v1894 = vpop.f32.mrb[0].mxu0
      %v1895 = vadd.f32 0.0, %v1894
      %v1896 = vpop.f32.mrb[0].mxu0
      %1897 = vmatprep.mubr.f32.mxu0 0.0
      %1898 = vmatmul.mubr.f32.gmra.mrb[0].mxu0 %v1181
      %v1899 = vpop.f32.mrb[0].mxu0
      %v1900 = vadd.f32 0.0, %v1899
      %v1901 = vpop.f32.mrb[0].mxu0
      %1902 = vmatprep.mubr.f32.mxu0 0.0
      %1903 = vmatmul.mubr.f32.gmra.mrb[0].mxu0 %v1184
      %v1904 = vpop.f32.mrb[0].mxu0
      %v1905 = vadd.f32 0.0, %v1904
      %v1906 = vpop.f32.mrb[0].mxu0
      %1907 = vmatprep.mubr.f32.mxu0 0.0
      %1908 = vmatmul.mubr.f32.gmra.mrb[0].mxu0 %v1187
      %v1909 = vpop.f32.mrb[0].mxu0
      %v1910 = vadd.f32 0.0, %v1909
      %v1911 = vpop.f32.mrb[0].mxu0
      %1912 = vmatprep.mubr.f32.mxu0 0.0
      %1913 = vmatmul.mubr.f32.gmra.mrb[0].mxu0 %v1190
      %v1914 = vpop.f32.mrb[0].mxu0
      %v1915 = vadd.f32 0.0, %v1914
      %v1916 = vpop.f32.mrb[0].mxu0
      %1917 = vmatprep.mubr.f32.mxu0 0.0
      %1918 = vmatmul.mubr.f32.gmra.mrb[0].mxu0 %v1193
      %v1919 = vpop.f32.mrb[0].mxu0
      %v1920 = vadd.f32 0.0, %v1919
      %v1921 = vpop.f32.mrb[0].mxu0
      %1922 = vmatprep.mubr.f32.mxu0 0.0
      %1923 = vmatmul.mubr.f32.gmra.mrb[0].mxu0 %v1196
      %v1924 = vpop.f32.mrb[0].mxu0
      %v1925 = vadd.f32 0.0, %v1924
      %v1926 = vpop.f32.mrb[0].mxu0
      %1927 = vmatprep.mubr.f32.mxu0 0.0
      %1928 = vmatmul.mubr.f32.gmra.mrb[0].mxu0 %v1199
      %v1929 = vpop.f32.mrb[0].mxu0
      %v1930 = vadd.f32 0.0, %v1929
      %v1931 = vpop.f32.mrb[0].mxu0
      %1932 = vmatprep.mubr.f32.mxu0 0.0
      %1933 = vmatmul.mubr.f32.gmra.mrb[0].mxu0 %v1202
      %v1934 = vpop.f32.mrb[0].mxu0
      %v1935 = vadd.f32 0.0, %v1934
      %v1936 = vpop.f32.mrb[0].mxu0
      %1937 = vmatprep.mubr.f32.mxu0 0.0
      %1938 = vmatmul.mubr.f32.gmra.mrb[0].mxu0 %v1205
      %v1939 = vpop.f32.mrb[0].mxu0
      %v1940 = vadd.f32 0.0, %v1939
      %v1941 = vpop.f32.mrb[0].mxu0
      %1942 = vmatprep.mubr.f32.mxu0 0.0
      %1943 = vmatmul.mubr.f32.gmra.mrb[0].mxu0 %v1208
      %v1944 = vpop.f32.mrb[0].mxu0
      %v1945 = vadd.f32 0.0, %v1944
      %v1946 = vpop.f32.mrb[0].mxu0
      %1947 = vmatprep.mubr.f32.mxu0 0.0
      %1948 = vmatmul.mubr.f32.gmra.mrb[0].mxu0 %v1211
      %v1949 = vpop.f32.mrb[0].mxu0
      %v1950 = vadd.f32 0.0, %v1949
      %v1951 = vpop.f32.mrb[0].mxu0
      %1952 = vmatprep.mubr.f32.mxu0 0.0
      %1953 = vmatmul.mubr.f32.gmra.mrb[0].mxu0 %v1214
      %v1954 = vpop.f32.mrb[0].mxu0
      %v1955 = vadd.f32 0.0, %v1954
      %v1956 = vpop.f32.mrb[0].mxu0
      %1957 = vmatprep.mubr.f32.mxu0 0.0
      %1958 = vmatmul.mubr.f32.gmra.mrb[0].mxu0 %v1217
      %v1959 = vpop.f32.mrb[0].mxu0
      %v1960 = vadd.f32 0.0, %v1959
      %v1961 = vpop.f32.mrb[0].mxu0
      %1962 = vmatprep.mubr.f32.mxu0 0.0
      %1963 = vmatmul.mubr.f32.gmra.mrb[0].mxu0 %v1482
      %v1964 = vpop.f32.mrb[0].mxu0
      %v1965 = vadd.f32 0.0, %v1964
      %v1966 = vpop.f32.mrb[0].mxu0
      %1967 = vmatprep.mubr.f32.mxu0 0.0
      %1968 = vmatmul.mubr.f32.gmra.mrb[0].mxu0 %v1485
      %v1969 = vpop.f32.mrb[0].mxu0
      %v1970 = vadd.f32 0.0, %v1969
      %v1971 = vpop.f32.mrb[0].mxu0
      %1972 = vmatprep.mubr.f32.mxu0 0.0
      %1973 = vmatmul.mubr.f32.gmra.mrb[0].mxu0 %v1750
      %v1974 = vpop.f32.mrb[0].mxu0
      %v1975 = vadd.f32 0.0, %v1974
      %v1976 = vpop.f32.mrb[0].mxu0
      %1977 = vmatprep.mubr.f32.mxu0 0.0
      %1978 = vmatmul.mubr.f32.gmra.mrb[0].mxu0 %v1753
      %v1979 = vpop.f32.mrb[0].mxu0
      %v1980 = vadd.f32 0.0, %v1979
      %v1981 = vpop.f32.mrb[0].mxu0
      %1982 = vdwg.mxu0
      %v1983 = vadd.f32 %v1715, %v1825
      %v1984 = vadd.f32 %v1716, %v1830
      %v1985 = vadd.f32 %v1717, %v1835
      %v1986 = vadd.f32 %v1718, %v1840
      %v1987 = vadd.f32 %v1719, %v1845
      %v1988 = vadd.f32 %v1720, %v1850
      %v1989 = vadd.f32 %v1721, %v1855
      %v1990 = vadd.f32 %v1722, %v1860
      %v1991 = vadd.f32 %v1723, %v1865
      %v1992 = vadd.f32 %v1724, %v1870
      %v1993 = vadd.f32 %v1725, %v1875
      %v1994 = vadd.f32 %v1726, %v1880
      %v1995 = vadd.f32 %v1727, %v1885
      %v1996 = vadd.f32 %v1728, %v1890
      %v1997 = vadd.f32 %v1729, %v1895
      %v1998 = vadd.f32 %v1730, %v1900
      %v1999 = vadd.f32 %v1731, %v1905
      %v2000 = vadd.f32 %v1732, %v1910
      %v2001 = vadd.f32 %v1733, %v1915
      %v2002 = vadd.f32 %v1734, %v1920
      %v2003 = vadd.f32 %v1735, %v1925
      %v2004 = vadd.f32 %v1736, %v1930
      %v2005 = vadd.f32 %v1737, %v1935
      %v2006 = vadd.f32 %v1738, %v1940
      %v2007 = vadd.f32 %v1739, %v1945
      %v2008 = vadd.f32 %v1740, %v1950
      %v2009 = vadd.f32 %v1741, %v1955
      %v2010 = vadd.f32 %v1742, %v1960
      %v2011 = vadd.f32 %v1743, %v1965
      %v2012 = vadd.f32 %v1744, %v1970
      %v2013 = vadd.f32 %v1745, %v1975
      %v2014 = vadd.f32 %v1746, %v1980
      %v2015 = vld [vmem:[%s207 + $0x2] sm:$0xff]
      %v2016 = vld [vmem:[%s207 + $0xa] sm:$0xff]
      %v2017 = vld [vmem:[%s207 + $0x1a] sm:$0xff]
      %v2018 = vld [vmem:[%s207 + $0x22] sm:$0xff]
      %v2019 = vld [vmem:[%s207 + $0x32] sm:$0xff]
      %v2020 = vld [vmem:[%s207 + $0x3a] sm:$0xff]
      %v2021 = vld [vmem:[%s207 + $0x4a] sm:$0xff]
      %v2022 = vld [vmem:[%s207 + $0x52] sm:$0xff]
      %v2023 = vld [vmem:[%s207 + $0x62] sm:$0xff]
      %v2024 = vld [vmem:[%s207 + $0x6a] sm:$0xff]
      %v2025 = vld [vmem:[%s207 + $0x7a] sm:$0xff]
      %v2026 = vld [vmem:[%s207 + $0x82] sm:$0xff]
      %v2027 = vld [vmem:[%s207 + $0x92] sm:$0xff]
      %v2028 = vld [vmem:[%s207 + $0x9a] sm:$0xff]
      %v2029 = vld [vmem:[%s207 + $0xaa] sm:$0xff]
      %v2030 = vld [vmem:[%s207 + $0xb2] sm:$0xff]
      %v2031 = vld [vmem:[%s207 + $0xc2] sm:$0xff]
      %v2032 = vld [vmem:[%s207 + $0xca] sm:$0xff]
      %v2033 = vld [vmem:[%s207 + $0xda] sm:$0xff]
      %v2034 = vld [vmem:[%s207 + $0xe2] sm:$0xff]
      %v2035 = vld [vmem:[%s207 + $0xf2] sm:$0xff]
      %v2036 = vld [vmem:[%s207 + $0xfa] sm:$0xff]
      %v2037 = vld [vmem:[%s207 + $0x10a] sm:$0xff]
      %v2038 = vld [vmem:[%s207 + $0x112] sm:$0xff]
      %v2039 = vld [vmem:[%s207 + $0x122] sm:$0xff]
      %v2040 = vld [vmem:[%s207 + $0x12a] sm:$0xff]
      %v2041 = vld [vmem:[%s207 + $0x13a] sm:$0xff]
      %v2042 = vld [vmem:[%s207 + $0x142] sm:$0xff]
      %v2043 = vld [vmem:[%s207 + $0x152] sm:$0xff]
      %v2044 = vld [vmem:[%s207 + $0x15a] sm:$0xff]
      %v2045 = vld [vmem:[%s207 + $0x16a] sm:$0xff]
      %v2046 = vld [vmem:[%s207 + $0x172] sm:$0xff]
      %v2047 = vld [vmem:[%s207 + $0x182] sm:$0xff]
      %v2048 = vld [vmem:[%s207 + $0x18a] sm:$0xff]
      %v2049 = vld [vmem:[%s207 + $0x19a] sm:$0xff]
      %v2050 = vld [vmem:[%s207 + $0x1a2] sm:$0xff]
      %s2051 = scalar_lea.vmem %s2, 8
      %v2052 = vld [vmem:[%s2051] sm:$0xf]
      %v2054 = vsel %vm257, %v2015, 0
      %v2057 = vsel %vm257, %v2016, 0
      %v2060 = vsel %vm257, %v2017, 0
      %v2063 = vsel %vm257, %v2018, 0
      %v2066 = vsel %vm257, %v2019, 0
      %v2069 = vsel %vm257, %v2020, 0
      %v2072 = vsel %vm257, %v2021, 0
      %v2075 = vsel %vm257, %v2022, 0
      %v2078 = vsel %vm257, %v2023, 0
      %v2081 = vsel %vm257, %v2024, 0
      %v2084 = vsel %vm257, %v2025, 0
      %v2087 = vsel %vm257, %v2026, 0
      %v2090 = vsel %vm257, %v2027, 0
      %v2093 = vsel %vm257, %v2028, 0
      %v2096 = vsel %vm257, %v2029, 0
      %v2099 = vsel %vm257, %v2030, 0
      %v2102 = vsel %vm257, %v2031, 0
      %v2105 = vsel %vm257, %v2032, 0
      %v2108 = vsel %vm257, %v2033, 0
      %v2111 = vsel %vm257, %v2034, 0
      %v2114 = vsel %vm257, %v2035, 0
      %v2117 = vsel %vm257, %v2036, 0
      %v2120 = vsel %vm257, %v2037, 0
      %v2123 = vsel %vm257, %v2038, 0
      %v2126 = vsel %vm257, %v2039, 0
      %v2129 = vsel %vm257, %v2040, 0
      %v2132 = vsel %vm257, %v2041, 0
      %v2135 = vsel %vm257, %v2042, 0
      %v2138 = vsel %vm257, %v2043, 0
      %v2141 = vsel %vm257, %v2044, 0
      %v2144 = vsel %vm257, %v2045, 0
      %v2147 = vsel %vm257, %v2046, 0
      %v2150 = vsel %vm354, %v2052, 0
      %2152 = vmatprep.subr.mxu0 0.0
      %2153 = vmatpush1.msra.mxu0 %v2150
      %2154 = vmatprep.subr.mxu0 0.0
      %2155 = vmatpush1.msra.mxu0 0.0
      %2156 = vmatprep.subr.mxu0 0.0
      %2157 = vmatpush1.msra.mxu0 0.0
      %2158 = vmatprep.subr.mxu0 0.0
      %2159 = vmatpush1.msra.mxu0 0.0
      %2160 = vmatprep.subr.mxu0 0.0
      %2161 = vmatpush1.msra.mxu0 0.0
      %2162 = vmatprep.subr.mxu0 0.0
      %2163 = vmatpush1.msra.mxu0 0.0
      %2164 = vmatprep.subr.mxu0 0.0
      %2165 = vmatpush1.msra.mxu0 0.0
      %2166 = vmatprep.subr.mxu0 0.0
      %2167 = vmatpush1.msra.mxu0 0.0
      %2168 = vmatprep.subr.mxu0 0.0
      %2169 = vmatpush1.msra.mxu0 0.0
      %2170 = vmatprep.subr.mxu0 0.0
      %2171 = vmatpush1.msra.mxu0 0.0
      %2172 = vmatprep.subr.mxu0 0.0
      %2173 = vmatpush1.msra.mxu0 0.0
      %2174 = vmatprep.subr.mxu0 0.0
      %2175 = vmatpush1.msra.mxu0 0.0
      %2176 = vmatprep.subr.mxu0 0.0
      %2177 = vmatpush1.msra.mxu0 0.0
      %2178 = vmatprep.subr.mxu0 0.0
      %2179 = vmatpush1.msra.mxu0 0.0
      %2180 = vmatprep.subr.mxu0 0.0
      %2181 = vmatpush1.msra.mxu0 0.0
      %2182 = vmatprep.subr.mxu0 0.0
      %2183 = vmatpush1.msra.mxu0 0.0
      %2184 = vmatprep.subr.mxu0 0.0
      %2185 = vmatpush1.msra.mxu0 0.0
      %2186 = vmatprep.subr.mxu0 0.0
      %2187 = vmatpush1.msra.mxu0 0.0
      %2188 = vmatprep.subr.mxu0 0.0
      %2189 = vmatpush1.msra.mxu0 0.0
      %2190 = vmatprep.subr.mxu0 0.0
      %2191 = vmatpush1.msra.mxu0 0.0
      %2192 = vmatprep.subr.mxu0 0.0
      %2193 = vmatpush1.msra.mxu0 0.0
      %2194 = vmatprep.subr.mxu0 0.0
      %2195 = vmatpush1.msra.mxu0 0.0
      %2196 = vmatprep.subr.mxu0 0.0
      %2197 = vmatpush1.msra.mxu0 0.0
      %2198 = vmatprep.subr.mxu0 0.0
      %2199 = vmatpush1.msra.mxu0 0.0
      %2200 = vmatprep.subr.mxu0 0.0
      %2201 = vmatpush1.msra.mxu0 0.0
      %2202 = vmatprep.subr.mxu0 0.0
      %2203 = vmatpush1.msra.mxu0 0.0
      %2204 = vmatprep.subr.mxu0 0.0
      %2205 = vmatpush1.msra.mxu0 0.0
      %2206 = vmatprep.subr.mxu0 0.0
      %2207 = vmatpush1.msra.mxu0 0.0
      %2208 = vmatprep.subr.mxu0 0.0
      %2209 = vmatpush1.msra.mxu0 0.0
      %2210 = vmatprep.subr.mxu0 0.0
      %2211 = vmatpush1.msra.mxu0 0.0
      %2212 = vmatprep.subr.mxu0 0.0
      %2213 = vmatpush1.msra.mxu0 0.0
      %2214 = vmatprep.subr.mxu0 0.0
      %2215 = vmatpush1.msra.mxu0 0.0
      %2216 = vmatprep.mubr.f32.mxu0 0.0
      %2217 = vmatmul.mubr.f32.gmra.mrb[0].mxu0 %v2054
      %v2218 = vpop.f32.mrb[0].mxu0
      %v2219 = vadd.f32 0.0, %v2218
      %v2220 = vpop.f32.mrb[0].mxu0
      %2221 = vmatprep.mubr.f32.mxu0 0.0
      %2222 = vmatmul.mubr.f32.gmra.mrb[0].mxu0 %v2057
      %v2223 = vpop.f32.mrb[0].mxu0
      %v2224 = vadd.f32 0.0, %v2223
      %v2225 = vpop.f32.mrb[0].mxu0
      %2226 = vmatprep.mubr.f32.mxu0 0.0
      %2227 = vmatmul.mubr.f32.gmra.mrb[0].mxu0 %v2060
      %v2228 = vpop.f32.mrb[0].mxu0
      %v2229 = vadd.f32 0.0, %v2228
      %v2230 = vpop.f32.mrb[0].mxu0
      %2231 = vmatprep.mubr.f32.mxu0 0.0
      %2232 = vmatmul.mubr.f32.gmra.mrb[0].mxu0 %v2063
      %v2233 = vpop.f32.mrb[0].mxu0
      %v2234 = vadd.f32 0.0, %v2233
      %v2235 = vpop.f32.mrb[0].mxu0
      %2236 = vmatprep.mubr.f32.mxu0 0.0
      %2237 = vmatmul.mubr.f32.gmra.mrb[0].mxu0 %v2066
      %v2238 = vpop.f32.mrb[0].mxu0
      %v2239 = vadd.f32 0.0, %v2238
      %v2240 = vpop.f32.mrb[0].mxu0
      %2241 = vmatprep.mubr.f32.mxu0 0.0
      %2242 = vmatmul.mubr.f32.gmra.mrb[0].mxu0 %v2069
      %v2243 = vpop.f32.mrb[0].mxu0
      %v2244 = vadd.f32 0.0, %v2243
      %v2245 = vpop.f32.mrb[0].mxu0
      %2246 = vmatprep.mubr.f32.mxu0 0.0
      %2247 = vmatmul.mubr.f32.gmra.mrb[0].mxu0 %v2072
      %v2248 = vpop.f32.mrb[0].mxu0
      %v2249 = vadd.f32 0.0, %v2248
      %v2250 = vpop.f32.mrb[0].mxu0
      %2251 = vmatprep.mubr.f32.mxu0 0.0
      %2252 = vmatmul.mubr.f32.gmra.mrb[0].mxu0 %v2075
      %v2253 = vpop.f32.mrb[0].mxu0
      %v2254 = vadd.f32 0.0, %v2253
      %v2255 = vpop.f32.mrb[0].mxu0
      %2256 = vmatprep.mubr.f32.mxu0 0.0
      %2257 = vmatmul.mubr.f32.gmra.mrb[0].mxu0 %v2078
      %v2258 = vpop.f32.mrb[0].mxu0
      %v2259 = vadd.f32 0.0, %v2258
      %v2260 = vpop.f32.mrb[0].mxu0
      %2261 = vmatprep.mubr.f32.mxu0 0.0
      %2262 = vmatmul.mubr.f32.gmra.mrb[0].mxu0 %v2081
      %v2263 = vpop.f32.mrb[0].mxu0
      %v2264 = vadd.f32 0.0, %v2263
      %v2265 = vpop.f32.mrb[0].mxu0
      %2266 = vmatprep.mubr.f32.mxu0 0.0
      %2267 = vmatmul.mubr.f32.gmra.mrb[0].mxu0 %v2084
      %v2268 = vpop.f32.mrb[0].mxu0
      %v2269 = vadd.f32 0.0, %v2268
      %v2270 = vpop.f32.mrb[0].mxu0
      %2271 = vmatprep.mubr.f32.mxu0 0.0
      %2272 = vmatmul.mubr.f32.gmra.mrb[0].mxu0 %v2087
      %v2273 = vpop.f32.mrb[0].mxu0
      %v2274 = vadd.f32 0.0, %v2273
      %v2275 = vpop.f32.mrb[0].mxu0
      %2276 = vmatprep.mubr.f32.mxu0 0.0
      %2277 = vmatmul.mubr.f32.gmra.mrb[0].mxu0 %v2090
      %v2278 = vpop.f32.mrb[0].mxu0
      %v2279 = vadd.f32 0.0, %v2278
      %v2280 = vpop.f32.mrb[0].mxu0
      %2281 = vmatprep.mubr.f32.mxu0 0.0
      %2282 = vmatmul.mubr.f32.gmra.mrb[0].mxu0 %v2093
      %v2283 = vpop.f32.mrb[0].mxu0
      %v2284 = vadd.f32 0.0, %v2283
      %v2285 = vpop.f32.mrb[0].mxu0
      %2286 = vmatprep.mubr.f32.mxu0 0.0
      %2287 = vmatmul.mubr.f32.gmra.mrb[0].mxu0 %v2096
      %v2288 = vpop.f32.mrb[0].mxu0
      %v2289 = vadd.f32 0.0, %v2288
      %v2290 = vpop.f32.mrb[0].mxu0
      %2291 = vmatprep.mubr.f32.mxu0 0.0
      %2292 = vmatmul.mubr.f32.gmra.mrb[0].mxu0 %v2099
      %v2293 = vpop.f32.mrb[0].mxu0
      %v2294 = vadd.f32 0.0, %v2293
      %v2295 = vpop.f32.mrb[0].mxu0
      %2296 = vmatprep.mubr.f32.mxu0 0.0
      %2297 = vmatmul.mubr.f32.gmra.mrb[0].mxu0 %v2102
      %v2298 = vpop.f32.mrb[0].mxu0
      %v2299 = vadd.f32 0.0, %v2298
      %v2300 = vpop.f32.mrb[0].mxu0
      %2301 = vmatprep.mubr.f32.mxu0 0.0
      %2302 = vmatmul.mubr.f32.gmra.mrb[0].mxu0 %v2105
      %v2303 = vpop.f32.mrb[0].mxu0
      %v2304 = vadd.f32 0.0, %v2303
      %v2305 = vpop.f32.mrb[0].mxu0
      %2306 = vmatprep.mubr.f32.mxu0 0.0
      %2307 = vmatmul.mubr.f32.gmra.mrb[0].mxu0 %v2108
      %v2308 = vpop.f32.mrb[0].mxu0
      %v2309 = vadd.f32 0.0, %v2308
      %v2310 = vpop.f32.mrb[0].mxu0
      %2311 = vmatprep.mubr.f32.mxu0 0.0
      %2312 = vmatmul.mubr.f32.gmra.mrb[0].mxu0 %v2111
      %v2313 = vpop.f32.mrb[0].mxu0
      %v2314 = vadd.f32 0.0, %v2313
      %v2315 = vpop.f32.mrb[0].mxu0
      %2316 = vmatprep.mubr.f32.mxu0 0.0
      %2317 = vmatmul.mubr.f32.gmra.mrb[0].mxu0 %v2114
      %v2318 = vpop.f32.mrb[0].mxu0
      %v2319 = vadd.f32 0.0, %v2318
      %v2320 = vpop.f32.mrb[0].mxu0
      %2321 = vmatprep.mubr.f32.mxu0 0.0
      %2322 = vmatmul.mubr.f32.gmra.mrb[0].mxu0 %v2117
      %v2323 = vpop.f32.mrb[0].mxu0
      %v2324 = vadd.f32 0.0, %v2323
      %v2325 = vpop.f32.mrb[0].mxu0
      %2326 = vmatprep.mubr.f32.mxu0 0.0
      %2327 = vmatmul.mubr.f32.gmra.mrb[0].mxu0 %v2120
      %v2328 = vpop.f32.mrb[0].mxu0
      %v2329 = vadd.f32 0.0, %v2328
      %v2330 = vpop.f32.mrb[0].mxu0
      %2331 = vmatprep.mubr.f32.mxu0 0.0
      %2332 = vmatmul.mubr.f32.gmra.mrb[0].mxu0 %v2123
      %v2333 = vpop.f32.mrb[0].mxu0
      %v2334 = vadd.f32 0.0, %v2333
      %v2335 = vpop.f32.mrb[0].mxu0
      %2336 = vmatprep.mubr.f32.mxu0 0.0
      %2337 = vmatmul.mubr.f32.gmra.mrb[0].mxu0 %v2126
      %v2338 = vpop.f32.mrb[0].mxu0
      %v2339 = vadd.f32 0.0, %v2338
      %v2340 = vpop.f32.mrb[0].mxu0
      %2341 = vmatprep.mubr.f32.mxu0 0.0
      %2342 = vmatmul.mubr.f32.gmra.mrb[0].mxu0 %v2129
      %v2343 = vpop.f32.mrb[0].mxu0
      %v2344 = vadd.f32 0.0, %v2343
      %v2345 = vpop.f32.mrb[0].mxu0
      %2346 = vmatprep.mubr.f32.mxu0 0.0
      %2347 = vmatmul.mubr.f32.gmra.mrb[0].mxu0 %v2132
      %v2348 = vpop.f32.mrb[0].mxu0
      %v2349 = vadd.f32 0.0, %v2348
      %v2350 = vpop.f32.mrb[0].mxu0
      %2351 = vmatprep.mubr.f32.mxu0 0.0
      %2352 = vmatmul.mubr.f32.gmra.mrb[0].mxu0 %v2135
      %v2353 = vpop.f32.mrb[0].mxu0
      %v2354 = vadd.f32 0.0, %v2353
      %v2355 = vpop.f32.mrb[0].mxu0
      %2356 = vmatprep.mubr.f32.mxu0 0.0
      %2357 = vmatmul.mubr.f32.gmra.mrb[0].mxu0 %v2138
      %v2358 = vpop.f32.mrb[0].mxu0
      %v2359 = vadd.f32 0.0, %v2358
      %v2360 = vpop.f32.mrb[0].mxu0
      %2361 = vmatprep.mubr.f32.mxu0 0.0
      %2362 = vmatmul.mubr.f32.gmra.mrb[0].mxu0 %v2141
      %v2363 = vpop.f32.mrb[0].mxu0
      %v2364 = vadd.f32 0.0, %v2363
      %v2365 = vpop.f32.mrb[0].mxu0
      %2366 = vmatprep.mubr.f32.mxu0 0.0
      %2367 = vmatmul.mubr.f32.gmra.mrb[0].mxu0 %v2144
      %v2368 = vpop.f32.mrb[0].mxu0
      %v2369 = vadd.f32 0.0, %v2368
      %v2370 = vpop.f32.mrb[0].mxu0
      %2371 = vmatprep.mubr.f32.mxu0 0.0
      %2372 = vmatmul.mubr.f32.gmra.mrb[0].mxu0 %v2147
      %v2373 = vpop.f32.mrb[0].mxu0
      %v2374 = vadd.f32 0.0, %v2373
      %v2375 = vpop.f32.mrb[0].mxu0
      %2376 = vdwg.mxu0
      %v2377 = vadd.f32 %v1983, %v2219
      %v2378 = vadd.f32 %v1984, %v2224
      %v2379 = vadd.f32 %v1985, %v2229
      %v2380 = vadd.f32 %v1986, %v2234
      %v2381 = vadd.f32 %v1987, %v2239
      %v2382 = vadd.f32 %v1988, %v2244
      %v2383 = vadd.f32 %v1989, %v2249
      %v2384 = vadd.f32 %v1990, %v2254
      %v2385 = vadd.f32 %v1991, %v2259
      %v2386 = vadd.f32 %v1992, %v2264
      %v2387 = vadd.f32 %v1993, %v2269
      %v2388 = vadd.f32 %v1994, %v2274
      %v2389 = vadd.f32 %v1995, %v2279
      %v2390 = vadd.f32 %v1996, %v2284
      %v2391 = vadd.f32 %v1997, %v2289
      %v2392 = vadd.f32 %v1998, %v2294
      %v2393 = vadd.f32 %v1999, %v2299
      %v2394 = vadd.f32 %v2000, %v2304
      %v2395 = vadd.f32 %v2001, %v2309
      %v2396 = vadd.f32 %v2002, %v2314
      %v2397 = vadd.f32 %v2003, %v2319
      %v2398 = vadd.f32 %v2004, %v2324
      %v2399 = vadd.f32 %v2005, %v2329
      %v2400 = vadd.f32 %v2006, %v2334
      %v2401 = vadd.f32 %v2007, %v2339
      %v2402 = vadd.f32 %v2008, %v2344
      %v2403 = vadd.f32 %v2009, %v2349
      %v2404 = vadd.f32 %v2010, %v2354
      %v2405 = vadd.f32 %v2011, %v2359
      %v2406 = vadd.f32 %v2012, %v2364
      %v2407 = vadd.f32 %v2013, %v2369
      %v2408 = vadd.f32 %v2014, %v2374
      %s2409 = scalar_lea.vmem %s2, 20
      %v2410 = vld [vmem:[%s2409] sm:$0xf]
      %v2412 = vsel %vm257, %v2047, 0
      %v2415 = vsel %vm257, %v2048, 0
      %v2418 = vsel %vm354, %v2410, 0
      %2420 = vmatprep.subr.mxu0 0.0
      %2421 = vmatpush1.msra.mxu0 %v2418
      %2422 = vmatprep.subr.mxu0 0.0
      %2423 = vmatpush1.msra.mxu0 0.0
      %2424 = vmatprep.subr.mxu0 0.0
      %2425 = vmatpush1.msra.mxu0 0.0
      %2426 = vmatprep.subr.mxu0 0.0
      %2427 = vmatpush1.msra.mxu0 0.0
      %2428 = vmatprep.subr.mxu0 0.0
      %2429 = vmatpush1.msra.mxu0 0.0
      %2430 = vmatprep.subr.mxu0 0.0
      %2431 = vmatpush1.msra.mxu0 0.0
      %2432 = vmatprep.subr.mxu0 0.0
      %2433 = vmatpush1.msra.mxu0 0.0
      %2434 = vmatprep.subr.mxu0 0.0
      %2435 = vmatpush1.msra.mxu0 0.0
      %2436 = vmatprep.subr.mxu0 0.0
      %2437 = vmatpush1.msra.mxu0 0.0
      %2438 = vmatprep.subr.mxu0 0.0
      %2439 = vmatpush1.msra.mxu0 0.0
      %2440 = vmatprep.subr.mxu0 0.0
      %2441 = vmatpush1.msra.mxu0 0.0
      %2442 = vmatprep.subr.mxu0 0.0
      %2443 = vmatpush1.msra.mxu0 0.0
      %2444 = vmatprep.subr.mxu0 0.0
      %2445 = vmatpush1.msra.mxu0 0.0
      %2446 = vmatprep.subr.mxu0 0.0
      %2447 = vmatpush1.msra.mxu0 0.0
      %2448 = vmatprep.subr.mxu0 0.0
      %2449 = vmatpush1.msra.mxu0 0.0
      %2450 = vmatprep.subr.mxu0 0.0
      %2451 = vmatpush1.msra.mxu0 0.0
      %2452 = vmatprep.subr.mxu0 0.0
      %2453 = vmatpush1.msra.mxu0 0.0
      %2454 = vmatprep.subr.mxu0 0.0
      %2455 = vmatpush1.msra.mxu0 0.0
      %2456 = vmatprep.subr.mxu0 0.0
      %2457 = vmatpush1.msra.mxu0 0.0
      %2458 = vmatprep.subr.mxu0 0.0
      %2459 = vmatpush1.msra.mxu0 0.0
      %2460 = vmatprep.subr.mxu0 0.0
      %2461 = vmatpush1.msra.mxu0 0.0
      %2462 = vmatprep.subr.mxu0 0.0
      %2463 = vmatpush1.msra.mxu0 0.0
      %2464 = vmatprep.subr.mxu0 0.0
      %2465 = vmatpush1.msra.mxu0 0.0
      %2466 = vmatprep.subr.mxu0 0.0
      %2467 = vmatpush1.msra.mxu0 0.0
      %2468 = vmatprep.subr.mxu0 0.0
      %2469 = vmatpush1.msra.mxu0 0.0
      %2470 = vmatprep.subr.mxu0 0.0
      %2471 = vmatpush1.msra.mxu0 0.0
      %2472 = vmatprep.subr.mxu0 0.0
      %2473 = vmatpush1.msra.mxu0 0.0
      %2474 = vmatprep.subr.mxu0 0.0
      %2475 = vmatpush1.msra.mxu0 0.0
      %2476 = vmatprep.subr.mxu0 0.0
      %2477 = vmatpush1.msra.mxu0 0.0
      %2478 = vmatprep.subr.mxu0 0.0
      %2479 = vmatpush1.msra.mxu0 0.0
      %2480 = vmatprep.subr.mxu0 0.0
      %2481 = vmatpush1.msra.mxu0 0.0
      %2482 = vmatprep.subr.mxu0 0.0
      %2483 = vmatpush1.msra.mxu0 0.0
      %2484 = vmatprep.mubr.f32.mxu0 0.0
      %2485 = vmatmul.mubr.f32.gmra.mrb[0].mxu0 %v2060
      %v2486 = vpop.f32.mrb[0].mxu0
      %v2487 = vadd.f32 0.0, %v2486
      %v2488 = vpop.f32.mrb[0].mxu0
      %2489 = vmatprep.mubr.f32.mxu0 0.0
      %2490 = vmatmul.mubr.f32.gmra.mrb[0].mxu0 %v2063
      %v2491 = vpop.f32.mrb[0].mxu0
      %v2492 = vadd.f32 0.0, %v2491
      %v2493 = vpop.f32.mrb[0].mxu0
      %2494 = vmatprep.mubr.f32.mxu0 0.0
      %2495 = vmatmul.mubr.f32.gmra.mrb[0].mxu0 %v2066
      %v2496 = vpop.f32.mrb[0].mxu0
      %v2497 = vadd.f32 0.0, %v2496
      %v2498 = vpop.f32.mrb[0].mxu0
      %2499 = vmatprep.mubr.f32.mxu0 0.0
      %2500 = vmatmul.mubr.f32.gmra.mrb[0].mxu0 %v2069
      %v2501 = vpop.f32.mrb[0].mxu0
      %v2502 = vadd.f32 0.0, %v2501
      %v2503 = vpop.f32.mrb[0].mxu0
      %2504 = vmatprep.mubr.f32.mxu0 0.0
      %2505 = vmatmul.mubr.f32.gmra.mrb[0].mxu0 %v2072
      %v2506 = vpop.f32.mrb[0].mxu0
      %v2507 = vadd.f32 0.0, %v2506
      %v2508 = vpop.f32.mrb[0].mxu0
      %2509 = vmatprep.mubr.f32.mxu0 0.0
      %2510 = vmatmul.mubr.f32.gmra.mrb[0].mxu0 %v2075
      %v2511 = vpop.f32.mrb[0].mxu0
      %v2512 = vadd.f32 0.0, %v2511
      %v2513 = vpop.f32.mrb[0].mxu0
      %2514 = vmatprep.mubr.f32.mxu0 0.0
      %2515 = vmatmul.mubr.f32.gmra.mrb[0].mxu0 %v2078
      %v2516 = vpop.f32.mrb[0].mxu0
      %v2517 = vadd.f32 0.0, %v2516
      %v2518 = vpop.f32.mrb[0].mxu0
      %2519 = vmatprep.mubr.f32.mxu0 0.0
      %2520 = vmatmul.mubr.f32.gmra.mrb[0].mxu0 %v2081
      %v2521 = vpop.f32.mrb[0].mxu0
      %v2522 = vadd.f32 0.0, %v2521
      %v2523 = vpop.f32.mrb[0].mxu0
      %2524 = vmatprep.mubr.f32.mxu0 0.0
      %2525 = vmatmul.mubr.f32.gmra.mrb[0].mxu0 %v2084
      %v2526 = vpop.f32.mrb[0].mxu0
      %v2527 = vadd.f32 0.0, %v2526
      %v2528 = vpop.f32.mrb[0].mxu0
      %2529 = vmatprep.mubr.f32.mxu0 0.0
      %2530 = vmatmul.mubr.f32.gmra.mrb[0].mxu0 %v2087
      %v2531 = vpop.f32.mrb[0].mxu0
      %v2532 = vadd.f32 0.0, %v2531
      %v2533 = vpop.f32.mrb[0].mxu0
      %2534 = vmatprep.mubr.f32.mxu0 0.0
      %2535 = vmatmul.mubr.f32.gmra.mrb[0].mxu0 %v2090
      %v2536 = vpop.f32.mrb[0].mxu0
      %v2537 = vadd.f32 0.0, %v2536
      %v2538 = vpop.f32.mrb[0].mxu0
      %2539 = vmatprep.mubr.f32.mxu0 0.0
      %2540 = vmatmul.mubr.f32.gmra.mrb[0].mxu0 %v2093
      %v2541 = vpop.f32.mrb[0].mxu0
      %v2542 = vadd.f32 0.0, %v2541
      %v2543 = vpop.f32.mrb[0].mxu0
      %2544 = vmatprep.mubr.f32.mxu0 0.0
      %2545 = vmatmul.mubr.f32.gmra.mrb[0].mxu0 %v2096
      %v2546 = vpop.f32.mrb[0].mxu0
      %v2547 = vadd.f32 0.0, %v2546
      %v2548 = vpop.f32.mrb[0].mxu0
      %2549 = vmatprep.mubr.f32.mxu0 0.0
      %2550 = vmatmul.mubr.f32.gmra.mrb[0].mxu0 %v2099
      %v2551 = vpop.f32.mrb[0].mxu0
      %v2552 = vadd.f32 0.0, %v2551
      %v2553 = vpop.f32.mrb[0].mxu0
      %2554 = vmatprep.mubr.f32.mxu0 0.0
      %2555 = vmatmul.mubr.f32.gmra.mrb[0].mxu0 %v2102
      %v2556 = vpop.f32.mrb[0].mxu0
      %v2557 = vadd.f32 0.0, %v2556
      %v2558 = vpop.f32.mrb[0].mxu0
      %2559 = vmatprep.mubr.f32.mxu0 0.0
      %2560 = vmatmul.mubr.f32.gmra.mrb[0].mxu0 %v2105
      %v2561 = vpop.f32.mrb[0].mxu0
      %v2562 = vadd.f32 0.0, %v2561
      %v2563 = vpop.f32.mrb[0].mxu0
      %2564 = vmatprep.mubr.f32.mxu0 0.0
      %2565 = vmatmul.mubr.f32.gmra.mrb[0].mxu0 %v2108
      %v2566 = vpop.f32.mrb[0].mxu0
      %v2567 = vadd.f32 0.0, %v2566
      %v2568 = vpop.f32.mrb[0].mxu0
      %2569 = vmatprep.mubr.f32.mxu0 0.0
      %2570 = vmatmul.mubr.f32.gmra.mrb[0].mxu0 %v2111
      %v2571 = vpop.f32.mrb[0].mxu0
      %v2572 = vadd.f32 0.0, %v2571
      %v2573 = vpop.f32.mrb[0].mxu0
      %2574 = vmatprep.mubr.f32.mxu0 0.0
      %2575 = vmatmul.mubr.f32.gmra.mrb[0].mxu0 %v2114
      %v2576 = vpop.f32.mrb[0].mxu0
      %v2577 = vadd.f32 0.0, %v2576
      %v2578 = vpop.f32.mrb[0].mxu0
      %2579 = vmatprep.mubr.f32.mxu0 0.0
      %2580 = vmatmul.mubr.f32.gmra.mrb[0].mxu0 %v2117
      %v2581 = vpop.f32.mrb[0].mxu0
      %v2582 = vadd.f32 0.0, %v2581
      %v2583 = vpop.f32.mrb[0].mxu0
      %2584 = vmatprep.mubr.f32.mxu0 0.0
      %2585 = vmatmul.mubr.f32.gmra.mrb[0].mxu0 %v2120
      %v2586 = vpop.f32.mrb[0].mxu0
      %v2587 = vadd.f32 0.0, %v2586
      %v2588 = vpop.f32.mrb[0].mxu0
      %2589 = vmatprep.mubr.f32.mxu0 0.0
      %2590 = vmatmul.mubr.f32.gmra.mrb[0].mxu0 %v2123
      %v2591 = vpop.f32.mrb[0].mxu0
      %v2592 = vadd.f32 0.0, %v2591
      %v2593 = vpop.f32.mrb[0].mxu0
      %2594 = vmatprep.mubr.f32.mxu0 0.0
      %2595 = vmatmul.mubr.f32.gmra.mrb[0].mxu0 %v2126
      %v2596 = vpop.f32.mrb[0].mxu0
      %v2597 = vadd.f32 0.0, %v2596
      %v2598 = vpop.f32.mrb[0].mxu0
      %2599 = vmatprep.mubr.f32.mxu0 0.0
      %2600 = vmatmul.mubr.f32.gmra.mrb[0].mxu0 %v2129
      %v2601 = vpop.f32.mrb[0].mxu0
      %v2602 = vadd.f32 0.0, %v2601
      %v2603 = vpop.f32.mrb[0].mxu0
      %2604 = vmatprep.mubr.f32.mxu0 0.0
      %2605 = vmatmul.mubr.f32.gmra.mrb[0].mxu0 %v2132
      %v2606 = vpop.f32.mrb[0].mxu0
      %v2607 = vadd.f32 0.0, %v2606
      %v2608 = vpop.f32.mrb[0].mxu0
      %2609 = vmatprep.mubr.f32.mxu0 0.0
      %2610 = vmatmul.mubr.f32.gmra.mrb[0].mxu0 %v2135
      %v2611 = vpop.f32.mrb[0].mxu0
      %v2612 = vadd.f32 0.0, %v2611
      %v2613 = vpop.f32.mrb[0].mxu0
      %2614 = vmatprep.mubr.f32.mxu0 0.0
      %2615 = vmatmul.mubr.f32.gmra.mrb[0].mxu0 %v2138
      %v2616 = vpop.f32.mrb[0].mxu0
      %v2617 = vadd.f32 0.0, %v2616
      %v2618 = vpop.f32.mrb[0].mxu0
      %2619 = vmatprep.mubr.f32.mxu0 0.0
      %2620 = vmatmul.mubr.f32.gmra.mrb[0].mxu0 %v2141
      %v2621 = vpop.f32.mrb[0].mxu0
      %v2622 = vadd.f32 0.0, %v2621
      %v2623 = vpop.f32.mrb[0].mxu0
      %2624 = vmatprep.mubr.f32.mxu0 0.0
      %2625 = vmatmul.mubr.f32.gmra.mrb[0].mxu0 %v2144
      %v2626 = vpop.f32.mrb[0].mxu0
      %v2627 = vadd.f32 0.0, %v2626
      %v2628 = vpop.f32.mrb[0].mxu0
      %2629 = vmatprep.mubr.f32.mxu0 0.0
      %2630 = vmatmul.mubr.f32.gmra.mrb[0].mxu0 %v2147
      %v2631 = vpop.f32.mrb[0].mxu0
      %v2632 = vadd.f32 0.0, %v2631
      %v2633 = vpop.f32.mrb[0].mxu0
      %2634 = vmatprep.mubr.f32.mxu0 0.0
      %2635 = vmatmul.mubr.f32.gmra.mrb[0].mxu0 %v2412
      %v2636 = vpop.f32.mrb[0].mxu0
      %v2637 = vadd.f32 0.0, %v2636
      %v2638 = vpop.f32.mrb[0].mxu0
      %2639 = vmatprep.mubr.f32.mxu0 0.0
      %2640 = vmatmul.mubr.f32.gmra.mrb[0].mxu0 %v2415
      %v2641 = vpop.f32.mrb[0].mxu0
      %v2642 = vadd.f32 0.0, %v2641
      %v2643 = vpop.f32.mrb[0].mxu0
      %2644 = vdwg.mxu0
      %v2645 = vadd.f32 %v2377, %v2487
      %v2646 = vadd.f32 %v2378, %v2492
      %v2647 = vadd.f32 %v2379, %v2497
      %v2648 = vadd.f32 %v2380, %v2502
      %v2649 = vadd.f32 %v2381, %v2507
      %v2650 = vadd.f32 %v2382, %v2512
      %v2651 = vadd.f32 %v2383, %v2517
      %v2652 = vadd.f32 %v2384, %v2522
      %v2653 = vadd.f32 %v2385, %v2527
      %v2654 = vadd.f32 %v2386, %v2532
      %v2655 = vadd.f32 %v2387, %v2537
      %v2656 = vadd.f32 %v2388, %v2542
      %v2657 = vadd.f32 %v2389, %v2547
      %v2658 = vadd.f32 %v2390, %v2552
      %v2659 = vadd.f32 %v2391, %v2557
      %v2660 = vadd.f32 %v2392, %v2562
      %v2661 = vadd.f32 %v2393, %v2567
      %v2662 = vadd.f32 %v2394, %v2572
      %v2663 = vadd.f32 %v2395, %v2577
      %v2664 = vadd.f32 %v2396, %v2582
      %v2665 = vadd.f32 %v2397, %v2587
      %v2666 = vadd.f32 %v2398, %v2592
      %v2667 = vadd.f32 %v2399, %v2597
      %v2668 = vadd.f32 %v2400, %v2602
      %v2669 = vadd.f32 %v2401, %v2607
      %v2670 = vadd.f32 %v2402, %v2612
      %v2671 = vadd.f32 %v2403, %v2617
      %v2672 = vadd.f32 %v2404, %v2622
      %v2673 = vadd.f32 %v2405, %v2627
      %v2674 = vadd.f32 %v2406, %v2632
      %v2675 = vadd.f32 %v2407, %v2637
      %v2676 = vadd.f32 %v2408, %v2642
      %s2677 = scalar_lea.vmem %s2, 32
      %v2678 = vld [vmem:[%s2677] sm:$0xf]
      %v2680 = vsel %vm257, %v2049, 0
      %v2683 = vsel %vm257, %v2050, 0
      %v2686 = vsel %vm354, %v2678, 0
      %2688 = vmatprep.subr.mxu0 0.0
      %2689 = vmatpush1.msra.mxu0 %v2686
      %2690 = vmatprep.subr.mxu0 0.0
      %2691 = vmatpush1.msra.mxu0 0.0
      %2692 = vmatprep.subr.mxu0 0.0
      %2693 = vmatpush1.msra.mxu0 0.0
      %2694 = vmatprep.subr.mxu0 0.0
      %2695 = vmatpush1.msra.mxu0 0.0
      %2696 = vmatprep.subr.mxu0 0.0
      %2697 = vmatpush1.msra.mxu0 0.0
      %2698 = vmatprep.subr.mxu0 0.0
      %2699 = vmatpush1.msra.mxu0 0.0
      %2700 = vmatprep.subr.mxu0 0.0
      %2701 = vmatpush1.msra.mxu0 0.0
      %2702 = vmatprep.subr.mxu0 0.0
      %2703 = vmatpush1.msra.mxu0 0.0
      %2704 = vmatprep.subr.mxu0 0.0
      %2705 = vmatpush1.msra.mxu0 0.0
      %2706 = vmatprep.subr.mxu0 0.0
      %2707 = vmatpush1.msra.mxu0 0.0
      %2708 = vmatprep.subr.mxu0 0.0
      %2709 = vmatpush1.msra.mxu0 0.0
      %2710 = vmatprep.subr.mxu0 0.0
      %2711 = vmatpush1.msra.mxu0 0.0
      %2712 = vmatprep.subr.mxu0 0.0
      %2713 = vmatpush1.msra.mxu0 0.0
      %2714 = vmatprep.subr.mxu0 0.0
      %2715 = vmatpush1.msra.mxu0 0.0
      %2716 = vmatprep.subr.mxu0 0.0
      %2717 = vmatpush1.msra.mxu0 0.0
      %2718 = vmatprep.subr.mxu0 0.0
      %2719 = vmatpush1.msra.mxu0 0.0
      %2720 = vmatprep.subr.mxu0 0.0
      %2721 = vmatpush1.msra.mxu0 0.0
      %2722 = vmatprep.subr.mxu0 0.0
      %2723 = vmatpush1.msra.mxu0 0.0
      %2724 = vmatprep.subr.mxu0 0.0
      %2725 = vmatpush1.msra.mxu0 0.0
      %2726 = vmatprep.subr.mxu0 0.0
      %2727 = vmatpush1.msra.mxu0 0.0
      %2728 = vmatprep.subr.mxu0 0.0
      %2729 = vmatpush1.msra.mxu0 0.0
      %2730 = vmatprep.subr.mxu0 0.0
      %2731 = vmatpush1.msra.mxu0 0.0
      %2732 = vmatprep.subr.mxu0 0.0
      %2733 = vmatpush1.msra.mxu0 0.0
      %2734 = vmatprep.subr.mxu0 0.0
      %2735 = vmatpush1.msra.mxu0 0.0
      %2736 = vmatprep.subr.mxu0 0.0
      %2737 = vmatpush1.msra.mxu0 0.0
      %2738 = vmatprep.subr.mxu0 0.0
      %2739 = vmatpush1.msra.mxu0 0.0
      %2740 = vmatprep.subr.mxu0 0.0
      %2741 = vmatpush1.msra.mxu0 0.0
      %2742 = vmatprep.subr.mxu0 0.0
      %2743 = vmatpush1.msra.mxu0 0.0
      %2744 = vmatprep.subr.mxu0 0.0
      %2745 = vmatpush1.msra.mxu0 0.0
      %2746 = vmatprep.subr.mxu0 0.0
      %2747 = vmatpush1.msra.mxu0 0.0
      %2748 = vmatprep.subr.mxu0 0.0
      %2749 = vmatpush1.msra.mxu0 0.0
      %2750 = vmatprep.subr.mxu0 0.0
      %2751 = vmatpush1.msra.mxu0 0.0
      %2752 = vmatprep.mubr.f32.mxu0 0.0
      %2753 = vmatmul.mubr.f32.gmra.mrb[0].mxu0 %v2066
      %v2754 = vpop.f32.mrb[0].mxu0
      %v2755 = vadd.f32 0.0, %v2754
      %v2756 = vpop.f32.mrb[0].mxu0
      %2757 = vmatprep.mubr.f32.mxu0 0.0
      %2758 = vmatmul.mubr.f32.gmra.mrb[0].mxu0 %v2069
      %v2759 = vpop.f32.mrb[0].mxu0
      %v2760 = vadd.f32 0.0, %v2759
      %v2761 = vpop.f32.mrb[0].mxu0
      %2762 = vmatprep.mubr.f32.mxu0 0.0
      %2763 = vmatmul.mubr.f32.gmra.mrb[0].mxu0 %v2072
      %v2764 = vpop.f32.mrb[0].mxu0
      %v2765 = vadd.f32 0.0, %v2764
      %v2766 = vpop.f32.mrb[0].mxu0
      %2767 = vmatprep.mubr.f32.mxu0 0.0
      %2768 = vmatmul.mubr.f32.gmra.mrb[0].mxu0 %v2075
      %v2769 = vpop.f32.mrb[0].mxu0
      %v2770 = vadd.f32 0.0, %v2769
      %v2771 = vpop.f32.mrb[0].mxu0
      %2772 = vmatprep.mubr.f32.mxu0 0.0
      %2773 = vmatmul.mubr.f32.gmra.mrb[0].mxu0 %v2078
      %v2774 = vpop.f32.mrb[0].mxu0
      %v2775 = vadd.f32 0.0, %v2774
      %v2776 = vpop.f32.mrb[0].mxu0
      %2777 = vmatprep.mubr.f32.mxu0 0.0
      %2778 = vmatmul.mubr.f32.gmra.mrb[0].mxu0 %v2081
      %v2779 = vpop.f32.mrb[0].mxu0
      %v2780 = vadd.f32 0.0, %v2779
      %v2781 = vpop.f32.mrb[0].mxu0
      %2782 = vmatprep.mubr.f32.mxu0 0.0
      %2783 = vmatmul.mubr.f32.gmra.mrb[0].mxu0 %v2084
      %v2784 = vpop.f32.mrb[0].mxu0
      %v2785 = vadd.f32 0.0, %v2784
      %v2786 = vpop.f32.mrb[0].mxu0
      %2787 = vmatprep.mubr.f32.mxu0 0.0
      %2788 = vmatmul.mubr.f32.gmra.mrb[0].mxu0 %v2087
      %v2789 = vpop.f32.mrb[0].mxu0
      %v2790 = vadd.f32 0.0, %v2789
      %v2791 = vpop.f32.mrb[0].mxu0
      %2792 = vmatprep.mubr.f32.mxu0 0.0
      %2793 = vmatmul.mubr.f32.gmra.mrb[0].mxu0 %v2090
      %v2794 = vpop.f32.mrb[0].mxu0
      %v2795 = vadd.f32 0.0, %v2794
      %v2796 = vpop.f32.mrb[0].mxu0
      %2797 = vmatprep.mubr.f32.mxu0 0.0
      %2798 = vmatmul.mubr.f32.gmra.mrb[0].mxu0 %v2093
      %v2799 = vpop.f32.mrb[0].mxu0
      %v2800 = vadd.f32 0.0, %v2799
      %v2801 = vpop.f32.mrb[0].mxu0
      %2802 = vmatprep.mubr.f32.mxu0 0.0
      %2803 = vmatmul.mubr.f32.gmra.mrb[0].mxu0 %v2096
      %v2804 = vpop.f32.mrb[0].mxu0
      %v2805 = vadd.f32 0.0, %v2804
      %v2806 = vpop.f32.mrb[0].mxu0
      %2807 = vmatprep.mubr.f32.mxu0 0.0
      %2808 = vmatmul.mubr.f32.gmra.mrb[0].mxu0 %v2099
      %v2809 = vpop.f32.mrb[0].mxu0
      %v2810 = vadd.f32 0.0, %v2809
      %v2811 = vpop.f32.mrb[0].mxu0
      %2812 = vmatprep.mubr.f32.mxu0 0.0
      %2813 = vmatmul.mubr.f32.gmra.mrb[0].mxu0 %v2102
      %v2814 = vpop.f32.mrb[0].mxu0
      %v2815 = vadd.f32 0.0, %v2814
      %v2816 = vpop.f32.mrb[0].mxu0
      %2817 = vmatprep.mubr.f32.mxu0 0.0
      %2818 = vmatmul.mubr.f32.gmra.mrb[0].mxu0 %v2105
      %v2819 = vpop.f32.mrb[0].mxu0
      %v2820 = vadd.f32 0.0, %v2819
      %v2821 = vpop.f32.mrb[0].mxu0
      %2822 = vmatprep.mubr.f32.mxu0 0.0
      %2823 = vmatmul.mubr.f32.gmra.mrb[0].mxu0 %v2108
      %v2824 = vpop.f32.mrb[0].mxu0
      %v2825 = vadd.f32 0.0, %v2824
      %v2826 = vpop.f32.mrb[0].mxu0
      %2827 = vmatprep.mubr.f32.mxu0 0.0
      %2828 = vmatmul.mubr.f32.gmra.mrb[0].mxu0 %v2111
      %v2829 = vpop.f32.mrb[0].mxu0
      %v2830 = vadd.f32 0.0, %v2829
      %v2831 = vpop.f32.mrb[0].mxu0
      %2832 = vmatprep.mubr.f32.mxu0 0.0
      %2833 = vmatmul.mubr.f32.gmra.mrb[0].mxu0 %v2114
      %v2834 = vpop.f32.mrb[0].mxu0
      %v2835 = vadd.f32 0.0, %v2834
      %v2836 = vpop.f32.mrb[0].mxu0
      %2837 = vmatprep.mubr.f32.mxu0 0.0
      %2838 = vmatmul.mubr.f32.gmra.mrb[0].mxu0 %v2117
      %v2839 = vpop.f32.mrb[0].mxu0
      %v2840 = vadd.f32 0.0, %v2839
      %v2841 = vpop.f32.mrb[0].mxu0
      %2842 = vmatprep.mubr.f32.mxu0 0.0
      %2843 = vmatmul.mubr.f32.gmra.mrb[0].mxu0 %v2120
      %v2844 = vpop.f32.mrb[0].mxu0
      %v2845 = vadd.f32 0.0, %v2844
      %v2846 = vpop.f32.mrb[0].mxu0
      %2847 = vmatprep.mubr.f32.mxu0 0.0
      %2848 = vmatmul.mubr.f32.gmra.mrb[0].mxu0 %v2123
      %v2849 = vpop.f32.mrb[0].mxu0
      %v2850 = vadd.f32 0.0, %v2849
      %v2851 = vpop.f32.mrb[0].mxu0
      %2852 = vmatprep.mubr.f32.mxu0 0.0
      %2853 = vmatmul.mubr.f32.gmra.mrb[0].mxu0 %v2126
      %v2854 = vpop.f32.mrb[0].mxu0
      %v2855 = vadd.f32 0.0, %v2854
      %v2856 = vpop.f32.mrb[0].mxu0
      %2857 = vmatprep.mubr.f32.mxu0 0.0
      %2858 = vmatmul.mubr.f32.gmra.mrb[0].mxu0 %v2129
      %v2859 = vpop.f32.mrb[0].mxu0
      %v2860 = vadd.f32 0.0, %v2859
      %v2861 = vpop.f32.mrb[0].mxu0
      %2862 = vmatprep.mubr.f32.mxu0 0.0
      %2863 = vmatmul.mubr.f32.gmra.mrb[0].mxu0 %v2132
      %v2864 = vpop.f32.mrb[0].mxu0
      %v2865 = vadd.f32 0.0, %v2864
      %v2866 = vpop.f32.mrb[0].mxu0
      %2867 = vmatprep.mubr.f32.mxu0 0.0
      %2868 = vmatmul.mubr.f32.gmra.mrb[0].mxu0 %v2135
      %v2869 = vpop.f32.mrb[0].mxu0
      %v2870 = vadd.f32 0.0, %v2869
      %v2871 = vpop.f32.mrb[0].mxu0
      %2872 = vmatprep.mubr.f32.mxu0 0.0
      %2873 = vmatmul.mubr.f32.gmra.mrb[0].mxu0 %v2138
      %v2874 = vpop.f32.mrb[0].mxu0
      %v2875 = vadd.f32 0.0, %v2874
      %v2876 = vpop.f32.mrb[0].mxu0
      %2877 = vmatprep.mubr.f32.mxu0 0.0
      %2878 = vmatmul.mubr.f32.gmra.mrb[0].mxu0 %v2141
      %v2879 = vpop.f32.mrb[0].mxu0
      %v2880 = vadd.f32 0.0, %v2879
      %v2881 = vpop.f32.mrb[0].mxu0
      %2882 = vmatprep.mubr.f32.mxu0 0.0
      %2883 = vmatmul.mubr.f32.gmra.mrb[0].mxu0 %v2144
      %v2884 = vpop.f32.mrb[0].mxu0
      %v2885 = vadd.f32 0.0, %v2884
      %v2886 = vpop.f32.mrb[0].mxu0
      %2887 = vmatprep.mubr.f32.mxu0 0.0
      %2888 = vmatmul.mubr.f32.gmra.mrb[0].mxu0 %v2147
      %v2889 = vpop.f32.mrb[0].mxu0
      %v2890 = vadd.f32 0.0, %v2889
      %v2891 = vpop.f32.mrb[0].mxu0
      %2892 = vmatprep.mubr.f32.mxu0 0.0
      %2893 = vmatmul.mubr.f32.gmra.mrb[0].mxu0 %v2412
      %v2894 = vpop.f32.mrb[0].mxu0
      %v2895 = vadd.f32 0.0, %v2894
      %v2896 = vpop.f32.mrb[0].mxu0
      %2897 = vmatprep.mubr.f32.mxu0 0.0
      %2898 = vmatmul.mubr.f32.gmra.mrb[0].mxu0 %v2415
      %v2899 = vpop.f32.mrb[0].mxu0
      %v2900 = vadd.f32 0.0, %v2899
      %v2901 = vpop.f32.mrb[0].mxu0
      %2902 = vmatprep.mubr.f32.mxu0 0.0
      %2903 = vmatmul.mubr.f32.gmra.mrb[0].mxu0 %v2680
      %v2904 = vpop.f32.mrb[0].mxu0
      %v2905 = vadd.f32 0.0, %v2904
      %v2906 = vpop.f32.mrb[0].mxu0
      %2907 = vmatprep.mubr.f32.mxu0 0.0
      %2908 = vmatmul.mubr.f32.gmra.mrb[0].mxu0 %v2683
      %v2909 = vpop.f32.mrb[0].mxu0
      %v2910 = vadd.f32 0.0, %v2909
      %v2911 = vpop.f32.mrb[0].mxu0
      %2912 = vdwg.mxu0
      %v2913 = vadd.f32 %v2645, %v2755
      %v2914 = vadd.f32 %v2646, %v2760
      %v2915 = vadd.f32 %v2647, %v2765
      %v2916 = vadd.f32 %v2648, %v2770
      %v2917 = vadd.f32 %v2649, %v2775
      %v2918 = vadd.f32 %v2650, %v2780
      %v2919 = vadd.f32 %v2651, %v2785
      %v2920 = vadd.f32 %v2652, %v2790
      %v2921 = vadd.f32 %v2653, %v2795
      %v2922 = vadd.f32 %v2654, %v2800
      %v2923 = vadd.f32 %v2655, %v2805
      %v2924 = vadd.f32 %v2656, %v2810
      %v2925 = vadd.f32 %v2657, %v2815
      %v2926 = vadd.f32 %v2658, %v2820
      %v2927 = vadd.f32 %v2659, %v2825
      %v2928 = vadd.f32 %v2660, %v2830
      %v2929 = vadd.f32 %v2661, %v2835
      %v2930 = vadd.f32 %v2662, %v2840
      %v2931 = vadd.f32 %v2663, %v2845
      %v2932 = vadd.f32 %v2664, %v2850
      %v2933 = vadd.f32 %v2665, %v2855
      %v2934 = vadd.f32 %v2666, %v2860
      %v2935 = vadd.f32 %v2667, %v2865
      %v2936 = vadd.f32 %v2668, %v2870
      %v2937 = vadd.f32 %v2669, %v2875
      %v2938 = vadd.f32 %v2670, %v2880
      %v2939 = vadd.f32 %v2671, %v2885
      %v2940 = vadd.f32 %v2672, %v2890
      %v2941 = vadd.f32 %v2673, %v2895
      %v2942 = vadd.f32 %v2674, %v2900
      %v2943 = vadd.f32 %v2675, %v2905
      %v2944 = vadd.f32 %v2676, %v2910
      %v2945 = vsel %vm257, %v2913, 0.0
      %v2946 = vsel %vm257, %v2914, 0.0
      %v2947 = vadd.f32 %v2945, %v2946
      %v2948 = vsel %vm257, %v2915, 0.0
      %v2949 = vadd.f32 %v2947, %v2948
      %v2950 = vsel %vm257, %v2916, 0.0
      %v2951 = vadd.f32 %v2949, %v2950
      %v2952 = vsel %vm257, %v2917, 0.0
      %v2953 = vadd.f32 %v2951, %v2952
      %v2954 = vsel %vm257, %v2918, 0.0
      %v2955 = vadd.f32 %v2953, %v2954
      %v2956 = vsel %vm257, %v2919, 0.0
      %v2957 = vadd.f32 %v2955, %v2956
      %v2958 = vsel %vm257, %v2920, 0.0
      %v2959 = vadd.f32 %v2957, %v2958
      %v2960 = vsel %vm257, %v2921, 0.0
      %v2961 = vadd.f32 %v2959, %v2960
      %v2962 = vsel %vm257, %v2922, 0.0
      %v2963 = vadd.f32 %v2961, %v2962
      %v2964 = vsel %vm257, %v2923, 0.0
      %v2965 = vadd.f32 %v2963, %v2964
      %v2966 = vsel %vm257, %v2924, 0.0
      %v2967 = vadd.f32 %v2965, %v2966
      %v2968 = vsel %vm257, %v2925, 0.0
      %v2969 = vadd.f32 %v2967, %v2968
      %v2970 = vsel %vm257, %v2926, 0.0
      %v2971 = vadd.f32 %v2969, %v2970
      %v2972 = vsel %vm257, %v2927, 0.0
      %v2973 = vadd.f32 %v2971, %v2972
      %v2974 = vsel %vm257, %v2928, 0.0
      %v2975 = vadd.f32 %v2973, %v2974
      %v2976 = vsel %vm257, %v2929, 0.0
      %v2977 = vadd.f32 %v2975, %v2976
      %v2978 = vsel %vm257, %v2930, 0.0
      %v2979 = vadd.f32 %v2977, %v2978
      %v2980 = vsel %vm257, %v2931, 0.0
      %v2981 = vadd.f32 %v2979, %v2980
      %v2982 = vsel %vm257, %v2932, 0.0
      %v2983 = vadd.f32 %v2981, %v2982
      %v2984 = vsel %vm257, %v2933, 0.0
      %v2985 = vadd.f32 %v2983, %v2984
      %v2986 = vsel %vm257, %v2934, 0.0
      %v2987 = vadd.f32 %v2985, %v2986
      %v2988 = vsel %vm257, %v2935, 0.0
      %v2989 = vadd.f32 %v2987, %v2988
      %v2990 = vsel %vm257, %v2936, 0.0
      %v2991 = vadd.f32 %v2989, %v2990
      %v2992 = vsel %vm257, %v2937, 0.0
      %v2993 = vadd.f32 %v2991, %v2992
      %v2994 = vsel %vm257, %v2938, 0.0
      %v2995 = vadd.f32 %v2993, %v2994
      %v2996 = vsel %vm257, %v2939, 0.0
      %v2997 = vadd.f32 %v2995, %v2996
      %v2998 = vsel %vm257, %v2940, 0.0
      %v2999 = vadd.f32 %v2997, %v2998
      %v3000 = vsel %vm257, %v2941, 0.0
      %v3001 = vadd.f32 %v2999, %v3000
      %v3002 = vsel %vm257, %v2942, 0.0
      %v3003 = vadd.f32 %v3001, %v3002
      %v3004 = vsel %vm257, %v2943, 0.0
      %v3005 = vadd.f32 %v3003, %v3004
      %v3006 = vsel %vm257, %v2944, 0.0
      %v3007 = vadd.f32 %v3005, %v3006
      %v3008 = vrot.slane %v3007, 4
      %v3009 = vadd.f32 %v3007, %v3008
      %v3010 = vrot.slane %v3009, 2
      %v3011 = vadd.f32 %v3009, %v3010
      %v3012 = vrot.slane %v3011, 1
      %v3013 = vadd.f32 %v3011, %v3012
      %v3014 = vmul.f32 %v2913, %v2913
      %v3015 = vmul.f32 %v2914, %v2914
      %v3016 = vmul.f32 %v2915, %v2915
      %v3017 = vmul.f32 %v2916, %v2916
      %v3018 = vmul.f32 %v2917, %v2917
      %v3019 = vmul.f32 %v2918, %v2918
      %v3020 = vmul.f32 %v2919, %v2919
      %v3021 = vmul.f32 %v2920, %v2920
      %v3022 = vmul.f32 %v2921, %v2921
      %v3023 = vmul.f32 %v2922, %v2922
      %v3024 = vmul.f32 %v2923, %v2923
      %v3025 = vmul.f32 %v2924, %v2924
      %v3026 = vmul.f32 %v2925, %v2925
      %v3027 = vmul.f32 %v2926, %v2926
      %v3028 = vmul.f32 %v2927, %v2927
      %v3029 = vmul.f32 %v2928, %v2928
      %v3030 = vmul.f32 %v2929, %v2929
      %v3031 = vmul.f32 %v2930, %v2930
      %v3032 = vmul.f32 %v2931, %v2931
      %v3033 = vmul.f32 %v2932, %v2932
      %v3034 = vmul.f32 %v2933, %v2933
      %v3035 = vmul.f32 %v2934, %v2934
      %v3036 = vmul.f32 %v2935, %v2935
      %v3037 = vmul.f32 %v2936, %v2936
      %v3038 = vmul.f32 %v2937, %v2937
      %v3039 = vmul.f32 %v2938, %v2938
      %v3040 = vmul.f32 %v2939, %v2939
      %v3041 = vmul.f32 %v2940, %v2940
      %v3042 = vmul.f32 %v2941, %v2941
      %v3043 = vmul.f32 %v2942, %v2942
      %v3044 = vmul.f32 %v2943, %v2943
      %v3045 = vmul.f32 %v2944, %v2944
      %v3046 = vsel %vm257, %v3014, 0.0
      %v3047 = vsel %vm257, %v3015, 0.0
      %v3048 = vadd.f32 %v3046, %v3047
      %v3049 = vsel %vm257, %v3016, 0.0
      %v3050 = vadd.f32 %v3048, %v3049
      %v3051 = vsel %vm257, %v3017, 0.0
      %v3052 = vadd.f32 %v3050, %v3051
      %v3053 = vsel %vm257, %v3018, 0.0
      %v3054 = vadd.f32 %v3052, %v3053
      %v3055 = vsel %vm257, %v3019, 0.0
      %v3056 = vadd.f32 %v3054, %v3055
      %v3057 = vsel %vm257, %v3020, 0.0
      %v3058 = vadd.f32 %v3056, %v3057
      %v3059 = vsel %vm257, %v3021, 0.0
      %v3060 = vadd.f32 %v3058, %v3059
      %v3061 = vsel %vm257, %v3022, 0.0
      %v3062 = vadd.f32 %v3060, %v3061
      %v3063 = vsel %vm257, %v3023, 0.0
      %v3064 = vadd.f32 %v3062, %v3063
      %v3065 = vsel %vm257, %v3024, 0.0
      %v3066 = vadd.f32 %v3064, %v3065
      %v3067 = vsel %vm257, %v3025, 0.0
      %v3068 = vadd.f32 %v3066, %v3067
      %v3069 = vsel %vm257, %v3026, 0.0
      %v3070 = vadd.f32 %v3068, %v3069
      %v3071 = vsel %vm257, %v3027, 0.0
      %v3072 = vadd.f32 %v3070, %v3071
      %v3073 = vsel %vm257, %v3028, 0.0
      %v3074 = vadd.f32 %v3072, %v3073
      %v3075 = vsel %vm257, %v3029, 0.0
      %v3076 = vadd.f32 %v3074, %v3075
      %v3077 = vsel %vm257, %v3030, 0.0
      %v3078 = vadd.f32 %v3076, %v3077
      %v3079 = vsel %vm257, %v3031, 0.0
      %v3080 = vadd.f32 %v3078, %v3079
      %v3081 = vsel %vm257, %v3032, 0.0
      %v3082 = vadd.f32 %v3080, %v3081
      %v3083 = vsel %vm257, %v3033, 0.0
      %v3084 = vadd.f32 %v3082, %v3083
      %v3085 = vsel %vm257, %v3034, 0.0
      %v3086 = vadd.f32 %v3084, %v3085
      %v3087 = vsel %vm257, %v3035, 0.0
      %v3088 = vadd.f32 %v3086, %v3087
      %v3089 = vsel %vm257, %v3036, 0.0
      %v3090 = vadd.f32 %v3088, %v3089
      %v3091 = vsel %vm257, %v3037, 0.0
      %v3092 = vadd.f32 %v3090, %v3091
      %v3093 = vsel %vm257, %v3038, 0.0
      %v3094 = vadd.f32 %v3092, %v3093
      %v3095 = vsel %vm257, %v3039, 0.0
      %v3096 = vadd.f32 %v3094, %v3095
      %v3097 = vsel %vm257, %v3040, 0.0
      %v3098 = vadd.f32 %v3096, %v3097
      %v3099 = vsel %vm257, %v3041, 0.0
      %v3100 = vadd.f32 %v3098, %v3099
      %v3101 = vsel %vm257, %v3042, 0.0
      %v3102 = vadd.f32 %v3100, %v3101
      %v3103 = vsel %vm257, %v3043, 0.0
      %v3104 = vadd.f32 %v3102, %v3103
      %v3105 = vsel %vm257, %v3044, 0.0
      %v3106 = vadd.f32 %v3104, %v3105
      %v3107 = vsel %vm257, %v3045, 0.0
      %v3108 = vadd.f32 %v3106, %v3107
      %v3109 = vrot.slane %v3108, 4
      %v3110 = vadd.f32 %v3108, %v3109
      %v3111 = vrot.slane %v3110, 2
      %v3112 = vadd.f32 %v3110, %v3111
      %v3113 = vrot.slane %v3112, 1
      %v3114 = vadd.f32 %v3112, %v3113
      %v3115 = vmul.f32 %v3013, 0.00390625
      %v3116 = vmul.f32 %v3114, 0.00390625
      %v3117 = vmul.f32 %v3115, %v3115
      %v3118 = vsub.f32 %v3116, %v3117
      %v3119 = vmax.f32 %v3118, 0.0
      %v3120 = vsub.f32 %v2913, %v3115
      %v3121 = vsub.f32 %v2914, %v3115
      %v3122 = vsub.f32 %v2915, %v3115
      %v3123 = vsub.f32 %v2916, %v3115
      %v3124 = vsub.f32 %v2917, %v3115
      %v3125 = vsub.f32 %v2918, %v3115
      %v3126 = vsub.f32 %v2919, %v3115
      %v3127 = vsub.f32 %v2920, %v3115
      %v3128 = vsub.f32 %v2921, %v3115
      %v3129 = vsub.f32 %v2922, %v3115
      %v3130 = vsub.f32 %v2923, %v3115
      %v3131 = vsub.f32 %v2924, %v3115
      %v3132 = vsub.f32 %v2925, %v3115
      %v3133 = vsub.f32 %v2926, %v3115
      %v3134 = vsub.f32 %v2927, %v3115
      %v3135 = vsub.f32 %v2928, %v3115
      %v3136 = vsub.f32 %v2929, %v3115
      %v3137 = vsub.f32 %v2930, %v3115
      %v3138 = vsub.f32 %v2931, %v3115
      %v3139 = vsub.f32 %v2932, %v3115
      %v3140 = vsub.f32 %v2933, %v3115
      %v3141 = vsub.f32 %v2934, %v3115
      %v3142 = vsub.f32 %v2935, %v3115
      %v3143 = vsub.f32 %v2936, %v3115
      %v3144 = vsub.f32 %v2937, %v3115
      %v3145 = vsub.f32 %v2938, %v3115
      %v3146 = vsub.f32 %v2939, %v3115
      %v3147 = vsub.f32 %v2940, %v3115
      %v3148 = vsub.f32 %v2941, %v3115
      %v3149 = vsub.f32 %v2942, %v3115
      %v3150 = vsub.f32 %v2943, %v3115
      %v3151 = vsub.f32 %v2944, %v3115
      %v3152 = vadd.f32 %v3119, 1e-05
      %v3153 = vrsqrt.pop %v3152
      %v3154 = vmul.f32 %v3120, %v3153
      %v3155 = vmul.f32 %v3121, %v3153
      %v3156 = vmul.f32 %v3122, %v3153
      %v3157 = vmul.f32 %v3123, %v3153
      %v3158 = vmul.f32 %v3124, %v3153
      %v3159 = vmul.f32 %v3125, %v3153
      %v3160 = vmul.f32 %v3126, %v3153
      %v3161 = vmul.f32 %v3127, %v3153
      %v3162 = vmul.f32 %v3128, %v3153
      %v3163 = vmul.f32 %v3129, %v3153
      %v3164 = vmul.f32 %v3130, %v3153
      %v3165 = vmul.f32 %v3131, %v3153
      %v3166 = vmul.f32 %v3132, %v3153
      %v3167 = vmul.f32 %v3133, %v3153
      %v3168 = vmul.f32 %v3134, %v3153
      %v3169 = vmul.f32 %v3135, %v3153
      %v3170 = vmul.f32 %v3136, %v3153
      %v3171 = vmul.f32 %v3137, %v3153
      %v3172 = vmul.f32 %v3138, %v3153
      %v3173 = vmul.f32 %v3139, %v3153
      %v3174 = vmul.f32 %v3140, %v3153
      %v3175 = vmul.f32 %v3141, %v3153
      %v3176 = vmul.f32 %v3142, %v3153
      %v3177 = vmul.f32 %v3143, %v3153
      %v3178 = vmul.f32 %v3144, %v3153
      %v3179 = vmul.f32 %v3145, %v3153
      %v3180 = vmul.f32 %v3146, %v3153
      %v3181 = vmul.f32 %v3147, %v3153
      %v3182 = vmul.f32 %v3148, %v3153
      %v3183 = vmul.f32 %v3149, %v3153
      %v3184 = vmul.f32 %v3150, %v3153
      %v3185 = vmul.f32 %v3151, %v3153
      %v3186 = vmax.f32 %v3154, 0.0
      %v3187 = vmax.f32 %v3155, 0.0
      %v3188 = vmax.f32 %v3156, 0.0
      %v3189 = vmax.f32 %v3157, 0.0
      %v3190 = vmax.f32 %v3158, 0.0
      %v3191 = vmax.f32 %v3159, 0.0
      %v3192 = vmax.f32 %v3160, 0.0
      %v3193 = vmax.f32 %v3161, 0.0
      %v3194 = vmax.f32 %v3162, 0.0
      %v3195 = vmax.f32 %v3163, 0.0
      %v3196 = vmax.f32 %v3164, 0.0
      %v3197 = vmax.f32 %v3165, 0.0
      %v3198 = vmax.f32 %v3166, 0.0
      %v3199 = vmax.f32 %v3167, 0.0
      %v3200 = vmax.f32 %v3168, 0.0
      %v3201 = vmax.f32 %v3169, 0.0
      %v3202 = vmax.f32 %v3170, 0.0
      %v3203 = vmax.f32 %v3171, 0.0
      %v3204 = vmax.f32 %v3172, 0.0
      %v3205 = vmax.f32 %v3173, 0.0
      %v3206 = vmax.f32 %v3174, 0.0
      %v3207 = vmax.f32 %v3175, 0.0
      %v3208 = vmax.f32 %v3176, 0.0
      %v3209 = vmax.f32 %v3177, 0.0
      %v3210 = vmax.f32 %v3178, 0.0
      %v3211 = vmax.f32 %v3179, 0.0
      %v3212 = vmax.f32 %v3180, 0.0
      %v3213 = vmax.f32 %v3181, 0.0
      %v3214 = vmax.f32 %v3182, 0.0
      %v3215 = vmax.f32 %v3183, 0.0
      %v3216 = vmax.f32 %v3184, 0.0
      %v3217 = vmax.f32 %v3185, 0.0
      %s3218 = scalar_lea.vmem [#allocation2], 24
      %3219 = vst.msk [vmem:[%s3218 + $0x1] sm:$0xff] %vm257, %v3186
      %3220 = vst.msk [vmem:[%s3218 + $0x9] sm:$0xff] %vm257, %v3187
      %3221 = vst.msk [vmem:[%s3218 + $0x19] sm:$0xff] %vm257, %v3188
      %3222 = vst.msk [vmem:[%s3218 + $0x21] sm:$0xff] %vm257, %v3189
      %3223 = vst.msk [vmem:[%s3218 + $0x31] sm:$0xff] %vm257, %v3190
      %3224 = vst.msk [vmem:[%s3218 + $0x39] sm:$0xff] %vm257, %v3191
      %3225 = vst.msk [vmem:[%s3218 + $0x49] sm:$0xff] %vm257, %v3192
      %3226 = vst.msk [vmem:[%s3218 + $0x51] sm:$0xff] %vm257, %v3193
      %3227 = vst.msk [vmem:[%s3218 + $0x61] sm:$0xff] %vm257, %v3194
      %3228 = vst.msk [vmem:[%s3218 + $0x69] sm:$0xff] %vm257, %v3195
      %3229 = vst.msk [vmem:[%s3218 + $0x79] sm:$0xff] %vm257, %v3196
      %3230 = vst.msk [vmem:[%s3218 + $0x81] sm:$0xff] %vm257, %v3197
      %3231 = vst.msk [vmem:[%s3218 + $0x91] sm:$0xff] %vm257, %v3198
      %3232 = vst.msk [vmem:[%s3218 + $0x99] sm:$0xff] %vm257, %v3199
      %3233 = vst.msk [vmem:[%s3218 + $0xa9] sm:$0xff] %vm257, %v3200
      %3234 = vst.msk [vmem:[%s3218 + $0xb1] sm:$0xff] %vm257, %v3201
      %3235 = vst.msk [vmem:[%s3218 + $0xc1] sm:$0xff] %vm257, %v3202
      %3236 = vst.msk [vmem:[%s3218 + $0xc9] sm:$0xff] %vm257, %v3203
      %3237 = vst.msk [vmem:[%s3218 + $0xd9] sm:$0xff] %vm257, %v3204
      %3238 = vst.msk [vmem:[%s3218 + $0xe1] sm:$0xff] %vm257, %v3205
      %3239 = vst.msk [vmem:[%s3218 + $0xf1] sm:$0xff] %vm257, %v3206
      %3240 = vst.msk [vmem:[%s3218 + $0xf9] sm:$0xff] %vm257, %v3207
      %3241 = vst.msk [vmem:[%s3218 + $0x109] sm:$0xff] %vm257, %v3208
      %3242 = vst.msk [vmem:[%s3218 + $0x111] sm:$0xff] %vm257, %v3209
      %3243 = vst.msk [vmem:[%s3218 + $0x121] sm:$0xff] %vm257, %v3210
      %3244 = vst.msk [vmem:[%s3218 + $0x129] sm:$0xff] %vm257, %v3211
      %3245 = vst.msk [vmem:[%s3218 + $0x139] sm:$0xff] %vm257, %v3212
      %3246 = vst.msk [vmem:[%s3218 + $0x141] sm:$0xff] %vm257, %v3213
      %3247 = vst.msk [vmem:[%s3218 + $0x151] sm:$0xff] %vm257, %v3214
      %3248 = vst.msk [vmem:[%s3218 + $0x159] sm:$0xff] %vm257, %v3215
      %3249 = vst.msk [vmem:[%s3218 + $0x169] sm:$0xff] %vm257, %v3216
      %3250 = vst.msk [vmem:[%s3218 + $0x171] sm:$0xff] %vm257, %v3217
      %vm3251 = vcmask 25601
      %3252 = vst.msk [vmem:[%s3218 - $0x1] sm:$0x2] %vm3251, %v3186
      %3253 = vst.msk [vmem:[%s3218 + $0x17] sm:$0x2] %vm3251, %v3188
      %3254 = vst.msk [vmem:[%s3218 + $0x2f] sm:$0x2] %vm3251, %v3190
      %3255 = vst.msk [vmem:[%s3218 + $0x47] sm:$0x2] %vm3251, %v3192
      %3256 = vst.msk [vmem:[%s3218 + $0x5f] sm:$0x2] %vm3251, %v3194
      %3257 = vst.msk [vmem:[%s3218 + $0x77] sm:$0x2] %vm3251, %v3196
      %3258 = vst.msk [vmem:[%s3218 + $0x8f] sm:$0x2] %vm3251, %v3198
      %3259 = vst.msk [vmem:[%s3218 + $0xa7] sm:$0x2] %vm3251, %v3200
      %3260 = vst.msk [vmem:[%s3218 + $0xbf] sm:$0x2] %vm3251, %v3202
      %3261 = vst.msk [vmem:[%s3218 + $0xd7] sm:$0x2] %vm3251, %v3204
      %3262 = vst.msk [vmem:[%s3218 + $0xef] sm:$0x2] %vm3251, %v3206
      %3263 = vst.msk [vmem:[%s3218 + $0x107] sm:$0x2] %vm3251, %v3208
      %3264 = vst.msk [vmem:[%s3218 + $0x11f] sm:$0x2] %vm3251, %v3210
      %3265 = vst.msk [vmem:[%s3218 + $0x137] sm:$0x2] %vm3251, %v3212
      %3266 = vst.msk [vmem:[%s3218 + $0x14f] sm:$0x2] %vm3251, %v3214
      %3267 = vst.msk [vmem:[%s3218 + $0x167] sm:$0x2] %vm3251, %v3216
      %vm3268 = vcmask 30726
      %3269 = vst.msk [vmem:[%s3218 + $0xb] sm:$0x40] %vm3268, %v3187
      %3270 = vst.msk [vmem:[%s3218 + $0x23] sm:$0x40] %vm3268, %v3189
      %3271 = vst.msk [vmem:[%s3218 + $0x3b] sm:$0x40] %vm3268, %v3191
      %3272 = vst.msk [vmem:[%s3218 + $0x53] sm:$0x40] %vm3268, %v3193
      %3273 = vst.msk [vmem:[%s3218 + $0x6b] sm:$0x40] %vm3268, %v3195
      %3274 = vst.msk [vmem:[%s3218 + $0x83] sm:$0x40] %vm3268, %v3197
      %3275 = vst.msk [vmem:[%s3218 + $0x9b] sm:$0x40] %vm3268, %v3199
      %3276 = vst.msk [vmem:[%s3218 + $0xb3] sm:$0x40] %vm3268, %v3201
      %3277 = vst.msk [vmem:[%s3218 + $0xcb] sm:$0x40] %vm3268, %v3203
      %3278 = vst.msk [vmem:[%s3218 + $0xe3] sm:$0x40] %vm3268, %v3205
      %3279 = vst.msk [vmem:[%s3218 + $0xfb] sm:$0x40] %vm3268, %v3207
      %3280 = vst.msk [vmem:[%s3218 + $0x113] sm:$0x40] %vm3268, %v3209
      %3281 = vst.msk [vmem:[%s3218 + $0x12b] sm:$0x40] %vm3268, %v3211
      %3282 = vst.msk [vmem:[%s3218 + $0x143] sm:$0x40] %vm3268, %v3213
      %3283 = vst.msk [vmem:[%s3218 + $0x15b] sm:$0x40] %vm3268, %v3215
      %3284 = vst.msk [vmem:[%s3218 + $0x173] sm:$0x40] %vm3268, %v3217
      %s3285 = scalar_lea.vmem [#allocation2], 48
      %v3286 = vld [vmem:[%s3285] sm:$0xff]
      %v3287 = vld [vmem:[%s3285 + $0x8] sm:$0xff]
      %v3288 = vld [vmem:[%s3285 + $0x10] sm:$0x3]
      %3289 = vst.msk [vmem:[#allocation2] sm:$0xff] %vm257, %v3286
      %3290 = vst.msk [vmem:[#allocation2 + $0x8] sm:$0xff] %vm257, %v3287
      %vm3291 = vcmask 25600
      %3292 = vst.msk [vmem:[#allocation2 + $0x10] sm:$0x3] %vm3291, %v3288
      %s3293 = scalar_lea.vmem [#allocation2], 360
      %v3294 = vld [vmem:[%s3293] sm:$0xff]
      %v3295 = vld [vmem:[%s3293 + $0x8] sm:$0xff]
      %v3296 = vld [vmem:[%s3293 + $0x10] sm:$0x3]
      %s3297 = scalar_lea.vmem [#allocation2], 408
      %3298 = vst.msk [vmem:[%s3297] sm:$0xff] %vm257, %v3294
      %3299 = vst.msk [vmem:[%s3297 + $0x8] sm:$0xff] %vm257, %v3295
      %3300 = vst.msk [vmem:[%s3297 + $0x10] sm:$0x3] %vm3291, %v3296
      %v3301 = vld [vmem:[#allocation2] sm:$0xff]
      %v3302 = vld [vmem:[#allocation2 + $0x8] sm:$0xff]
      %v3303 = vld [vmem:[#allocation2 + $0x18] sm:$0xff]
      %v3304 = vld [vmem:[#allocation2 + $0x20] sm:$0xff]
      %v3305 = vld [vmem:[#allocation2 + $0x30] sm:$0xff]
      %v3306 = vld [vmem:[#allocation2 + $0x38] sm:$0xff]
      %v3307 = vld [vmem:[#allocation2 + $0x48] sm:$0xff]
      %v3308 = vld [vmem:[#allocation2 + $0x50] sm:$0xff]
      %v3309 = vld [vmem:[#allocation2 + $0x60] sm:$0xff]
      %v3310 = vld [vmem:[#allocation2 + $0x68] sm:$0xff]
      %v3311 = vld [vmem:[#allocation2 + $0x78] sm:$0xff]
      %v3312 = vld [vmem:[#allocation2 + $0x80] sm:$0xff]
      %v3313 = vld [vmem:[#allocation2 + $0x90] sm:$0xff]
      %v3314 = vld [vmem:[#allocation2 + $0x98] sm:$0xff]
      %v3315 = vld [vmem:[#allocation2 + $0xa8] sm:$0xff]
      %v3316 = vld [vmem:[#allocation2 + $0xb0] sm:$0xff]
      %v3317 = vld [vmem:[#allocation2 + $0xc0] sm:$0xff]
      %v3318 = vld [vmem:[#allocation2 + $0xc8] sm:$0xff]
      %v3319 = vld [vmem:[#allocation2 + $0xd8] sm:$0xff]
      %v3320 = vld [vmem:[#allocation2 + $0xe0] sm:$0xff]
      %v3321 = vld [vmem:[#allocation2 + $0xf0] sm:$0xff]
      %v3322 = vld [vmem:[#allocation2 + $0xf8] sm:$0xff]
      %v3323 = vld [vmem:[#allocation2 + $0x108] sm:$0xff]
      %v3324 = vld [vmem:[#allocation2 + $0x110] sm:$0xff]
      %v3325 = vld [vmem:[#allocation2 + $0x120] sm:$0xff]
      %v3326 = vld [vmem:[#allocation2 + $0x128] sm:$0xff]
      %v3327 = vld [vmem:[#allocation2 + $0x138] sm:$0xff]
      %v3328 = vld [vmem:[#allocation2 + $0x140] sm:$0xff]
      %v3329 = vld [vmem:[#allocation2 + $0x150] sm:$0xff]
      %v3330 = vld [vmem:[#allocation2 + $0x158] sm:$0xff]
      %v3331 = vld [vmem:[#allocation2 + $0x168] sm:$0xff]
      %v3332 = vld [vmem:[#allocation2 + $0x170] sm:$0xff]
      %v3333 = vld [vmem:[#allocation2 + $0x180] sm:$0xff]
      %v3334 = vld [vmem:[#allocation2 + $0x188] sm:$0xff]
      %v3335 = vld [vmem:[#allocation2 + $0x198] sm:$0xff]
      %v3336 = vld [vmem:[#allocation2 + $0x1a0] sm:$0xff]
      %v3337 = vld [vmem:[%s3] sm:$0xf]
      %s3338 = scalar_lea.vmem %s3, 12
      %v3339 = vld [vmem:[%s3338] sm:$0xf]
      %v3341 = vsel %vm257, %v3303, 0
      %v3344 = vsel %vm257, %v3304, 0
      %v3347 = vsel %vm257, %v3305, 0
      %v3350 = vsel %vm257, %v3306, 0
      %v3353 = vsel %vm257, %v3307, 0
      %v3356 = vsel %vm257, %v3308, 0
      %v3359 = vsel %vm257, %v3309, 0
      %v3362 = vsel %vm257, %v3310, 0
      %v3365 = vsel %vm257, %v3311, 0
      %v3368 = vsel %vm257, %v3312, 0
      %v3371 = vsel %vm257, %v3313, 0
      %v3374 = vsel %vm257, %v3314, 0
      %v3377 = vsel %vm257, %v3315, 0
      %v3380 = vsel %vm257, %v3316, 0
      %v3383 = vsel %vm257, %v3317, 0
      %v3386 = vsel %vm257, %v3318, 0
      %v3389 = vsel %vm257, %v3319, 0
      %v3392 = vsel %vm257, %v3320, 0
      %v3395 = vsel %vm257, %v3321, 0
      %v3398 = vsel %vm257, %v3322, 0
      %v3401 = vsel %vm257, %v3323, 0
      %v3404 = vsel %vm257, %v3324, 0
      %v3407 = vsel %vm257, %v3325, 0
      %v3410 = vsel %vm257, %v3326, 0
      %v3413 = vsel %vm257, %v3327, 0
      %v3416 = vsel %vm257, %v3328, 0
      %v3419 = vsel %vm257, %v3329, 0
      %v3422 = vsel %vm257, %v3330, 0
      %v3425 = vsel %vm257, %v3331, 0
      %v3428 = vsel %vm257, %v3332, 0
      %v3431 = vsel %vm257, %v3333, 0
      %v3434 = vsel %vm257, %v3334, 0
      %v3437 = vsel %vm354, %v3339, 0
      %3439 = vmatprep.subr.mxu0 0.0
      %3440 = vmatpush1.msra.mxu0 %v3437
      %3441 = vmatprep.subr.mxu0 0.0
      %3442 = vmatpush1.msra.mxu0 0.0
      %3443 = vmatprep.subr.mxu0 0.0
      %3444 = vmatpush1.msra.mxu0 0.0
      %3445 = vmatprep.subr.mxu0 0.0
      %3446 = vmatpush1.msra.mxu0 0.0
      %3447 = vmatprep.subr.mxu0 0.0
      %3448 = vmatpush1.msra.mxu0 0.0
      %3449 = vmatprep.subr.mxu0 0.0
      %3450 = vmatpush1.msra.mxu0 0.0
      %3451 = vmatprep.subr.mxu0 0.0
      %3452 = vmatpush1.msra.mxu0 0.0
      %3453 = vmatprep.subr.mxu0 0.0
      %3454 = vmatpush1.msra.mxu0 0.0
      %3455 = vmatprep.subr.mxu0 0.0
      %3456 = vmatpush1.msra.mxu0 0.0
      %3457 = vmatprep.subr.mxu0 0.0
      %3458 = vmatpush1.msra.mxu0 0.0
      %3459 = vmatprep.subr.mxu0 0.0
      %3460 = vmatpush1.msra.mxu0 0.0
      %3461 = vmatprep.subr.mxu0 0.0
      %3462 = vmatpush1.msra.mxu0 0.0
      %3463 = vmatprep.subr.mxu0 0.0
      %3464 = vmatpush1.msra.mxu0 0.0
      %3465 = vmatprep.subr.mxu0 0.0
      %3466 = vmatpush1.msra.mxu0 0.0
      %3467 = vmatprep.subr.mxu0 0.0
      %3468 = vmatpush1.msra.mxu0 0.0
      %3469 = vmatprep.subr.mxu0 0.0
      %3470 = vmatpush1.msra.mxu0 0.0
      %3471 = vmatprep.subr.mxu0 0.0
      %3472 = vmatpush1.msra.mxu0 0.0
      %3473 = vmatprep.subr.mxu0 0.0
      %3474 = vmatpush1.msra.mxu0 0.0
      %3475 = vmatprep.subr.mxu0 0.0
      %3476 = vmatpush1.msra.mxu0 0.0
      %3477 = vmatprep.subr.mxu0 0.0
      %3478 = vmatpush1.msra.mxu0 0.0
      %3479 = vmatprep.subr.mxu0 0.0
      %3480 = vmatpush1.msra.mxu0 0.0
      %3481 = vmatprep.subr.mxu0 0.0
      %3482 = vmatpush1.msra.mxu0 0.0
      %3483 = vmatprep.subr.mxu0 0.0
      %3484 = vmatpush1.msra.mxu0 0.0
      %3485 = vmatprep.subr.mxu0 0.0
      %3486 = vmatpush1.msra.mxu0 0.0
      %3487 = vmatprep.subr.mxu0 0.0
      %3488 = vmatpush1.msra.mxu0 0.0
      %3489 = vmatprep.subr.mxu0 0.0
      %3490 = vmatpush1.msra.mxu0 0.0
      %3491 = vmatprep.subr.mxu0 0.0
      %3492 = vmatpush1.msra.mxu0 0.0
      %3493 = vmatprep.subr.mxu0 0.0
      %3494 = vmatpush1.msra.mxu0 0.0
      %3495 = vmatprep.subr.mxu0 0.0
      %3496 = vmatpush1.msra.mxu0 0.0
      %3497 = vmatprep.subr.mxu0 0.0
      %3498 = vmatpush1.msra.mxu0 0.0
      %3499 = vmatprep.subr.mxu0 0.0
      %3500 = vmatpush1.msra.mxu0 0.0
      %3501 = vmatprep.subr.mxu0 0.0
      %3502 = vmatpush1.msra.mxu0 0.0
      %3503 = vmatprep.mubr.f32.mxu0 0.0
      %3504 = vmatmul.mubr.f32.gmra.mrb[0].mxu0 %v3341
      %v3505 = vpop.f32.mrb[0].mxu0
      %v3506 = vadd.f32 0.0, %v3505
      %v3507 = vpop.f32.mrb[0].mxu0
      %3508 = vmatprep.mubr.f32.mxu0 0.0
      %3509 = vmatmul.mubr.f32.gmra.mrb[0].mxu0 %v3344
      %v3510 = vpop.f32.mrb[0].mxu0
      %v3511 = vadd.f32 0.0, %v3510
      %v3512 = vpop.f32.mrb[0].mxu0
      %3513 = vmatprep.mubr.f32.mxu0 0.0
      %3514 = vmatmul.mubr.f32.gmra.mrb[0].mxu0 %v3347
      %v3515 = vpop.f32.mrb[0].mxu0
      %v3516 = vadd.f32 0.0, %v3515
      %v3517 = vpop.f32.mrb[0].mxu0
      %3518 = vmatprep.mubr.f32.mxu0 0.0
      %3519 = vmatmul.mubr.f32.gmra.mrb[0].mxu0 %v3350
      %v3520 = vpop.f32.mrb[0].mxu0
      %v3521 = vadd.f32 0.0, %v3520
      %v3522 = vpop.f32.mrb[0].mxu0
      %3523 = vmatprep.mubr.f32.mxu0 0.0
      %3524 = vmatmul.mubr.f32.gmra.mrb[0].mxu0 %v3353
      %v3525 = vpop.f32.mrb[0].mxu0
      %v3526 = vadd.f32 0.0, %v3525
      %v3527 = vpop.f32.mrb[0].mxu0
      %3528 = vmatprep.mubr.f32.mxu0 0.0
      %3529 = vmatmul.mubr.f32.gmra.mrb[0].mxu0 %v3356
      %v3530 = vpop.f32.mrb[0].mxu0
      %v3531 = vadd.f32 0.0, %v3530
      %v3532 = vpop.f32.mrb[0].mxu0
      %3533 = vmatprep.mubr.f32.mxu0 0.0
      %3534 = vmatmul.mubr.f32.gmra.mrb[0].mxu0 %v3359
      %v3535 = vpop.f32.mrb[0].mxu0
      %v3536 = vadd.f32 0.0, %v3535
      %v3537 = vpop.f32.mrb[0].mxu0
      %3538 = vmatprep.mubr.f32.mxu0 0.0
      %3539 = vmatmul.mubr.f32.gmra.mrb[0].mxu0 %v3362
      %v3540 = vpop.f32.mrb[0].mxu0
      %v3541 = vadd.f32 0.0, %v3540
      %v3542 = vpop.f32.mrb[0].mxu0
      %3543 = vmatprep.mubr.f32.mxu0 0.0
      %3544 = vmatmul.mubr.f32.gmra.mrb[0].mxu0 %v3365
      %v3545 = vpop.f32.mrb[0].mxu0
      %v3546 = vadd.f32 0.0, %v3545
      %v3547 = vpop.f32.mrb[0].mxu0
      %3548 = vmatprep.mubr.f32.mxu0 0.0
      %3549 = vmatmul.mubr.f32.gmra.mrb[0].mxu0 %v3368
      %v3550 = vpop.f32.mrb[0].mxu0
      %v3551 = vadd.f32 0.0, %v3550
      %v3552 = vpop.f32.mrb[0].mxu0
      %3553 = vmatprep.mubr.f32.mxu0 0.0
      %3554 = vmatmul.mubr.f32.gmra.mrb[0].mxu0 %v3371
      %v3555 = vpop.f32.mrb[0].mxu0
      %v3556 = vadd.f32 0.0, %v3555
      %v3557 = vpop.f32.mrb[0].mxu0
      %3558 = vmatprep.mubr.f32.mxu0 0.0
      %3559 = vmatmul.mubr.f32.gmra.mrb[0].mxu0 %v3374
      %v3560 = vpop.f32.mrb[0].mxu0
      %v3561 = vadd.f32 0.0, %v3560
      %v3562 = vpop.f32.mrb[0].mxu0
      %3563 = vmatprep.mubr.f32.mxu0 0.0
      %3564 = vmatmul.mubr.f32.gmra.mrb[0].mxu0 %v3377
      %v3565 = vpop.f32.mrb[0].mxu0
      %v3566 = vadd.f32 0.0, %v3565
      %v3567 = vpop.f32.mrb[0].mxu0
      %3568 = vmatprep.mubr.f32.mxu0 0.0
      %3569 = vmatmul.mubr.f32.gmra.mrb[0].mxu0 %v3380
      %v3570 = vpop.f32.mrb[0].mxu0
      %v3571 = vadd.f32 0.0, %v3570
      %v3572 = vpop.f32.mrb[0].mxu0
      %3573 = vmatprep.mubr.f32.mxu0 0.0
      %3574 = vmatmul.mubr.f32.gmra.mrb[0].mxu0 %v3383
      %v3575 = vpop.f32.mrb[0].mxu0
      %v3576 = vadd.f32 0.0, %v3575
      %v3577 = vpop.f32.mrb[0].mxu0
      %3578 = vmatprep.mubr.f32.mxu0 0.0
      %3579 = vmatmul.mubr.f32.gmra.mrb[0].mxu0 %v3386
      %v3580 = vpop.f32.mrb[0].mxu0
      %v3581 = vadd.f32 0.0, %v3580
      %v3582 = vpop.f32.mrb[0].mxu0
      %3583 = vmatprep.mubr.f32.mxu0 0.0
      %3584 = vmatmul.mubr.f32.gmra.mrb[0].mxu0 %v3389
      %v3585 = vpop.f32.mrb[0].mxu0
      %v3586 = vadd.f32 0.0, %v3585
      %v3587 = vpop.f32.mrb[0].mxu0
      %3588 = vmatprep.mubr.f32.mxu0 0.0
      %3589 = vmatmul.mubr.f32.gmra.mrb[0].mxu0 %v3392
      %v3590 = vpop.f32.mrb[0].mxu0
      %v3591 = vadd.f32 0.0, %v3590
      %v3592 = vpop.f32.mrb[0].mxu0
      %3593 = vmatprep.mubr.f32.mxu0 0.0
      %3594 = vmatmul.mubr.f32.gmra.mrb[0].mxu0 %v3395
      %v3595 = vpop.f32.mrb[0].mxu0
      %v3596 = vadd.f32 0.0, %v3595
      %v3597 = vpop.f32.mrb[0].mxu0
      %3598 = vmatprep.mubr.f32.mxu0 0.0
      %3599 = vmatmul.mubr.f32.gmra.mrb[0].mxu0 %v3398
      %v3600 = vpop.f32.mrb[0].mxu0
      %v3601 = vadd.f32 0.0, %v3600
      %v3602 = vpop.f32.mrb[0].mxu0
      %3603 = vmatprep.mubr.f32.mxu0 0.0
      %3604 = vmatmul.mubr.f32.gmra.mrb[0].mxu0 %v3401
      %v3605 = vpop.f32.mrb[0].mxu0
      %v3606 = vadd.f32 0.0, %v3605
      %v3607 = vpop.f32.mrb[0].mxu0
      %3608 = vmatprep.mubr.f32.mxu0 0.0
      %3609 = vmatmul.mubr.f32.gmra.mrb[0].mxu0 %v3404
      %v3610 = vpop.f32.mrb[0].mxu0
      %v3611 = vadd.f32 0.0, %v3610
      %v3612 = vpop.f32.mrb[0].mxu0
      %3613 = vmatprep.mubr.f32.mxu0 0.0
      %3614 = vmatmul.mubr.f32.gmra.mrb[0].mxu0 %v3407
      %v3615 = vpop.f32.mrb[0].mxu0
      %v3616 = vadd.f32 0.0, %v3615
      %v3617 = vpop.f32.mrb[0].mxu0
      %3618 = vmatprep.mubr.f32.mxu0 0.0
      %3619 = vmatmul.mubr.f32.gmra.mrb[0].mxu0 %v3410
      %v3620 = vpop.f32.mrb[0].mxu0
      %v3621 = vadd.f32 0.0, %v3620
      %v3622 = vpop.f32.mrb[0].mxu0
      %3623 = vmatprep.mubr.f32.mxu0 0.0
      %3624 = vmatmul.mubr.f32.gmra.mrb[0].mxu0 %v3413
      %v3625 = vpop.f32.mrb[0].mxu0
      %v3626 = vadd.f32 0.0, %v3625
      %v3627 = vpop.f32.mrb[0].mxu0
      %3628 = vmatprep.mubr.f32.mxu0 0.0
      %3629 = vmatmul.mubr.f32.gmra.mrb[0].mxu0 %v3416
      %v3630 = vpop.f32.mrb[0].mxu0
      %v3631 = vadd.f32 0.0, %v3630
      %v3632 = vpop.f32.mrb[0].mxu0
      %3633 = vmatprep.mubr.f32.mxu0 0.0
      %3634 = vmatmul.mubr.f32.gmra.mrb[0].mxu0 %v3419
      %v3635 = vpop.f32.mrb[0].mxu0
      %v3636 = vadd.f32 0.0, %v3635
      %v3637 = vpop.f32.mrb[0].mxu0
      %3638 = vmatprep.mubr.f32.mxu0 0.0
      %3639 = vmatmul.mubr.f32.gmra.mrb[0].mxu0 %v3422
      %v3640 = vpop.f32.mrb[0].mxu0
      %v3641 = vadd.f32 0.0, %v3640
      %v3642 = vpop.f32.mrb[0].mxu0
      %3643 = vmatprep.mubr.f32.mxu0 0.0
      %3644 = vmatmul.mubr.f32.gmra.mrb[0].mxu0 %v3425
      %v3645 = vpop.f32.mrb[0].mxu0
      %v3646 = vadd.f32 0.0, %v3645
      %v3647 = vpop.f32.mrb[0].mxu0
      %3648 = vmatprep.mubr.f32.mxu0 0.0
      %3649 = vmatmul.mubr.f32.gmra.mrb[0].mxu0 %v3428
      %v3650 = vpop.f32.mrb[0].mxu0
      %v3651 = vadd.f32 0.0, %v3650
      %v3652 = vpop.f32.mrb[0].mxu0
      %3653 = vmatprep.mubr.f32.mxu0 0.0
      %3654 = vmatmul.mubr.f32.gmra.mrb[0].mxu0 %v3431
      %v3655 = vpop.f32.mrb[0].mxu0
      %v3656 = vadd.f32 0.0, %v3655
      %v3657 = vpop.f32.mrb[0].mxu0
      %3658 = vmatprep.mubr.f32.mxu0 0.0
      %3659 = vmatmul.mubr.f32.gmra.mrb[0].mxu0 %v3434
      %v3660 = vpop.f32.mrb[0].mxu0
      %v3661 = vadd.f32 0.0, %v3660
      %v3662 = vpop.f32.mrb[0].mxu0
      %3663 = vdwg.mxu0
      %v3665 = vsel %vm257, %v3301, 0
      %v3668 = vsel %vm257, %v3302, 0
      %v3671 = vsel %vm354, %v3337, 0
      %3673 = vmatprep.subr.mxu0 0.0
      %3674 = vmatpush1.msra.mxu0 %v3671
      %3675 = vmatprep.subr.mxu0 0.0
      %3676 = vmatpush1.msra.mxu0 0.0
      %3677 = vmatprep.subr.mxu0 0.0
      %3678 = vmatpush1.msra.mxu0 0.0
      %3679 = vmatprep.subr.mxu0 0.0
      %3680 = vmatpush1.msra.mxu0 0.0
      %3681 = vmatprep.subr.mxu0 0.0
      %3682 = vmatpush1.msra.mxu0 0.0
      %3683 = vmatprep.subr.mxu0 0.0
      %3684 = vmatpush1.msra.mxu0 0.0
      %3685 = vmatprep.subr.mxu0 0.0
      %3686 = vmatpush1.msra.mxu0 0.0
      %3687 = vmatprep.subr.mxu0 0.0
      %3688 = vmatpush1.msra.mxu0 0.0
      %3689 = vmatprep.subr.mxu0 0.0
      %3690 = vmatpush1.msra.mxu0 0.0
      %3691 = vmatprep.subr.mxu0 0.0
      %3692 = vmatpush1.msra.mxu0 0.0
      %3693 = vmatprep.subr.mxu0 0.0
      %3694 = vmatpush1.msra.mxu0 0.0
      %3695 = vmatprep.subr.mxu0 0.0
      %3696 = vmatpush1.msra.mxu0 0.0
      %3697 = vmatprep.subr.mxu0 0.0
      %3698 = vmatpush1.msra.mxu0 0.0
      %3699 = vmatprep.subr.mxu0 0.0
      %3700 = vmatpush1.msra.mxu0 0.0
      %3701 = vmatprep.subr.mxu0 0.0
      %3702 = vmatpush1.msra.mxu0 0.0
      %3703 = vmatprep.subr.mxu0 0.0
      %3704 = vmatpush1.msra.mxu0 0.0
      %3705 = vmatprep.subr.mxu0 0.0
      %3706 = vmatpush1.msra.mxu0 0.0
      %3707 = vmatprep.subr.mxu0 0.0
      %3708 = vmatpush1.msra.mxu0 0.0
      %3709 = vmatprep.subr.mxu0 0.0
      %3710 = vmatpush1.msra.mxu0 0.0
      %3711 = vmatprep.subr.mxu0 0.0
      %3712 = vmatpush1.msra.mxu0 0.0
      %3713 = vmatprep.subr.mxu0 0.0
      %3714 = vmatpush1.msra.mxu0 0.0
      %3715 = vmatprep.subr.mxu0 0.0
      %3716 = vmatpush1.msra.mxu0 0.0
      %3717 = vmatprep.subr.mxu0 0.0
      %3718 = vmatpush1.msra.mxu0 0.0
      %3719 = vmatprep.subr.mxu0 0.0
      %3720 = vmatpush1.msra.mxu0 0.0
      %3721 = vmatprep.subr.mxu0 0.0
      %3722 = vmatpush1.msra.mxu0 0.0
      %3723 = vmatprep.subr.mxu0 0.0
      %3724 = vmatpush1.msra.mxu0 0.0
      %3725 = vmatprep.subr.mxu0 0.0
      %3726 = vmatpush1.msra.mxu0 0.0
      %3727 = vmatprep.subr.mxu0 0.0
      %3728 = vmatpush1.msra.mxu0 0.0
      %3729 = vmatprep.subr.mxu0 0.0
      %3730 = vmatpush1.msra.mxu0 0.0
      %3731 = vmatprep.subr.mxu0 0.0
      %3732 = vmatpush1.msra.mxu0 0.0
      %3733 = vmatprep.subr.mxu0 0.0
      %3734 = vmatpush1.msra.mxu0 0.0
      %3735 = vmatprep.subr.mxu0 0.0
      %3736 = vmatpush1.msra.mxu0 0.0
      %3737 = vmatprep.mubr.f32.mxu0 0.0
      %3738 = vmatmul.mubr.f32.gmra.mrb[0].mxu0 %v3665
      %v3739 = vpop.f32.mrb[0].mxu0
      %v3740 = vadd.f32 %v3506, %v3739
      %v3741 = vpop.f32.mrb[0].mxu0
      %3742 = vmatprep.mubr.f32.mxu0 0.0
      %3743 = vmatmul.mubr.f32.gmra.mrb[0].mxu0 %v3668
      %v3744 = vpop.f32.mrb[0].mxu0
      %v3745 = vadd.f32 %v3511, %v3744
      %v3746 = vpop.f32.mrb[0].mxu0
      %3747 = vmatprep.mubr.f32.mxu0 0.0
      %3748 = vmatmul.mubr.f32.gmra.mrb[0].mxu0 %v3341
      %v3749 = vpop.f32.mrb[0].mxu0
      %v3750 = vadd.f32 %v3516, %v3749
      %v3751 = vpop.f32.mrb[0].mxu0
      %3752 = vmatprep.mubr.f32.mxu0 0.0
      %3753 = vmatmul.mubr.f32.gmra.mrb[0].mxu0 %v3344
      %v3754 = vpop.f32.mrb[0].mxu0
      %v3755 = vadd.f32 %v3521, %v3754
      %v3756 = vpop.f32.mrb[0].mxu0
      %3757 = vmatprep.mubr.f32.mxu0 0.0
      %3758 = vmatmul.mubr.f32.gmra.mrb[0].mxu0 %v3347
      %v3759 = vpop.f32.mrb[0].mxu0
      %v3760 = vadd.f32 %v3526, %v3759
      %v3761 = vpop.f32.mrb[0].mxu0
      %3762 = vmatprep.mubr.f32.mxu0 0.0
      %3763 = vmatmul.mubr.f32.gmra.mrb[0].mxu0 %v3350
      %v3764 = vpop.f32.mrb[0].mxu0
      %v3765 = vadd.f32 %v3531, %v3764
      %v3766 = vpop.f32.mrb[0].mxu0
      %3767 = vmatprep.mubr.f32.mxu0 0.0
      %3768 = vmatmul.mubr.f32.gmra.mrb[0].mxu0 %v3353
      %v3769 = vpop.f32.mrb[0].mxu0
      %v3770 = vadd.f32 %v3536, %v3769
      %v3771 = vpop.f32.mrb[0].mxu0
      %3772 = vmatprep.mubr.f32.mxu0 0.0
      %3773 = vmatmul.mubr.f32.gmra.mrb[0].mxu0 %v3356
      %v3774 = vpop.f32.mrb[0].mxu0
      %v3775 = vadd.f32 %v3541, %v3774
      %v3776 = vpop.f32.mrb[0].mxu0
      %3777 = vmatprep.mubr.f32.mxu0 0.0
      %3778 = vmatmul.mubr.f32.gmra.mrb[0].mxu0 %v3359
      %v3779 = vpop.f32.mrb[0].mxu0
      %v3780 = vadd.f32 %v3546, %v3779
      %v3781 = vpop.f32.mrb[0].mxu0
      %3782 = vmatprep.mubr.f32.mxu0 0.0
      %3783 = vmatmul.mubr.f32.gmra.mrb[0].mxu0 %v3362
      %v3784 = vpop.f32.mrb[0].mxu0
      %v3785 = vadd.f32 %v3551, %v3784
      %v3786 = vpop.f32.mrb[0].mxu0
      %3787 = vmatprep.mubr.f32.mxu0 0.0
      %3788 = vmatmul.mubr.f32.gmra.mrb[0].mxu0 %v3365
      %v3789 = vpop.f32.mrb[0].mxu0
      %v3790 = vadd.f32 %v3556, %v3789
      %v3791 = vpop.f32.mrb[0].mxu0
      %3792 = vmatprep.mubr.f32.mxu0 0.0
      %3793 = vmatmul.mubr.f32.gmra.mrb[0].mxu0 %v3368
      %v3794 = vpop.f32.mrb[0].mxu0
      %v3795 = vadd.f32 %v3561, %v3794
      %v3796 = vpop.f32.mrb[0].mxu0
      %3797 = vmatprep.mubr.f32.mxu0 0.0
      %3798 = vmatmul.mubr.f32.gmra.mrb[0].mxu0 %v3371
      %v3799 = vpop.f32.mrb[0].mxu0
      %v3800 = vadd.f32 %v3566, %v3799
      %v3801 = vpop.f32.mrb[0].mxu0
      %3802 = vmatprep.mubr.f32.mxu0 0.0
      %3803 = vmatmul.mubr.f32.gmra.mrb[0].mxu0 %v3374
      %v3804 = vpop.f32.mrb[0].mxu0
      %v3805 = vadd.f32 %v3571, %v3804
      %v3806 = vpop.f32.mrb[0].mxu0
      %3807 = vmatprep.mubr.f32.mxu0 0.0
      %3808 = vmatmul.mubr.f32.gmra.mrb[0].mxu0 %v3377
      %v3809 = vpop.f32.mrb[0].mxu0
      %v3810 = vadd.f32 %v3576, %v3809
      %v3811 = vpop.f32.mrb[0].mxu0
      %3812 = vmatprep.mubr.f32.mxu0 0.0
      %3813 = vmatmul.mubr.f32.gmra.mrb[0].mxu0 %v3380
      %v3814 = vpop.f32.mrb[0].mxu0
      %v3815 = vadd.f32 %v3581, %v3814
      %v3816 = vpop.f32.mrb[0].mxu0
      %3817 = vmatprep.mubr.f32.mxu0 0.0
      %3818 = vmatmul.mubr.f32.gmra.mrb[0].mxu0 %v3383
      %v3819 = vpop.f32.mrb[0].mxu0
      %v3820 = vadd.f32 %v3586, %v3819
      %v3821 = vpop.f32.mrb[0].mxu0
      %3822 = vmatprep.mubr.f32.mxu0 0.0
      %3823 = vmatmul.mubr.f32.gmra.mrb[0].mxu0 %v3386
      %v3824 = vpop.f32.mrb[0].mxu0
      %v3825 = vadd.f32 %v3591, %v3824
      %v3826 = vpop.f32.mrb[0].mxu0
      %3827 = vmatprep.mubr.f32.mxu0 0.0
      %3828 = vmatmul.mubr.f32.gmra.mrb[0].mxu0 %v3389
      %v3829 = vpop.f32.mrb[0].mxu0
      %v3830 = vadd.f32 %v3596, %v3829
      %v3831 = vpop.f32.mrb[0].mxu0
      %3832 = vmatprep.mubr.f32.mxu0 0.0
      %3833 = vmatmul.mubr.f32.gmra.mrb[0].mxu0 %v3392
      %v3834 = vpop.f32.mrb[0].mxu0
      %v3835 = vadd.f32 %v3601, %v3834
      %v3836 = vpop.f32.mrb[0].mxu0
      %3837 = vmatprep.mubr.f32.mxu0 0.0
      %3838 = vmatmul.mubr.f32.gmra.mrb[0].mxu0 %v3395
      %v3839 = vpop.f32.mrb[0].mxu0
      %v3840 = vadd.f32 %v3606, %v3839
      %v3841 = vpop.f32.mrb[0].mxu0
      %3842 = vmatprep.mubr.f32.mxu0 0.0
      %3843 = vmatmul.mubr.f32.gmra.mrb[0].mxu0 %v3398
      %v3844 = vpop.f32.mrb[0].mxu0
      %v3845 = vadd.f32 %v3611, %v3844
      %v3846 = vpop.f32.mrb[0].mxu0
      %3847 = vmatprep.mubr.f32.mxu0 0.0
      %3848 = vmatmul.mubr.f32.gmra.mrb[0].mxu0 %v3401
      %v3849 = vpop.f32.mrb[0].mxu0
      %v3850 = vadd.f32 %v3616, %v3849
      %v3851 = vpop.f32.mrb[0].mxu0
      %3852 = vmatprep.mubr.f32.mxu0 0.0
      %3853 = vmatmul.mubr.f32.gmra.mrb[0].mxu0 %v3404
      %v3854 = vpop.f32.mrb[0].mxu0
      %v3855 = vadd.f32 %v3621, %v3854
      %v3856 = vpop.f32.mrb[0].mxu0
      %3857 = vmatprep.mubr.f32.mxu0 0.0
      %3858 = vmatmul.mubr.f32.gmra.mrb[0].mxu0 %v3407
      %v3859 = vpop.f32.mrb[0].mxu0
      %v3860 = vadd.f32 %v3626, %v3859
      %v3861 = vpop.f32.mrb[0].mxu0
      %3862 = vmatprep.mubr.f32.mxu0 0.0
      %3863 = vmatmul.mubr.f32.gmra.mrb[0].mxu0 %v3410
      %v3864 = vpop.f32.mrb[0].mxu0
      %v3865 = vadd.f32 %v3631, %v3864
      %v3866 = vpop.f32.mrb[0].mxu0
      %3867 = vmatprep.mubr.f32.mxu0 0.0
      %3868 = vmatmul.mubr.f32.gmra.mrb[0].mxu0 %v3413
      %v3869 = vpop.f32.mrb[0].mxu0
      %v3870 = vadd.f32 %v3636, %v3869
      %v3871 = vpop.f32.mrb[0].mxu0
      %3872 = vmatprep.mubr.f32.mxu0 0.0
      %3873 = vmatmul.mubr.f32.gmra.mrb[0].mxu0 %v3416
      %v3874 = vpop.f32.mrb[0].mxu0
      %v3875 = vadd.f32 %v3641, %v3874
      %v3876 = vpop.f32.mrb[0].mxu0
      %3877 = vmatprep.mubr.f32.mxu0 0.0
      %3878 = vmatmul.mubr.f32.gmra.mrb[0].mxu0 %v3419
      %v3879 = vpop.f32.mrb[0].mxu0
      %v3880 = vadd.f32 %v3646, %v3879
      %v3881 = vpop.f32.mrb[0].mxu0
      %3882 = vmatprep.mubr.f32.mxu0 0.0
      %3883 = vmatmul.mubr.f32.gmra.mrb[0].mxu0 %v3422
      %v3884 = vpop.f32.mrb[0].mxu0
      %v3885 = vadd.f32 %v3651, %v3884
      %v3886 = vpop.f32.mrb[0].mxu0
      %3887 = vmatprep.mubr.f32.mxu0 0.0
      %3888 = vmatmul.mubr.f32.gmra.mrb[0].mxu0 %v3425
      %v3889 = vpop.f32.mrb[0].mxu0
      %v3890 = vadd.f32 %v3656, %v3889
      %v3891 = vpop.f32.mrb[0].mxu0
      %3892 = vmatprep.mubr.f32.mxu0 0.0
      %3893 = vmatmul.mubr.f32.gmra.mrb[0].mxu0 %v3428
      %v3894 = vpop.f32.mrb[0].mxu0
      %v3895 = vadd.f32 %v3661, %v3894
      %v3896 = vpop.f32.mrb[0].mxu0
      %3897 = vdwg.mxu0
      %s3898 = scalar_lea.vmem %s3, 24
      %v3899 = vld [vmem:[%s3898] sm:$0xf]
      %v3901 = vsel %vm257, %v3335, 0
      %v3904 = vsel %vm257, %v3336, 0
      %v3907 = vsel %vm354, %v3899, 0
      %3909 = vmatprep.subr.mxu0 0.0
      %3910 = vmatpush1.msra.mxu0 %v3907
      %3911 = vmatprep.subr.mxu0 0.0
      %3912 = vmatpush1.msra.mxu0 0.0
      %3913 = vmatprep.subr.mxu0 0.0
      %3914 = vmatpush1.msra.mxu0 0.0
      %3915 = vmatprep.subr.mxu0 0.0
      %3916 = vmatpush1.msra.mxu0 0.0
      %3917 = vmatprep.subr.mxu0 0.0
      %3918 = vmatpush1.msra.mxu0 0.0
      %3919 = vmatprep.subr.mxu0 0.0
      %3920 = vmatpush1.msra.mxu0 0.0
      %3921 = vmatprep.subr.mxu0 0.0
      %3922 = vmatpush1.msra.mxu0 0.0
      %3923 = vmatprep.subr.mxu0 0.0
      %3924 = vmatpush1.msra.mxu0 0.0
      %3925 = vmatprep.subr.mxu0 0.0
      %3926 = vmatpush1.msra.mxu0 0.0
      %3927 = vmatprep.subr.mxu0 0.0
      %3928 = vmatpush1.msra.mxu0 0.0
      %3929 = vmatprep.subr.mxu0 0.0
      %3930 = vmatpush1.msra.mxu0 0.0
      %3931 = vmatprep.subr.mxu0 0.0
      %3932 = vmatpush1.msra.mxu0 0.0
      %3933 = vmatprep.subr.mxu0 0.0
      %3934 = vmatpush1.msra.mxu0 0.0
      %3935 = vmatprep.subr.mxu0 0.0
      %3936 = vmatpush1.msra.mxu0 0.0
      %3937 = vmatprep.subr.mxu0 0.0
      %3938 = vmatpush1.msra.mxu0 0.0
      %3939 = vmatprep.subr.mxu0 0.0
      %3940 = vmatpush1.msra.mxu0 0.0
      %3941 = vmatprep.subr.mxu0 0.0
      %3942 = vmatpush1.msra.mxu0 0.0
      %3943 = vmatprep.subr.mxu0 0.0
      %3944 = vmatpush1.msra.mxu0 0.0
      %3945 = vmatprep.subr.mxu0 0.0
      %3946 = vmatpush1.msra.mxu0 0.0
      %3947 = vmatprep.subr.mxu0 0.0
      %3948 = vmatpush1.msra.mxu0 0.0
      %3949 = vmatprep.subr.mxu0 0.0
      %3950 = vmatpush1.msra.mxu0 0.0
      %3951 = vmatprep.subr.mxu0 0.0
      %3952 = vmatpush1.msra.mxu0 0.0
      %3953 = vmatprep.subr.mxu0 0.0
      %3954 = vmatpush1.msra.mxu0 0.0
      %3955 = vmatprep.subr.mxu0 0.0
      %3956 = vmatpush1.msra.mxu0 0.0
      %3957 = vmatprep.subr.mxu0 0.0
      %3958 = vmatpush1.msra.mxu0 0.0
      %3959 = vmatprep.subr.mxu0 0.0
      %3960 = vmatpush1.msra.mxu0 0.0
      %3961 = vmatprep.subr.mxu0 0.0
      %3962 = vmatpush1.msra.mxu0 0.0
      %3963 = vmatprep.subr.mxu0 0.0
      %3964 = vmatpush1.msra.mxu0 0.0
      %3965 = vmatprep.subr.mxu0 0.0
      %3966 = vmatpush1.msra.mxu0 0.0
      %3967 = vmatprep.subr.mxu0 0.0
      %3968 = vmatpush1.msra.mxu0 0.0
      %3969 = vmatprep.subr.mxu0 0.0
      %3970 = vmatpush1.msra.mxu0 0.0
      %3971 = vmatprep.subr.mxu0 0.0
      %3972 = vmatpush1.msra.mxu0 0.0
      %3973 = vmatprep.mubr.f32.mxu0 0.0
      %3974 = vmatmul.mubr.f32.gmra.mrb[0].mxu0 %v3347
      %v3975 = vpop.f32.mrb[0].mxu0
      %v3976 = vadd.f32 0.0, %v3975
      %v3977 = vpop.f32.mrb[0].mxu0
      %3978 = vmatprep.mubr.f32.mxu0 0.0
      %3979 = vmatmul.mubr.f32.gmra.mrb[0].mxu0 %v3350
      %v3980 = vpop.f32.mrb[0].mxu0
      %v3981 = vadd.f32 0.0, %v3980
      %v3982 = vpop.f32.mrb[0].mxu0
      %3983 = vmatprep.mubr.f32.mxu0 0.0
      %3984 = vmatmul.mubr.f32.gmra.mrb[0].mxu0 %v3353
      %v3985 = vpop.f32.mrb[0].mxu0
      %v3986 = vadd.f32 0.0, %v3985
      %v3987 = vpop.f32.mrb[0].mxu0
      %3988 = vmatprep.mubr.f32.mxu0 0.0
      %3989 = vmatmul.mubr.f32.gmra.mrb[0].mxu0 %v3356
      %v3990 = vpop.f32.mrb[0].mxu0
      %v3991 = vadd.f32 0.0, %v3990
      %v3992 = vpop.f32.mrb[0].mxu0
      %3993 = vmatprep.mubr.f32.mxu0 0.0
      %3994 = vmatmul.mubr.f32.gmra.mrb[0].mxu0 %v3359
      %v3995 = vpop.f32.mrb[0].mxu0
      %v3996 = vadd.f32 0.0, %v3995
      %v3997 = vpop.f32.mrb[0].mxu0
      %3998 = vmatprep.mubr.f32.mxu0 0.0
      %3999 = vmatmul.mubr.f32.gmra.mrb[0].mxu0 %v3362
      %v4000 = vpop.f32.mrb[0].mxu0
      %v4001 = vadd.f32 0.0, %v4000
      %v4002 = vpop.f32.mrb[0].mxu0
      %4003 = vmatprep.mubr.f32.mxu0 0.0
      %4004 = vmatmul.mubr.f32.gmra.mrb[0].mxu0 %v3365
      %v4005 = vpop.f32.mrb[0].mxu0
      %v4006 = vadd.f32 0.0, %v4005
      %v4007 = vpop.f32.mrb[0].mxu0
      %4008 = vmatprep.mubr.f32.mxu0 0.0
      %4009 = vmatmul.mubr.f32.gmra.mrb[0].mxu0 %v3368
      %v4010 = vpop.f32.mrb[0].mxu0
      %v4011 = vadd.f32 0.0, %v4010
      %v4012 = vpop.f32.mrb[0].mxu0
      %4013 = vmatprep.mubr.f32.mxu0 0.0
      %4014 = vmatmul.mubr.f32.gmra.mrb[0].mxu0 %v3371
      %v4015 = vpop.f32.mrb[0].mxu0
      %v4016 = vadd.f32 0.0, %v4015
      %v4017 = vpop.f32.mrb[0].mxu0
      %4018 = vmatprep.mubr.f32.mxu0 0.0
      %4019 = vmatmul.mubr.f32.gmra.mrb[0].mxu0 %v3374
      %v4020 = vpop.f32.mrb[0].mxu0
      %v4021 = vadd.f32 0.0, %v4020
      %v4022 = vpop.f32.mrb[0].mxu0
      %4023 = vmatprep.mubr.f32.mxu0 0.0
      %4024 = vmatmul.mubr.f32.gmra.mrb[0].mxu0 %v3377
      %v4025 = vpop.f32.mrb[0].mxu0
      %v4026 = vadd.f32 0.0, %v4025
      %v4027 = vpop.f32.mrb[0].mxu0
      %4028 = vmatprep.mubr.f32.mxu0 0.0
      %4029 = vmatmul.mubr.f32.gmra.mrb[0].mxu0 %v3380
      %v4030 = vpop.f32.mrb[0].mxu0
      %v4031 = vadd.f32 0.0, %v4030
      %v4032 = vpop.f32.mrb[0].mxu0
      %4033 = vmatprep.mubr.f32.mxu0 0.0
      %4034 = vmatmul.mubr.f32.gmra.mrb[0].mxu0 %v3383
      %v4035 = vpop.f32.mrb[0].mxu0
      %v4036 = vadd.f32 0.0, %v4035
      %v4037 = vpop.f32.mrb[0].mxu0
      %4038 = vmatprep.mubr.f32.mxu0 0.0
      %4039 = vmatmul.mubr.f32.gmra.mrb[0].mxu0 %v3386
      %v4040 = vpop.f32.mrb[0].mxu0
      %v4041 = vadd.f32 0.0, %v4040
      %v4042 = vpop.f32.mrb[0].mxu0
      %4043 = vmatprep.mubr.f32.mxu0 0.0
      %4044 = vmatmul.mubr.f32.gmra.mrb[0].mxu0 %v3389
      %v4045 = vpop.f32.mrb[0].mxu0
      %v4046 = vadd.f32 0.0, %v4045
      %v4047 = vpop.f32.mrb[0].mxu0
      %4048 = vmatprep.mubr.f32.mxu0 0.0
      %4049 = vmatmul.mubr.f32.gmra.mrb[0].mxu0 %v3392
      %v4050 = vpop.f32.mrb[0].mxu0
      %v4051 = vadd.f32 0.0, %v4050
      %v4052 = vpop.f32.mrb[0].mxu0
      %4053 = vmatprep.mubr.f32.mxu0 0.0
      %4054 = vmatmul.mubr.f32.gmra.mrb[0].mxu0 %v3395
      %v4055 = vpop.f32.mrb[0].mxu0
      %v4056 = vadd.f32 0.0, %v4055
      %v4057 = vpop.f32.mrb[0].mxu0
      %4058 = vmatprep.mubr.f32.mxu0 0.0
      %4059 = vmatmul.mubr.f32.gmra.mrb[0].mxu0 %v3398
      %v4060 = vpop.f32.mrb[0].mxu0
      %v4061 = vadd.f32 0.0, %v4060
      %v4062 = vpop.f32.mrb[0].mxu0
      %4063 = vmatprep.mubr.f32.mxu0 0.0
      %4064 = vmatmul.mubr.f32.gmra.mrb[0].mxu0 %v3401
      %v4065 = vpop.f32.mrb[0].mxu0
      %v4066 = vadd.f32 0.0, %v4065
      %v4067 = vpop.f32.mrb[0].mxu0
      %4068 = vmatprep.mubr.f32.mxu0 0.0
      %4069 = vmatmul.mubr.f32.gmra.mrb[0].mxu0 %v3404
      %v4070 = vpop.f32.mrb[0].mxu0
      %v4071 = vadd.f32 0.0, %v4070
      %v4072 = vpop.f32.mrb[0].mxu0
      %4073 = vmatprep.mubr.f32.mxu0 0.0
      %4074 = vmatmul.mubr.f32.gmra.mrb[0].mxu0 %v3407
      %v4075 = vpop.f32.mrb[0].mxu0
      %v4076 = vadd.f32 0.0, %v4075
      %v4077 = vpop.f32.mrb[0].mxu0
      %4078 = vmatprep.mubr.f32.mxu0 0.0
      %4079 = vmatmul.mubr.f32.gmra.mrb[0].mxu0 %v3410
      %v4080 = vpop.f32.mrb[0].mxu0
      %v4081 = vadd.f32 0.0, %v4080
      %v4082 = vpop.f32.mrb[0].mxu0
      %4083 = vmatprep.mubr.f32.mxu0 0.0
      %4084 = vmatmul.mubr.f32.gmra.mrb[0].mxu0 %v3413
      %v4085 = vpop.f32.mrb[0].mxu0
      %v4086 = vadd.f32 0.0, %v4085
      %v4087 = vpop.f32.mrb[0].mxu0
      %4088 = vmatprep.mubr.f32.mxu0 0.0
      %4089 = vmatmul.mubr.f32.gmra.mrb[0].mxu0 %v3416
      %v4090 = vpop.f32.mrb[0].mxu0
      %v4091 = vadd.f32 0.0, %v4090
      %v4092 = vpop.f32.mrb[0].mxu0
      %4093 = vmatprep.mubr.f32.mxu0 0.0
      %4094 = vmatmul.mubr.f32.gmra.mrb[0].mxu0 %v3419
      %v4095 = vpop.f32.mrb[0].mxu0
      %v4096 = vadd.f32 0.0, %v4095
      %v4097 = vpop.f32.mrb[0].mxu0
      %4098 = vmatprep.mubr.f32.mxu0 0.0
      %4099 = vmatmul.mubr.f32.gmra.mrb[0].mxu0 %v3422
      %v4100 = vpop.f32.mrb[0].mxu0
      %v4101 = vadd.f32 0.0, %v4100
      %v4102 = vpop.f32.mrb[0].mxu0
      %4103 = vmatprep.mubr.f32.mxu0 0.0
      %4104 = vmatmul.mubr.f32.gmra.mrb[0].mxu0 %v3425
      %v4105 = vpop.f32.mrb[0].mxu0
      %v4106 = vadd.f32 0.0, %v4105
      %v4107 = vpop.f32.mrb[0].mxu0
      %4108 = vmatprep.mubr.f32.mxu0 0.0
      %4109 = vmatmul.mubr.f32.gmra.mrb[0].mxu0 %v3428
      %v4110 = vpop.f32.mrb[0].mxu0
      %v4111 = vadd.f32 0.0, %v4110
      %v4112 = vpop.f32.mrb[0].mxu0
      %4113 = vmatprep.mubr.f32.mxu0 0.0
      %4114 = vmatmul.mubr.f32.gmra.mrb[0].mxu0 %v3431
      %v4115 = vpop.f32.mrb[0].mxu0
      %v4116 = vadd.f32 0.0, %v4115
      %v4117 = vpop.f32.mrb[0].mxu0
      %4118 = vmatprep.mubr.f32.mxu0 0.0
      %4119 = vmatmul.mubr.f32.gmra.mrb[0].mxu0 %v3434
      %v4120 = vpop.f32.mrb[0].mxu0
      %v4121 = vadd.f32 0.0, %v4120
      %v4122 = vpop.f32.mrb[0].mxu0
      %4123 = vmatprep.mubr.f32.mxu0 0.0
      %4124 = vmatmul.mubr.f32.gmra.mrb[0].mxu0 %v3901
      %v4125 = vpop.f32.mrb[0].mxu0
      %v4126 = vadd.f32 0.0, %v4125
      %v4127 = vpop.f32.mrb[0].mxu0
      %4128 = vmatprep.mubr.f32.mxu0 0.0
      %4129 = vmatmul.mubr.f32.gmra.mrb[0].mxu0 %v3904
      %v4130 = vpop.f32.mrb[0].mxu0
      %v4131 = vadd.f32 0.0, %v4130
      %v4132 = vpop.f32.mrb[0].mxu0
      %4133 = vdwg.mxu0
      %v4134 = vadd.f32 %v3740, %v3976
      %v4135 = vadd.f32 %v3745, %v3981
      %v4136 = vadd.f32 %v3750, %v3986
      %v4137 = vadd.f32 %v3755, %v3991
      %v4138 = vadd.f32 %v3760, %v3996
      %v4139 = vadd.f32 %v3765, %v4001
      %v4140 = vadd.f32 %v3770, %v4006
      %v4141 = vadd.f32 %v3775, %v4011
      %v4142 = vadd.f32 %v3780, %v4016
      %v4143 = vadd.f32 %v3785, %v4021
      %v4144 = vadd.f32 %v3790, %v4026
      %v4145 = vadd.f32 %v3795, %v4031
      %v4146 = vadd.f32 %v3800, %v4036
      %v4147 = vadd.f32 %v3805, %v4041
      %v4148 = vadd.f32 %v3810, %v4046
      %v4149 = vadd.f32 %v3815, %v4051
      %v4150 = vadd.f32 %v3820, %v4056
      %v4151 = vadd.f32 %v3825, %v4061
      %v4152 = vadd.f32 %v3830, %v4066
      %v4153 = vadd.f32 %v3835, %v4071
      %v4154 = vadd.f32 %v3840, %v4076
      %v4155 = vadd.f32 %v3845, %v4081
      %v4156 = vadd.f32 %v3850, %v4086
      %v4157 = vadd.f32 %v3855, %v4091
      %v4158 = vadd.f32 %v3860, %v4096
      %v4159 = vadd.f32 %v3865, %v4101
      %v4160 = vadd.f32 %v3870, %v4106
      %v4161 = vadd.f32 %v3875, %v4111
      %v4162 = vadd.f32 %v3880, %v4116
      %v4163 = vadd.f32 %v3885, %v4121
      %v4164 = vadd.f32 %v3890, %v4126
      %v4165 = vadd.f32 %v3895, %v4131
      %v4166 = vld [vmem:[#allocation2 + $0x1] sm:$0xff]
      %v4167 = vld [vmem:[#allocation2 + $0x9] sm:$0xff]
      %v4168 = vld [vmem:[#allocation2 + $0x19] sm:$0xff]
      %v4169 = vld [vmem:[#allocation2 + $0x21] sm:$0xff]
      %v4170 = vld [vmem:[#allocation2 + $0x31] sm:$0xff]
      %v4171 = vld [vmem:[#allocation2 + $0x39] sm:$0xff]
      %v4172 = vld [vmem:[#allocation2 + $0x49] sm:$0xff]
      %v4173 = vld [vmem:[#allocation2 + $0x51] sm:$0xff]
      %v4174 = vld [vmem:[#allocation2 + $0x61] sm:$0xff]
      %v4175 = vld [vmem:[#allocation2 + $0x69] sm:$0xff]
      %v4176 = vld [vmem:[#allocation2 + $0x79] sm:$0xff]
      %v4177 = vld [vmem:[#allocation2 + $0x81] sm:$0xff]
      %v4178 = vld [vmem:[#allocation2 + $0x91] sm:$0xff]
      %v4179 = vld [vmem:[#allocation2 + $0x99] sm:$0xff]
      %v4180 = vld [vmem:[#allocation2 + $0xa9] sm:$0xff]
      %v4181 = vld [vmem:[#allocation2 + $0xb1] sm:$0xff]
      %v4182 = vld [vmem:[#allocation2 + $0xc1] sm:$0xff]
      %v4183 = vld [vmem:[#allocation2 + $0xc9] sm:$0xff]
      %v4184 = vld [vmem:[#allocation2 + $0xd9] sm:$0xff]
      %v4185 = vld [vmem:[#allocation2 + $0xe1] sm:$0xff]
      %v4186 = vld [vmem:[#allocation2 + $0xf1] sm:$0xff]
      %v4187 = vld [vmem:[#allocation2 + $0xf9] sm:$0xff]
      %v4188 = vld [vmem:[#allocation2 + $0x109] sm:$0xff]
      %v4189 = vld [vmem:[#allocation2 + $0x111] sm:$0xff]
      %v4190 = vld [vmem:[#allocation2 + $0x121] sm:$0xff]
      %v4191 = vld [vmem:[#allocation2 + $0x129] sm:$0xff]
      %v4192 = vld [vmem:[#allocation2 + $0x139] sm:$0xff]
      %v4193 = vld [vmem:[#allocation2 + $0x141] sm:$0xff]
      %v4194 = vld [vmem:[#allocation2 + $0x151] sm:$0xff]
      %v4195 = vld [vmem:[#allocation2 + $0x159] sm:$0xff]
      %v4196 = vld [vmem:[#allocation2 + $0x169] sm:$0xff]
      %v4197 = vld [vmem:[#allocation2 + $0x171] sm:$0xff]
      %v4198 = vld [vmem:[#allocation2 + $0x181] sm:$0xff]
      %v4199 = vld [vmem:[#allocation2 + $0x189] sm:$0xff]
      %v4200 = vld [vmem:[#allocation2 + $0x199] sm:$0xff]
      %v4201 = vld [vmem:[#allocation2 + $0x1a1] sm:$0xff]
      %s4202 = scalar_lea.vmem %s3, 4
      %v4203 = vld [vmem:[%s4202] sm:$0xf]
      %v4205 = vsel %vm257, %v4166, 0
      %v4208 = vsel %vm257, %v4167, 0
      %v4211 = vsel %vm257, %v4168, 0
      %v4214 = vsel %vm257, %v4169, 0
      %v4217 = vsel %vm257, %v4170, 0
      %v4220 = vsel %vm257, %v4171, 0
      %v4223 = vsel %vm257, %v4172, 0
      %v4226 = vsel %vm257, %v4173, 0
      %v4229 = vsel %vm257, %v4174, 0
      %v4232 = vsel %vm257, %v4175, 0
      %v4235 = vsel %vm257, %v4176, 0
      %v4238 = vsel %vm257, %v4177, 0
      %v4241 = vsel %vm257, %v4178, 0
      %v4244 = vsel %vm257, %v4179, 0
      %v4247 = vsel %vm257, %v4180, 0
      %v4250 = vsel %vm257, %v4181, 0
      %v4253 = vsel %vm257, %v4182, 0
      %v4256 = vsel %vm257, %v4183, 0
      %v4259 = vsel %vm257, %v4184, 0
      %v4262 = vsel %vm257, %v4185, 0
      %v4265 = vsel %vm257, %v4186, 0
      %v4268 = vsel %vm257, %v4187, 0
      %v4271 = vsel %vm257, %v4188, 0
      %v4274 = vsel %vm257, %v4189, 0
      %v4277 = vsel %vm257, %v4190, 0
      %v4280 = vsel %vm257, %v4191, 0
      %v4283 = vsel %vm257, %v4192, 0
      %v4286 = vsel %vm257, %v4193, 0
      %v4289 = vsel %vm257, %v4194, 0
      %v4292 = vsel %vm257, %v4195, 0
      %v4295 = vsel %vm257, %v4196, 0
      %v4298 = vsel %vm257, %v4197, 0
      %v4301 = vsel %vm354, %v4203, 0
      %4303 = vmatprep.subr.mxu0 0.0
      %4304 = vmatpush1.msra.mxu0 %v4301
      %4305 = vmatprep.subr.mxu0 0.0
      %4306 = vmatpush1.msra.mxu0 0.0
      %4307 = vmatprep.subr.mxu0 0.0
      %4308 = vmatpush1.msra.mxu0 0.0
      %4309 = vmatprep.subr.mxu0 0.0
      %4310 = vmatpush1.msra.mxu0 0.0
      %4311 = vmatprep.subr.mxu0 0.0
      %4312 = vmatpush1.msra.mxu0 0.0
      %4313 = vmatprep.subr.mxu0 0.0
      %4314 = vmatpush1.msra.mxu0 0.0
      %4315 = vmatprep.subr.mxu0 0.0
      %4316 = vmatpush1.msra.mxu0 0.0
      %4317 = vmatprep.subr.mxu0 0.0
      %4318 = vmatpush1.msra.mxu0 0.0
      %4319 = vmatprep.subr.mxu0 0.0
      %4320 = vmatpush1.msra.mxu0 0.0
      %4321 = vmatprep.subr.mxu0 0.0
      %4322 = vmatpush1.msra.mxu0 0.0
      %4323 = vmatprep.subr.mxu0 0.0
      %4324 = vmatpush1.msra.mxu0 0.0
      %4325 = vmatprep.subr.mxu0 0.0
      %4326 = vmatpush1.msra.mxu0 0.0
      %4327 = vmatprep.subr.mxu0 0.0
      %4328 = vmatpush1.msra.mxu0 0.0
      %4329 = vmatprep.subr.mxu0 0.0
      %4330 = vmatpush1.msra.mxu0 0.0
      %4331 = vmatprep.subr.mxu0 0.0
      %4332 = vmatpush1.msra.mxu0 0.0
      %4333 = vmatprep.subr.mxu0 0.0
      %4334 = vmatpush1.msra.mxu0 0.0
      %4335 = vmatprep.subr.mxu0 0.0
      %4336 = vmatpush1.msra.mxu0 0.0
      %4337 = vmatprep.subr.mxu0 0.0
      %4338 = vmatpush1.msra.mxu0 0.0
      %4339 = vmatprep.subr.mxu0 0.0
      %4340 = vmatpush1.msra.mxu0 0.0
      %4341 = vmatprep.subr.mxu0 0.0
      %4342 = vmatpush1.msra.mxu0 0.0
      %4343 = vmatprep.subr.mxu0 0.0
      %4344 = vmatpush1.msra.mxu0 0.0
      %4345 = vmatprep.subr.mxu0 0.0
      %4346 = vmatpush1.msra.mxu0 0.0
      %4347 = vmatprep.subr.mxu0 0.0
      %4348 = vmatpush1.msra.mxu0 0.0
      %4349 = vmatprep.subr.mxu0 0.0
      %4350 = vmatpush1.msra.mxu0 0.0
      %4351 = vmatprep.subr.mxu0 0.0
      %4352 = vmatpush1.msra.mxu0 0.0
      %4353 = vmatprep.subr.mxu0 0.0
      %4354 = vmatpush1.msra.mxu0 0.0
      %4355 = vmatprep.subr.mxu0 0.0
      %4356 = vmatpush1.msra.mxu0 0.0
      %4357 = vmatprep.subr.mxu0 0.0
      %4358 = vmatpush1.msra.mxu0 0.0
      %4359 = vmatprep.subr.mxu0 0.0
      %4360 = vmatpush1.msra.mxu0 0.0
      %4361 = vmatprep.subr.mxu0 0.0
      %4362 = vmatpush1.msra.mxu0 0.0
      %4363 = vmatprep.subr.mxu0 0.0
      %4364 = vmatpush1.msra.mxu0 0.0
      %4365 = vmatprep.subr.mxu0 0.0
      %4366 = vmatpush1.msra.mxu0 0.0
      %4367 = vmatprep.mubr.f32.mxu0 0.0
      %4368 = vmatmul.mubr.f32.gmra.mrb[0].mxu0 %v4205
      %v4369 = vpop.f32.mrb[0].mxu0
      %v4370 = vadd.f32 0.0, %v4369
      %v4371 = vpop.f32.mrb[0].mxu0
      %4372 = vmatprep.mubr.f32.mxu0 0.0
      %4373 = vmatmul.mubr.f32.gmra.mrb[0].mxu0 %v4208
      %v4374 = vpop.f32.mrb[0].mxu0
      %v4375 = vadd.f32 0.0, %v4374
      %v4376 = vpop.f32.mrb[0].mxu0
      %4377 = vmatprep.mubr.f32.mxu0 0.0
      %4378 = vmatmul.mubr.f32.gmra.mrb[0].mxu0 %v4211
      %v4379 = vpop.f32.mrb[0].mxu0
      %v4380 = vadd.f32 0.0, %v4379
      %v4381 = vpop.f32.mrb[0].mxu0
      %4382 = vmatprep.mubr.f32.mxu0 0.0
      %4383 = vmatmul.mubr.f32.gmra.mrb[0].mxu0 %v4214
      %v4384 = vpop.f32.mrb[0].mxu0
      %v4385 = vadd.f32 0.0, %v4384
      %v4386 = vpop.f32.mrb[0].mxu0
      %4387 = vmatprep.mubr.f32.mxu0 0.0
      %4388 = vmatmul.mubr.f32.gmra.mrb[0].mxu0 %v4217
      %v4389 = vpop.f32.mrb[0].mxu0
      %v4390 = vadd.f32 0.0, %v4389
      %v4391 = vpop.f32.mrb[0].mxu0
      %4392 = vmatprep.mubr.f32.mxu0 0.0
      %4393 = vmatmul.mubr.f32.gmra.mrb[0].mxu0 %v4220
      %v4394 = vpop.f32.mrb[0].mxu0
      %v4395 = vadd.f32 0.0, %v4394
      %v4396 = vpop.f32.mrb[0].mxu0
      %4397 = vmatprep.mubr.f32.mxu0 0.0
      %4398 = vmatmul.mubr.f32.gmra.mrb[0].mxu0 %v4223
      %v4399 = vpop.f32.mrb[0].mxu0
      %v4400 = vadd.f32 0.0, %v4399
      %v4401 = vpop.f32.mrb[0].mxu0
      %4402 = vmatprep.mubr.f32.mxu0 0.0
      %4403 = vmatmul.mubr.f32.gmra.mrb[0].mxu0 %v4226
      %v4404 = vpop.f32.mrb[0].mxu0
      %v4405 = vadd.f32 0.0, %v4404
      %v4406 = vpop.f32.mrb[0].mxu0
      %4407 = vmatprep.mubr.f32.mxu0 0.0
      %4408 = vmatmul.mubr.f32.gmra.mrb[0].mxu0 %v4229
      %v4409 = vpop.f32.mrb[0].mxu0
      %v4410 = vadd.f32 0.0, %v4409
      %v4411 = vpop.f32.mrb[0].mxu0
      %4412 = vmatprep.mubr.f32.mxu0 0.0
      %4413 = vmatmul.mubr.f32.gmra.mrb[0].mxu0 %v4232
      %v4414 = vpop.f32.mrb[0].mxu0
      %v4415 = vadd.f32 0.0, %v4414
      %v4416 = vpop.f32.mrb[0].mxu0
      %4417 = vmatprep.mubr.f32.mxu0 0.0
      %4418 = vmatmul.mubr.f32.gmra.mrb[0].mxu0 %v4235
      %v4419 = vpop.f32.mrb[0].mxu0
      %v4420 = vadd.f32 0.0, %v4419
      %v4421 = vpop.f32.mrb[0].mxu0
      %4422 = vmatprep.mubr.f32.mxu0 0.0
      %4423 = vmatmul.mubr.f32.gmra.mrb[0].mxu0 %v4238
      %v4424 = vpop.f32.mrb[0].mxu0
      %v4425 = vadd.f32 0.0, %v4424
      %v4426 = vpop.f32.mrb[0].mxu0
      %4427 = vmatprep.mubr.f32.mxu0 0.0
      %4428 = vmatmul.mubr.f32.gmra.mrb[0].mxu0 %v4241
      %v4429 = vpop.f32.mrb[0].mxu0
      %v4430 = vadd.f32 0.0, %v4429
      %v4431 = vpop.f32.mrb[0].mxu0
      %4432 = vmatprep.mubr.f32.mxu0 0.0
      %4433 = vmatmul.mubr.f32.gmra.mrb[0].mxu0 %v4244
      %v4434 = vpop.f32.mrb[0].mxu0
      %v4435 = vadd.f32 0.0, %v4434
      %v4436 = vpop.f32.mrb[0].mxu0
      %4437 = vmatprep.mubr.f32.mxu0 0.0
      %4438 = vmatmul.mubr.f32.gmra.mrb[0].mxu0 %v4247
      %v4439 = vpop.f32.mrb[0].mxu0
      %v4440 = vadd.f32 0.0, %v4439
      %v4441 = vpop.f32.mrb[0].mxu0
      %4442 = vmatprep.mubr.f32.mxu0 0.0
      %4443 = vmatmul.mubr.f32.gmra.mrb[0].mxu0 %v4250
      %v4444 = vpop.f32.mrb[0].mxu0
      %v4445 = vadd.f32 0.0, %v4444
      %v4446 = vpop.f32.mrb[0].mxu0
      %4447 = vmatprep.mubr.f32.mxu0 0.0
      %4448 = vmatmul.mubr.f32.gmra.mrb[0].mxu0 %v4253
      %v4449 = vpop.f32.mrb[0].mxu0
      %v4450 = vadd.f32 0.0, %v4449
      %v4451 = vpop.f32.mrb[0].mxu0
      %4452 = vmatprep.mubr.f32.mxu0 0.0
      %4453 = vmatmul.mubr.f32.gmra.mrb[0].mxu0 %v4256
      %v4454 = vpop.f32.mrb[0].mxu0
      %v4455 = vadd.f32 0.0, %v4454
      %v4456 = vpop.f32.mrb[0].mxu0
      %4457 = vmatprep.mubr.f32.mxu0 0.0
      %4458 = vmatmul.mubr.f32.gmra.mrb[0].mxu0 %v4259
      %v4459 = vpop.f32.mrb[0].mxu0
      %v4460 = vadd.f32 0.0, %v4459
      %v4461 = vpop.f32.mrb[0].mxu0
      %4462 = vmatprep.mubr.f32.mxu0 0.0
      %4463 = vmatmul.mubr.f32.gmra.mrb[0].mxu0 %v4262
      %v4464 = vpop.f32.mrb[0].mxu0
      %v4465 = vadd.f32 0.0, %v4464
      %v4466 = vpop.f32.mrb[0].mxu0
      %4467 = vmatprep.mubr.f32.mxu0 0.0
      %4468 = vmatmul.mubr.f32.gmra.mrb[0].mxu0 %v4265
      %v4469 = vpop.f32.mrb[0].mxu0
      %v4470 = vadd.f32 0.0, %v4469
      %v4471 = vpop.f32.mrb[0].mxu0
      %4472 = vmatprep.mubr.f32.mxu0 0.0
      %4473 = vmatmul.mubr.f32.gmra.mrb[0].mxu0 %v4268
      %v4474 = vpop.f32.mrb[0].mxu0
      %v4475 = vadd.f32 0.0, %v4474
      %v4476 = vpop.f32.mrb[0].mxu0
      %4477 = vmatprep.mubr.f32.mxu0 0.0
      %4478 = vmatmul.mubr.f32.gmra.mrb[0].mxu0 %v4271
      %v4479 = vpop.f32.mrb[0].mxu0
      %v4480 = vadd.f32 0.0, %v4479
      %v4481 = vpop.f32.mrb[0].mxu0
      %4482 = vmatprep.mubr.f32.mxu0 0.0
      %4483 = vmatmul.mubr.f32.gmra.mrb[0].mxu0 %v4274
      %v4484 = vpop.f32.mrb[0].mxu0
      %v4485 = vadd.f32 0.0, %v4484
      %v4486 = vpop.f32.mrb[0].mxu0
      %4487 = vmatprep.mubr.f32.mxu0 0.0
      %4488 = vmatmul.mubr.f32.gmra.mrb[0].mxu0 %v4277
      %v4489 = vpop.f32.mrb[0].mxu0
      %v4490 = vadd.f32 0.0, %v4489
      %v4491 = vpop.f32.mrb[0].mxu0
      %4492 = vmatprep.mubr.f32.mxu0 0.0
      %4493 = vmatmul.mubr.f32.gmra.mrb[0].mxu0 %v4280
      %v4494 = vpop.f32.mrb[0].mxu0
      %v4495 = vadd.f32 0.0, %v4494
      %v4496 = vpop.f32.mrb[0].mxu0
      %4497 = vmatprep.mubr.f32.mxu0 0.0
      %4498 = vmatmul.mubr.f32.gmra.mrb[0].mxu0 %v4283
      %v4499 = vpop.f32.mrb[0].mxu0
      %v4500 = vadd.f32 0.0, %v4499
      %v4501 = vpop.f32.mrb[0].mxu0
      %4502 = vmatprep.mubr.f32.mxu0 0.0
      %4503 = vmatmul.mubr.f32.gmra.mrb[0].mxu0 %v4286
      %v4504 = vpop.f32.mrb[0].mxu0
      %v4505 = vadd.f32 0.0, %v4504
      %v4506 = vpop.f32.mrb[0].mxu0
      %4507 = vmatprep.mubr.f32.mxu0 0.0
      %4508 = vmatmul.mubr.f32.gmra.mrb[0].mxu0 %v4289
      %v4509 = vpop.f32.mrb[0].mxu0
      %v4510 = vadd.f32 0.0, %v4509
      %v4511 = vpop.f32.mrb[0].mxu0
      %4512 = vmatprep.mubr.f32.mxu0 0.0
      %4513 = vmatmul.mubr.f32.gmra.mrb[0].mxu0 %v4292
      %v4514 = vpop.f32.mrb[0].mxu0
      %v4515 = vadd.f32 0.0, %v4514
      %v4516 = vpop.f32.mrb[0].mxu0
      %4517 = vmatprep.mubr.f32.mxu0 0.0
      %4518 = vmatmul.mubr.f32.gmra.mrb[0].mxu0 %v4295
      %v4519 = vpop.f32.mrb[0].mxu0
      %v4520 = vadd.f32 0.0, %v4519
      %v4521 = vpop.f32.mrb[0].mxu0
      %4522 = vmatprep.mubr.f32.mxu0 0.0
      %4523 = vmatmul.mubr.f32.gmra.mrb[0].mxu0 %v4298
      %v4524 = vpop.f32.mrb[0].mxu0
      %v4525 = vadd.f32 0.0, %v4524
      %v4526 = vpop.f32.mrb[0].mxu0
      %4527 = vdwg.mxu0
      %v4528 = vadd.f32 %v4134, %v4370
      %v4529 = vadd.f32 %v4135, %v4375
      %v4530 = vadd.f32 %v4136, %v4380
      %v4531 = vadd.f32 %v4137, %v4385
      %v4532 = vadd.f32 %v4138, %v4390
      %v4533 = vadd.f32 %v4139, %v4395
      %v4534 = vadd.f32 %v4140, %v4400
      %v4535 = vadd.f32 %v4141, %v4405
      %v4536 = vadd.f32 %v4142, %v4410
      %v4537 = vadd.f32 %v4143, %v4415
      %v4538 = vadd.f32 %v4144, %v4420
      %v4539 = vadd.f32 %v4145, %v4425
      %v4540 = vadd.f32 %v4146, %v4430
      %v4541 = vadd.f32 %v4147, %v4435
      %v4542 = vadd.f32 %v4148, %v4440
      %v4543 = vadd.f32 %v4149, %v4445
      %v4544 = vadd.f32 %v4150, %v4450
      %v4545 = vadd.f32 %v4151, %v4455
      %v4546 = vadd.f32 %v4152, %v4460
      %v4547 = vadd.f32 %v4153, %v4465
      %v4548 = vadd.f32 %v4154, %v4470
      %v4549 = vadd.f32 %v4155, %v4475
      %v4550 = vadd.f32 %v4156, %v4480
      %v4551 = vadd.f32 %v4157, %v4485
      %v4552 = vadd.f32 %v4158, %v4490
      %v4553 = vadd.f32 %v4159, %v4495
      %v4554 = vadd.f32 %v4160, %v4500
      %v4555 = vadd.f32 %v4161, %v4505
      %v4556 = vadd.f32 %v4162, %v4510
      %v4557 = vadd.f32 %v4163, %v4515
      %v4558 = vadd.f32 %v4164, %v4520
      %v4559 = vadd.f32 %v4165, %v4525
      %s4560 = scalar_lea.vmem %s3, 16
      %v4561 = vld [vmem:[%s4560] sm:$0xf]
      %v4563 = vsel %vm257, %v4198, 0
      %v4566 = vsel %vm257, %v4199, 0
      %v4569 = vsel %vm354, %v4561, 0
      %4571 = vmatprep.subr.mxu0 0.0
      %4572 = vmatpush1.msra.mxu0 %v4569
      %4573 = vmatprep.subr.mxu0 0.0
      %4574 = vmatpush1.msra.mxu0 0.0
      %4575 = vmatprep.subr.mxu0 0.0
      %4576 = vmatpush1.msra.mxu0 0.0
      %4577 = vmatprep.subr.mxu0 0.0
      %4578 = vmatpush1.msra.mxu0 0.0
      %4579 = vmatprep.subr.mxu0 0.0
      %4580 = vmatpush1.msra.mxu0 0.0
      %4581 = vmatprep.subr.mxu0 0.0
      %4582 = vmatpush1.msra.mxu0 0.0
      %4583 = vmatprep.subr.mxu0 0.0
      %4584 = vmatpush1.msra.mxu0 0.0
      %4585 = vmatprep.subr.mxu0 0.0
      %4586 = vmatpush1.msra.mxu0 0.0
      %4587 = vmatprep.subr.mxu0 0.0
      %4588 = vmatpush1.msra.mxu0 0.0
      %4589 = vmatprep.subr.mxu0 0.0
      %4590 = vmatpush1.msra.mxu0 0.0
      %4591 = vmatprep.subr.mxu0 0.0
      %4592 = vmatpush1.msra.mxu0 0.0
      %4593 = vmatprep.subr.mxu0 0.0
      %4594 = vmatpush1.msra.mxu0 0.0
      %4595 = vmatprep.subr.mxu0 0.0
      %4596 = vmatpush1.msra.mxu0 0.0
      %4597 = vmatprep.subr.mxu0 0.0
      %4598 = vmatpush1.msra.mxu0 0.0
      %4599 = vmatprep.subr.mxu0 0.0
      %4600 = vmatpush1.msra.mxu0 0.0
      %4601 = vmatprep.subr.mxu0 0.0
      %4602 = vmatpush1.msra.mxu0 0.0
      %4603 = vmatprep.subr.mxu0 0.0
      %4604 = vmatpush1.msra.mxu0 0.0
      %4605 = vmatprep.subr.mxu0 0.0
      %4606 = vmatpush1.msra.mxu0 0.0
      %4607 = vmatprep.subr.mxu0 0.0
      %4608 = vmatpush1.msra.mxu0 0.0
      %4609 = vmatprep.subr.mxu0 0.0
      %4610 = vmatpush1.msra.mxu0 0.0
      %4611 = vmatprep.subr.mxu0 0.0
      %4612 = vmatpush1.msra.mxu0 0.0
      %4613 = vmatprep.subr.mxu0 0.0
      %4614 = vmatpush1.msra.mxu0 0.0
      %4615 = vmatprep.subr.mxu0 0.0
      %4616 = vmatpush1.msra.mxu0 0.0
      %4617 = vmatprep.subr.mxu0 0.0
      %4618 = vmatpush1.msra.mxu0 0.0
      %4619 = vmatprep.subr.mxu0 0.0
      %4620 = vmatpush1.msra.mxu0 0.0
      %4621 = vmatprep.subr.mxu0 0.0
      %4622 = vmatpush1.msra.mxu0 0.0
      %4623 = vmatprep.subr.mxu0 0.0
      %4624 = vmatpush1.msra.mxu0 0.0
      %4625 = vmatprep.subr.mxu0 0.0
      %4626 = vmatpush1.msra.mxu0 0.0
      %4627 = vmatprep.subr.mxu0 0.0
      %4628 = vmatpush1.msra.mxu0 0.0
      %4629 = vmatprep.subr.mxu0 0.0
      %4630 = vmatpush1.msra.mxu0 0.0
      %4631 = vmatprep.subr.mxu0 0.0
      %4632 = vmatpush1.msra.mxu0 0.0
      %4633 = vmatprep.subr.mxu0 0.0
      %4634 = vmatpush1.msra.mxu0 0.0
      %4635 = vmatprep.mubr.f32.mxu0 0.0
      %4636 = vmatmul.mubr.f32.gmra.mrb[0].mxu0 %v4211
      %v4637 = vpop.f32.mrb[0].mxu0
      %v4638 = vadd.f32 0.0, %v4637
      %v4639 = vpop.f32.mrb[0].mxu0
      %4640 = vmatprep.mubr.f32.mxu0 0.0
      %4641 = vmatmul.mubr.f32.gmra.mrb[0].mxu0 %v4214
      %v4642 = vpop.f32.mrb[0].mxu0
      %v4643 = vadd.f32 0.0, %v4642
      %v4644 = vpop.f32.mrb[0].mxu0
      %4645 = vmatprep.mubr.f32.mxu0 0.0
      %4646 = vmatmul.mubr.f32.gmra.mrb[0].mxu0 %v4217
      %v4647 = vpop.f32.mrb[0].mxu0
      %v4648 = vadd.f32 0.0, %v4647
      %v4649 = vpop.f32.mrb[0].mxu0
      %4650 = vmatprep.mubr.f32.mxu0 0.0
      %4651 = vmatmul.mubr.f32.gmra.mrb[0].mxu0 %v4220
      %v4652 = vpop.f32.mrb[0].mxu0
      %v4653 = vadd.f32 0.0, %v4652
      %v4654 = vpop.f32.mrb[0].mxu0
      %4655 = vmatprep.mubr.f32.mxu0 0.0
      %4656 = vmatmul.mubr.f32.gmra.mrb[0].mxu0 %v4223
      %v4657 = vpop.f32.mrb[0].mxu0
      %v4658 = vadd.f32 0.0, %v4657
      %v4659 = vpop.f32.mrb[0].mxu0
      %4660 = vmatprep.mubr.f32.mxu0 0.0
      %4661 = vmatmul.mubr.f32.gmra.mrb[0].mxu0 %v4226
      %v4662 = vpop.f32.mrb[0].mxu0
      %v4663 = vadd.f32 0.0, %v4662
      %v4664 = vpop.f32.mrb[0].mxu0
      %4665 = vmatprep.mubr.f32.mxu0 0.0
      %4666 = vmatmul.mubr.f32.gmra.mrb[0].mxu0 %v4229
      %v4667 = vpop.f32.mrb[0].mxu0
      %v4668 = vadd.f32 0.0, %v4667
      %v4669 = vpop.f32.mrb[0].mxu0
      %4670 = vmatprep.mubr.f32.mxu0 0.0
      %4671 = vmatmul.mubr.f32.gmra.mrb[0].mxu0 %v4232
      %v4672 = vpop.f32.mrb[0].mxu0
      %v4673 = vadd.f32 0.0, %v4672
      %v4674 = vpop.f32.mrb[0].mxu0
      %4675 = vmatprep.mubr.f32.mxu0 0.0
      %4676 = vmatmul.mubr.f32.gmra.mrb[0].mxu0 %v4235
      %v4677 = vpop.f32.mrb[0].mxu0
      %v4678 = vadd.f32 0.0, %v4677
      %v4679 = vpop.f32.mrb[0].mxu0
      %4680 = vmatprep.mubr.f32.mxu0 0.0
      %4681 = vmatmul.mubr.f32.gmra.mrb[0].mxu0 %v4238
      %v4682 = vpop.f32.mrb[0].mxu0
      %v4683 = vadd.f32 0.0, %v4682
      %v4684 = vpop.f32.mrb[0].mxu0
      %4685 = vmatprep.mubr.f32.mxu0 0.0
      %4686 = vmatmul.mubr.f32.gmra.mrb[0].mxu0 %v4241
      %v4687 = vpop.f32.mrb[0].mxu0
      %v4688 = vadd.f32 0.0, %v4687
      %v4689 = vpop.f32.mrb[0].mxu0
      %4690 = vmatprep.mubr.f32.mxu0 0.0
      %4691 = vmatmul.mubr.f32.gmra.mrb[0].mxu0 %v4244
      %v4692 = vpop.f32.mrb[0].mxu0
      %v4693 = vadd.f32 0.0, %v4692
      %v4694 = vpop.f32.mrb[0].mxu0
      %4695 = vmatprep.mubr.f32.mxu0 0.0
      %4696 = vmatmul.mubr.f32.gmra.mrb[0].mxu0 %v4247
      %v4697 = vpop.f32.mrb[0].mxu0
      %v4698 = vadd.f32 0.0, %v4697
      %v4699 = vpop.f32.mrb[0].mxu0
      %4700 = vmatprep.mubr.f32.mxu0 0.0
      %4701 = vmatmul.mubr.f32.gmra.mrb[0].mxu0 %v4250
      %v4702 = vpop.f32.mrb[0].mxu0
      %v4703 = vadd.f32 0.0, %v4702
      %v4704 = vpop.f32.mrb[0].mxu0
      %4705 = vmatprep.mubr.f32.mxu0 0.0
      %4706 = vmatmul.mubr.f32.gmra.mrb[0].mxu0 %v4253
      %v4707 = vpop.f32.mrb[0].mxu0
      %v4708 = vadd.f32 0.0, %v4707
      %v4709 = vpop.f32.mrb[0].mxu0
      %4710 = vmatprep.mubr.f32.mxu0 0.0
      %4711 = vmatmul.mubr.f32.gmra.mrb[0].mxu0 %v4256
      %v4712 = vpop.f32.mrb[0].mxu0
      %v4713 = vadd.f32 0.0, %v4712
      %v4714 = vpop.f32.mrb[0].mxu0
      %4715 = vmatprep.mubr.f32.mxu0 0.0
      %4716 = vmatmul.mubr.f32.gmra.mrb[0].mxu0 %v4259
      %v4717 = vpop.f32.mrb[0].mxu0
      %v4718 = vadd.f32 0.0, %v4717
      %v4719 = vpop.f32.mrb[0].mxu0
      %4720 = vmatprep.mubr.f32.mxu0 0.0
      %4721 = vmatmul.mubr.f32.gmra.mrb[0].mxu0 %v4262
      %v4722 = vpop.f32.mrb[0].mxu0
      %v4723 = vadd.f32 0.0, %v4722
      %v4724 = vpop.f32.mrb[0].mxu0
      %4725 = vmatprep.mubr.f32.mxu0 0.0
      %4726 = vmatmul.mubr.f32.gmra.mrb[0].mxu0 %v4265
      %v4727 = vpop.f32.mrb[0].mxu0
      %v4728 = vadd.f32 0.0, %v4727
      %v4729 = vpop.f32.mrb[0].mxu0
      %4730 = vmatprep.mubr.f32.mxu0 0.0
      %4731 = vmatmul.mubr.f32.gmra.mrb[0].mxu0 %v4268
      %v4732 = vpop.f32.mrb[0].mxu0
      %v4733 = vadd.f32 0.0, %v4732
      %v4734 = vpop.f32.mrb[0].mxu0
      %4735 = vmatprep.mubr.f32.mxu0 0.0
      %4736 = vmatmul.mubr.f32.gmra.mrb[0].mxu0 %v4271
      %v4737 = vpop.f32.mrb[0].mxu0
      %v4738 = vadd.f32 0.0, %v4737
      %v4739 = vpop.f32.mrb[0].mxu0
      %4740 = vmatprep.mubr.f32.mxu0 0.0
      %4741 = vmatmul.mubr.f32.gmra.mrb[0].mxu0 %v4274
      %v4742 = vpop.f32.mrb[0].mxu0
      %v4743 = vadd.f32 0.0, %v4742
      %v4744 = vpop.f32.mrb[0].mxu0
      %4745 = vmatprep.mubr.f32.mxu0 0.0
      %4746 = vmatmul.mubr.f32.gmra.mrb[0].mxu0 %v4277
      %v4747 = vpop.f32.mrb[0].mxu0
      %v4748 = vadd.f32 0.0, %v4747
      %v4749 = vpop.f32.mrb[0].mxu0
      %4750 = vmatprep.mubr.f32.mxu0 0.0
      %4751 = vmatmul.mubr.f32.gmra.mrb[0].mxu0 %v4280
      %v4752 = vpop.f32.mrb[0].mxu0
      %v4753 = vadd.f32 0.0, %v4752
      %v4754 = vpop.f32.mrb[0].mxu0
      %4755 = vmatprep.mubr.f32.mxu0 0.0
      %4756 = vmatmul.mubr.f32.gmra.mrb[0].mxu0 %v4283
      %v4757 = vpop.f32.mrb[0].mxu0
      %v4758 = vadd.f32 0.0, %v4757
      %v4759 = vpop.f32.mrb[0].mxu0
      %4760 = vmatprep.mubr.f32.mxu0 0.0
      %4761 = vmatmul.mubr.f32.gmra.mrb[0].mxu0 %v4286
      %v4762 = vpop.f32.mrb[0].mxu0
      %v4763 = vadd.f32 0.0, %v4762
      %v4764 = vpop.f32.mrb[0].mxu0
      %4765 = vmatprep.mubr.f32.mxu0 0.0
      %4766 = vmatmul.mubr.f32.gmra.mrb[0].mxu0 %v4289
      %v4767 = vpop.f32.mrb[0].mxu0
      %v4768 = vadd.f32 0.0, %v4767
      %v4769 = vpop.f32.mrb[0].mxu0
      %4770 = vmatprep.mubr.f32.mxu0 0.0
      %4771 = vmatmul.mubr.f32.gmra.mrb[0].mxu0 %v4292
      %v4772 = vpop.f32.mrb[0].mxu0
      %v4773 = vadd.f32 0.0, %v4772
      %v4774 = vpop.f32.mrb[0].mxu0
      %4775 = vmatprep.mubr.f32.mxu0 0.0
      %4776 = vmatmul.mubr.f32.gmra.mrb[0].mxu0 %v4295
      %v4777 = vpop.f32.mrb[0].mxu0
      %v4778 = vadd.f32 0.0, %v4777
      %v4779 = vpop.f32.mrb[0].mxu0
      %4780 = vmatprep.mubr.f32.mxu0 0.0
      %4781 = vmatmul.mubr.f32.gmra.mrb[0].mxu0 %v4298
      %v4782 = vpop.f32.mrb[0].mxu0
      %v4783 = vadd.f32 0.0, %v4782
      %v4784 = vpop.f32.mrb[0].mxu0
      %4785 = vmatprep.mubr.f32.mxu0 0.0
      %4786 = vmatmul.mubr.f32.gmra.mrb[0].mxu0 %v4563
      %v4787 = vpop.f32.mrb[0].mxu0
      %v4788 = vadd.f32 0.0, %v4787
      %v4789 = vpop.f32.mrb[0].mxu0
      %4790 = vmatprep.mubr.f32.mxu0 0.0
      %4791 = vmatmul.mubr.f32.gmra.mrb[0].mxu0 %v4566
      %v4792 = vpop.f32.mrb[0].mxu0
      %v4793 = vadd.f32 0.0, %v4792
      %v4794 = vpop.f32.mrb[0].mxu0
      %4795 = vdwg.mxu0
      %v4796 = vadd.f32 %v4528, %v4638
      %v4797 = vadd.f32 %v4529, %v4643
      %v4798 = vadd.f32 %v4530, %v4648
      %v4799 = vadd.f32 %v4531, %v4653
      %v4800 = vadd.f32 %v4532, %v4658
      %v4801 = vadd.f32 %v4533, %v4663
      %v4802 = vadd.f32 %v4534, %v4668
      %v4803 = vadd.f32 %v4535, %v4673
      %v4804 = vadd.f32 %v4536, %v4678
      %v4805 = vadd.f32 %v4537, %v4683
      %v4806 = vadd.f32 %v4538, %v4688
      %v4807 = vadd.f32 %v4539, %v4693
      %v4808 = vadd.f32 %v4540, %v4698
      %v4809 = vadd.f32 %v4541, %v4703
      %v4810 = vadd.f32 %v4542, %v4708
      %v4811 = vadd.f32 %v4543, %v4713
      %v4812 = vadd.f32 %v4544, %v4718
      %v4813 = vadd.f32 %v4545, %v4723
      %v4814 = vadd.f32 %v4546, %v4728
      %v4815 = vadd.f32 %v4547, %v4733
      %v4816 = vadd.f32 %v4548, %v4738
      %v4817 = vadd.f32 %v4549, %v4743
      %v4818 = vadd.f32 %v4550, %v4748
      %v4819 = vadd.f32 %v4551, %v4753
      %v4820 = vadd.f32 %v4552, %v4758
      %v4821 = vadd.f32 %v4553, %v4763
      %v4822 = vadd.f32 %v4554, %v4768
      %v4823 = vadd.f32 %v4555, %v4773
      %v4824 = vadd.f32 %v4556, %v4778
      %v4825 = vadd.f32 %v4557, %v4783
      %v4826 = vadd.f32 %v4558, %v4788
      %v4827 = vadd.f32 %v4559, %v4793
      %s4828 = scalar_lea.vmem %s3, 28
      %v4829 = vld [vmem:[%s4828] sm:$0xf]
      %v4831 = vsel %vm257, %v4200, 0
      %v4834 = vsel %vm257, %v4201, 0
      %v4837 = vsel %vm354, %v4829, 0
      %4839 = vmatprep.subr.mxu0 0.0
      %4840 = vmatpush1.msra.mxu0 %v4837
      %4841 = vmatprep.subr.mxu0 0.0
      %4842 = vmatpush1.msra.mxu0 0.0
      %4843 = vmatprep.subr.mxu0 0.0
      %4844 = vmatpush1.msra.mxu0 0.0
      %4845 = vmatprep.subr.mxu0 0.0
      %4846 = vmatpush1.msra.mxu0 0.0
      %4847 = vmatprep.subr.mxu0 0.0
      %4848 = vmatpush1.msra.mxu0 0.0
      %4849 = vmatprep.subr.mxu0 0.0
      %4850 = vmatpush1.msra.mxu0 0.0
      %4851 = vmatprep.subr.mxu0 0.0
      %4852 = vmatpush1.msra.mxu0 0.0
      %4853 = vmatprep.subr.mxu0 0.0
      %4854 = vmatpush1.msra.mxu0 0.0
      %4855 = vmatprep.subr.mxu0 0.0
      %4856 = vmatpush1.msra.mxu0 0.0
      %4857 = vmatprep.subr.mxu0 0.0
      %4858 = vmatpush1.msra.mxu0 0.0
      %4859 = vmatprep.subr.mxu0 0.0
      %4860 = vmatpush1.msra.mxu0 0.0
      %4861 = vmatprep.subr.mxu0 0.0
      %4862 = vmatpush1.msra.mxu0 0.0
      %4863 = vmatprep.subr.mxu0 0.0
      %4864 = vmatpush1.msra.mxu0 0.0
      %4865 = vmatprep.subr.mxu0 0.0
      %4866 = vmatpush1.msra.mxu0 0.0
      %4867 = vmatprep.subr.mxu0 0.0
      %4868 = vmatpush1.msra.mxu0 0.0
      %4869 = vmatprep.subr.mxu0 0.0
      %4870 = vmatpush1.msra.mxu0 0.0
      %4871 = vmatprep.subr.mxu0 0.0
      %4872 = vmatpush1.msra.mxu0 0.0
      %4873 = vmatprep.subr.mxu0 0.0
      %4874 = vmatpush1.msra.mxu0 0.0
      %4875 = vmatprep.subr.mxu0 0.0
      %4876 = vmatpush1.msra.mxu0 0.0
      %4877 = vmatprep.subr.mxu0 0.0
      %4878 = vmatpush1.msra.mxu0 0.0
      %4879 = vmatprep.subr.mxu0 0.0
      %4880 = vmatpush1.msra.mxu0 0.0
      %4881 = vmatprep.subr.mxu0 0.0
      %4882 = vmatpush1.msra.mxu0 0.0
      %4883 = vmatprep.subr.mxu0 0.0
      %4884 = vmatpush1.msra.mxu0 0.0
      %4885 = vmatprep.subr.mxu0 0.0
      %4886 = vmatpush1.msra.mxu0 0.0
      %4887 = vmatprep.subr.mxu0 0.0
      %4888 = vmatpush1.msra.mxu0 0.0
      %4889 = vmatprep.subr.mxu0 0.0
      %4890 = vmatpush1.msra.mxu0 0.0
      %4891 = vmatprep.subr.mxu0 0.0
      %4892 = vmatpush1.msra.mxu0 0.0
      %4893 = vmatprep.subr.mxu0 0.0
      %4894 = vmatpush1.msra.mxu0 0.0
      %4895 = vmatprep.subr.mxu0 0.0
      %4896 = vmatpush1.msra.mxu0 0.0
      %4897 = vmatprep.subr.mxu0 0.0
      %4898 = vmatpush1.msra.mxu0 0.0
      %4899 = vmatprep.subr.mxu0 0.0
      %4900 = vmatpush1.msra.mxu0 0.0
      %4901 = vmatprep.subr.mxu0 0.0
      %4902 = vmatpush1.msra.mxu0 0.0
      %4903 = vmatprep.mubr.f32.mxu0 0.0
      %4904 = vmatmul.mubr.f32.gmra.mrb[0].mxu0 %v4217
      %v4905 = vpop.f32.mrb[0].mxu0
      %v4906 = vadd.f32 0.0, %v4905
      %v4907 = vpop.f32.mrb[0].mxu0
      %4908 = vmatprep.mubr.f32.mxu0 0.0
      %4909 = vmatmul.mubr.f32.gmra.mrb[0].mxu0 %v4220
      %v4910 = vpop.f32.mrb[0].mxu0
      %v4911 = vadd.f32 0.0, %v4910
      %v4912 = vpop.f32.mrb[0].mxu0
      %4913 = vmatprep.mubr.f32.mxu0 0.0
      %4914 = vmatmul.mubr.f32.gmra.mrb[0].mxu0 %v4223
      %v4915 = vpop.f32.mrb[0].mxu0
      %v4916 = vadd.f32 0.0, %v4915
      %v4917 = vpop.f32.mrb[0].mxu0
      %4918 = vmatprep.mubr.f32.mxu0 0.0
      %4919 = vmatmul.mubr.f32.gmra.mrb[0].mxu0 %v4226
      %v4920 = vpop.f32.mrb[0].mxu0
      %v4921 = vadd.f32 0.0, %v4920
      %v4922 = vpop.f32.mrb[0].mxu0
      %4923 = vmatprep.mubr.f32.mxu0 0.0
      %4924 = vmatmul.mubr.f32.gmra.mrb[0].mxu0 %v4229
      %v4925 = vpop.f32.mrb[0].mxu0
      %v4926 = vadd.f32 0.0, %v4925
      %v4927 = vpop.f32.mrb[0].mxu0
      %4928 = vmatprep.mubr.f32.mxu0 0.0
      %4929 = vmatmul.mubr.f32.gmra.mrb[0].mxu0 %v4232
      %v4930 = vpop.f32.mrb[0].mxu0
      %v4931 = vadd.f32 0.0, %v4930
      %v4932 = vpop.f32.mrb[0].mxu0
      %4933 = vmatprep.mubr.f32.mxu0 0.0
      %4934 = vmatmul.mubr.f32.gmra.mrb[0].mxu0 %v4235
      %v4935 = vpop.f32.mrb[0].mxu0
      %v4936 = vadd.f32 0.0, %v4935
      %v4937 = vpop.f32.mrb[0].mxu0
      %4938 = vmatprep.mubr.f32.mxu0 0.0
      %4939 = vmatmul.mubr.f32.gmra.mrb[0].mxu0 %v4238
      %v4940 = vpop.f32.mrb[0].mxu0
      %v4941 = vadd.f32 0.0, %v4940
      %v4942 = vpop.f32.mrb[0].mxu0
      %4943 = vmatprep.mubr.f32.mxu0 0.0
      %4944 = vmatmul.mubr.f32.gmra.mrb[0].mxu0 %v4241
      %v4945 = vpop.f32.mrb[0].mxu0
      %v4946 = vadd.f32 0.0, %v4945
      %v4947 = vpop.f32.mrb[0].mxu0
      %4948 = vmatprep.mubr.f32.mxu0 0.0
      %4949 = vmatmul.mubr.f32.gmra.mrb[0].mxu0 %v4244
      %v4950 = vpop.f32.mrb[0].mxu0
      %v4951 = vadd.f32 0.0, %v4950
      %v4952 = vpop.f32.mrb[0].mxu0
      %4953 = vmatprep.mubr.f32.mxu0 0.0
      %4954 = vmatmul.mubr.f32.gmra.mrb[0].mxu0 %v4247
      %v4955 = vpop.f32.mrb[0].mxu0
      %v4956 = vadd.f32 0.0, %v4955
      %v4957 = vpop.f32.mrb[0].mxu0
      %4958 = vmatprep.mubr.f32.mxu0 0.0
      %4959 = vmatmul.mubr.f32.gmra.mrb[0].mxu0 %v4250
      %v4960 = vpop.f32.mrb[0].mxu0
      %v4961 = vadd.f32 0.0, %v4960
      %v4962 = vpop.f32.mrb[0].mxu0
      %4963 = vmatprep.mubr.f32.mxu0 0.0
      %4964 = vmatmul.mubr.f32.gmra.mrb[0].mxu0 %v4253
      %v4965 = vpop.f32.mrb[0].mxu0
      %v4966 = vadd.f32 0.0, %v4965
      %v4967 = vpop.f32.mrb[0].mxu0
      %4968 = vmatprep.mubr.f32.mxu0 0.0
      %4969 = vmatmul.mubr.f32.gmra.mrb[0].mxu0 %v4256
      %v4970 = vpop.f32.mrb[0].mxu0
      %v4971 = vadd.f32 0.0, %v4970
      %v4972 = vpop.f32.mrb[0].mxu0
      %4973 = vmatprep.mubr.f32.mxu0 0.0
      %4974 = vmatmul.mubr.f32.gmra.mrb[0].mxu0 %v4259
      %v4975 = vpop.f32.mrb[0].mxu0
      %v4976 = vadd.f32 0.0, %v4975
      %v4977 = vpop.f32.mrb[0].mxu0
      %4978 = vmatprep.mubr.f32.mxu0 0.0
      %4979 = vmatmul.mubr.f32.gmra.mrb[0].mxu0 %v4262
      %v4980 = vpop.f32.mrb[0].mxu0
      %v4981 = vadd.f32 0.0, %v4980
      %v4982 = vpop.f32.mrb[0].mxu0
      %4983 = vmatprep.mubr.f32.mxu0 0.0
      %4984 = vmatmul.mubr.f32.gmra.mrb[0].mxu0 %v4265
      %v4985 = vpop.f32.mrb[0].mxu0
      %v4986 = vadd.f32 0.0, %v4985
      %v4987 = vpop.f32.mrb[0].mxu0
      %4988 = vmatprep.mubr.f32.mxu0 0.0
      %4989 = vmatmul.mubr.f32.gmra.mrb[0].mxu0 %v4268
      %v4990 = vpop.f32.mrb[0].mxu0
      %v4991 = vadd.f32 0.0, %v4990
      %v4992 = vpop.f32.mrb[0].mxu0
      %4993 = vmatprep.mubr.f32.mxu0 0.0
      %4994 = vmatmul.mubr.f32.gmra.mrb[0].mxu0 %v4271
      %v4995 = vpop.f32.mrb[0].mxu0
      %v4996 = vadd.f32 0.0, %v4995
      %v4997 = vpop.f32.mrb[0].mxu0
      %4998 = vmatprep.mubr.f32.mxu0 0.0
      %4999 = vmatmul.mubr.f32.gmra.mrb[0].mxu0 %v4274
      %v5000 = vpop.f32.mrb[0].mxu0
      %v5001 = vadd.f32 0.0, %v5000
      %v5002 = vpop.f32.mrb[0].mxu0
      %5003 = vmatprep.mubr.f32.mxu0 0.0
      %5004 = vmatmul.mubr.f32.gmra.mrb[0].mxu0 %v4277
      %v5005 = vpop.f32.mrb[0].mxu0
      %v5006 = vadd.f32 0.0, %v5005
      %v5007 = vpop.f32.mrb[0].mxu0
      %5008 = vmatprep.mubr.f32.mxu0 0.0
      %5009 = vmatmul.mubr.f32.gmra.mrb[0].mxu0 %v4280
      %v5010 = vpop.f32.mrb[0].mxu0
      %v5011 = vadd.f32 0.0, %v5010
      %v5012 = vpop.f32.mrb[0].mxu0
      %5013 = vmatprep.mubr.f32.mxu0 0.0
      %5014 = vmatmul.mubr.f32.gmra.mrb[0].mxu0 %v4283
      %v5015 = vpop.f32.mrb[0].mxu0
      %v5016 = vadd.f32 0.0, %v5015
      %v5017 = vpop.f32.mrb[0].mxu0
      %5018 = vmatprep.mubr.f32.mxu0 0.0
      %5019 = vmatmul.mubr.f32.gmra.mrb[0].mxu0 %v4286
      %v5020 = vpop.f32.mrb[0].mxu0
      %v5021 = vadd.f32 0.0, %v5020
      %v5022 = vpop.f32.mrb[0].mxu0
      %5023 = vmatprep.mubr.f32.mxu0 0.0
      %5024 = vmatmul.mubr.f32.gmra.mrb[0].mxu0 %v4289
      %v5025 = vpop.f32.mrb[0].mxu0
      %v5026 = vadd.f32 0.0, %v5025
      %v5027 = vpop.f32.mrb[0].mxu0
      %5028 = vmatprep.mubr.f32.mxu0 0.0
      %5029 = vmatmul.mubr.f32.gmra.mrb[0].mxu0 %v4292
      %v5030 = vpop.f32.mrb[0].mxu0
      %v5031 = vadd.f32 0.0, %v5030
      %v5032 = vpop.f32.mrb[0].mxu0
      %5033 = vmatprep.mubr.f32.mxu0 0.0
      %5034 = vmatmul.mubr.f32.gmra.mrb[0].mxu0 %v4295
      %v5035 = vpop.f32.mrb[0].mxu0
      %v5036 = vadd.f32 0.0, %v5035
      %v5037 = vpop.f32.mrb[0].mxu0
      %5038 = vmatprep.mubr.f32.mxu0 0.0
      %5039 = vmatmul.mubr.f32.gmra.mrb[0].mxu0 %v4298
      %v5040 = vpop.f32.mrb[0].mxu0
      %v5041 = vadd.f32 0.0, %v5040
      %v5042 = vpop.f32.mrb[0].mxu0
      %5043 = vmatprep.mubr.f32.mxu0 0.0
      %5044 = vmatmul.mubr.f32.gmra.mrb[0].mxu0 %v4563
      %v5045 = vpop.f32.mrb[0].mxu0
      %v5046 = vadd.f32 0.0, %v5045
      %v5047 = vpop.f32.mrb[0].mxu0
      %5048 = vmatprep.mubr.f32.mxu0 0.0
      %5049 = vmatmul.mubr.f32.gmra.mrb[0].mxu0 %v4566
      %v5050 = vpop.f32.mrb[0].mxu0
      %v5051 = vadd.f32 0.0, %v5050
      %v5052 = vpop.f32.mrb[0].mxu0
      %5053 = vmatprep.mubr.f32.mxu0 0.0
      %5054 = vmatmul.mubr.f32.gmra.mrb[0].mxu0 %v4831
      %v5055 = vpop.f32.mrb[0].mxu0
      %v5056 = vadd.f32 0.0, %v5055
      %v5057 = vpop.f32.mrb[0].mxu0
      %5058 = vmatprep.mubr.f32.mxu0 0.0
      %5059 = vmatmul.mubr.f32.gmra.mrb[0].mxu0 %v4834
      %v5060 = vpop.f32.mrb[0].mxu0
      %v5061 = vadd.f32 0.0, %v5060
      %v5062 = vpop.f32.mrb[0].mxu0
      %5063 = vdwg.mxu0
      %v5064 = vadd.f32 %v4796, %v4906
      %v5065 = vadd.f32 %v4797, %v4911
      %v5066 = vadd.f32 %v4798, %v4916
      %v5067 = vadd.f32 %v4799, %v4921
      %v5068 = vadd.f32 %v4800, %v4926
      %v5069 = vadd.f32 %v4801, %v4931
      %v5070 = vadd.f32 %v4802, %v4936
      %v5071 = vadd.f32 %v4803, %v4941
      %v5072 = vadd.f32 %v4804, %v4946
      %v5073 = vadd.f32 %v4805, %v4951
      %v5074 = vadd.f32 %v4806, %v4956
      %v5075 = vadd.f32 %v4807, %v4961
      %v5076 = vadd.f32 %v4808, %v4966
      %v5077 = vadd.f32 %v4809, %v4971
      %v5078 = vadd.f32 %v4810, %v4976
      %v5079 = vadd.f32 %v4811, %v4981
      %v5080 = vadd.f32 %v4812, %v4986
      %v5081 = vadd.f32 %v4813, %v4991
      %v5082 = vadd.f32 %v4814, %v4996
      %v5083 = vadd.f32 %v4815, %v5001
      %v5084 = vadd.f32 %v4816, %v5006
      %v5085 = vadd.f32 %v4817, %v5011
      %v5086 = vadd.f32 %v4818, %v5016
      %v5087 = vadd.f32 %v4819, %v5021
      %v5088 = vadd.f32 %v4820, %v5026
      %v5089 = vadd.f32 %v4821, %v5031
      %v5090 = vadd.f32 %v4822, %v5036
      %v5091 = vadd.f32 %v4823, %v5041
      %v5092 = vadd.f32 %v4824, %v5046
      %v5093 = vadd.f32 %v4825, %v5051
      %v5094 = vadd.f32 %v4826, %v5056
      %v5095 = vadd.f32 %v4827, %v5061
      %v5096 = vld [vmem:[#allocation2 + $0x2] sm:$0xff]
      %v5097 = vld [vmem:[#allocation2 + $0xa] sm:$0xff]
      %v5098 = vld [vmem:[#allocation2 + $0x1a] sm:$0xff]
      %v5099 = vld [vmem:[#allocation2 + $0x22] sm:$0xff]
      %v5100 = vld [vmem:[#allocation2 + $0x32] sm:$0xff]
      %v5101 = vld [vmem:[#allocation2 + $0x3a] sm:$0xff]
      %v5102 = vld [vmem:[#allocation2 + $0x4a] sm:$0xff]
      %v5103 = vld [vmem:[#allocation2 + $0x52] sm:$0xff]
      %v5104 = vld [vmem:[#allocation2 + $0x62] sm:$0xff]
      %v5105 = vld [vmem:[#allocation2 + $0x6a] sm:$0xff]
      %v5106 = vld [vmem:[#allocation2 + $0x7a] sm:$0xff]
      %v5107 = vld [vmem:[#allocation2 + $0x82] sm:$0xff]
      %v5108 = vld [vmem:[#allocation2 + $0x92] sm:$0xff]
      %v5109 = vld [vmem:[#allocation2 + $0x9a] sm:$0xff]
      %v5110 = vld [vmem:[#allocation2 + $0xaa] sm:$0xff]
      %v5111 = vld [vmem:[#allocation2 + $0xb2] sm:$0xff]
      %v5112 = vld [vmem:[#allocation2 + $0xc2] sm:$0xff]
      %v5113 = vld [vmem:[#allocation2 + $0xca] sm:$0xff]
      %v5114 = vld [vmem:[#allocation2 + $0xda] sm:$0xff]
      %v5115 = vld [vmem:[#allocation2 + $0xe2] sm:$0xff]
      %v5116 = vld [vmem:[#allocation2 + $0xf2] sm:$0xff]
      %v5117 = vld [vmem:[#allocation2 + $0xfa] sm:$0xff]
      %v5118 = vld [vmem:[#allocation2 + $0x10a] sm:$0xff]
      %v5119 = vld [vmem:[#allocation2 + $0x112] sm:$0xff]
      %v5120 = vld [vmem:[#allocation2 + $0x122] sm:$0xff]
      %v5121 = vld [vmem:[#allocation2 + $0x12a] sm:$0xff]
      %v5122 = vld [vmem:[#allocation2 + $0x13a] sm:$0xff]
      %v5123 = vld [vmem:[#allocation2 + $0x142] sm:$0xff]
      %v5124 = vld [vmem:[#allocation2 + $0x152] sm:$0xff]
      %v5125 = vld [vmem:[#allocation2 + $0x15a] sm:$0xff]
      %v5126 = vld [vmem:[#allocation2 + $0x16a] sm:$0xff]
      %v5127 = vld [vmem:[#allocation2 + $0x172] sm:$0xff]
      %v5128 = vld [vmem:[#allocation2 + $0x182] sm:$0xff]
      %v5129 = vld [vmem:[#allocation2 + $0x18a] sm:$0xff]
      %v5130 = vld [vmem:[#allocation2 + $0x19a] sm:$0xff]
      %v5131 = vld [vmem:[#allocation2 + $0x1a2] sm:$0xff]
      %s5132 = scalar_lea.vmem %s3, 8
      %v5133 = vld [vmem:[%s5132] sm:$0xf]
      %v5135 = vsel %vm257, %v5096, 0
      %v5138 = vsel %vm257, %v5097, 0
      %v5141 = vsel %vm257, %v5098, 0
      %v5144 = vsel %vm257, %v5099, 0
      %v5147 = vsel %vm257, %v5100, 0
      %v5150 = vsel %vm257, %v5101, 0
      %v5153 = vsel %vm257, %v5102, 0
      %v5156 = vsel %vm257, %v5103, 0
      %v5159 = vsel %vm257, %v5104, 0
      %v5162 = vsel %vm257, %v5105, 0
      %v5165 = vsel %vm257, %v5106, 0
      %v5168 = vsel %vm257, %v5107, 0
      %v5171 = vsel %vm257, %v5108, 0
      %v5174 = vsel %vm257, %v5109, 0
      %v5177 = vsel %vm257, %v5110, 0
      %v5180 = vsel %vm257, %v5111, 0
      %v5183 = vsel %vm257, %v5112, 0
      %v5186 = vsel %vm257, %v5113, 0
      %v5189 = vsel %vm257, %v5114, 0
      %v5192 = vsel %vm257, %v5115, 0
      %v5195 = vsel %vm257, %v5116, 0
      %v5198 = vsel %vm257, %v5117, 0
      %v5201 = vsel %vm257, %v5118, 0
      %v5204 = vsel %vm257, %v5119, 0
      %v5207 = vsel %vm257, %v5120, 0
      %v5210 = vsel %vm257, %v5121, 0
      %v5213 = vsel %vm257, %v5122, 0
      %v5216 = vsel %vm257, %v5123, 0
      %v5219 = vsel %vm257, %v5124, 0
      %v5222 = vsel %vm257, %v5125, 0
      %v5225 = vsel %vm257, %v5126, 0
      %v5228 = vsel %vm257, %v5127, 0
      %v5231 = vsel %vm354, %v5133, 0
      %5233 = vmatprep.subr.mxu0 0.0
      %5234 = vmatpush1.msra.mxu0 %v5231
      %5235 = vmatprep.subr.mxu0 0.0
      %5236 = vmatpush1.msra.mxu0 0.0
      %5237 = vmatprep.subr.mxu0 0.0
      %5238 = vmatpush1.msra.mxu0 0.0
      %5239 = vmatprep.subr.mxu0 0.0
      %5240 = vmatpush1.msra.mxu0 0.0
      %5241 = vmatprep.subr.mxu0 0.0
      %5242 = vmatpush1.msra.mxu0 0.0
      %5243 = vmatprep.subr.mxu0 0.0
      %5244 = vmatpush1.msra.mxu0 0.0
      %5245 = vmatprep.subr.mxu0 0.0
      %5246 = vmatpush1.msra.mxu0 0.0
      %5247 = vmatprep.subr.mxu0 0.0
      %5248 = vmatpush1.msra.mxu0 0.0
      %5249 = vmatprep.subr.mxu0 0.0
      %5250 = vmatpush1.msra.mxu0 0.0
      %5251 = vmatprep.subr.mxu0 0.0
      %5252 = vmatpush1.msra.mxu0 0.0
      %5253 = vmatprep.subr.mxu0 0.0
      %5254 = vmatpush1.msra.mxu0 0.0
      %5255 = vmatprep.subr.mxu0 0.0
      %5256 = vmatpush1.msra.mxu0 0.0
      %5257 = vmatprep.subr.mxu0 0.0
      %5258 = vmatpush1.msra.mxu0 0.0
      %5259 = vmatprep.subr.mxu0 0.0
      %5260 = vmatpush1.msra.mxu0 0.0
      %5261 = vmatprep.subr.mxu0 0.0
      %5262 = vmatpush1.msra.mxu0 0.0
      %5263 = vmatprep.subr.mxu0 0.0
      %5264 = vmatpush1.msra.mxu0 0.0
      %5265 = vmatprep.subr.mxu0 0.0
      %5266 = vmatpush1.msra.mxu0 0.0
      %5267 = vmatprep.subr.mxu0 0.0
      %5268 = vmatpush1.msra.mxu0 0.0
      %5269 = vmatprep.subr.mxu0 0.0
      %5270 = vmatpush1.msra.mxu0 0.0
      %5271 = vmatprep.subr.mxu0 0.0
      %5272 = vmatpush1.msra.mxu0 0.0
      %5273 = vmatprep.subr.mxu0 0.0
      %5274 = vmatpush1.msra.mxu0 0.0
      %5275 = vmatprep.subr.mxu0 0.0
      %5276 = vmatpush1.msra.mxu0 0.0
      %5277 = vmatprep.subr.mxu0 0.0
      %5278 = vmatpush1.msra.mxu0 0.0
      %5279 = vmatprep.subr.mxu0 0.0
      %5280 = vmatpush1.msra.mxu0 0.0
      %5281 = vmatprep.subr.mxu0 0.0
      %5282 = vmatpush1.msra.mxu0 0.0
      %5283 = vmatprep.subr.mxu0 0.0
      %5284 = vmatpush1.msra.mxu0 0.0
      %5285 = vmatprep.subr.mxu0 0.0
      %5286 = vmatpush1.msra.mxu0 0.0
      %5287 = vmatprep.subr.mxu0 0.0
      %5288 = vmatpush1.msra.mxu0 0.0
      %5289 = vmatprep.subr.mxu0 0.0
      %5290 = vmatpush1.msra.mxu0 0.0
      %5291 = vmatprep.subr.mxu0 0.0
      %5292 = vmatpush1.msra.mxu0 0.0
      %5293 = vmatprep.subr.mxu0 0.0
      %5294 = vmatpush1.msra.mxu0 0.0
      %5295 = vmatprep.subr.mxu0 0.0
      %5296 = vmatpush1.msra.mxu0 0.0
      %5297 = vmatprep.mubr.f32.mxu0 0.0
      %5298 = vmatmul.mubr.f32.gmra.mrb[0].mxu0 %v5135
      %v5299 = vpop.f32.mrb[0].mxu0
      %v5300 = vadd.f32 0.0, %v5299
      %v5301 = vpop.f32.mrb[0].mxu0
      %5302 = vmatprep.mubr.f32.mxu0 0.0
      %5303 = vmatmul.mubr.f32.gmra.mrb[0].mxu0 %v5138
      %v5304 = vpop.f32.mrb[0].mxu0
      %v5305 = vadd.f32 0.0, %v5304
      %v5306 = vpop.f32.mrb[0].mxu0
      %5307 = vmatprep.mubr.f32.mxu0 0.0
      %5308 = vmatmul.mubr.f32.gmra.mrb[0].mxu0 %v5141
      %v5309 = vpop.f32.mrb[0].mxu0
      %v5310 = vadd.f32 0.0, %v5309
      %v5311 = vpop.f32.mrb[0].mxu0
      %5312 = vmatprep.mubr.f32.mxu0 0.0
      %5313 = vmatmul.mubr.f32.gmra.mrb[0].mxu0 %v5144
      %v5314 = vpop.f32.mrb[0].mxu0
      %v5315 = vadd.f32 0.0, %v5314
      %v5316 = vpop.f32.mrb[0].mxu0
      %5317 = vmatprep.mubr.f32.mxu0 0.0
      %5318 = vmatmul.mubr.f32.gmra.mrb[0].mxu0 %v5147
      %v5319 = vpop.f32.mrb[0].mxu0
      %v5320 = vadd.f32 0.0, %v5319
      %v5321 = vpop.f32.mrb[0].mxu0
      %5322 = vmatprep.mubr.f32.mxu0 0.0
      %5323 = vmatmul.mubr.f32.gmra.mrb[0].mxu0 %v5150
      %v5324 = vpop.f32.mrb[0].mxu0
      %v5325 = vadd.f32 0.0, %v5324
      %v5326 = vpop.f32.mrb[0].mxu0
      %5327 = vmatprep.mubr.f32.mxu0 0.0
      %5328 = vmatmul.mubr.f32.gmra.mrb[0].mxu0 %v5153
      %v5329 = vpop.f32.mrb[0].mxu0
      %v5330 = vadd.f32 0.0, %v5329
      %v5331 = vpop.f32.mrb[0].mxu0
      %5332 = vmatprep.mubr.f32.mxu0 0.0
      %5333 = vmatmul.mubr.f32.gmra.mrb[0].mxu0 %v5156
      %v5334 = vpop.f32.mrb[0].mxu0
      %v5335 = vadd.f32 0.0, %v5334
      %v5336 = vpop.f32.mrb[0].mxu0
      %5337 = vmatprep.mubr.f32.mxu0 0.0
      %5338 = vmatmul.mubr.f32.gmra.mrb[0].mxu0 %v5159
      %v5339 = vpop.f32.mrb[0].mxu0
      %v5340 = vadd.f32 0.0, %v5339
      %v5341 = vpop.f32.mrb[0].mxu0
      %5342 = vmatprep.mubr.f32.mxu0 0.0
      %5343 = vmatmul.mubr.f32.gmra.mrb[0].mxu0 %v5162
      %v5344 = vpop.f32.mrb[0].mxu0
      %v5345 = vadd.f32 0.0, %v5344
      %v5346 = vpop.f32.mrb[0].mxu0
      %5347 = vmatprep.mubr.f32.mxu0 0.0
      %5348 = vmatmul.mubr.f32.gmra.mrb[0].mxu0 %v5165
      %v5349 = vpop.f32.mrb[0].mxu0
      %v5350 = vadd.f32 0.0, %v5349
      %v5351 = vpop.f32.mrb[0].mxu0
      %5352 = vmatprep.mubr.f32.mxu0 0.0
      %5353 = vmatmul.mubr.f32.gmra.mrb[0].mxu0 %v5168
      %v5354 = vpop.f32.mrb[0].mxu0
      %v5355 = vadd.f32 0.0, %v5354
      %v5356 = vpop.f32.mrb[0].mxu0
      %5357 = vmatprep.mubr.f32.mxu0 0.0
      %5358 = vmatmul.mubr.f32.gmra.mrb[0].mxu0 %v5171
      %v5359 = vpop.f32.mrb[0].mxu0
      %v5360 = vadd.f32 0.0, %v5359
      %v5361 = vpop.f32.mrb[0].mxu0
      %5362 = vmatprep.mubr.f32.mxu0 0.0
      %5363 = vmatmul.mubr.f32.gmra.mrb[0].mxu0 %v5174
      %v5364 = vpop.f32.mrb[0].mxu0
      %v5365 = vadd.f32 0.0, %v5364
      %v5366 = vpop.f32.mrb[0].mxu0
      %5367 = vmatprep.mubr.f32.mxu0 0.0
      %5368 = vmatmul.mubr.f32.gmra.mrb[0].mxu0 %v5177
      %v5369 = vpop.f32.mrb[0].mxu0
      %v5370 = vadd.f32 0.0, %v5369
      %v5371 = vpop.f32.mrb[0].mxu0
      %5372 = vmatprep.mubr.f32.mxu0 0.0
      %5373 = vmatmul.mubr.f32.gmra.mrb[0].mxu0 %v5180
      %v5374 = vpop.f32.mrb[0].mxu0
      %v5375 = vadd.f32 0.0, %v5374
      %v5376 = vpop.f32.mrb[0].mxu0
      %5377 = vmatprep.mubr.f32.mxu0 0.0
      %5378 = vmatmul.mubr.f32.gmra.mrb[0].mxu0 %v5183
      %v5379 = vpop.f32.mrb[0].mxu0
      %v5380 = vadd.f32 0.0, %v5379
      %v5381 = vpop.f32.mrb[0].mxu0
      %5382 = vmatprep.mubr.f32.mxu0 0.0
      %5383 = vmatmul.mubr.f32.gmra.mrb[0].mxu0 %v5186
      %v5384 = vpop.f32.mrb[0].mxu0
      %v5385 = vadd.f32 0.0, %v5384
      %v5386 = vpop.f32.mrb[0].mxu0
      %5387 = vmatprep.mubr.f32.mxu0 0.0
      %5388 = vmatmul.mubr.f32.gmra.mrb[0].mxu0 %v5189
      %v5389 = vpop.f32.mrb[0].mxu0
      %v5390 = vadd.f32 0.0, %v5389
      %v5391 = vpop.f32.mrb[0].mxu0
      %5392 = vmatprep.mubr.f32.mxu0 0.0
      %5393 = vmatmul.mubr.f32.gmra.mrb[0].mxu0 %v5192
      %v5394 = vpop.f32.mrb[0].mxu0
      %v5395 = vadd.f32 0.0, %v5394
      %v5396 = vpop.f32.mrb[0].mxu0
      %5397 = vmatprep.mubr.f32.mxu0 0.0
      %5398 = vmatmul.mubr.f32.gmra.mrb[0].mxu0 %v5195
      %v5399 = vpop.f32.mrb[0].mxu0
      %v5400 = vadd.f32 0.0, %v5399
      %v5401 = vpop.f32.mrb[0].mxu0
      %5402 = vmatprep.mubr.f32.mxu0 0.0
      %5403 = vmatmul.mubr.f32.gmra.mrb[0].mxu0 %v5198
      %v5404 = vpop.f32.mrb[0].mxu0
      %v5405 = vadd.f32 0.0, %v5404
      %v5406 = vpop.f32.mrb[0].mxu0
      %5407 = vmatprep.mubr.f32.mxu0 0.0
      %5408 = vmatmul.mubr.f32.gmra.mrb[0].mxu0 %v5201
      %v5409 = vpop.f32.mrb[0].mxu0
      %v5410 = vadd.f32 0.0, %v5409
      %v5411 = vpop.f32.mrb[0].mxu0
      %5412 = vmatprep.mubr.f32.mxu0 0.0
      %5413 = vmatmul.mubr.f32.gmra.mrb[0].mxu0 %v5204
      %v5414 = vpop.f32.mrb[0].mxu0
      %v5415 = vadd.f32 0.0, %v5414
      %v5416 = vpop.f32.mrb[0].mxu0
      %5417 = vmatprep.mubr.f32.mxu0 0.0
      %5418 = vmatmul.mubr.f32.gmra.mrb[0].mxu0 %v5207
      %v5419 = vpop.f32.mrb[0].mxu0
      %v5420 = vadd.f32 0.0, %v5419
      %v5421 = vpop.f32.mrb[0].mxu0
      %5422 = vmatprep.mubr.f32.mxu0 0.0
      %5423 = vmatmul.mubr.f32.gmra.mrb[0].mxu0 %v5210
      %v5424 = vpop.f32.mrb[0].mxu0
      %v5425 = vadd.f32 0.0, %v5424
      %v5426 = vpop.f32.mrb[0].mxu0
      %5427 = vmatprep.mubr.f32.mxu0 0.0
      %5428 = vmatmul.mubr.f32.gmra.mrb[0].mxu0 %v5213
      %v5429 = vpop.f32.mrb[0].mxu0
      %v5430 = vadd.f32 0.0, %v5429
      %v5431 = vpop.f32.mrb[0].mxu0
      %5432 = vmatprep.mubr.f32.mxu0 0.0
      %5433 = vmatmul.mubr.f32.gmra.mrb[0].mxu0 %v5216
      %v5434 = vpop.f32.mrb[0].mxu0
      %v5435 = vadd.f32 0.0, %v5434
      %v5436 = vpop.f32.mrb[0].mxu0
      %5437 = vmatprep.mubr.f32.mxu0 0.0
      %5438 = vmatmul.mubr.f32.gmra.mrb[0].mxu0 %v5219
      %v5439 = vpop.f32.mrb[0].mxu0
      %v5440 = vadd.f32 0.0, %v5439
      %v5441 = vpop.f32.mrb[0].mxu0
      %5442 = vmatprep.mubr.f32.mxu0 0.0
      %5443 = vmatmul.mubr.f32.gmra.mrb[0].mxu0 %v5222
      %v5444 = vpop.f32.mrb[0].mxu0
      %v5445 = vadd.f32 0.0, %v5444
      %v5446 = vpop.f32.mrb[0].mxu0
      %5447 = vmatprep.mubr.f32.mxu0 0.0
      %5448 = vmatmul.mubr.f32.gmra.mrb[0].mxu0 %v5225
      %v5449 = vpop.f32.mrb[0].mxu0
      %v5450 = vadd.f32 0.0, %v5449
      %v5451 = vpop.f32.mrb[0].mxu0
      %5452 = vmatprep.mubr.f32.mxu0 0.0
      %5453 = vmatmul.mubr.f32.gmra.mrb[0].mxu0 %v5228
      %v5454 = vpop.f32.mrb[0].mxu0
      %v5455 = vadd.f32 0.0, %v5454
      %v5456 = vpop.f32.mrb[0].mxu0
      %5457 = vdwg.mxu0
      %v5458 = vadd.f32 %v5064, %v5300
      %v5459 = vadd.f32 %v5065, %v5305
      %v5460 = vadd.f32 %v5066, %v5310
      %v5461 = vadd.f32 %v5067, %v5315
      %v5462 = vadd.f32 %v5068, %v5320
      %v5463 = vadd.f32 %v5069, %v5325
      %v5464 = vadd.f32 %v5070, %v5330
      %v5465 = vadd.f32 %v5071, %v5335
      %v5466 = vadd.f32 %v5072, %v5340
      %v5467 = vadd.f32 %v5073, %v5345
      %v5468 = vadd.f32 %v5074, %v5350
      %v5469 = vadd.f32 %v5075, %v5355
      %v5470 = vadd.f32 %v5076, %v5360
      %v5471 = vadd.f32 %v5077, %v5365
      %v5472 = vadd.f32 %v5078, %v5370
      %v5473 = vadd.f32 %v5079, %v5375
      %v5474 = vadd.f32 %v5080, %v5380
      %v5475 = vadd.f32 %v5081, %v5385
      %v5476 = vadd.f32 %v5082, %v5390
      %v5477 = vadd.f32 %v5083, %v5395
      %v5478 = vadd.f32 %v5084, %v5400
      %v5479 = vadd.f32 %v5085, %v5405
      %v5480 = vadd.f32 %v5086, %v5410
      %v5481 = vadd.f32 %v5087, %v5415
      %v5482 = vadd.f32 %v5088, %v5420
      %v5483 = vadd.f32 %v5089, %v5425
      %v5484 = vadd.f32 %v5090, %v5430
      %v5485 = vadd.f32 %v5091, %v5435
      %v5486 = vadd.f32 %v5092, %v5440
      %v5487 = vadd.f32 %v5093, %v5445
      %v5488 = vadd.f32 %v5094, %v5450
      %v5489 = vadd.f32 %v5095, %v5455
      %s5490 = scalar_lea.vmem %s3, 20
      %v5491 = vld [vmem:[%s5490] sm:$0xf]
      %v5493 = vsel %vm257, %v5128, 0
      %v5496 = vsel %vm257, %v5129, 0
      %v5499 = vsel %vm354, %v5491, 0
      %5501 = vmatprep.subr.mxu0 0.0
      %5502 = vmatpush1.msra.mxu0 %v5499
      %5503 = vmatprep.subr.mxu0 0.0
      %5504 = vmatpush1.msra.mxu0 0.0
      %5505 = vmatprep.subr.mxu0 0.0
      %5506 = vmatpush1.msra.mxu0 0.0
      %5507 = vmatprep.subr.mxu0 0.0
      %5508 = vmatpush1.msra.mxu0 0.0
      %5509 = vmatprep.subr.mxu0 0.0
      %5510 = vmatpush1.msra.mxu0 0.0
      %5511 = vmatprep.subr.mxu0 0.0
      %5512 = vmatpush1.msra.mxu0 0.0
      %5513 = vmatprep.subr.mxu0 0.0
      %5514 = vmatpush1.msra.mxu0 0.0
      %5515 = vmatprep.subr.mxu0 0.0
      %5516 = vmatpush1.msra.mxu0 0.0
      %5517 = vmatprep.subr.mxu0 0.0
      %5518 = vmatpush1.msra.mxu0 0.0
      %5519 = vmatprep.subr.mxu0 0.0
      %5520 = vmatpush1.msra.mxu0 0.0
      %5521 = vmatprep.subr.mxu0 0.0
      %5522 = vmatpush1.msra.mxu0 0.0
      %5523 = vmatprep.subr.mxu0 0.0
      %5524 = vmatpush1.msra.mxu0 0.0
      %5525 = vmatprep.subr.mxu0 0.0
      %5526 = vmatpush1.msra.mxu0 0.0
      %5527 = vmatprep.subr.mxu0 0.0
      %5528 = vmatpush1.msra.mxu0 0.0
      %5529 = vmatprep.subr.mxu0 0.0
      %5530 = vmatpush1.msra.mxu0 0.0
      %5531 = vmatprep.subr.mxu0 0.0
      %5532 = vmatpush1.msra.mxu0 0.0
      %5533 = vmatprep.subr.mxu0 0.0
      %5534 = vmatpush1.msra.mxu0 0.0
      %5535 = vmatprep.subr.mxu0 0.0
      %5536 = vmatpush1.msra.mxu0 0.0
      %5537 = vmatprep.subr.mxu0 0.0
      %5538 = vmatpush1.msra.mxu0 0.0
      %5539 = vmatprep.subr.mxu0 0.0
      %5540 = vmatpush1.msra.mxu0 0.0
      %5541 = vmatprep.subr.mxu0 0.0
      %5542 = vmatpush1.msra.mxu0 0.0
      %5543 = vmatprep.subr.mxu0 0.0
      %5544 = vmatpush1.msra.mxu0 0.0
      %5545 = vmatprep.subr.mxu0 0.0
      %5546 = vmatpush1.msra.mxu0 0.0
      %5547 = vmatprep.subr.mxu0 0.0
      %5548 = vmatpush1.msra.mxu0 0.0
      %5549 = vmatprep.subr.mxu0 0.0
      %5550 = vmatpush1.msra.mxu0 0.0
      %5551 = vmatprep.subr.mxu0 0.0
      %5552 = vmatpush1.msra.mxu0 0.0
      %5553 = vmatprep.subr.mxu0 0.0
      %5554 = vmatpush1.msra.mxu0 0.0
      %5555 = vmatprep.subr.mxu0 0.0
      %5556 = vmatpush1.msra.mxu0 0.0
      %5557 = vmatprep.subr.mxu0 0.0
      %5558 = vmatpush1.msra.mxu0 0.0
      %5559 = vmatprep.subr.mxu0 0.0
      %5560 = vmatpush1.msra.mxu0 0.0
      %5561 = vmatprep.subr.mxu0 0.0
      %5562 = vmatpush1.msra.mxu0 0.0
      %5563 = vmatprep.subr.mxu0 0.0
      %5564 = vmatpush1.msra.mxu0 0.0
      %5565 = vmatprep.mubr.f32.mxu0 0.0
      %5566 = vmatmul.mubr.f32.gmra.mrb[0].mxu0 %v5141
      %v5567 = vpop.f32.mrb[0].mxu0
      %v5568 = vadd.f32 0.0, %v5567
      %v5569 = vpop.f32.mrb[0].mxu0
      %5570 = vmatprep.mubr.f32.mxu0 0.0
      %5571 = vmatmul.mubr.f32.gmra.mrb[0].mxu0 %v5144
      %v5572 = vpop.f32.mrb[0].mxu0
      %v5573 = vadd.f32 0.0, %v5572
      %v5574 = vpop.f32.mrb[0].mxu0
      %5575 = vmatprep.mubr.f32.mxu0 0.0
      %5576 = vmatmul.mubr.f32.gmra.mrb[0].mxu0 %v5147
      %v5577 = vpop.f32.mrb[0].mxu0
      %v5578 = vadd.f32 0.0, %v5577
      %v5579 = vpop.f32.mrb[0].mxu0
      %5580 = vmatprep.mubr.f32.mxu0 0.0
      %5581 = vmatmul.mubr.f32.gmra.mrb[0].mxu0 %v5150
      %v5582 = vpop.f32.mrb[0].mxu0
      %v5583 = vadd.f32 0.0, %v5582
      %v5584 = vpop.f32.mrb[0].mxu0
      %5585 = vmatprep.mubr.f32.mxu0 0.0
      %5586 = vmatmul.mubr.f32.gmra.mrb[0].mxu0 %v5153
      %v5587 = vpop.f32.mrb[0].mxu0
      %v5588 = vadd.f32 0.0, %v5587
      %v5589 = vpop.f32.mrb[0].mxu0
      %5590 = vmatprep.mubr.f32.mxu0 0.0
      %5591 = vmatmul.mubr.f32.gmra.mrb[0].mxu0 %v5156
      %v5592 = vpop.f32.mrb[0].mxu0
      %v5593 = vadd.f32 0.0, %v5592
      %v5594 = vpop.f32.mrb[0].mxu0
      %5595 = vmatprep.mubr.f32.mxu0 0.0
      %5596 = vmatmul.mubr.f32.gmra.mrb[0].mxu0 %v5159
      %v5597 = vpop.f32.mrb[0].mxu0
      %v5598 = vadd.f32 0.0, %v5597
      %v5599 = vpop.f32.mrb[0].mxu0
      %5600 = vmatprep.mubr.f32.mxu0 0.0
      %5601 = vmatmul.mubr.f32.gmra.mrb[0].mxu0 %v5162
      %v5602 = vpop.f32.mrb[0].mxu0
      %v5603 = vadd.f32 0.0, %v5602
      %v5604 = vpop.f32.mrb[0].mxu0
      %5605 = vmatprep.mubr.f32.mxu0 0.0
      %5606 = vmatmul.mubr.f32.gmra.mrb[0].mxu0 %v5165
      %v5607 = vpop.f32.mrb[0].mxu0
      %v5608 = vadd.f32 0.0, %v5607
      %v5609 = vpop.f32.mrb[0].mxu0
      %5610 = vmatprep.mubr.f32.mxu0 0.0
      %5611 = vmatmul.mubr.f32.gmra.mrb[0].mxu0 %v5168
      %v5612 = vpop.f32.mrb[0].mxu0
      %v5613 = vadd.f32 0.0, %v5612
      %v5614 = vpop.f32.mrb[0].mxu0
      %5615 = vmatprep.mubr.f32.mxu0 0.0
      %5616 = vmatmul.mubr.f32.gmra.mrb[0].mxu0 %v5171
      %v5617 = vpop.f32.mrb[0].mxu0
      %v5618 = vadd.f32 0.0, %v5617
      %v5619 = vpop.f32.mrb[0].mxu0
      %5620 = vmatprep.mubr.f32.mxu0 0.0
      %5621 = vmatmul.mubr.f32.gmra.mrb[0].mxu0 %v5174
      %v5622 = vpop.f32.mrb[0].mxu0
      %v5623 = vadd.f32 0.0, %v5622
      %v5624 = vpop.f32.mrb[0].mxu0
      %5625 = vmatprep.mubr.f32.mxu0 0.0
      %5626 = vmatmul.mubr.f32.gmra.mrb[0].mxu0 %v5177
      %v5627 = vpop.f32.mrb[0].mxu0
      %v5628 = vadd.f32 0.0, %v5627
      %v5629 = vpop.f32.mrb[0].mxu0
      %5630 = vmatprep.mubr.f32.mxu0 0.0
      %5631 = vmatmul.mubr.f32.gmra.mrb[0].mxu0 %v5180
      %v5632 = vpop.f32.mrb[0].mxu0
      %v5633 = vadd.f32 0.0, %v5632
      %v5634 = vpop.f32.mrb[0].mxu0
      %5635 = vmatprep.mubr.f32.mxu0 0.0
      %5636 = vmatmul.mubr.f32.gmra.mrb[0].mxu0 %v5183
      %v5637 = vpop.f32.mrb[0].mxu0
      %v5638 = vadd.f32 0.0, %v5637
      %v5639 = vpop.f32.mrb[0].mxu0
      %5640 = vmatprep.mubr.f32.mxu0 0.0
      %5641 = vmatmul.mubr.f32.gmra.mrb[0].mxu0 %v5186
      %v5642 = vpop.f32.mrb[0].mxu0
      %v5643 = vadd.f32 0.0, %v5642
      %v5644 = vpop.f32.mrb[0].mxu0
      %5645 = vmatprep.mubr.f32.mxu0 0.0
      %5646 = vmatmul.mubr.f32.gmra.mrb[0].mxu0 %v5189
      %v5647 = vpop.f32.mrb[0].mxu0
      %v5648 = vadd.f32 0.0, %v5647
      %v5649 = vpop.f32.mrb[0].mxu0
      %5650 = vmatprep.mubr.f32.mxu0 0.0
      %5651 = vmatmul.mubr.f32.gmra.mrb[0].mxu0 %v5192
      %v5652 = vpop.f32.mrb[0].mxu0
      %v5653 = vadd.f32 0.0, %v5652
      %v5654 = vpop.f32.mrb[0].mxu0
      %5655 = vmatprep.mubr.f32.mxu0 0.0
      %5656 = vmatmul.mubr.f32.gmra.mrb[0].mxu0 %v5195
      %v5657 = vpop.f32.mrb[0].mxu0
      %v5658 = vadd.f32 0.0, %v5657
      %v5659 = vpop.f32.mrb[0].mxu0
      %5660 = vmatprep.mubr.f32.mxu0 0.0
      %5661 = vmatmul.mubr.f32.gmra.mrb[0].mxu0 %v5198
      %v5662 = vpop.f32.mrb[0].mxu0
      %v5663 = vadd.f32 0.0, %v5662
      %v5664 = vpop.f32.mrb[0].mxu0
      %5665 = vmatprep.mubr.f32.mxu0 0.0
      %5666 = vmatmul.mubr.f32.gmra.mrb[0].mxu0 %v5201
      %v5667 = vpop.f32.mrb[0].mxu0
      %v5668 = vadd.f32 0.0, %v5667
      %v5669 = vpop.f32.mrb[0].mxu0
      %5670 = vmatprep.mubr.f32.mxu0 0.0
      %5671 = vmatmul.mubr.f32.gmra.mrb[0].mxu0 %v5204
      %v5672 = vpop.f32.mrb[0].mxu0
      %v5673 = vadd.f32 0.0, %v5672
      %v5674 = vpop.f32.mrb[0].mxu0
      %5675 = vmatprep.mubr.f32.mxu0 0.0
      %5676 = vmatmul.mubr.f32.gmra.mrb[0].mxu0 %v5207
      %v5677 = vpop.f32.mrb[0].mxu0
      %v5678 = vadd.f32 0.0, %v5677
      %v5679 = vpop.f32.mrb[0].mxu0
      %5680 = vmatprep.mubr.f32.mxu0 0.0
      %5681 = vmatmul.mubr.f32.gmra.mrb[0].mxu0 %v5210
      %v5682 = vpop.f32.mrb[0].mxu0
      %v5683 = vadd.f32 0.0, %v5682
      %v5684 = vpop.f32.mrb[0].mxu0
      %5685 = vmatprep.mubr.f32.mxu0 0.0
      %5686 = vmatmul.mubr.f32.gmra.mrb[0].mxu0 %v5213
      %v5687 = vpop.f32.mrb[0].mxu0
      %v5688 = vadd.f32 0.0, %v5687
      %v5689 = vpop.f32.mrb[0].mxu0
      %5690 = vmatprep.mubr.f32.mxu0 0.0
      %5691 = vmatmul.mubr.f32.gmra.mrb[0].mxu0 %v5216
      %v5692 = vpop.f32.mrb[0].mxu0
      %v5693 = vadd.f32 0.0, %v5692
      %v5694 = vpop.f32.mrb[0].mxu0
      %5695 = vmatprep.mubr.f32.mxu0 0.0
      %5696 = vmatmul.mubr.f32.gmra.mrb[0].mxu0 %v5219
      %v5697 = vpop.f32.mrb[0].mxu0
      %v5698 = vadd.f32 0.0, %v5697
      %v5699 = vpop.f32.mrb[0].mxu0
      %5700 = vmatprep.mubr.f32.mxu0 0.0
      %5701 = vmatmul.mubr.f32.gmra.mrb[0].mxu0 %v5222
      %v5702 = vpop.f32.mrb[0].mxu0
      %v5703 = vadd.f32 0.0, %v5702
      %v5704 = vpop.f32.mrb[0].mxu0
      %5705 = vmatprep.mubr.f32.mxu0 0.0
      %5706 = vmatmul.mubr.f32.gmra.mrb[0].mxu0 %v5225
      %v5707 = vpop.f32.mrb[0].mxu0
      %v5708 = vadd.f32 0.0, %v5707
      %v5709 = vpop.f32.mrb[0].mxu0
      %5710 = vmatprep.mubr.f32.mxu0 0.0
      %5711 = vmatmul.mubr.f32.gmra.mrb[0].mxu0 %v5228
      %v5712 = vpop.f32.mrb[0].mxu0
      %v5713 = vadd.f32 0.0, %v5712
      %v5714 = vpop.f32.mrb[0].mxu0
      %5715 = vmatprep.mubr.f32.mxu0 0.0
      %5716 = vmatmul.mubr.f32.gmra.mrb[0].mxu0 %v5493
      %v5717 = vpop.f32.mrb[0].mxu0
      %v5718 = vadd.f32 0.0, %v5717
      %v5719 = vpop.f32.mrb[0].mxu0
      %5720 = vmatprep.mubr.f32.mxu0 0.0
      %5721 = vmatmul.mubr.f32.gmra.mrb[0].mxu0 %v5496
      %v5722 = vpop.f32.mrb[0].mxu0
      %v5723 = vadd.f32 0.0, %v5722
      %v5724 = vpop.f32.mrb[0].mxu0
      %5725 = vdwg.mxu0
      %v5726 = vadd.f32 %v5458, %v5568
      %v5727 = vadd.f32 %v5459, %v5573
      %v5728 = vadd.f32 %v5460, %v5578
      %v5729 = vadd.f32 %v5461, %v5583
      %v5730 = vadd.f32 %v5462, %v5588
      %v5731 = vadd.f32 %v5463, %v5593
      %v5732 = vadd.f32 %v5464, %v5598
      %v5733 = vadd.f32 %v5465, %v5603
      %v5734 = vadd.f32 %v5466, %v5608
      %v5735 = vadd.f32 %v5467, %v5613
      %v5736 = vadd.f32 %v5468, %v5618
      %v5737 = vadd.f32 %v5469, %v5623
      %v5738 = vadd.f32 %v5470, %v5628
      %v5739 = vadd.f32 %v5471, %v5633
      %v5740 = vadd.f32 %v5472, %v5638
      %v5741 = vadd.f32 %v5473, %v5643
      %v5742 = vadd.f32 %v5474, %v5648
      %v5743 = vadd.f32 %v5475, %v5653
      %v5744 = vadd.f32 %v5476, %v5658
      %v5745 = vadd.f32 %v5477, %v5663
      %v5746 = vadd.f32 %v5478, %v5668
      %v5747 = vadd.f32 %v5479, %v5673
      %v5748 = vadd.f32 %v5480, %v5678
      %v5749 = vadd.f32 %v5481, %v5683
      %v5750 = vadd.f32 %v5482, %v5688
      %v5751 = vadd.f32 %v5483, %v5693
      %v5752 = vadd.f32 %v5484, %v5698
      %v5753 = vadd.f32 %v5485, %v5703
      %v5754 = vadd.f32 %v5486, %v5708
      %v5755 = vadd.f32 %v5487, %v5713
      %v5756 = vadd.f32 %v5488, %v5718
      %v5757 = vadd.f32 %v5489, %v5723
      %s5758 = scalar_lea.vmem %s3, 32
      %v5759 = vld [vmem:[%s5758] sm:$0xf]
      %v5761 = vsel %vm257, %v5130, 0
      %v5764 = vsel %vm257, %v5131, 0
      %v5767 = vsel %vm354, %v5759, 0
      %5769 = vmatprep.subr.mxu0 0.0
      %5770 = vmatpush1.msra.mxu0 %v5767
      %5771 = vmatprep.subr.mxu0 0.0
      %5772 = vmatpush1.msra.mxu0 0.0
      %5773 = vmatprep.subr.mxu0 0.0
      %5774 = vmatpush1.msra.mxu0 0.0
      %5775 = vmatprep.subr.mxu0 0.0
      %5776 = vmatpush1.msra.mxu0 0.0
      %5777 = vmatprep.subr.mxu0 0.0
      %5778 = vmatpush1.msra.mxu0 0.0
      %5779 = vmatprep.subr.mxu0 0.0
      %5780 = vmatpush1.msra.mxu0 0.0
      %5781 = vmatprep.subr.mxu0 0.0
      %5782 = vmatpush1.msra.mxu0 0.0
      %5783 = vmatprep.subr.mxu0 0.0
      %5784 = vmatpush1.msra.mxu0 0.0
      %5785 = vmatprep.subr.mxu0 0.0
      %5786 = vmatpush1.msra.mxu0 0.0
      %5787 = vmatprep.subr.mxu0 0.0
      %5788 = vmatpush1.msra.mxu0 0.0
      %5789 = vmatprep.subr.mxu0 0.0
      %5790 = vmatpush1.msra.mxu0 0.0
      %5791 = vmatprep.subr.mxu0 0.0
      %5792 = vmatpush1.msra.mxu0 0.0
      %5793 = vmatprep.subr.mxu0 0.0
      %5794 = vmatpush1.msra.mxu0 0.0
      %5795 = vmatprep.subr.mxu0 0.0
      %5796 = vmatpush1.msra.mxu0 0.0
      %5797 = vmatprep.subr.mxu0 0.0
      %5798 = vmatpush1.msra.mxu0 0.0
      %5799 = vmatprep.subr.mxu0 0.0
      %5800 = vmatpush1.msra.mxu0 0.0
      %5801 = vmatprep.subr.mxu0 0.0
      %5802 = vmatpush1.msra.mxu0 0.0
      %5803 = vmatprep.subr.mxu0 0.0
      %5804 = vmatpush1.msra.mxu0 0.0
      %5805 = vmatprep.subr.mxu0 0.0
      %5806 = vmatpush1.msra.mxu0 0.0
      %5807 = vmatprep.subr.mxu0 0.0
      %5808 = vmatpush1.msra.mxu0 0.0
      %5809 = vmatprep.subr.mxu0 0.0
      %5810 = vmatpush1.msra.mxu0 0.0
      %5811 = vmatprep.subr.mxu0 0.0
      %5812 = vmatpush1.msra.mxu0 0.0
      %5813 = vmatprep.subr.mxu0 0.0
      %5814 = vmatpush1.msra.mxu0 0.0
      %5815 = vmatprep.subr.mxu0 0.0
      %5816 = vmatpush1.msra.mxu0 0.0
      %5817 = vmatprep.subr.mxu0 0.0
      %5818 = vmatpush1.msra.mxu0 0.0
      %5819 = vmatprep.subr.mxu0 0.0
      %5820 = vmatpush1.msra.mxu0 0.0
      %5821 = vmatprep.subr.mxu0 0.0
      %5822 = vmatpush1.msra.mxu0 0.0
      %5823 = vmatprep.subr.mxu0 0.0
      %5824 = vmatpush1.msra.mxu0 0.0
      %5825 = vmatprep.subr.mxu0 0.0
      %5826 = vmatpush1.msra.mxu0 0.0
      %5827 = vmatprep.subr.mxu0 0.0
      %5828 = vmatpush1.msra.mxu0 0.0
      %5829 = vmatprep.subr.mxu0 0.0
      %5830 = vmatpush1.msra.mxu0 0.0
      %5831 = vmatprep.subr.mxu0 0.0
      %5832 = vmatpush1.msra.mxu0 0.0
      %5833 = vmatprep.mubr.f32.mxu0 0.0
      %5834 = vmatmul.mubr.f32.gmra.mrb[0].mxu0 %v5147
      %v5835 = vpop.f32.mrb[0].mxu0
      %v5836 = vadd.f32 0.0, %v5835
      %v5837 = vpop.f32.mrb[0].mxu0
      %5838 = vmatprep.mubr.f32.mxu0 0.0
      %5839 = vmatmul.mubr.f32.gmra.mrb[0].mxu0 %v5150
      %v5840 = vpop.f32.mrb[0].mxu0
      %v5841 = vadd.f32 0.0, %v5840
      %v5842 = vpop.f32.mrb[0].mxu0
      %5843 = vmatprep.mubr.f32.mxu0 0.0
      %5844 = vmatmul.mubr.f32.gmra.mrb[0].mxu0 %v5153
      %v5845 = vpop.f32.mrb[0].mxu0
      %v5846 = vadd.f32 0.0, %v5845
      %v5847 = vpop.f32.mrb[0].mxu0
      %5848 = vmatprep.mubr.f32.mxu0 0.0
      %5849 = vmatmul.mubr.f32.gmra.mrb[0].mxu0 %v5156
      %v5850 = vpop.f32.mrb[0].mxu0
      %v5851 = vadd.f32 0.0, %v5850
      %v5852 = vpop.f32.mrb[0].mxu0
      %5853 = vmatprep.mubr.f32.mxu0 0.0
      %5854 = vmatmul.mubr.f32.gmra.mrb[0].mxu0 %v5159
      %v5855 = vpop.f32.mrb[0].mxu0
      %v5856 = vadd.f32 0.0, %v5855
      %v5857 = vpop.f32.mrb[0].mxu0
      %5858 = vmatprep.mubr.f32.mxu0 0.0
      %5859 = vmatmul.mubr.f32.gmra.mrb[0].mxu0 %v5162
      %v5860 = vpop.f32.mrb[0].mxu0
      %v5861 = vadd.f32 0.0, %v5860
      %v5862 = vpop.f32.mrb[0].mxu0
      %5863 = vmatprep.mubr.f32.mxu0 0.0
      %5864 = vmatmul.mubr.f32.gmra.mrb[0].mxu0 %v5165
      %v5865 = vpop.f32.mrb[0].mxu0
      %v5866 = vadd.f32 0.0, %v5865
      %v5867 = vpop.f32.mrb[0].mxu0
      %5868 = vmatprep.mubr.f32.mxu0 0.0
      %5869 = vmatmul.mubr.f32.gmra.mrb[0].mxu0 %v5168
      %v5870 = vpop.f32.mrb[0].mxu0
      %v5871 = vadd.f32 0.0, %v5870
      %v5872 = vpop.f32.mrb[0].mxu0
      %5873 = vmatprep.mubr.f32.mxu0 0.0
      %5874 = vmatmul.mubr.f32.gmra.mrb[0].mxu0 %v5171
      %v5875 = vpop.f32.mrb[0].mxu0
      %v5876 = vadd.f32 0.0, %v5875
      %v5877 = vpop.f32.mrb[0].mxu0
      %5878 = vmatprep.mubr.f32.mxu0 0.0
      %5879 = vmatmul.mubr.f32.gmra.mrb[0].mxu0 %v5174
      %v5880 = vpop.f32.mrb[0].mxu0
      %v5881 = vadd.f32 0.0, %v5880
      %v5882 = vpop.f32.mrb[0].mxu0
      %5883 = vmatprep.mubr.f32.mxu0 0.0
      %5884 = vmatmul.mubr.f32.gmra.mrb[0].mxu0 %v5177
      %v5885 = vpop.f32.mrb[0].mxu0
      %v5886 = vadd.f32 0.0, %v5885
      %v5887 = vpop.f32.mrb[0].mxu0
      %5888 = vmatprep.mubr.f32.mxu0 0.0
      %5889 = vmatmul.mubr.f32.gmra.mrb[0].mxu0 %v5180
      %v5890 = vpop.f32.mrb[0].mxu0
      %v5891 = vadd.f32 0.0, %v5890
      %v5892 = vpop.f32.mrb[0].mxu0
      %5893 = vmatprep.mubr.f32.mxu0 0.0
      %5894 = vmatmul.mubr.f32.gmra.mrb[0].mxu0 %v5183
      %v5895 = vpop.f32.mrb[0].mxu0
      %v5896 = vadd.f32 0.0, %v5895
      %v5897 = vpop.f32.mrb[0].mxu0
      %5898 = vmatprep.mubr.f32.mxu0 0.0
      %5899 = vmatmul.mubr.f32.gmra.mrb[0].mxu0 %v5186
      %v5900 = vpop.f32.mrb[0].mxu0
      %v5901 = vadd.f32 0.0, %v5900
      %v5902 = vpop.f32.mrb[0].mxu0
      %5903 = vmatprep.mubr.f32.mxu0 0.0
      %5904 = vmatmul.mubr.f32.gmra.mrb[0].mxu0 %v5189
      %v5905 = vpop.f32.mrb[0].mxu0
      %v5906 = vadd.f32 0.0, %v5905
      %v5907 = vpop.f32.mrb[0].mxu0
      %5908 = vmatprep.mubr.f32.mxu0 0.0
      %5909 = vmatmul.mubr.f32.gmra.mrb[0].mxu0 %v5192
      %v5910 = vpop.f32.mrb[0].mxu0
      %v5911 = vadd.f32 0.0, %v5910
      %v5912 = vpop.f32.mrb[0].mxu0
      %5913 = vmatprep.mubr.f32.mxu0 0.0
      %5914 = vmatmul.mubr.f32.gmra.mrb[0].mxu0 %v5195
      %v5915 = vpop.f32.mrb[0].mxu0
      %v5916 = vadd.f32 0.0, %v5915
      %v5917 = vpop.f32.mrb[0].mxu0
      %5918 = vmatprep.mubr.f32.mxu0 0.0
      %5919 = vmatmul.mubr.f32.gmra.mrb[0].mxu0 %v5198
      %v5920 = vpop.f32.mrb[0].mxu0
      %v5921 = vadd.f32 0.0, %v5920
      %v5922 = vpop.f32.mrb[0].mxu0
      %5923 = vmatprep.mubr.f32.mxu0 0.0
      %5924 = vmatmul.mubr.f32.gmra.mrb[0].mxu0 %v5201
      %v5925 = vpop.f32.mrb[0].mxu0
      %v5926 = vadd.f32 0.0, %v5925
      %v5927 = vpop.f32.mrb[0].mxu0
      %5928 = vmatprep.mubr.f32.mxu0 0.0
      %5929 = vmatmul.mubr.f32.gmra.mrb[0].mxu0 %v5204
      %v5930 = vpop.f32.mrb[0].mxu0
      %v5931 = vadd.f32 0.0, %v5930
      %v5932 = vpop.f32.mrb[0].mxu0
      %5933 = vmatprep.mubr.f32.mxu0 0.0
      %5934 = vmatmul.mubr.f32.gmra.mrb[0].mxu0 %v5207
      %v5935 = vpop.f32.mrb[0].mxu0
      %v5936 = vadd.f32 0.0, %v5935
      %v5937 = vpop.f32.mrb[0].mxu0
      %5938 = vmatprep.mubr.f32.mxu0 0.0
      %5939 = vmatmul.mubr.f32.gmra.mrb[0].mxu0 %v5210
      %v5940 = vpop.f32.mrb[0].mxu0
      %v5941 = vadd.f32 0.0, %v5940
      %v5942 = vpop.f32.mrb[0].mxu0
      %5943 = vmatprep.mubr.f32.mxu0 0.0
      %5944 = vmatmul.mubr.f32.gmra.mrb[0].mxu0 %v5213
      %v5945 = vpop.f32.mrb[0].mxu0
      %v5946 = vadd.f32 0.0, %v5945
      %v5947 = vpop.f32.mrb[0].mxu0
      %5948 = vmatprep.mubr.f32.mxu0 0.0
      %5949 = vmatmul.mubr.f32.gmra.mrb[0].mxu0 %v5216
      %v5950 = vpop.f32.mrb[0].mxu0
      %v5951 = vadd.f32 0.0, %v5950
      %v5952 = vpop.f32.mrb[0].mxu0
      %5953 = vmatprep.mubr.f32.mxu0 0.0
      %5954 = vmatmul.mubr.f32.gmra.mrb[0].mxu0 %v5219
      %v5955 = vpop.f32.mrb[0].mxu0
      %v5956 = vadd.f32 0.0, %v5955
      %v5957 = vpop.f32.mrb[0].mxu0
      %5958 = vmatprep.mubr.f32.mxu0 0.0
      %5959 = vmatmul.mubr.f32.gmra.mrb[0].mxu0 %v5222
      %v5960 = vpop.f32.mrb[0].mxu0
      %v5961 = vadd.f32 0.0, %v5960
      %v5962 = vpop.f32.mrb[0].mxu0
      %5963 = vmatprep.mubr.f32.mxu0 0.0
      %5964 = vmatmul.mubr.f32.gmra.mrb[0].mxu0 %v5225
      %v5965 = vpop.f32.mrb[0].mxu0
      %v5966 = vadd.f32 0.0, %v5965
      %v5967 = vpop.f32.mrb[0].mxu0
      %5968 = vmatprep.mubr.f32.mxu0 0.0
      %5969 = vmatmul.mubr.f32.gmra.mrb[0].mxu0 %v5228
      %v5970 = vpop.f32.mrb[0].mxu0
      %v5971 = vadd.f32 0.0, %v5970
      %v5972 = vpop.f32.mrb[0].mxu0
      %5973 = vmatprep.mubr.f32.mxu0 0.0
      %5974 = vmatmul.mubr.f32.gmra.mrb[0].mxu0 %v5493
      %v5975 = vpop.f32.mrb[0].mxu0
      %v5976 = vadd.f32 0.0, %v5975
      %v5977 = vpop.f32.mrb[0].mxu0
      %5978 = vmatprep.mubr.f32.mxu0 0.0
      %5979 = vmatmul.mubr.f32.gmra.mrb[0].mxu0 %v5496
      %v5980 = vpop.f32.mrb[0].mxu0
      %v5981 = vadd.f32 0.0, %v5980
      %v5982 = vpop.f32.mrb[0].mxu0
      %5983 = vmatprep.mubr.f32.mxu0 0.0
      %5984 = vmatmul.mubr.f32.gmra.mrb[0].mxu0 %v5761
      %v5985 = vpop.f32.mrb[0].mxu0
      %v5986 = vadd.f32 0.0, %v5985
      %v5987 = vpop.f32.mrb[0].mxu0
      %5988 = vmatprep.mubr.f32.mxu0 0.0
      %5989 = vmatmul.mubr.f32.gmra.mrb[0].mxu0 %v5764
      %v5990 = vpop.f32.mrb[0].mxu0
      %v5991 = vadd.f32 0.0, %v5990
      %v5992 = vpop.f32.mrb[0].mxu0
      %5993 = vdwg.mxu0
      %v5994 = vadd.f32 %v5726, %v5836
      %v5995 = vadd.f32 %v5727, %v5841
      %v5996 = vadd.f32 %v5728, %v5846
      %v5997 = vadd.f32 %v5729, %v5851
      %v5998 = vadd.f32 %v5730, %v5856
      %v5999 = vadd.f32 %v5731, %v5861
      %v6000 = vadd.f32 %v5732, %v5866
      %v6001 = vadd.f32 %v5733, %v5871
      %v6002 = vadd.f32 %v5734, %v5876
      %v6003 = vadd.f32 %v5735, %v5881
      %v6004 = vadd.f32 %v5736, %v5886
      %v6005 = vadd.f32 %v5737, %v5891
      %v6006 = vadd.f32 %v5738, %v5896
      %v6007 = vadd.f32 %v5739, %v5901
      %v6008 = vadd.f32 %v5740, %v5906
      %v6009 = vadd.f32 %v5741, %v5911
      %v6010 = vadd.f32 %v5742, %v5916
      %v6011 = vadd.f32 %v5743, %v5921
      %v6012 = vadd.f32 %v5744, %v5926
      %v6013 = vadd.f32 %v5745, %v5931
      %v6014 = vadd.f32 %v5746, %v5936
      %v6015 = vadd.f32 %v5747, %v5941
      %v6016 = vadd.f32 %v5748, %v5946
      %v6017 = vadd.f32 %v5749, %v5951
      %v6018 = vadd.f32 %v5750, %v5956
      %v6019 = vadd.f32 %v5751, %v5961
      %v6020 = vadd.f32 %v5752, %v5966
      %v6021 = vadd.f32 %v5753, %v5971
      %v6022 = vadd.f32 %v5754, %v5976
      %v6023 = vadd.f32 %v5755, %v5981
      %v6024 = vadd.f32 %v5756, %v5986
      %v6025 = vadd.f32 %v5757, %v5991
      %v6026 = vsel %vm257, %v5994, 0.0
      %v6027 = vsel %vm257, %v5995, 0.0
      %v6028 = vadd.f32 %v6026, %v6027
      %v6029 = vsel %vm257, %v5996, 0.0
      %v6030 = vadd.f32 %v6028, %v6029
      %v6031 = vsel %vm257, %v5997, 0.0
      %v6032 = vadd.f32 %v6030, %v6031
      %v6033 = vsel %vm257, %v5998, 0.0
      %v6034 = vadd.f32 %v6032, %v6033
      %v6035 = vsel %vm257, %v5999, 0.0
      %v6036 = vadd.f32 %v6034, %v6035
      %v6037 = vsel %vm257, %v6000, 0.0
      %v6038 = vadd.f32 %v6036, %v6037
      %v6039 = vsel %vm257, %v6001, 0.0
      %v6040 = vadd.f32 %v6038, %v6039
      %v6041 = vsel %vm257, %v6002, 0.0
      %v6042 = vadd.f32 %v6040, %v6041
      %v6043 = vsel %vm257, %v6003, 0.0
      %v6044 = vadd.f32 %v6042, %v6043
      %v6045 = vsel %vm257, %v6004, 0.0
      %v6046 = vadd.f32 %v6044, %v6045
      %v6047 = vsel %vm257, %v6005, 0.0
      %v6048 = vadd.f32 %v6046, %v6047
      %v6049 = vsel %vm257, %v6006, 0.0
      %v6050 = vadd.f32 %v6048, %v6049
      %v6051 = vsel %vm257, %v6007, 0.0
      %v6052 = vadd.f32 %v6050, %v6051
      %v6053 = vsel %vm257, %v6008, 0.0
      %v6054 = vadd.f32 %v6052, %v6053
      %v6055 = vsel %vm257, %v6009, 0.0
      %v6056 = vadd.f32 %v6054, %v6055
      %v6057 = vsel %vm257, %v6010, 0.0
      %v6058 = vadd.f32 %v6056, %v6057
      %v6059 = vsel %vm257, %v6011, 0.0
      %v6060 = vadd.f32 %v6058, %v6059
      %v6061 = vsel %vm257, %v6012, 0.0
      %v6062 = vadd.f32 %v6060, %v6061
      %v6063 = vsel %vm257, %v6013, 0.0
      %v6064 = vadd.f32 %v6062, %v6063
      %v6065 = vsel %vm257, %v6014, 0.0
      %v6066 = vadd.f32 %v6064, %v6065
      %v6067 = vsel %vm257, %v6015, 0.0
      %v6068 = vadd.f32 %v6066, %v6067
      %v6069 = vsel %vm257, %v6016, 0.0
      %v6070 = vadd.f32 %v6068, %v6069
      %v6071 = vsel %vm257, %v6017, 0.0
      %v6072 = vadd.f32 %v6070, %v6071
      %v6073 = vsel %vm257, %v6018, 0.0
      %v6074 = vadd.f32 %v6072, %v6073
      %v6075 = vsel %vm257, %v6019, 0.0
      %v6076 = vadd.f32 %v6074, %v6075
      %v6077 = vsel %vm257, %v6020, 0.0
      %v6078 = vadd.f32 %v6076, %v6077
      %v6079 = vsel %vm257, %v6021, 0.0
      %v6080 = vadd.f32 %v6078, %v6079
      %v6081 = vsel %vm257, %v6022, 0.0
      %v6082 = vadd.f32 %v6080, %v6081
      %v6083 = vsel %vm257, %v6023, 0.0
      %v6084 = vadd.f32 %v6082, %v6083
      %v6085 = vsel %vm257, %v6024, 0.0
      %v6086 = vadd.f32 %v6084, %v6085
      %v6087 = vsel %vm257, %v6025, 0.0
      %v6088 = vadd.f32 %v6086, %v6087
      %v6089 = vrot.slane %v6088, 4
      %v6090 = vadd.f32 %v6088, %v6089
      %v6091 = vrot.slane %v6090, 2
      %v6092 = vadd.f32 %v6090, %v6091
      %v6093 = vrot.slane %v6092, 1
      %v6094 = vadd.f32 %v6092, %v6093
      %v6095 = vmul.f32 %v5994, %v5994
      %v6096 = vmul.f32 %v5995, %v5995
      %v6097 = vmul.f32 %v5996, %v5996
      %v6098 = vmul.f32 %v5997, %v5997
      %v6099 = vmul.f32 %v5998, %v5998
      %v6100 = vmul.f32 %v5999, %v5999
      %v6101 = vmul.f32 %v6000, %v6000
      %v6102 = vmul.f32 %v6001, %v6001
      %v6103 = vmul.f32 %v6002, %v6002
      %v6104 = vmul.f32 %v6003, %v6003
      %v6105 = vmul.f32 %v6004, %v6004
      %v6106 = vmul.f32 %v6005, %v6005
      %v6107 = vmul.f32 %v6006, %v6006
      %v6108 = vmul.f32 %v6007, %v6007
      %v6109 = vmul.f32 %v6008, %v6008
      %v6110 = vmul.f32 %v6009, %v6009
      %v6111 = vmul.f32 %v6010, %v6010
      %v6112 = vmul.f32 %v6011, %v6011
      %v6113 = vmul.f32 %v6012, %v6012
      %v6114 = vmul.f32 %v6013, %v6013
      %v6115 = vmul.f32 %v6014, %v6014
      %v6116 = vmul.f32 %v6015, %v6015
      %v6117 = vmul.f32 %v6016, %v6016
      %v6118 = vmul.f32 %v6017, %v6017
      %v6119 = vmul.f32 %v6018, %v6018
      %v6120 = vmul.f32 %v6019, %v6019
      %v6121 = vmul.f32 %v6020, %v6020
      %v6122 = vmul.f32 %v6021, %v6021
      %v6123 = vmul.f32 %v6022, %v6022
      %v6124 = vmul.f32 %v6023, %v6023
      %v6125 = vmul.f32 %v6024, %v6024
      %v6126 = vmul.f32 %v6025, %v6025
      %v6127 = vsel %vm257, %v6095, 0.0
      %v6128 = vsel %vm257, %v6096, 0.0
      %v6129 = vadd.f32 %v6127, %v6128
      %v6130 = vsel %vm257, %v6097, 0.0
      %v6131 = vadd.f32 %v6129, %v6130
      %v6132 = vsel %vm257, %v6098, 0.0
      %v6133 = vadd.f32 %v6131, %v6132
      %v6134 = vsel %vm257, %v6099, 0.0
      %v6135 = vadd.f32 %v6133, %v6134
      %v6136 = vsel %vm257, %v6100, 0.0
      %v6137 = vadd.f32 %v6135, %v6136
      %v6138 = vsel %vm257, %v6101, 0.0
      %v6139 = vadd.f32 %v6137, %v6138
      %v6140 = vsel %vm257, %v6102, 0.0
      %v6141 = vadd.f32 %v6139, %v6140
      %v6142 = vsel %vm257, %v6103, 0.0
      %v6143 = vadd.f32 %v6141, %v6142
      %v6144 = vsel %vm257, %v6104, 0.0
      %v6145 = vadd.f32 %v6143, %v6144
      %v6146 = vsel %vm257, %v6105, 0.0
      %v6147 = vadd.f32 %v6145, %v6146
      %v6148 = vsel %vm257, %v6106, 0.0
      %v6149 = vadd.f32 %v6147, %v6148
      %v6150 = vsel %vm257, %v6107, 0.0
      %v6151 = vadd.f32 %v6149, %v6150
      %v6152 = vsel %vm257, %v6108, 0.0
      %v6153 = vadd.f32 %v6151, %v6152
      %v6154 = vsel %vm257, %v6109, 0.0
      %v6155 = vadd.f32 %v6153, %v6154
      %v6156 = vsel %vm257, %v6110, 0.0
      %v6157 = vadd.f32 %v6155, %v6156
      %v6158 = vsel %vm257, %v6111, 0.0
      %v6159 = vadd.f32 %v6157, %v6158
      %v6160 = vsel %vm257, %v6112, 0.0
      %v6161 = vadd.f32 %v6159, %v6160
      %v6162 = vsel %vm257, %v6113, 0.0
      %v6163 = vadd.f32 %v6161, %v6162
      %v6164 = vsel %vm257, %v6114, 0.0
      %v6165 = vadd.f32 %v6163, %v6164
      %v6166 = vsel %vm257, %v6115, 0.0
      %v6167 = vadd.f32 %v6165, %v6166
      %v6168 = vsel %vm257, %v6116, 0.0
      %v6169 = vadd.f32 %v6167, %v6168
      %v6170 = vsel %vm257, %v6117, 0.0
      %v6171 = vadd.f32 %v6169, %v6170
      %v6172 = vsel %vm257, %v6118, 0.0
      %v6173 = vadd.f32 %v6171, %v6172
      %v6174 = vsel %vm257, %v6119, 0.0
      %v6175 = vadd.f32 %v6173, %v6174
      %v6176 = vsel %vm257, %v6120, 0.0
      %v6177 = vadd.f32 %v6175, %v6176
      %v6178 = vsel %vm257, %v6121, 0.0
      %v6179 = vadd.f32 %v6177, %v6178
      %v6180 = vsel %vm257, %v6122, 0.0
      %v6181 = vadd.f32 %v6179, %v6180
      %v6182 = vsel %vm257, %v6123, 0.0
      %v6183 = vadd.f32 %v6181, %v6182
      %v6184 = vsel %vm257, %v6124, 0.0
      %v6185 = vadd.f32 %v6183, %v6184
      %v6186 = vsel %vm257, %v6125, 0.0
      %v6187 = vadd.f32 %v6185, %v6186
      %v6188 = vsel %vm257, %v6126, 0.0
      %v6189 = vadd.f32 %v6187, %v6188
      %v6190 = vrot.slane %v6189, 4
      %v6191 = vadd.f32 %v6189, %v6190
      %v6192 = vrot.slane %v6191, 2
      %v6193 = vadd.f32 %v6191, %v6192
      %v6194 = vrot.slane %v6193, 1
      %v6195 = vadd.f32 %v6193, %v6194
      %v6196 = vmul.f32 %v6094, 0.00390625
      %v6197 = vmul.f32 %v6195, 0.00390625
      %v6198 = vmul.f32 %v6196, %v6196
      %v6199 = vsub.f32 %v6197, %v6198
      %v6200 = vmax.f32 %v6199, 0.0
      %v6201 = vsub.f32 %v5994, %v6196
      %v6202 = vsub.f32 %v5995, %v6196
      %v6203 = vsub.f32 %v5996, %v6196
      %v6204 = vsub.f32 %v5997, %v6196
      %v6205 = vsub.f32 %v5998, %v6196
      %v6206 = vsub.f32 %v5999, %v6196
      %v6207 = vsub.f32 %v6000, %v6196
      %v6208 = vsub.f32 %v6001, %v6196
      %v6209 = vsub.f32 %v6002, %v6196
      %v6210 = vsub.f32 %v6003, %v6196
      %v6211 = vsub.f32 %v6004, %v6196
      %v6212 = vsub.f32 %v6005, %v6196
      %v6213 = vsub.f32 %v6006, %v6196
      %v6214 = vsub.f32 %v6007, %v6196
      %v6215 = vsub.f32 %v6008, %v6196
      %v6216 = vsub.f32 %v6009, %v6196
      %v6217 = vsub.f32 %v6010, %v6196
      %v6218 = vsub.f32 %v6011, %v6196
      %v6219 = vsub.f32 %v6012, %v6196
      %v6220 = vsub.f32 %v6013, %v6196
      %v6221 = vsub.f32 %v6014, %v6196
      %v6222 = vsub.f32 %v6015, %v6196
      %v6223 = vsub.f32 %v6016, %v6196
      %v6224 = vsub.f32 %v6017, %v6196
      %v6225 = vsub.f32 %v6018, %v6196
      %v6226 = vsub.f32 %v6019, %v6196
      %v6227 = vsub.f32 %v6020, %v6196
      %v6228 = vsub.f32 %v6021, %v6196
      %v6229 = vsub.f32 %v6022, %v6196
      %v6230 = vsub.f32 %v6023, %v6196
      %v6231 = vsub.f32 %v6024, %v6196
      %v6232 = vsub.f32 %v6025, %v6196
      %v6233 = vadd.f32 %v6200, 1e-05
      %v6234 = vrsqrt.pop %v6233
      %v6235 = vmul.f32 %v6201, %v6234
      %v6236 = vmul.f32 %v6202, %v6234
      %v6237 = vmul.f32 %v6203, %v6234
      %v6238 = vmul.f32 %v6204, %v6234
      %v6239 = vmul.f32 %v6205, %v6234
      %v6240 = vmul.f32 %v6206, %v6234
      %v6241 = vmul.f32 %v6207, %v6234
      %v6242 = vmul.f32 %v6208, %v6234
      %v6243 = vmul.f32 %v6209, %v6234
      %v6244 = vmul.f32 %v6210, %v6234
      %v6245 = vmul.f32 %v6211, %v6234
      %v6246 = vmul.f32 %v6212, %v6234
      %v6247 = vmul.f32 %v6213, %v6234
      %v6248 = vmul.f32 %v6214, %v6234
      %v6249 = vmul.f32 %v6215, %v6234
      %v6250 = vmul.f32 %v6216, %v6234
      %v6251 = vmul.f32 %v6217, %v6234
      %v6252 = vmul.f32 %v6218, %v6234
      %v6253 = vmul.f32 %v6219, %v6234
      %v6254 = vmul.f32 %v6220, %v6234
      %v6255 = vmul.f32 %v6221, %v6234
      %v6256 = vmul.f32 %v6222, %v6234
      %v6257 = vmul.f32 %v6223, %v6234
      %v6258 = vmul.f32 %v6224, %v6234
      %v6259 = vmul.f32 %v6225, %v6234
      %v6260 = vmul.f32 %v6226, %v6234
      %v6261 = vmul.f32 %v6227, %v6234
      %v6262 = vmul.f32 %v6228, %v6234
      %v6263 = vmul.f32 %v6229, %v6234
      %v6264 = vmul.f32 %v6230, %v6234
      %v6265 = vmul.f32 %v6231, %v6234
      %v6266 = vmul.f32 %v6232, %v6234
      %v6267 = vld [vmem:[%s212] sm:$0xff]
      %v6268 = vld [vmem:[%s212 + $0x8] sm:$0xff]
      %v6269 = vld [vmem:[%s212 + $0x10] sm:$0xff]
      %v6270 = vld [vmem:[%s212 + $0x18] sm:$0xff]
      %v6271 = vld [vmem:[%s212 + $0x20] sm:$0xff]
      %v6272 = vld [vmem:[%s212 + $0x28] sm:$0xff]
      %v6273 = vld [vmem:[%s212 + $0x30] sm:$0xff]
      %v6274 = vld [vmem:[%s212 + $0x38] sm:$0xff]
      %v6275 = vld [vmem:[%s212 + $0x40] sm:$0xff]
      %v6276 = vld [vmem:[%s212 + $0x48] sm:$0xff]
      %v6277 = vld [vmem:[%s212 + $0x50] sm:$0xff]
      %v6278 = vld [vmem:[%s212 + $0x58] sm:$0xff]
      %v6279 = vld [vmem:[%s212 + $0x60] sm:$0xff]
      %v6280 = vld [vmem:[%s212 + $0x68] sm:$0xff]
      %v6281 = vld [vmem:[%s212 + $0x70] sm:$0xff]
      %v6282 = vld [vmem:[%s212 + $0x78] sm:$0xff]
      %v6283 = vld [vmem:[%s212 + $0x80] sm:$0xff]
      %v6284 = vld [vmem:[%s212 + $0x88] sm:$0xff]
      %v6285 = vld [vmem:[%s212 + $0x90] sm:$0xff]
      %v6286 = vld [vmem:[%s212 + $0x98] sm:$0xff]
      %v6287 = vld [vmem:[%s212 + $0xa0] sm:$0xff]
      %v6288 = vld [vmem:[%s212 + $0xa8] sm:$0xff]
      %v6289 = vld [vmem:[%s212 + $0xb0] sm:$0xff]
      %v6290 = vld [vmem:[%s212 + $0xb8] sm:$0xff]
      %v6291 = vld [vmem:[%s212 + $0xc0] sm:$0xff]
      %v6292 = vld [vmem:[%s212 + $0xc8] sm:$0xff]
      %v6293 = vld [vmem:[%s212 + $0xd0] sm:$0xff]
      %v6294 = vld [vmem:[%s212 + $0xd8] sm:$0xff]
      %v6295 = vld [vmem:[%s212 + $0xe0] sm:$0xff]
      %v6296 = vld [vmem:[%s212 + $0xe8] sm:$0xff]
      %v6297 = vld [vmem:[%s212 + $0xf0] sm:$0xff]
      %v6298 = vld [vmem:[%s212 + $0xf8] sm:$0xff]
      %v6299 = vadd.f32 %v6267, %v6235
      %v6300 = vadd.f32 %v6268, %v6236
      %v6301 = vadd.f32 %v6269, %v6237
      %v6302 = vadd.f32 %v6270, %v6238
      %v6303 = vadd.f32 %v6271, %v6239
      %v6304 = vadd.f32 %v6272, %v6240
      %v6305 = vadd.f32 %v6273, %v6241
      %v6306 = vadd.f32 %v6274, %v6242
      %v6307 = vadd.f32 %v6275, %v6243
      %v6308 = vadd.f32 %v6276, %v6244
      %v6309 = vadd.f32 %v6277, %v6245
      %v6310 = vadd.f32 %v6278, %v6246
      %v6311 = vadd.f32 %v6279, %v6247
      %v6312 = vadd.f32 %v6280, %v6248
      %v6313 = vadd.f32 %v6281, %v6249
      %v6314 = vadd.f32 %v6282, %v6250
      %v6315 = vadd.f32 %v6283, %v6251
      %v6316 = vadd.f32 %v6284, %v6252
      %v6317 = vadd.f32 %v6285, %v6253
      %v6318 = vadd.f32 %v6286, %v6254
      %v6319 = vadd.f32 %v6287, %v6255
      %v6320 = vadd.f32 %v6288, %v6256
      %v6321 = vadd.f32 %v6289, %v6257
      %v6322 = vadd.f32 %v6290, %v6258
      %v6323 = vadd.f32 %v6291, %v6259
      %v6324 = vadd.f32 %v6292, %v6260
      %v6325 = vadd.f32 %v6293, %v6261
      %v6326 = vadd.f32 %v6294, %v6262
      %v6327 = vadd.f32 %v6295, %v6263
      %v6328 = vadd.f32 %v6296, %v6264
      %v6329 = vadd.f32 %v6297, %v6265
      %v6330 = vadd.f32 %v6298, %v6266
      %6331 = vst.msk [vmem:[%s217] sm:$0xff] %vm257, %v6299
      %6332 = vst.msk [vmem:[%s217 + $0x8] sm:$0xff] %vm257, %v6300
      %6333 = vst.msk [vmem:[%s217 + $0x10] sm:$0xff] %vm257, %v6301
      %6334 = vst.msk [vmem:[%s217 + $0x18] sm:$0xff] %vm257, %v6302
      %6335 = vst.msk [vmem:[%s217 + $0x20] sm:$0xff] %vm257, %v6303
      %6336 = vst.msk [vmem:[%s217 + $0x28] sm:$0xff] %vm257, %v6304
      %6337 = vst.msk [vmem:[%s217 + $0x30] sm:$0xff] %vm257, %v6305
      %6338 = vst.msk [vmem:[%s217 + $0x38] sm:$0xff] %vm257, %v6306
      %6339 = vst.msk [vmem:[%s217 + $0x40] sm:$0xff] %vm257, %v6307
      %6340 = vst.msk [vmem:[%s217 + $0x48] sm:$0xff] %vm257, %v6308
      %6341 = vst.msk [vmem:[%s217 + $0x50] sm:$0xff] %vm257, %v6309
      %6342 = vst.msk [vmem:[%s217 + $0x58] sm:$0xff] %vm257, %v6310
      %6343 = vst.msk [vmem:[%s217 + $0x60] sm:$0xff] %vm257, %v6311
      %6344 = vst.msk [vmem:[%s217 + $0x68] sm:$0xff] %vm257, %v6312
      %6345 = vst.msk [vmem:[%s217 + $0x70] sm:$0xff] %vm257, %v6313
      %6346 = vst.msk [vmem:[%s217 + $0x78] sm:$0xff] %vm257, %v6314
      %6347 = vst.msk [vmem:[%s217 + $0x80] sm:$0xff] %vm257, %v6315
      %6348 = vst.msk [vmem:[%s217 + $0x88] sm:$0xff] %vm257, %v6316
      %6349 = vst.msk [vmem:[%s217 + $0x90] sm:$0xff] %vm257, %v6317
      %6350 = vst.msk [vmem:[%s217 + $0x98] sm:$0xff] %vm257, %v6318
      %6351 = vst.msk [vmem:[%s217 + $0xa0] sm:$0xff] %vm257, %v6319
      %6352 = vst.msk [vmem:[%s217 + $0xa8] sm:$0xff] %vm257, %v6320
      %6353 = vst.msk [vmem:[%s217 + $0xb0] sm:$0xff] %vm257, %v6321
      %6354 = vst.msk [vmem:[%s217 + $0xb8] sm:$0xff] %vm257, %v6322
      %6355 = vst.msk [vmem:[%s217 + $0xc0] sm:$0xff] %vm257, %v6323
      %6356 = vst.msk [vmem:[%s217 + $0xc8] sm:$0xff] %vm257, %v6324
      %6357 = vst.msk [vmem:[%s217 + $0xd0] sm:$0xff] %vm257, %v6325
      %6358 = vst.msk [vmem:[%s217 + $0xd8] sm:$0xff] %vm257, %v6326
      %6359 = vst.msk [vmem:[%s217 + $0xe0] sm:$0xff] %vm257, %v6327
      %6360 = vst.msk [vmem:[%s217 + $0xe8] sm:$0xff] %vm257, %v6328
      %6361 = vst.msk [vmem:[%s217 + $0xf0] sm:$0xff] %vm257, %v6329
      %6362 = vst.msk [vmem:[%s217 + $0xf8] sm:$0xff] %vm257, %v6330
      %p6363 = scmp.lt.s32.totalorder %s15, 1
      %s6364 = scalar_select %p6363, %s15, 1
      %s6365 = smul.addr %s6364, 32
      %s6366 = smul.addr %s6365, 8
      %s6367 = scalar_lea.vmem %s4, %s6366
      // Predicated region
      $region37: #{resnet_block_pallas.1} parent=35 // pred_check
        %p6368 = pneg %p127
      $region38: #{resnet_block_pallas.1} parent=35 // pred_check_branch
        %6370 = sbr.rel (%p6368) target = $region40
      $region39: #{resnet_block_pallas.1} parent=35 // pred_region
        _
      $region40: #{resnet_block_pallas.1} parent=35 // pred_fallthru
        _
    $region36: #{resnet_block_pallas.1} parent=5 // pred_fallthru
      _
    %p6371 = scmp.le.s32.totalorder 2, %s10
    // Predicated region
    $region41: #{resnet_block_pallas.1} parent=5 // pred_check
      %p6372 = pneg %p6371
    $region42: #{resnet_block_pallas.1} parent=5 // pred_check_branch
      %6374 = sbr.rel (%p6372) target = $region44
    $region43: #{resnet_block_pallas.1} parent=5 // pred_region
      %s6375 = ssub.s32 %s10, 2
      // Predicated region
      $region45: #{resnet_block_pallas.1} parent=43 // pred_check
        %p6376 = pneg %p133
      $region46: #{resnet_block_pallas.1} parent=43 // pred_check_branch
        %6378 = sbr.rel (%p6376) target = $region48
      $region47: #{resnet_block_pallas.1} parent=43 // pred_region
        %p6379 = scmp.lt.s32.totalorder %s16, 1
        %s6380 = scalar_select %p6379, %s16, 1
        %s6381 = smul.addr %s6380, 32
        %s6382 = smul.addr %s6381, 8
        %s6383 = scalar_lea.vmem %s4, %s6382
      $region48: #{resnet_block_pallas.1} parent=43 // pred_fallthru
        _
    $region44: #{resnet_block_pallas.1} parent=5 // pred_fallthru
      _
  $region6: #{resnet_block_pallas.1} parent=0 // loop_footer
    %s14 = sadd.s32 1, %s10
  $region7: #{resnet_block_pallas.1} parent=0 // loop_footer_branch
    %9 = sbr.rel target = $region3
  $region8: #{resnet_block_pallas.1} parent=0 // loop_exit
    _

</llo_original>
